<compile_context>
chip_gen: v7x
topology: tpu7x:2x2x1
jax: 0.10.0
libtpu: 0.0.40
codegen_flags: <defaults>
</compile_context>

<pallas_src>
import functools

import jax
import jax.numpy as jnp
import numpy as np
from jax.experimental import pallas as pl
from jax.experimental.pallas import tpu as pltpu


# ----------------------------- Call A: conv1 ---------------------------------

def _conv1_kernel(w_ref, p_ref, b_ref, o_ref):
    # (16,100) @ (100, tile_cols) -> lane-dense (16, tile_cols) output.
    acc = jnp.dot(w_ref[...], p_ref[...], preferred_element_type=jnp.float32)
    o_ref[...] = jnp.maximum(acc + b_ref[...], 0.0)


def _round_up(x, m):
    return ((x + m - 1) // m) * m


def conv1_matmul_relu(w1p, patches, bias):
    """relu(w1p @ patches + bias).  w1p (16,100), patches (100,M), bias (16,1)."""
    OC, KKC = w1p.shape
    M = patches.shape[1]
    # Two balanced 128-aligned column tiles (v7x megacore: one per TC; v5e/v6e:
    # two large sequential steps).  Cap keeps 2x(KKC+OC)*tile*4B ~< 6 MiB.
    tile_cols = min(_round_up(pl.cdiv(M, 2), 128), 6144)
    grid = (pl.cdiv(M, tile_cols),)
    return pl.pallas_call(
        _conv1_kernel,
        out_shape=jax.ShapeDtypeStruct((OC, M), jnp.float32),
        grid=grid,
        in_specs=[
            pl.BlockSpec((OC, KKC), lambda j: (0, 0)),
            pl.BlockSpec((KKC, tile_cols), lambda j: (0, j)),
            pl.BlockSpec((OC, 1), lambda j: (0, 0)),
        ],
        out_specs=pl.BlockSpec((OC, tile_cols), lambda j: (0, j)),
        compiler_params=pltpu.CompilerParams(
            dimension_semantics=("parallel",),
            vmem_limit_bytes=32 * 1024 * 1024),
    )(w1p, patches, bias)


# --------------------- Call B: fused conv2 + pool2 + MLP ----------------------

def _tail_kernel(p2t_ref, w2c_ref, b2c_ref, w1_ref, b1_ref, w2_ref, b2_ref,
                 w3_ref, b3_ref, out_ref, h2_ref, *, batch, ow2):
    B = batch
    # conv2 in transposed orientation: (OH2*OW2*B, 1600) @ (1600, 32).
    y2t = jnp.dot(p2t_ref[...], w2c_ref[...], preferred_element_type=jnp.float32)
    y2t = jnp.maximum(y2t + b2c_ref[...], 0.0)          # rows flat (oy, ox, b)

    # 5x5 / stride-5 max pool directly on the flat row axis: sliding-window max
    # over the 25 (dy,dx) taps, then pick the 2x2 pooled positions.
    row = ow2 * B                                        # flat-row stride of oy
    width = 5 * row + 6 * B                              # covers all pooled rows
    m = y2t[0:width, :]
    for dy in range(5):
        for dx in range(5):
            if dy == 0 and dx == 0:
                continue
            off = dy * row + dx * B
            m = jnp.maximum(m, y2t[off:off + width, :])
    # pooled blocks for (p, q) in row-major order -> lane order (p, q, c);
    # the Linear1 weight columns are permuted to match at trace time.
    blocks = [m[(5 * p * row + 5 * q * B):(5 * p * row + 5 * q * B) + B, :]
              for p in range(2) for q in range(2)]
    feat = jnp.maximum(jnp.concatenate(blocks, axis=1), 0.0)      # (B, 128)

    h1 = jnp.maximum(
        jnp.dot(feat, w1_ref[...], preferred_element_type=jnp.float32)
        + b1_ref[...], 0.0)                                       # (B, 500)
    h2 = jnp.maximum(
        jnp.dot(h1, w2_ref[...], preferred_element_type=jnp.float32)
        + b2_ref[...], 0.0)                                       # (B, 30)
    out = (jnp.dot(h2, w3_ref[...], preferred_element_type=jnp.float32)
           + b3_ref[...])                                         # (B, 6)
    out_ref[...] = out
    h2_ref[...] = h2


def tail_fused(p2t, p, batch, ow2):
    w2c = p["conv2_w"].transpose(0, 2, 3, 1).reshape(32, -1).T    # (1600, 32)
    b2c = p["conv2_b"].reshape(1, 32)
    # PyTorch flatten order is f = c*4 + p*2 + q; the kernel emits f' =
    # (p*2+q)*32 + c, so permute the Linear1 weight columns once (free, XLA).
    w1 = p["lin1_w"].reshape(500, 32, 4).transpose(0, 2, 1).reshape(500, 128)
    w1t = w1.T                                                    # (128, 500)
    b1 = p["lin1_b"].reshape(1, 500)
    w2t = p["lin2_w"].T                                           # (500, 30)
    b2 = p["lin2_b"].reshape(1, 30)
    w3t = p["out_w"].T                                            # (30, 6)
    b3 = p["out_b"].reshape(1, 6)

    args = (p2t, w2c, b2c, w1t, b1, w2t, b2, w3t, b3)
    in_specs = [pl.BlockSpec(a.shape, lambda i: (0, 0)) for a in args]
    out, h2 = pl.pallas_call(
        functools.partial(_tail_kernel, batch=batch, ow2=ow2),
        out_shape=(jax.ShapeDtypeStruct((batch, 6), jnp.float32),
                   jax.ShapeDtypeStruct((batch, 30), jnp.float32)),
        grid=(1,),
        in_specs=in_specs,
        out_specs=(pl.BlockSpec((batch, 6), lambda i: (0, 0)),
                   pl.BlockSpec((batch, 30), lambda i: (0, 0))),
    )(*args)
    return out, h2


# --------------------------- XLA layout glue ---------------------------------

def im2col_chwb(x_chwb, K, pad):
    """im2col -> (K*K*C, OH*OW*B); rows (ky,kx,c), cols (oy,ox,b).  The flatten
    is performed for free by the Pallas input DMA when the tile is loaded."""
    C, H, W, B = x_chwb.shape
    xp = jnp.pad(x_chwb, ((0, 0), (pad, pad), (pad, pad), (0, 0)))
    OH = H + 2 * pad - K + 1
    OW = W + 2 * pad - K + 1
    taps = [xp[:, ky:ky + OH, kx:kx + OW, :] for ky in range(K) for kx in range(K)]
    patches = jnp.stack(taps, axis=0)                 # (K*K, C, OH, OW, B)
    return patches.reshape(K * K * C, OH * OW * B), OH, OW


def im2col_T_chwb(x_chwb, K, pad):
    """Transposed im2col -> (OH*OW*B, K*K*C); rows (oy,ox,b), cols (ky,kx,c)."""
    C, H, W, B = x_chwb.shape
    xp = jnp.pad(x_chwb, ((0, 0), (pad, pad), (pad, pad), (0, 0)))
    OH = H + 2 * pad - K + 1
    OW = W + 2 * pad - K + 1
    taps = [xp[:, ky:ky + OH, kx:kx + OW, :] for ky in range(K) for kx in range(K)]
    patches = jnp.stack(taps, axis=0)                 # (K*K, C, OH, OW, B)
    return patches.transpose(2, 3, 4, 0, 1).reshape(OH * OW * B, K * K * C), OH, OW


def cnn_forward(x, p):
    """Pallas implementation of CNN.forward.  x: (B, 1, 80, 80) NCHW."""
    B = x.shape[0]
    x_chwb = jnp.transpose(x, (1, 2, 3, 0))           # (1, 80, 80, B) — tiny

    w1p = p["conv1_w"].transpose(0, 2, 3, 1).reshape(16, -1)      # (16, 100)

    # --- call A: conv1 + bias + ReLU ---------------------------------------
    p1, OH1, OW1 = im2col_chwb(x_chwb, 10, 2)         # (100, 75*75*B)
    y1 = conv1_matmul_relu(w1p, p1, p["conv1_b"].reshape(16, 1))  # (16, M)

    # pool1 (5x5 / stride-5): tiny XLA reduction on the 0.72 MB conv1 output.
    y1 = y1.reshape(16, OH1 // 5, 5, OW1 // 5, 5, B)
    z1 = jnp.max(y1, axis=(2, 4))                      # (16, 15, 15, B)

    # --- call B: conv2 + ReLU + pool2 + flatten + ReLU + MLP (one kernel) ---
    p2t, OH2, OW2 = im2col_T_chwb(z1, 10, 2)           # (10*10*B, 1600)
    out, h30 = tail_fused(p2t, p, B, OW2)              # (B, 6), (B, 30)
    return out, h30


# --------------------------- params & reference -------------------------------

def init_params(key):
    ks = jax.random.split(key, 10)

    def u(k, shape, fan_in):
        bound = 1.0 / np.sqrt(fan_in)
        return jax.random.uniform(k, shape, jnp.float32, -bound, bound)

    return {
        "conv1_w": u(ks[0], (16, 1, 10, 10), 100),
        "conv1_b": u(ks[1], (16,), 100),
        "conv2_w": u(ks[2], (32, 16, 10, 10), 1600),
        "conv2_b": u(ks[3], (32,), 1600),
        "lin1_w": u(ks[4], (500, 128), 128),
        "lin1_b": u(ks[5], (500,), 128),
        "lin2_w": u(ks[6], (30, 500), 500),
        "lin2_b": u(ks[7], (30,), 500),
        "out_w": u(ks[8], (6, 30), 30),
        "out_b": u(ks[9], (6,), 30),
    }


def reference_forward(x, p):
    def conv(h, w, b):
        y = jax.lax.conv_general_dilated(
            h, w, (1, 1), [(2, 2), (2, 2)],
            dimension_numbers=("NCHW", "OIHW", "NCHW"))
        return y + b[None, :, None, None]

    def pool(h):
        return jax.lax.reduce_window(h, -jnp.inf, jax.lax.max,
                                     (1, 1, 5, 5), (1, 1, 5, 5), "VALID")

    relu = lambda v: jnp.maximum(v, 0.0)
    h = pool(relu(conv(x, p["conv1_w"], p["conv1_b"])))
    h = pool(relu(conv(h, p["conv2_w"], p["conv2_b"])))
    f = relu(h.reshape(h.shape[0], -1))
    h1 = relu(f @ p["lin1_w"].T + p["lin1_b"])
    h2 = relu(h1 @ p["lin2_w"].T + p["lin2_b"])
    out = h2 @ p["out_w"].T + p["out_b"]
    return out, h2


if __name__ == "__main__":
    key = jax.random.PRNGKey(0)
    kx, kp = jax.random.split(key)
    # Smallest spatial size consistent with the module's Linear(128, 500):
    # 80 -> conv(k10,p2)=75 -> pool5=15 -> conv(k10,p2)=10 -> pool5=2 ; 32*2*2=128.
    x = jax.random.normal(kx, (2, 1, 80, 80), jnp.float32)
    params = init_params(kp)

    out, h30 = jax.jit(cnn_forward)(x, params)
    jax.block_until_ready((out, h30))

    ref_out, ref_h30 = reference_forward(x, params)
    assert out.shape == (2, 6) and h30.shape == (2, 30)
    np.testing.assert_allclose(np.asarray(out), np.asarray(ref_out),
                               rtol=2e-3, atol=2e-3)
    np.testing.assert_allclose(np.asarray(h30), np.asarray(ref_h30),
                               rtol=2e-3, atol=2e-3)
    print("KERNEL_OK")
</pallas_src>

<mosaic_0001>
module attributes {stable_mosaic.version = 11 : i64} {
  func.func @_conv1_kernel(%arg0: i32, %arg1: memref<16x100xf32, #tpu.memory_space<vmem>>, %arg2: memref<100x5632xf32, #tpu.memory_space<vmem>>, %arg3: memref<16x1xf32, #tpu.memory_space<vmem>>, %arg4: memref<16x5632xf32, #tpu.memory_space<vmem>>) attributes {dimension_semantics = [#tpu.dimension_semantics<parallel>], iteration_bounds = array<i64: 2>, scalar_prefetch = 0 : i64, scratch_operands = 0 : i64, tpu.core_type = #tpu.core_type<tc>, window_params = [{pipeline_mode = #tpu.pipeline_mode<synchronous>, transform_indices = @transform_0, window_bounds = array<i64: 16, 100>}, {transform_indices = @transform_1, window_bounds = array<i64: 100, 5632>}, {pipeline_mode = #tpu.pipeline_mode<synchronous>, transform_indices = @transform_2, window_bounds = array<i64: 16, 1>}, {transform_indices = @transform_3, window_bounds = array<i64: 16, 5632>}]} {
    %c0 = arith.constant 0 : index
    %c0_0 = arith.constant 0 : index
    %0 = vector.load %arg1[%c0, %c0_0] : memref<16x100xf32, #tpu.memory_space<vmem>>, vector<16x100xf32>
    %c0_1 = arith.constant 0 : index
    %c0_2 = arith.constant 0 : index
    %1 = vector.load %arg2[%c0_1, %c0_2] : memref<100x5632xf32, #tpu.memory_space<vmem>>, vector<100x5632xf32>
    %cst = arith.constant dense<0.000000e+00> : vector<16x5632xf32>
    %2 = tpu.matmul %0, %1, %cst {dimension_numbers = #tpu.dot_dimension_numbers<[1], [0], [0], [1], [0, 0, 1, 1], [], []>} : vector<16x100xf32>, vector<100x5632xf32>, vector<16x5632xf32> -> vector<16x5632xf32>
    %c0_3 = arith.constant 0 : index
    %c0_4 = arith.constant 0 : index
    %3 = vector.load %arg3[%c0_3, %c0_4] : memref<16x1xf32, #tpu.memory_space<vmem>>, vector<16x1xf32>
    %4 = vector.broadcast %3 : vector<16x1xf32> to vector<16x5632xf32>
    %5 = arith.addf %2, %4 : vector<16x5632xf32>
    %cst_5 = arith.constant 0.000000e+00 : f32
    %6 = vector.broadcast %cst_5 : f32 to vector<16x5632xf32>
    %7 = arith.maximumf %5, %6 : vector<16x5632xf32>
    %c0_6 = arith.constant 0 : index
    %c0_7 = arith.constant 0 : index
    %8 = vector.load %arg4[%c0_6, %c0_7] : memref<16x5632xf32, #tpu.memory_space<vmem>>, vector<16x5632xf32>
    tpu.vector_store %arg4[%c0_6, %c0_7], %7 {strides = array<i32>} : memref<16x5632xf32, #tpu.memory_space<vmem>>, vector<16x5632xf32>,
    return
  }
  func.func @transform_0(%arg0: i32) -> (i32, i32) {
    %c0_i32 = arith.constant 0 : i32
    %c0_i32_0 = arith.constant 0 : i32
    %c0_i32_1 = arith.constant 0 : i32
    return %c0_i32, %c0_i32_0 : i32, i32
  }
  func.func @transform_1(%arg0: i32) -> (i32, i32) {
    %c0_i32 = arith.constant 0 : i32
    %c0_i32_0 = arith.constant 0 : i32
    return %c0_i32, %arg0 : i32, i32
  }
  func.func @transform_2(%arg0: i32) -> (i32, i32) {
    %c0_i32 = arith.constant 0 : i32
    %c0_i32_0 = arith.constant 0 : i32
    %c0_i32_1 = arith.constant 0 : i32
    return %c0_i32, %c0_i32_0 : i32, i32
  }
  func.func @transform_3(%arg0: i32) -> (i32, i32) {
    %c0_i32 = arith.constant 0 : i32
    %c0_i32_0 = arith.constant 0 : i32
    return %c0_i32, %arg0 : i32, i32
  }
}

module attributes {stable_mosaic.version = 11 : i64} {
  func.func @_tail_kernel(%arg0: i32, %arg1: memref<200x1600xf32, #tpu.memory_space<vmem>>, %arg2: memref<1600x32xf32, #tpu.memory_space<vmem>>, %arg3: memref<1x32xf32, #tpu.memory_space<vmem>>, %arg4: memref<128x500xf32, #tpu.memory_space<vmem>>, %arg5: memref<1x500xf32, #tpu.memory_space<vmem>>, %arg6: memref<500x30xf32, #tpu.memory_space<vmem>>, %arg7: memref<1x30xf32, #tpu.memory_space<vmem>>, %arg8: memref<30x6xf32, #tpu.memory_space<vmem>>, %arg9: memref<1x6xf32, #tpu.memory_space<vmem>>, %arg10: memref<2x6xf32, #tpu.memory_space<vmem>>, %arg11: memref<2x30xf32, #tpu.memory_space<vmem>>) attributes {dimension_semantics = [#tpu.dimension_semantics<arbitrary>], iteration_bounds = array<i64: 1>, scalar_prefetch = 0 : i64, scratch_operands = 0 : i64, tpu.core_type = #tpu.core_type<tc>, window_params = [{pipeline_mode = #tpu.pipeline_mode<synchronous>, transform_indices = @transform_0, window_bounds = array<i64: 200, 1600>}, {pipeline_mode = #tpu.pipeline_mode<synchronous>, transform_indices = @transform_1, window_bounds = array<i64: 1600, 32>}, {pipeline_mode = #tpu.pipeline_mode<synchronous>, transform_indices = @transform_2, window_bounds = array<i64: 1, 32>}, {pipeline_mode = #tpu.pipeline_mode<synchronous>, transform_indices = @transform_3, window_bounds = array<i64: 128, 500>}, {pipeline_mode = #tpu.pipeline_mode<synchronous>, transform_indices = @transform_4, window_bounds = array<i64: 1, 500>}, {pipeline_mode = #tpu.pipeline_mode<synchronous>, transform_indices = @transform_5, window_bounds = array<i64: 500, 30>}, {pipeline_mode = #tpu.pipeline_mode<synchronous>, transform_indices = @transform_6, window_bounds = array<i64: 1, 30>}, {pipeline_mode = #tpu.pipeline_mode<synchronous>, transform_indices = @transform_7, window_bounds = array<i64: 30, 6>}, {pipeline_mode = #tpu.pipeline_mode<synchronous>, transform_indices = @transform_8, window_bounds = array<i64: 1, 6>}, {pipeline_mode = #tpu.pipeline_mode<synchronous>, transform_indices = @transform_9, window_bounds = array<i64: 2, 6>}, {pipeline_mode = #tpu.pipeline_mode<synchronous>, transform_indices = @transform_10, window_bounds = array<i64: 2, 30>}]} {
    %c0 = arith.constant 0 : index
    %c0_0 = arith.constant 0 : index
    %0 = vector.load %arg1[%c0, %c0_0] : memref<200x1600xf32, #tpu.memory_space<vmem>>, vector<200x1600xf32>
    %c0_1 = arith.constant 0 : index
    %c0_2 = arith.constant 0 : index
    %1 = vector.load %arg2[%c0_1, %c0_2] : memref<1600x32xf32, #tpu.memory_space<vmem>>, vector<1600x32xf32>
    %cst = arith.constant dense<0.000000e+00> : vector<200x32xf32>
    %2 = tpu.matmul %0, %1, %cst {dimension_numbers = #tpu.dot_dimension_numbers<[1], [0], [0], [1], [0, 0, 1, 1], [], []>} : vector<200x1600xf32>, vector<1600x32xf32>, vector<200x32xf32> -> vector<200x32xf32>
    %c0_3 = arith.constant 0 : index
    %c0_4 = arith.constant 0 : index
    %3 = vector.load %arg3[%c0_3, %c0_4] : memref<1x32xf32, #tpu.memory_space<vmem>>, vector<1x32xf32>
    %4 = vector.broadcast %3 : vector<1x32xf32> to vector<200x32xf32>
    %5 = arith.addf %2, %4 : vector<200x32xf32>
    %cst_5 = arith.constant 0.000000e+00 : f32
    %6 = vector.broadcast %cst_5 : f32 to vector<200x32xf32>
    %7 = arith.maximumf %5, %6 : vector<200x32xf32>
    %8 = vector.extract_strided_slice %7 {offsets = [0, 0], sizes = [112, 32], strides = [1, 1]} : vector<200x32xf32> to vector<112x32xf32>
    %9 = vector.extract_strided_slice %7 {offsets = [2, 0], sizes = [112, 32], strides = [1, 1]} : vector<200x32xf32> to vector<112x32xf32>
    %10 = arith.maximumf %8, %9 : vector<112x32xf32>
    %11 = vector.extract_strided_slice %7 {offsets = [4, 0], sizes = [112, 32], strides = [1, 1]} : vector<200x32xf32> to vector<112x32xf32>
    %12 = arith.maximumf %10, %11 : vector<112x32xf32>
    %13 = vector.extract_strided_slice %7 {offsets = [6, 0], sizes = [112, 32], strides = [1, 1]} : vector<200x32xf32> to vector<112x32xf32>
    %14 = arith.maximumf %12, %13 : vector<112x32xf32>
    %15 = vector.extract_strided_slice %7 {offsets = [8, 0], sizes = [112, 32], strides = [1, 1]} : vector<200x32xf32> to vector<112x32xf32>
    %16 = arith.maximumf %14, %15 : vector<112x32xf32>
    %17 = vector.extract_strided_slice %7 {offsets = [20, 0], sizes = [112, 32], strides = [1, 1]} : vector<200x32xf32> to vector<112x32xf32>
    %18 = arith.maximumf %16, %17 : vector<112x32xf32>
    %19 = vector.extract_strided_slice %7 {offsets = [22, 0], sizes = [112, 32], strides = [1, 1]} : vector<200x32xf32> to vector<112x32xf32>
    %20 = arith.maximumf %18, %19 : vector<112x32xf32>
    %21 = vector.extract_strided_slice %7 {offsets = [24, 0], sizes = [112, 32], strides = [1, 1]} : vector<200x32xf32> to vector<112x32xf32>
    %22 = arith.maximumf %20, %21 : vector<112x32xf32>
    %23 = vector.extract_strided_slice %7 {offsets = [26, 0], sizes = [112, 32], strides = [1, 1]} : vector<200x32xf32> to vector<112x32xf32>
    %24 = arith.maximumf %22, %23 : vector<112x32xf32>
    %25 = vector.extract_strided_slice %7 {offsets = [28, 0], sizes = [112, 32], strides = [1, 1]} : vector<200x32xf32> to vector<112x32xf32>
    %26 = arith.maximumf %24, %25 : vector<112x32xf32>
    %27 = vector.extract_strided_slice %7 {offsets = [40, 0], sizes = [112, 32], strides = [1, 1]} : vector<200x32xf32> to vector<112x32xf32>
    %28 = arith.maximumf %26, %27 : vector<112x32xf32>
    %29 = vector.extract_strided_slice %7 {offsets = [42, 0], sizes = [112, 32], strides = [1, 1]} : vector<200x32xf32> to vector<112x32xf32>
    %30 = arith.maximumf %28, %29 : vector<112x32xf32>
    %31 = vector.extract_strided_slice %7 {offsets = [44, 0], sizes = [112, 32], strides = [1, 1]} : vector<200x32xf32> to vector<112x32xf32>
    %32 = arith.maximumf %30, %31 : vector<112x32xf32>
    %33 = vector.extract_strided_slice %7 {offsets = [46, 0], sizes = [112, 32], strides = [1, 1]} : vector<200x32xf32> to vector<112x32xf32>
    %34 = arith.maximumf %32, %33 : vector<112x32xf32>
    %35 = vector.extract_strided_slice %7 {offsets = [48, 0], sizes = [112, 32], strides = [1, 1]} : vector<200x32xf32> to vector<112x32xf32>
    %36 = arith.maximumf %34, %35 : vector<112x32xf32>
    %37 = vector.extract_strided_slice %7 {offsets = [60, 0], sizes = [112, 32], strides = [1, 1]} : vector<200x32xf32> to vector<112x32xf32>
    %38 = arith.maximumf %36, %37 : vector<112x32xf32>
    %39 = vector.extract_strided_slice %7 {offsets = [62, 0], sizes = [112, 32], strides = [1, 1]} : vector<200x32xf32> to vector<112x32xf32>
    %40 = arith.maximumf %38, %39 : vector<112x32xf32>
    %41 = vector.extract_strided_slice %7 {offsets = [64, 0], sizes = [112, 32], strides = [1, 1]} : vector<200x32xf32> to vector<112x32xf32>
    %42 = arith.maximumf %40, %41 : vector<112x32xf32>
    %43 = vector.extract_strided_slice %7 {offsets = [66, 0], sizes = [112, 32], strides = [1, 1]} : vector<200x32xf32> to vector<112x32xf32>
    %44 = arith.maximumf %42, %43 : vector<112x32xf32>
    %45 = vector.extract_strided_slice %7 {offsets = [68, 0], sizes = [112, 32], strides = [1, 1]} : vector<200x32xf32> to vector<112x32xf32>
    %46 = arith.maximumf %44, %45 : vector<112x32xf32>
    %47 = vector.extract_strided_slice %7 {offsets = [80, 0], sizes = [112, 32], strides = [1, 1]} : vector<200x32xf32> to vector<112x32xf32>
    %48 = arith.maximumf %46, %47 : vector<112x32xf32>
    %49 = vector.extract_strided_slice %7 {offsets = [82, 0], sizes = [112, 32], strides = [1, 1]} : vector<200x32xf32> to vector<112x32xf32>
    %50 = arith.maximumf %48, %49 : vector<112x32xf32>
    %51 = vector.extract_strided_slice %7 {offsets = [84, 0], sizes = [112, 32], strides = [1, 1]} : vector<200x32xf32> to vector<112x32xf32>
    %52 = arith.maximumf %50, %51 : vector<112x32xf32>
    %53 = vector.extract_strided_slice %7 {offsets = [86, 0], sizes = [112, 32], strides = [1, 1]} : vector<200x32xf32> to vector<112x32xf32>
    %54 = arith.maximumf %52, %53 : vector<112x32xf32>
    %55 = vector.extract_strided_slice %7 {offsets = [88, 0], sizes = [112, 32], strides = [1, 1]} : vector<200x32xf32> to vector<112x32xf32>
    %56 = arith.maximumf %54, %55 : vector<112x32xf32>
    %57 = vector.extract_strided_slice %56 {offsets = [0, 0], sizes = [2, 32], strides = [1, 1]} : vector<112x32xf32> to vector<2x32xf32>
    %58 = vector.extract_strided_slice %56 {offsets = [10, 0], sizes = [2, 32], strides = [1, 1]} : vector<112x32xf32> to vector<2x32xf32>
    %59 = vector.extract_strided_slice %56 {offsets = [100, 0], sizes = [2, 32], strides = [1, 1]} : vector<112x32xf32> to vector<2x32xf32>
    %60 = vector.extract_strided_slice %56 {offsets = [110, 0], sizes = [2, 32], strides = [1, 1]} : vector<112x32xf32> to vector<2x32xf32>
    %61 = tpu.concatenate %57, %58, %59, %60 in 1 : vector<2x32xf32>, vector<2x32xf32>, vector<2x32xf32>, vector<2x32xf32> -> vector<2x128xf32>
    %cst_6 = arith.constant 0.000000e+00 : f32
    %62 = vector.broadcast %cst_6 : f32 to vector<2x128xf32>
    %63 = arith.maximumf %61, %62 : vector<2x128xf32>
    %c0_7 = arith.constant 0 : index
    %c0_8 = arith.constant 0 : index
    %64 = vector.load %arg4[%c0_7, %c0_8] : memref<128x500xf32, #tpu.memory_space<vmem>>, vector<128x500xf32>
    %cst_9 = arith.constant dense<0.000000e+00> : vector<2x500xf32>
    %65 = tpu.matmul %63, %64, %cst_9 {dimension_numbers = #tpu.dot_dimension_numbers<[1], [0], [0], [1], [0, 0, 1, 1], [], []>} : vector<2x128xf32>, vector<128x500xf32>, vector<2x500xf32> -> vector<2x500xf32>
    %c0_10 = arith.constant 0 : index
    %c0_11 = arith.constant 0 : index
    %66 = vector.load %arg5[%c0_10, %c0_11] : memref<1x500xf32, #tpu.memory_space<vmem>>, vector<1x500xf32>
    %67 = vector.broadcast %66 : vector<1x500xf32> to vector<2x500xf32>
    %68 = arith.addf %65, %67 : vector<2x500xf32>
    %cst_12 = arith.constant 0.000000e+00 : f32
    %69 = vector.broadcast %cst_12 : f32 to vector<2x500xf32>
    %70 = arith.maximumf %68, %69 : vector<2x500xf32>
    %c0_13 = arith.constant 0 : index
    %c0_14 = arith.constant 0 : index
    %71 = vector.load %arg6[%c0_13, %c0_14] : memref<500x30xf32, #tpu.memory_space<vmem>>, vector<500x30xf32>
    %cst_15 = arith.constant dense<0.000000e+00> : vector<2x30xf32>
    %72 = tpu.matmul %70, %71, %cst_15 {dimension_numbers = #tpu.dot_dimension_numbers<[1], [0], [0], [1], [0, 0, 1, 1], [], []>} : vector<2x500xf32>, vector<500x30xf32>, vector<2x30xf32> -> vector<2x30xf32>
    %c0_16 = arith.constant 0 : index
    %c0_17 = arith.constant 0 : index
    %73 = vector.load %arg7[%c0_16, %c0_17] : memref<1x30xf32, #tpu.memory_space<vmem>>, vector<1x30xf32>
    %74 = vector.broadcast %73 : vector<1x30xf32> to vector<2x30xf32>
    %75 = arith.addf %72, %74 : vector<2x30xf32>
    %cst_18 = arith.constant 0.000000e+00 : f32
    %76 = vector.broadcast %cst_18 : f32 to vector<2x30xf32>
    %77 = arith.maximumf %75, %76 : vector<2x30xf32>
    %c0_19 = arith.constant 0 : index
    %c0_20 = arith.constant 0 : index
    %78 = vector.load %arg8[%c0_19, %c0_20] : memref<30x6xf32, #tpu.memory_space<vmem>>, vector<30x6xf32>
    %cst_21 = arith.constant dense<0.000000e+00> : vector<2x6xf32>
    %79 = tpu.matmul %77, %78, %cst_21 {dimension_numbers = #tpu.dot_dimension_numbers<[1], [0], [0], [1], [0, 0, 1, 1], [], []>} : vector<2x30xf32>, vector<30x6xf32>, vector<2x6xf32> -> vector<2x6xf32>
    %c0_22 = arith.constant 0 : index
    %c0_23 = arith.constant 0 : index
    %80 = vector.load %arg9[%c0_22, %c0_23] : memref<1x6xf32, #tpu.memory_space<vmem>>, vector<1x6xf32>
    %81 = vector.broadcast %80 : vector<1x6xf32> to vector<2x6xf32>
    %82 = arith.addf %79, %81 : vector<2x6xf32>
    %c0_24 = arith.constant 0 : index
    %c0_25 = arith.constant 0 : index
    %83 = vector.load %arg10[%c0_24, %c0_25] : memref<2x6xf32, #tpu.memory_space<vmem>>, vector<2x6xf32>
    tpu.vector_store %arg10[%c0_24, %c0_25], %82 {strides = array<i32>} : memref<2x6xf32, #tpu.memory_space<vmem>>, vector<2x6xf32>,
    %c0_26 = arith.constant 0 : index
    %c0_27 = arith.constant 0 : index
    %84 = vector.load %arg11[%c0_26, %c0_27] : memref<2x30xf32, #tpu.memory_space<vmem>>, vector<2x30xf32>
    tpu.vector_store %arg11[%c0_26, %c0_27], %77 {strides = array<i32>} : memref<2x30xf32, #tpu.memory_space<vmem>>, vector<2x30xf32>,
    return
  }
  func.func @transform_0(%arg0: i32) -> (i32, i32) {
    %c0_i32 = arith.constant 0 : i32
    %c0_i32_0 = arith.constant 0 : i32
    %c0_i32_1 = arith.constant 0 : i32
    return %c0_i32, %c0_i32_0 : i32, i32
  }
  func.func @transform_1(%arg0: i32) -> (i32, i32) {
    %c0_i32 = arith.constant 0 : i32
    %c0_i32_0 = arith.constant 0 : i32
    %c0_i32_1 = arith.constant 0 : i32
    return %c0_i32, %c0_i32_0 : i32, i32
  }
  func.func @transform_2(%arg0: i32) -> (i32, i32) {
    %c0_i32 = arith.constant 0 : i32
    %c0_i32_0 = arith.constant 0 : i32
    %c0_i32_1 = arith.constant 0 : i32
    return %c0_i32, %c0_i32_0 : i32, i32
  }
  func.func @transform_3(%arg0: i32) -> (i32, i32) {
    %c0_i32 = arith.constant 0 : i32
    %c0_i32_0 = arith.constant 0 : i32
    %c0_i32_1 = arith.constant 0 : i32
    return %c0_i32, %c0_i32_0 : i32, i32
  }
  func.func @transform_4(%arg0: i32) -> (i32, i32) {
    %c0_i32 = arith.constant 0 : i32
    %c0_i32_0 = arith.constant 0 : i32
    %c0_i32_1 = arith.constant 0 : i32
    return %c0_i32, %c0_i32_0 : i32, i32
  }
  func.func @transform_5(%arg0: i32) -> (i32, i32) {
    %c0_i32 = arith.constant 0 : i32
    %c0_i32_0 = arith.constant 0 : i32
    %c0_i32_1 = arith.constant 0 : i32
    return %c0_i32, %c0_i32_0 : i32, i32
  }
  func.func @transform_6(%arg0: i32) -> (i32, i32) {
    %c0_i32 = arith.constant 0 : i32
    %c0_i32_0 = arith.constant 0 : i32
    %c0_i32_1 = arith.constant 0 : i32
    return %c0_i32, %c0_i32_0 : i32, i32
  }
  func.func @transform_7(%arg0: i32) -> (i32, i32) {
    %c0_i32 = arith.constant 0 : i32
    %c0_i32_0 = arith.constant 0 : i32
    %c0_i32_1 = arith.constant 0 : i32
    return %c0_i32, %c0_i32_0 : i32, i32
  }
  func.func @transform_8(%arg0: i32) -> (i32, i32) {
    %c0_i32 = arith.constant 0 : i32
    %c0_i32_0 = arith.constant 0 : i32
    %c0_i32_1 = arith.constant 0 : i32
    return %c0_i32, %c0_i32_0 : i32, i32
  }
  func.func @transform_9(%arg0: i32) -> (i32, i32) {
    %c0_i32 = arith.constant 0 : i32
    %c0_i32_0 = arith.constant 0 : i32
    %c0_i32_1 = arith.constant 0 : i32
    return %c0_i32, %c0_i32_0 : i32, i32
  }
  func.func @transform_10(%arg0: i32) -> (i32, i32) {
    %c0_i32 = arith.constant 0 : i32
    %c0_i32_0 = arith.constant 0 : i32
    %c0_i32_1 = arith.constant 0 : i32
    return %c0_i32, %c0_i32_0 : i32, i32
  }
}

</mosaic_0001>

<llo_original>
// kernel: cnn_forward.2
$region0: #{cnn_forward.2}
  #allocation0 [shape = 'u32[]', space=smem, size = 0x4, offset = 0x4, fixed_abs, tag = 'smem constant byte address 0x4 - core index']
  #allocation1 [shape = 'u32[144,128]{1,0:T(1,128)}', space=vmem, size = 0x12000, scoped, tag = 'internal scratch']
  %s0 = inlined_call_operand.vmem [shape: f32[16,100], index: 0, kind: input, shape index: {}]
  %s1 = inlined_call_operand.vmem [shape: f32[100,11250], index: 1, kind: input, shape index: {}]
  %s2 = inlined_call_operand.vmem [shape: f32[16,1], index: 2, kind: input, shape index: {}]
  %s3 = inlined_call_operand.vmem [shape: f32[16,11250], index: 3, kind: output, shape index: {}]
  %s4 = sld [smem:[#allocation0]]
  $region87: #{cnn_forward.2} parent=0
    _
  %s6 = ssub.s32 1, %s4
  %s7 = scalar_select 0, %s6, %s4
  $region1: #{cnn_forward.2} parent=0
    #allocation2 [shape = 'u8[4685824]{0}', space=vmem, size = 0x478000, scoped, tag = 'input window, operand 1']
    #allocation3 [shape = 'u8[720896]{0}', space=vmem, size = 0xb0000, scoped, tag = 'output window, operand 0']
    loop: start=0, step=1, limit=4
    $region2: #{cnn_forward.2} parent=1 // loop_pre_header
      _
    $region3: #{cnn_forward.2} parent=1 // loop_header
      %s9 = sphi 0, %s13
      %p10 = scmp.ge.s32.totalorder %s9, 4
      %s17 = sphi 0, %s17
      %s19 = sphi 0, %s17
      %s20 = sphi 0, %s19
      %s34 = sphi 0, %s20
      %s40 = sphi 0, %s42
      %s43 = sphi 0, %s40
      %s44 = sphi 0, %s43
      %s60 = sphi 0, %s44
      %s64 = sphi 0, %s64
      %s66 = sphi 0, %s64
      %s67 = sphi 0, %s66
      %s81 = sphi 0, %s67
      %s87 = sphi 0, %s89
      %s90 = sphi 0, %s87
      %s91 = sphi 0, %s90
      %s107 = sphi 0, %s91
    $region4: #{cnn_forward.2} parent=1 // loop_header_branch
      %12 = sbr.rel (%p10) target = $region8
    $region5: #{cnn_forward.2} parent=1 // loop_body
      %s14 = ssub.s32 %s9, 1
      %s15 = ssub.s32 %s9, 2
      %s16 = sadd.s32 %s9, 1
      %s18 = sadd.s32 %s17, 1
      %p21 = scmp.eq.s32.totalorder %s9, 1
      %p22 = scmp.ne.s32.totalorder %s17, %s19
      %p23 = scmp.eq.s32.totalorder %s9, 0
      %p24 = por %p22, %p23
      %p25 = scmp.ne.s32.totalorder %s17, %s19
      %p26 = scmp.eq.s32.totalorder %s14, 1
      %p27 = por %p25, %p26
      %p28 = scmp.ne.s32.totalorder %s19, %s20
      %p29 = scmp.eq.s32.totalorder %s14, 0
      %p30 = por %p28, %p29
      %p31 = scmp.ne.s32.totalorder %s19, %s20
      %p32 = scmp.eq.s32.totalorder %s15, 1
      %p33 = por %p31, %p32
      %p35 = scmp.ne.s32.totalorder %s20, %s34
      %p36 = scmp.eq.s32.totalorder %s15, 0
      %p37 = por %p35, %p36
      %s38 = ssub.s32 %s9, %s16
      %p39 = scmp.eq.s32.totalorder %s38, 0
      %s41 = sadd.s32 %s40, 1
      %s42 = scalar_select %p39, %s40, %s41
      %p45 = pneg %p39
      %p46 = scmp.eq.s32.totalorder %s9, 1
      %p47 = por %p45, %p46
      %p48 = scmp.ne.s32.totalorder %s40, %s43
      %p49 = scmp.eq.s32.totalorder %s9, 0
      %p50 = por %p48, %p49
      %p51 = scmp.ne.s32.totalorder %s40, %s43
      %p52 = scmp.eq.s32.totalorder %s14, 1
      %p53 = por %p51, %p52
      %p54 = scmp.ne.s32.totalorder %s43, %s44
      %p55 = scmp.eq.s32.totalorder %s14, 0
      %p56 = por %p54, %p55
      %p57 = scmp.ne.s32.totalorder %s43, %s44
      %p58 = scmp.eq.s32.totalorder %s15, 1
      %p59 = por %p57, %p58
      %p61 = scmp.ne.s32.totalorder %s44, %s60
      %p62 = scmp.eq.s32.totalorder %s15, 0
      %p63 = por %p61, %p62
      %s65 = sadd.s32 %s64, 1
      %p68 = scmp.eq.s32.totalorder %s9, 1
      %p69 = scmp.ne.s32.totalorder %s64, %s66
      %p70 = scmp.eq.s32.totalorder %s9, 0
      %p71 = por %p69, %p70
      %p72 = scmp.ne.s32.totalorder %s64, %s66
      %p73 = scmp.eq.s32.totalorder %s14, 1
      %p74 = por %p72, %p73
      %p75 = scmp.ne.s32.totalorder %s66, %s67
      %p76 = scmp.eq.s32.totalorder %s14, 0
      %p77 = por %p75, %p76
      %p78 = scmp.ne.s32.totalorder %s66, %s67
      %p79 = scmp.eq.s32.totalorder %s15, 1
      %p80 = por %p78, %p79
      %p82 = scmp.ne.s32.totalorder %s67, %s81
      %p83 = scmp.eq.s32.totalorder %s15, 0
      %p84 = por %p82, %p83
      %s85 = ssub.s32 %s9, %s16
      %p86 = scmp.eq.s32.totalorder %s85, 0
      %s88 = sadd.s32 %s87, 1
      %s89 = scalar_select %p86, %s87, %s88
      %p92 = pneg %p86
      %p93 = scmp.eq.s32.totalorder %s9, 1
      %p94 = por %p92, %p93
      %p95 = scmp.ne.s32.totalorder %s87, %s90
      %p96 = scmp.eq.s32.totalorder %s9, 0
      %p97 = por %p95, %p96
      %p98 = scmp.ne.s32.totalorder %s87, %s90
      %p99 = scmp.eq.s32.totalorder %s14, 1
      %p100 = por %p98, %p99
      %p101 = scmp.ne.s32.totalorder %s90, %s91
      %p102 = scmp.eq.s32.totalorder %s14, 0
      %p103 = por %p101, %p102
      %p104 = scmp.ne.s32.totalorder %s90, %s91
      %p105 = scmp.eq.s32.totalorder %s15, 1
      %p106 = por %p104, %p105
      %p108 = scmp.ne.s32.totalorder %s91, %s107
      %p109 = scmp.eq.s32.totalorder %s15, 0
      %p110 = por %p108, %p109
      %p111 = scmp.le.s32.totalorder 1, %s9
      %p112 = scmp.lt.s32.totalorder %s9, 3
      %p113 = pnand %p111, %p112
      %p114 = pneg %p113
      // Predicated region
      $region9: #{cnn_forward.2} parent=5 // pred_check
        _
      $region10: #{cnn_forward.2} parent=5 // pred_check_branch
        %116 = sbr.rel (%p113) target = $region12
      $region11: #{cnn_forward.2} parent=5 // pred_region
        %s117 = ssub.s32 %s9, 1
        // Predicated region
        $region13: #{cnn_forward.2} parent=11 // pred_check
          %p118 = pneg %p30
        $region14: #{cnn_forward.2} parent=11 // pred_check_branch
          %120 = sbr.rel (%p118) target = $region16
        $region15: #{cnn_forward.2} parent=11 // pred_region
          _
        $region16: #{cnn_forward.2} parent=11 // pred_fallthru
          _
        // Predicated region
        $region17: #{cnn_forward.2} parent=11 // pred_check
          %p121 = pneg %p77
        $region18: #{cnn_forward.2} parent=11 // pred_check_branch
          %123 = sbr.rel (%p121) target = $region20
        $region19: #{cnn_forward.2} parent=11 // pred_region
          _
        $region20: #{cnn_forward.2} parent=11 // pred_fallthru
          _
      $region12: #{cnn_forward.2} parent=5 // pred_fallthru
        _
      %p124 = scmp.lt.s32.totalorder %s9, 2
      // Predicated region
      $region21: #{cnn_forward.2} parent=5 // pred_check
        %p125 = pneg %p124
      $region22: #{cnn_forward.2} parent=5 // pred_check_branch
        %127 = sbr.rel (%p125) target = $region24
      $region23: #{cnn_forward.2} parent=5 // pred_region
        // Predicated region
        $region25: #{cnn_forward.2} parent=23 // pred_check
          %p128 = pneg %p50
        $region26: #{cnn_forward.2} parent=23 // pred_check_branch
          %130 = sbr.rel (%p128) target = $region28
        $region27: #{cnn_forward.2} parent=23 // pred_region
          %s131 = sand.u32 %s40, 1
          %s132 = sand.u32 %s40, 1
          %s133 = smul.addr %s132, 4576
          %s134 = scalar_lea.vmem [#allocation2], %s133
          %s135 = smul.u32 44, %s9
          %s136 = smul.addr %s135, 8
          %s137 = scalar_lea.vmem %s1, %s136
          // Predicated region
          $region29: #{cnn_forward.2} parent=27 // pred_check
            _
          $region30: #{cnn_forward.2} parent=27 // pred_check_branch
            %139 = sbr.rel (0) target = $region32
          $region31: #{cnn_forward.2} parent=27 // pred_region
            // Predicated region
            $region33: #{cnn_forward.2} parent=31 // pred_check
              _
            $region34: #{cnn_forward.2} parent=31 // pred_check_branch
              %141 = sbr.rel (0) target = $region36
            $region35: #{cnn_forward.2} parent=31 // pred_region
              loop: start=0, step=1, limit=1
              $region37: #{cnn_forward.2} parent=35 // loop_pre_header
                _
              $region38: #{cnn_forward.2} parent=35 // loop_header
                %s143 = sphi 0, %s147
                %p144 = scmp.ge.s32.totalorder %s143, 1
                %s148 = sphi %s137, %s137
                %s149 = sphi %s134, %s134
              $region39: #{cnn_forward.2} parent=35 // loop_header_branch
                %146 = sbr.rel (%p144) target = $region43
              $region40: #{cnn_forward.2} parent=35 // loop_body
                %v150 = vld [vmem:[%s148] sm:$0xff]
                %151 = vst [vmem:[%s149] sm:$0xff] %v150
                %v152 = vld [vmem:[%s148 + $0x8] sm:$0xff]
                %153 = vst [vmem:[%s149 + $0x8] sm:$0xff] %v152
                %v154 = vld [vmem:[%s148 + $0x10] sm:$0xff]
                %155 = vst [vmem:[%s149 + $0x10] sm:$0xff] %v154
                %v156 = vld [vmem:[%s148 + $0x18] sm:$0xff]
                %157 = vst [vmem:[%s149 + $0x18] sm:$0xff] %v156
                %v158 = vld [vmem:[%s148 + $0x20] sm:$0xff]
                %159 = vst [vmem:[%s149 + $0x20] sm:$0xff] %v158
                %v160 = vld [vmem:[%s148 + $0x28] sm:$0xff]
                %161 = vst [vmem:[%s149 + $0x28] sm:$0xff] %v160
                %v162 = vld [vmem:[%s148 + $0x30] sm:$0xff]
                %163 = vst [vmem:[%s149 + $0x30] sm:$0xff] %v162
                %v164 = vld [vmem:[%s148 + $0x38] sm:$0xff]
                %165 = vst [vmem:[%s149 + $0x38] sm:$0xff] %v164
                %v166 = vld [vmem:[%s148 + $0x40] sm:$0xff]
                %167 = vst [vmem:[%s149 + $0x40] sm:$0xff] %v166
                %v168 = vld [vmem:[%s148 + $0x48] sm:$0xff]
                %169 = vst [vmem:[%s149 + $0x48] sm:$0xff] %v168
                %v170 = vld [vmem:[%s148 + $0x50] sm:$0xff]
                %171 = vst [vmem:[%s149 + $0x50] sm:$0xff] %v170
                %v172 = vld [vmem:[%s148 + $0x58] sm:$0xff]
                %173 = vst [vmem:[%s149 + $0x58] sm:$0xff] %v172
                %v174 = vld [vmem:[%s148 + $0x60] sm:$0xff]
                %175 = vst [vmem:[%s149 + $0x60] sm:$0xff] %v174
                %v176 = vld [vmem:[%s148 + $0x68] sm:$0xff]
                %177 = vst [vmem:[%s149 + $0x68] sm:$0xff] %v176
                %v178 = vld [vmem:[%s148 + $0x70] sm:$0xff]
                %179 = vst [vmem:[%s149 + $0x70] sm:$0xff] %v178
                %v180 = vld [vmem:[%s148 + $0x78] sm:$0xff]
                %181 = vst [vmem:[%s149 + $0x78] sm:$0xff] %v180
                %v182 = vld [vmem:[%s148 + $0x80] sm:$0xff]
                %183 = vst [vmem:[%s149 + $0x80] sm:$0xff] %v182
                %v184 = vld [vmem:[%s148 + $0x88] sm:$0xff]
                %185 = vst [vmem:[%s149 + $0x88] sm:$0xff] %v184
                %v186 = vld [vmem:[%s148 + $0x90] sm:$0xff]
                %187 = vst [vmem:[%s149 + $0x90] sm:$0xff] %v186
                %v188 = vld [vmem:[%s148 + $0x98] sm:$0xff]
                %189 = vst [vmem:[%s149 + $0x98] sm:$0xff] %v188
                %v190 = vld [vmem:[%s148 + $0xa0] sm:$0xff]
                %191 = vst [vmem:[%s149 + $0xa0] sm:$0xff] %v190
                %v192 = vld [vmem:[%s148 + $0xa8] sm:$0xff]
                %193 = vst [vmem:[%s149 + $0xa8] sm:$0xff] %v192
                %v194 = vld [vmem:[%s148 + $0xb0] sm:$0xff]
                %195 = vst [vmem:[%s149 + $0xb0] sm:$0xff] %v194
                %v196 = vld [vmem:[%s148 + $0xb8] sm:$0xff]
                %197 = vst [vmem:[%s149 + $0xb8] sm:$0xff] %v196
                %v198 = vld [vmem:[%s148 + $0xc0] sm:$0xff]
                %199 = vst [vmem:[%s149 + $0xc0] sm:$0xff] %v198
                %v200 = vld [vmem:[%s148 + $0xc8] sm:$0xff]
                %201 = vst [vmem:[%s149 + $0xc8] sm:$0xff] %v200
                %v202 = vld [vmem:[%s148 + $0xd0] sm:$0xff]
                %203 = vst [vmem:[%s149 + $0xd0] sm:$0xff] %v202
                %v204 = vld [vmem:[%s148 + $0xd8] sm:$0xff]
                %205 = vst [vmem:[%s149 + $0xd8] sm:$0xff] %v204
                %v206 = vld [vmem:[%s148 + $0xe0] sm:$0xff]
                %207 = vst [vmem:[%s149 + $0xe0] sm:$0xff] %v206
                %v208 = vld [vmem:[%s148 + $0xe8] sm:$0xff]
                %209 = vst [vmem:[%s149 + $0xe8] sm:$0xff] %v208
                %v210 = vld [vmem:[%s148 + $0xf0] sm:$0xff]
                %211 = vst [vmem:[%s149 + $0xf0] sm:$0xff] %v210
                %v212 = vld [vmem:[%s148 + $0xf8] sm:$0xff]
                %213 = vst [vmem:[%s149 + $0xf8] sm:$0xff] %v212
                %v214 = vld [vmem:[%s148 + $0x100] sm:$0xff]
                %215 = vst [vmem:[%s149 + $0x100] sm:$0xff] %v214
                %v216 = vld [vmem:[%s148 + $0x108] sm:$0xff]
                %217 = vst [vmem:[%s149 + $0x108] sm:$0xff] %v216
                %v218 = vld [vmem:[%s148 + $0x110] sm:$0xff]
                %219 = vst [vmem:[%s149 + $0x110] sm:$0xff] %v218
                %v220 = vld [vmem:[%s148 + $0x118] sm:$0xff]
                %221 = vst [vmem:[%s149 + $0x118] sm:$0xff] %v220
                %v222 = vld [vmem:[%s148 + $0x120] sm:$0xff]
                %223 = vst [vmem:[%s149 + $0x120] sm:$0xff] %v222
                %v224 = vld [vmem:[%s148 + $0x128] sm:$0xff]
                %225 = vst [vmem:[%s149 + $0x128] sm:$0xff] %v224
                %v226 = vld [vmem:[%s148 + $0x130] sm:$0xff]
                %227 = vst [vmem:[%s149 + $0x130] sm:$0xff] %v226
                %v228 = vld [vmem:[%s148 + $0x138] sm:$0xff]
                %229 = vst [vmem:[%s149 + $0x138] sm:$0xff] %v228
                %v230 = vld [vmem:[%s148 + $0x140] sm:$0xff]
                %231 = vst [vmem:[%s149 + $0x140] sm:$0xff] %v230
                %v232 = vld [vmem:[%s148 + $0x148] sm:$0xff]
                %233 = vst [vmem:[%s149 + $0x148] sm:$0xff] %v232
                %v234 = vld [vmem:[%s148 + $0x150] sm:$0xff]
                %235 = vst [vmem:[%s149 + $0x150] sm:$0xff] %v234
                %v236 = vld [vmem:[%s148 + $0x158] sm:$0xff]
                %237 = vst [vmem:[%s149 + $0x158] sm:$0xff] %v236
                %v238 = vld [vmem:[%s148 + $0x2c0] sm:$0xff]
                %239 = vst [vmem:[%s149 + $0x160] sm:$0xff] %v238
                %v240 = vld [vmem:[%s148 + $0x2c8] sm:$0xff]
                %241 = vst [vmem:[%s149 + $0x168] sm:$0xff] %v240
                %v242 = vld [vmem:[%s148 + $0x2d0] sm:$0xff]
                %243 = vst [vmem:[%s149 + $0x170] sm:$0xff] %v242
                %v244 = vld [vmem:[%s148 + $0x2d8] sm:$0xff]
                %245 = vst [vmem:[%s149 + $0x178] sm:$0xff] %v244
                %v246 = vld [vmem:[%s148 + $0x2e0] sm:$0xff]
                %247 = vst [vmem:[%s149 + $0x180] sm:$0xff] %v246
                %v248 = vld [vmem:[%s148 + $0x2e8] sm:$0xff]
                %249 = vst [vmem:[%s149 + $0x188] sm:$0xff] %v248
                %v250 = vld [vmem:[%s148 + $0x2f0] sm:$0xff]
                %251 = vst [vmem:[%s149 + $0x190] sm:$0xff] %v250
                %v252 = vld [vmem:[%s148 + $0x2f8] sm:$0xff]
                %253 = vst [vmem:[%s149 + $0x198] sm:$0xff] %v252
                %v254 = vld [vmem:[%s148 + $0x300] sm:$0xff]
                %255 = vst [vmem:[%s149 + $0x1a0] sm:$0xff] %v254
                %v256 = vld [vmem:[%s148 + $0x308] sm:$0xff]
                %257 = vst [vmem:[%s149 + $0x1a8] sm:$0xff] %v256
                %v258 = vld [vmem:[%s148 + $0x310] sm:$0xff]
                %259 = vst [vmem:[%s149 + $0x1b0] sm:$0xff] %v258
                %v260 = vld [vmem:[%s148 + $0x318] sm:$0xff]
                %261 = vst [vmem:[%s149 + $0x1b8] sm:$0xff] %v260
                %v262 = vld [vmem:[%s148 + $0x320] sm:$0xff]
                %263 = vst [vmem:[%s149 + $0x1c0] sm:$0xff] %v262
                %v264 = vld [vmem:[%s148 + $0x328] sm:$0xff]
                %265 = vst [vmem:[%s149 + $0x1c8] sm:$0xff] %v264
                %v266 = vld [vmem:[%s148 + $0x330] sm:$0xff]
                %267 = vst [vmem:[%s149 + $0x1d0] sm:$0xff] %v266
                %v268 = vld [vmem:[%s148 + $0x338] sm:$0xff]
                %269 = vst [vmem:[%s149 + $0x1d8] sm:$0xff] %v268
                %v270 = vld [vmem:[%s148 + $0x340] sm:$0xff]
                %271 = vst [vmem:[%s149 + $0x1e0] sm:$0xff] %v270
                %v272 = vld [vmem:[%s148 + $0x348] sm:$0xff]
                %273 = vst [vmem:[%s149 + $0x1e8] sm:$0xff] %v272
                %v274 = vld [vmem:[%s148 + $0x350] sm:$0xff]
                %275 = vst [vmem:[%s149 + $0x1f0] sm:$0xff] %v274
                %v276 = vld [vmem:[%s148 + $0x358] sm:$0xff]
                %277 = vst [vmem:[%s149 + $0x1f8] sm:$0xff] %v276
                %v278 = vld [vmem:[%s148 + $0x360] sm:$0xff]
                %279 = vst [vmem:[%s149 + $0x200] sm:$0xff] %v278
                %v280 = vld [vmem:[%s148 + $0x368] sm:$0xff]
                %281 = vst [vmem:[%s149 + $0x208] sm:$0xff] %v280
                %v282 = vld [vmem:[%s148 + $0x370] sm:$0xff]
                %283 = vst [vmem:[%s149 + $0x210] sm:$0xff] %v282
                %v284 = vld [vmem:[%s148 + $0x378] sm:$0xff]
                %285 = vst [vmem:[%s149 + $0x218] sm:$0xff] %v284
                %v286 = vld [vmem:[%s148 + $0x380] sm:$0xff]
                %287 = vst [vmem:[%s149 + $0x220] sm:$0xff] %v286
                %v288 = vld [vmem:[%s148 + $0x388] sm:$0xff]
                %289 = vst [vmem:[%s149 + $0x228] sm:$0xff] %v288
                %v290 = vld [vmem:[%s148 + $0x390] sm:$0xff]
                %291 = vst [vmem:[%s149 + $0x230] sm:$0xff] %v290
                %v292 = vld [vmem:[%s148 + $0x398] sm:$0xff]
                %293 = vst [vmem:[%s149 + $0x238] sm:$0xff] %v292
                %v294 = vld [vmem:[%s148 + $0x3a0] sm:$0xff]
                %295 = vst [vmem:[%s149 + $0x240] sm:$0xff] %v294
                %v296 = vld [vmem:[%s148 + $0x3a8] sm:$0xff]
                %297 = vst [vmem:[%s149 + $0x248] sm:$0xff] %v296
                %v298 = vld [vmem:[%s148 + $0x3b0] sm:$0xff]
                %299 = vst [vmem:[%s149 + $0x250] sm:$0xff] %v298
                %v300 = vld [vmem:[%s148 + $0x3b8] sm:$0xff]
                %301 = vst [vmem:[%s149 + $0x258] sm:$0xff] %v300
                %v302 = vld [vmem:[%s148 + $0x3c0] sm:$0xff]
                %303 = vst [vmem:[%s149 + $0x260] sm:$0xff] %v302
                %v304 = vld [vmem:[%s148 + $0x3c8] sm:$0xff]
                %305 = vst [vmem:[%s149 + $0x268] sm:$0xff] %v304
                %v306 = vld [vmem:[%s148 + $0x3d0] sm:$0xff]
                %307 = vst [vmem:[%s149 + $0x270] sm:$0xff] %v306
                %v308 = vld [vmem:[%s148 + $0x3d8] sm:$0xff]
                %309 = vst [vmem:[%s149 + $0x278] sm:$0xff] %v308
                %v310 = vld [vmem:[%s148 + $0x3e0] sm:$0xff]
                %311 = vst [vmem:[%s149 + $0x280] sm:$0xff] %v310
                %v312 = vld [vmem:[%s148 + $0x3e8] sm:$0xff]
                %313 = vst [vmem:[%s149 + $0x288] sm:$0xff] %v312
                %v314 = vld [vmem:[%s148 + $0x3f0] sm:$0xff]
                %315 = vst [vmem:[%s149 + $0x290] sm:$0xff] %v314
                %v316 = vld [vmem:[%s148 + $0x3f8] sm:$0xff]
                %317 = vst [vmem:[%s149 + $0x298] sm:$0xff] %v316
                %v318 = vld [vmem:[%s148 + $0x400] sm:$0xff]
                %319 = vst [vmem:[%s149 + $0x2a0] sm:$0xff] %v318
                %v320 = vld [vmem:[%s148 + $0x408] sm:$0xff]
                %321 = vst [vmem:[%s149 + $0x2a8] sm:$0xff] %v320
                %v322 = vld [vmem:[%s148 + $0x410] sm:$0xff]
                %323 = vst [vmem:[%s149 + $0x2b0] sm:$0xff] %v322
                %v324 = vld [vmem:[%s148 + $0x418] sm:$0xff]
                %325 = vst [vmem:[%s149 + $0x2b8] sm:$0xff] %v324
                %v326 = vld [vmem:[%s148 + $0x580] sm:$0xff]
                %327 = vst [vmem:[%s149 + $0x2c0] sm:$0xff] %v326
                %v328 = vld [vmem:[%s148 + $0x588] sm:$0xff]
                %329 = vst [vmem:[%s149 + $0x2c8] sm:$0xff] %v328
                %v330 = vld [vmem:[%s148 + $0x590] sm:$0xff]
                %331 = vst [vmem:[%s149 + $0x2d0] sm:$0xff] %v330
                %v332 = vld [vmem:[%s148 + $0x598] sm:$0xff]
                %333 = vst [vmem:[%s149 + $0x2d8] sm:$0xff] %v332
                %v334 = vld [vmem:[%s148 + $0x5a0] sm:$0xff]
                %335 = vst [vmem:[%s149 + $0x2e0] sm:$0xff] %v334
                %v336 = vld [vmem:[%s148 + $0x5a8] sm:$0xff]
                %337 = vst [vmem:[%s149 + $0x2e8] sm:$0xff] %v336
                %v338 = vld [vmem:[%s148 + $0x5b0] sm:$0xff]
                %339 = vst [vmem:[%s149 + $0x2f0] sm:$0xff] %v338
                %v340 = vld [vmem:[%s148 + $0x5b8] sm:$0xff]
                %341 = vst [vmem:[%s149 + $0x2f8] sm:$0xff] %v340
                %v342 = vld [vmem:[%s148 + $0x5c0] sm:$0xff]
                %343 = vst [vmem:[%s149 + $0x300] sm:$0xff] %v342
                %v344 = vld [vmem:[%s148 + $0x5c8] sm:$0xff]
                %345 = vst [vmem:[%s149 + $0x308] sm:$0xff] %v344
                %v346 = vld [vmem:[%s148 + $0x5d0] sm:$0xff]
                %347 = vst [vmem:[%s149 + $0x310] sm:$0xff] %v346
                %v348 = vld [vmem:[%s148 + $0x5d8] sm:$0xff]
                %349 = vst [vmem:[%s149 + $0x318] sm:$0xff] %v348
                %v350 = vld [vmem:[%s148 + $0x5e0] sm:$0xff]
                %351 = vst [vmem:[%s149 + $0x320] sm:$0xff] %v350
                %v352 = vld [vmem:[%s148 + $0x5e8] sm:$0xff]
                %353 = vst [vmem:[%s149 + $0x328] sm:$0xff] %v352
                %v354 = vld [vmem:[%s148 + $0x5f0] sm:$0xff]
                %355 = vst [vmem:[%s149 + $0x330] sm:$0xff] %v354
                %v356 = vld [vmem:[%s148 + $0x5f8] sm:$0xff]
                %357 = vst [vmem:[%s149 + $0x338] sm:$0xff] %v356
                %v358 = vld [vmem:[%s148 + $0x600] sm:$0xff]
                %359 = vst [vmem:[%s149 + $0x340] sm:$0xff] %v358
                %v360 = vld [vmem:[%s148 + $0x608] sm:$0xff]
                %361 = vst [vmem:[%s149 + $0x348] sm:$0xff] %v360
                %v362 = vld [vmem:[%s148 + $0x610] sm:$0xff]
                %363 = vst [vmem:[%s149 + $0x350] sm:$0xff] %v362
                %v364 = vld [vmem:[%s148 + $0x618] sm:$0xff]
                %365 = vst [vmem:[%s149 + $0x358] sm:$0xff] %v364
                %v366 = vld [vmem:[%s148 + $0x620] sm:$0xff]
                %367 = vst [vmem:[%s149 + $0x360] sm:$0xff] %v366
                %v368 = vld [vmem:[%s148 + $0x628] sm:$0xff]
                %369 = vst [vmem:[%s149 + $0x368] sm:$0xff] %v368
                %v370 = vld [vmem:[%s148 + $0x630] sm:$0xff]
                %371 = vst [vmem:[%s149 + $0x370] sm:$0xff] %v370
                %v372 = vld [vmem:[%s148 + $0x638] sm:$0xff]
                %373 = vst [vmem:[%s149 + $0x378] sm:$0xff] %v372
                %v374 = vld [vmem:[%s148 + $0x640] sm:$0xff]
                %375 = vst [vmem:[%s149 + $0x380] sm:$0xff] %v374
                %v376 = vld [vmem:[%s148 + $0x648] sm:$0xff]
                %377 = vst [vmem:[%s149 + $0x388] sm:$0xff] %v376
                %v378 = vld [vmem:[%s148 + $0x650] sm:$0xff]
                %379 = vst [vmem:[%s149 + $0x390] sm:$0xff] %v378
                %v380 = vld [vmem:[%s148 + $0x658] sm:$0xff]
                %381 = vst [vmem:[%s149 + $0x398] sm:$0xff] %v380
                %v382 = vld [vmem:[%s148 + $0x660] sm:$0xff]
                %383 = vst [vmem:[%s149 + $0x3a0] sm:$0xff] %v382
                %v384 = vld [vmem:[%s148 + $0x668] sm:$0xff]
                %385 = vst [vmem:[%s149 + $0x3a8] sm:$0xff] %v384
                %v386 = vld [vmem:[%s148 + $0x670] sm:$0xff]
                %387 = vst [vmem:[%s149 + $0x3b0] sm:$0xff] %v386
                %v388 = vld [vmem:[%s148 + $0x678] sm:$0xff]
                %389 = vst [vmem:[%s149 + $0x3b8] sm:$0xff] %v388
                %v390 = vld [vmem:[%s148 + $0x680] sm:$0xff]
                %391 = vst [vmem:[%s149 + $0x3c0] sm:$0xff] %v390
                %v392 = vld [vmem:[%s148 + $0x688] sm:$0xff]
                %393 = vst [vmem:[%s149 + $0x3c8] sm:$0xff] %v392
                %v394 = vld [vmem:[%s148 + $0x690] sm:$0xff]
                %395 = vst [vmem:[%s149 + $0x3d0] sm:$0xff] %v394
                %v396 = vld [vmem:[%s148 + $0x698] sm:$0xff]
                %397 = vst [vmem:[%s149 + $0x3d8] sm:$0xff] %v396
                %v398 = vld [vmem:[%s148 + $0x6a0] sm:$0xff]
                %399 = vst [vmem:[%s149 + $0x3e0] sm:$0xff] %v398
                %v400 = vld [vmem:[%s148 + $0x6a8] sm:$0xff]
                %401 = vst [vmem:[%s149 + $0x3e8] sm:$0xff] %v400
                %v402 = vld [vmem:[%s148 + $0x6b0] sm:$0xff]
                %403 = vst [vmem:[%s149 + $0x3f0] sm:$0xff] %v402
                %v404 = vld [vmem:[%s148 + $0x6b8] sm:$0xff]
                %405 = vst [vmem:[%s149 + $0x3f8] sm:$0xff] %v404
                %v406 = vld [vmem:[%s148 + $0x6c0] sm:$0xff]
                %407 = vst [vmem:[%s149 + $0x400] sm:$0xff] %v406
                %v408 = vld [vmem:[%s148 + $0x6c8] sm:$0xff]
                %409 = vst [vmem:[%s149 + $0x408] sm:$0xff] %v408
                %v410 = vld [vmem:[%s148 + $0x6d0] sm:$0xff]
                %411 = vst [vmem:[%s149 + $0x410] sm:$0xff] %v410
                %v412 = vld [vmem:[%s148 + $0x6d8] sm:$0xff]
                %413 = vst [vmem:[%s149 + $0x418] sm:$0xff] %v412
                %v414 = vld [vmem:[%s148 + $0x840] sm:$0xff]
                %415 = vst [vmem:[%s149 + $0x420] sm:$0xff] %v414
                %v416 = vld [vmem:[%s148 + $0x848] sm:$0xff]
                %417 = vst [vmem:[%s149 + $0x428] sm:$0xff] %v416
                %v418 = vld [vmem:[%s148 + $0x850] sm:$0xff]
                %419 = vst [vmem:[%s149 + $0x430] sm:$0xff] %v418
                %v420 = vld [vmem:[%s148 + $0x858] sm:$0xff]
                %421 = vst [vmem:[%s149 + $0x438] sm:$0xff] %v420
                %v422 = vld [vmem:[%s148 + $0x860] sm:$0xff]
                %423 = vst [vmem:[%s149 + $0x440] sm:$0xff] %v422
                %v424 = vld [vmem:[%s148 + $0x868] sm:$0xff]
                %425 = vst [vmem:[%s149 + $0x448] sm:$0xff] %v424
                %v426 = vld [vmem:[%s148 + $0x870] sm:$0xff]
                %427 = vst [vmem:[%s149 + $0x450] sm:$0xff] %v426
                %v428 = vld [vmem:[%s148 + $0x878] sm:$0xff]
                %429 = vst [vmem:[%s149 + $0x458] sm:$0xff] %v428
                %v430 = vld [vmem:[%s148 + $0x880] sm:$0xff]
                %431 = vst [vmem:[%s149 + $0x460] sm:$0xff] %v430
                %v432 = vld [vmem:[%s148 + $0x888] sm:$0xff]
                %433 = vst [vmem:[%s149 + $0x468] sm:$0xff] %v432
                %v434 = vld [vmem:[%s148 + $0x890] sm:$0xff]
                %435 = vst [vmem:[%s149 + $0x470] sm:$0xff] %v434
                %v436 = vld [vmem:[%s148 + $0x898] sm:$0xff]
                %437 = vst [vmem:[%s149 + $0x478] sm:$0xff] %v436
                %v438 = vld [vmem:[%s148 + $0x8a0] sm:$0xff]
                %439 = vst [vmem:[%s149 + $0x480] sm:$0xff] %v438
                %v440 = vld [vmem:[%s148 + $0x8a8] sm:$0xff]
                %441 = vst [vmem:[%s149 + $0x488] sm:$0xff] %v440
                %v442 = vld [vmem:[%s148 + $0x8b0] sm:$0xff]
                %443 = vst [vmem:[%s149 + $0x490] sm:$0xff] %v442
                %v444 = vld [vmem:[%s148 + $0x8b8] sm:$0xff]
                %445 = vst [vmem:[%s149 + $0x498] sm:$0xff] %v444
                %v446 = vld [vmem:[%s148 + $0x8c0] sm:$0xff]
                %447 = vst [vmem:[%s149 + $0x4a0] sm:$0xff] %v446
                %v448 = vld [vmem:[%s148 + $0x8c8] sm:$0xff]
                %449 = vst [vmem:[%s149 + $0x4a8] sm:$0xff] %v448
                %v450 = vld [vmem:[%s148 + $0x8d0] sm:$0xff]
                %451 = vst [vmem:[%s149 + $0x4b0] sm:$0xff] %v450
                %v452 = vld [vmem:[%s148 + $0x8d8] sm:$0xff]
                %453 = vst [vmem:[%s149 + $0x4b8] sm:$0xff] %v452
                %v454 = vld [vmem:[%s148 + $0x8e0] sm:$0xff]
                %455 = vst [vmem:[%s149 + $0x4c0] sm:$0xff] %v454
                %v456 = vld [vmem:[%s148 + $0x8e8] sm:$0xff]
                %457 = vst [vmem:[%s149 + $0x4c8] sm:$0xff] %v456
                %v458 = vld [vmem:[%s148 + $0x8f0] sm:$0xff]
                %459 = vst [vmem:[%s149 + $0x4d0] sm:$0xff] %v458
                %v460 = vld [vmem:[%s148 + $0x8f8] sm:$0xff]
                %461 = vst [vmem:[%s149 + $0x4d8] sm:$0xff] %v460
                %v462 = vld [vmem:[%s148 + $0x900] sm:$0xff]
                %463 = vst [vmem:[%s149 + $0x4e0] sm:$0xff] %v462
                %v464 = vld [vmem:[%s148 + $0x908] sm:$0xff]
                %465 = vst [vmem:[%s149 + $0x4e8] sm:$0xff] %v464
                %v466 = vld [vmem:[%s148 + $0x910] sm:$0xff]
                %467 = vst [vmem:[%s149 + $0x4f0] sm:$0xff] %v466
                %v468 = vld [vmem:[%s148 + $0x918] sm:$0xff]
                %469 = vst [vmem:[%s149 + $0x4f8] sm:$0xff] %v468
                %v470 = vld [vmem:[%s148 + $0x920] sm:$0xff]
                %471 = vst [vmem:[%s149 + $0x500] sm:$0xff] %v470
                %v472 = vld [vmem:[%s148 + $0x928] sm:$0xff]
                %473 = vst [vmem:[%s149 + $0x508] sm:$0xff] %v472
                %v474 = vld [vmem:[%s148 + $0x930] sm:$0xff]
                %475 = vst [vmem:[%s149 + $0x510] sm:$0xff] %v474
                %v476 = vld [vmem:[%s148 + $0x938] sm:$0xff]
                %477 = vst [vmem:[%s149 + $0x518] sm:$0xff] %v476
                %v478 = vld [vmem:[%s148 + $0x940] sm:$0xff]
                %479 = vst [vmem:[%s149 + $0x520] sm:$0xff] %v478
                %v480 = vld [vmem:[%s148 + $0x948] sm:$0xff]
                %481 = vst [vmem:[%s149 + $0x528] sm:$0xff] %v480
                %v482 = vld [vmem:[%s148 + $0x950] sm:$0xff]
                %483 = vst [vmem:[%s149 + $0x530] sm:$0xff] %v482
                %v484 = vld [vmem:[%s148 + $0x958] sm:$0xff]
                %485 = vst [vmem:[%s149 + $0x538] sm:$0xff] %v484
                %v486 = vld [vmem:[%s148 + $0x960] sm:$0xff]
                %487 = vst [vmem:[%s149 + $0x540] sm:$0xff] %v486
                %v488 = vld [vmem:[%s148 + $0x968] sm:$0xff]
                %489 = vst [vmem:[%s149 + $0x548] sm:$0xff] %v488
                %v490 = vld [vmem:[%s148 + $0x970] sm:$0xff]
                %491 = vst [vmem:[%s149 + $0x550] sm:$0xff] %v490
                %v492 = vld [vmem:[%s148 + $0x978] sm:$0xff]
                %493 = vst [vmem:[%s149 + $0x558] sm:$0xff] %v492
                %v494 = vld [vmem:[%s148 + $0x980] sm:$0xff]
                %495 = vst [vmem:[%s149 + $0x560] sm:$0xff] %v494
                %v496 = vld [vmem:[%s148 + $0x988] sm:$0xff]
                %497 = vst [vmem:[%s149 + $0x568] sm:$0xff] %v496
                %v498 = vld [vmem:[%s148 + $0x990] sm:$0xff]
                %499 = vst [vmem:[%s149 + $0x570] sm:$0xff] %v498
                %v500 = vld [vmem:[%s148 + $0x998] sm:$0xff]
                %501 = vst [vmem:[%s149 + $0x578] sm:$0xff] %v500
                %v502 = vld [vmem:[%s148 + $0xb00] sm:$0xff]
                %503 = vst [vmem:[%s149 + $0x580] sm:$0xff] %v502
                %v504 = vld [vmem:[%s148 + $0xb08] sm:$0xff]
                %505 = vst [vmem:[%s149 + $0x588] sm:$0xff] %v504
                %v506 = vld [vmem:[%s148 + $0xb10] sm:$0xff]
                %507 = vst [vmem:[%s149 + $0x590] sm:$0xff] %v506
                %v508 = vld [vmem:[%s148 + $0xb18] sm:$0xff]
                %509 = vst [vmem:[%s149 + $0x598] sm:$0xff] %v508
                %v510 = vld [vmem:[%s148 + $0xb20] sm:$0xff]
                %511 = vst [vmem:[%s149 + $0x5a0] sm:$0xff] %v510
                %v512 = vld [vmem:[%s148 + $0xb28] sm:$0xff]
                %513 = vst [vmem:[%s149 + $0x5a8] sm:$0xff] %v512
                %v514 = vld [vmem:[%s148 + $0xb30] sm:$0xff]
                %515 = vst [vmem:[%s149 + $0x5b0] sm:$0xff] %v514
                %v516 = vld [vmem:[%s148 + $0xb38] sm:$0xff]
                %517 = vst [vmem:[%s149 + $0x5b8] sm:$0xff] %v516
                %v518 = vld [vmem:[%s148 + $0xb40] sm:$0xff]
                %519 = vst [vmem:[%s149 + $0x5c0] sm:$0xff] %v518
                %v520 = vld [vmem:[%s148 + $0xb48] sm:$0xff]
                %521 = vst [vmem:[%s149 + $0x5c8] sm:$0xff] %v520
                %v522 = vld [vmem:[%s148 + $0xb50] sm:$0xff]
                %523 = vst [vmem:[%s149 + $0x5d0] sm:$0xff] %v522
                %v524 = vld [vmem:[%s148 + $0xb58] sm:$0xff]
                %525 = vst [vmem:[%s149 + $0x5d8] sm:$0xff] %v524
                %v526 = vld [vmem:[%s148 + $0xb60] sm:$0xff]
                %527 = vst [vmem:[%s149 + $0x5e0] sm:$0xff] %v526
                %v528 = vld [vmem:[%s148 + $0xb68] sm:$0xff]
                %529 = vst [vmem:[%s149 + $0x5e8] sm:$0xff] %v528
                %v530 = vld [vmem:[%s148 + $0xb70] sm:$0xff]
                %531 = vst [vmem:[%s149 + $0x5f0] sm:$0xff] %v530
                %v532 = vld [vmem:[%s148 + $0xb78] sm:$0xff]
                %533 = vst [vmem:[%s149 + $0x5f8] sm:$0xff] %v532
                %v534 = vld [vmem:[%s148 + $0xb80] sm:$0xff]
                %535 = vst [vmem:[%s149 + $0x600] sm:$0xff] %v534
                %v536 = vld [vmem:[%s148 + $0xb88] sm:$0xff]
                %537 = vst [vmem:[%s149 + $0x608] sm:$0xff] %v536
                %v538 = vld [vmem:[%s148 + $0xb90] sm:$0xff]
                %539 = vst [vmem:[%s149 + $0x610] sm:$0xff] %v538
                %v540 = vld [vmem:[%s148 + $0xb98] sm:$0xff]
                %541 = vst [vmem:[%s149 + $0x618] sm:$0xff] %v540
                %v542 = vld [vmem:[%s148 + $0xba0] sm:$0xff]
                %543 = vst [vmem:[%s149 + $0x620] sm:$0xff] %v542
                %v544 = vld [vmem:[%s148 + $0xba8] sm:$0xff]
                %545 = vst [vmem:[%s149 + $0x628] sm:$0xff] %v544
                %v546 = vld [vmem:[%s148 + $0xbb0] sm:$0xff]
                %547 = vst [vmem:[%s149 + $0x630] sm:$0xff] %v546
                %v548 = vld [vmem:[%s148 + $0xbb8] sm:$0xff]
                %549 = vst [vmem:[%s149 + $0x638] sm:$0xff] %v548
                %v550 = vld [vmem:[%s148 + $0xbc0] sm:$0xff]
                %551 = vst [vmem:[%s149 + $0x640] sm:$0xff] %v550
                %v552 = vld [vmem:[%s148 + $0xbc8] sm:$0xff]
                %553 = vst [vmem:[%s149 + $0x648] sm:$0xff] %v552
                %v554 = vld [vmem:[%s148 + $0xbd0] sm:$0xff]
                %555 = vst [vmem:[%s149 + $0x650] sm:$0xff] %v554
                %v556 = vld [vmem:[%s148 + $0xbd8] sm:$0xff]
                %557 = vst [vmem:[%s149 + $0x658] sm:$0xff] %v556
                %v558 = vld [vmem:[%s148 + $0xbe0] sm:$0xff]
                %559 = vst [vmem:[%s149 + $0x660] sm:$0xff] %v558
                %v560 = vld [vmem:[%s148 + $0xbe8] sm:$0xff]
                %561 = vst [vmem:[%s149 + $0x668] sm:$0xff] %v560
                %v562 = vld [vmem:[%s148 + $0xbf0] sm:$0xff]
                %563 = vst [vmem:[%s149 + $0x670] sm:$0xff] %v562
                %v564 = vld [vmem:[%s148 + $0xbf8] sm:$0xff]
                %565 = vst [vmem:[%s149 + $0x678] sm:$0xff] %v564
                %v566 = vld [vmem:[%s148 + $0xc00] sm:$0xff]
                %567 = vst [vmem:[%s149 + $0x680] sm:$0xff] %v566
                %v568 = vld [vmem:[%s148 + $0xc08] sm:$0xff]
                %569 = vst [vmem:[%s149 + $0x688] sm:$0xff] %v568
                %v570 = vld [vmem:[%s148 + $0xc10] sm:$0xff]
                %571 = vst [vmem:[%s149 + $0x690] sm:$0xff] %v570
                %v572 = vld [vmem:[%s148 + $0xc18] sm:$0xff]
                %573 = vst [vmem:[%s149 + $0x698] sm:$0xff] %v572
                %v574 = vld [vmem:[%s148 + $0xc20] sm:$0xff]
                %575 = vst [vmem:[%s149 + $0x6a0] sm:$0xff] %v574
                %v576 = vld [vmem:[%s148 + $0xc28] sm:$0xff]
                %577 = vst [vmem:[%s149 + $0x6a8] sm:$0xff] %v576
                %v578 = vld [vmem:[%s148 + $0xc30] sm:$0xff]
                %579 = vst [vmem:[%s149 + $0x6b0] sm:$0xff] %v578
                %v580 = vld [vmem:[%s148 + $0xc38] sm:$0xff]
                %581 = vst [vmem:[%s149 + $0x6b8] sm:$0xff] %v580
                %v582 = vld [vmem:[%s148 + $0xc40] sm:$0xff]
                %583 = vst [vmem:[%s149 + $0x6c0] sm:$0xff] %v582
                %v584 = vld [vmem:[%s148 + $0xc48] sm:$0xff]
                %585 = vst [vmem:[%s149 + $0x6c8] sm:$0xff] %v584
                %v586 = vld [vmem:[%s148 + $0xc50] sm:$0xff]
                %587 = vst [vmem:[%s149 + $0x6d0] sm:$0xff] %v586
                %v588 = vld [vmem:[%s148 + $0xc58] sm:$0xff]
                %589 = vst [vmem:[%s149 + $0x6d8] sm:$0xff] %v588
                %v590 = vld [vmem:[%s148 + $0xdc0] sm:$0xff]
                %591 = vst [vmem:[%s149 + $0x6e0] sm:$0xff] %v590
                %v592 = vld [vmem:[%s148 + $0xdc8] sm:$0xff]
                %593 = vst [vmem:[%s149 + $0x6e8] sm:$0xff] %v592
                %v594 = vld [vmem:[%s148 + $0xdd0] sm:$0xff]
                %595 = vst [vmem:[%s149 + $0x6f0] sm:$0xff] %v594
                %v596 = vld [vmem:[%s148 + $0xdd8] sm:$0xff]
                %597 = vst [vmem:[%s149 + $0x6f8] sm:$0xff] %v596
                %v598 = vld [vmem:[%s148 + $0xde0] sm:$0xff]
                %599 = vst [vmem:[%s149 + $0x700] sm:$0xff] %v598
                %v600 = vld [vmem:[%s148 + $0xde8] sm:$0xff]
                %601 = vst [vmem:[%s149 + $0x708] sm:$0xff] %v600
                %v602 = vld [vmem:[%s148 + $0xdf0] sm:$0xff]
                %603 = vst [vmem:[%s149 + $0x710] sm:$0xff] %v602
                %v604 = vld [vmem:[%s148 + $0xdf8] sm:$0xff]
                %605 = vst [vmem:[%s149 + $0x718] sm:$0xff] %v604
                %v606 = vld [vmem:[%s148 + $0xe00] sm:$0xff]
                %607 = vst [vmem:[%s149 + $0x720] sm:$0xff] %v606
                %v608 = vld [vmem:[%s148 + $0xe08] sm:$0xff]
                %609 = vst [vmem:[%s149 + $0x728] sm:$0xff] %v608
                %v610 = vld [vmem:[%s148 + $0xe10] sm:$0xff]
                %611 = vst [vmem:[%s149 + $0x730] sm:$0xff] %v610
                %v612 = vld [vmem:[%s148 + $0xe18] sm:$0xff]
                %613 = vst [vmem:[%s149 + $0x738] sm:$0xff] %v612
                %v614 = vld [vmem:[%s148 + $0xe20] sm:$0xff]
                %615 = vst [vmem:[%s149 + $0x740] sm:$0xff] %v614
                %v616 = vld [vmem:[%s148 + $0xe28] sm:$0xff]
                %617 = vst [vmem:[%s149 + $0x748] sm:$0xff] %v616
                %v618 = vld [vmem:[%s148 + $0xe30] sm:$0xff]
                %619 = vst [vmem:[%s149 + $0x750] sm:$0xff] %v618
                %v620 = vld [vmem:[%s148 + $0xe38] sm:$0xff]
                %621 = vst [vmem:[%s149 + $0x758] sm:$0xff] %v620
                %v622 = vld [vmem:[%s148 + $0xe40] sm:$0xff]
                %623 = vst [vmem:[%s149 + $0x760] sm:$0xff] %v622
                %v624 = vld [vmem:[%s148 + $0xe48] sm:$0xff]
                %625 = vst [vmem:[%s149 + $0x768] sm:$0xff] %v624
                %v626 = vld [vmem:[%s148 + $0xe50] sm:$0xff]
                %627 = vst [vmem:[%s149 + $0x770] sm:$0xff] %v626
                %v628 = vld [vmem:[%s148 + $0xe58] sm:$0xff]
                %629 = vst [vmem:[%s149 + $0x778] sm:$0xff] %v628
                %v630 = vld [vmem:[%s148 + $0xe60] sm:$0xff]
                %631 = vst [vmem:[%s149 + $0x780] sm:$0xff] %v630
                %v632 = vld [vmem:[%s148 + $0xe68] sm:$0xff]
                %633 = vst [vmem:[%s149 + $0x788] sm:$0xff] %v632
                %v634 = vld [vmem:[%s148 + $0xe70] sm:$0xff]
                %635 = vst [vmem:[%s149 + $0x790] sm:$0xff] %v634
                %v636 = vld [vmem:[%s148 + $0xe78] sm:$0xff]
                %637 = vst [vmem:[%s149 + $0x798] sm:$0xff] %v636
                %v638 = vld [vmem:[%s148 + $0xe80] sm:$0xff]
                %639 = vst [vmem:[%s149 + $0x7a0] sm:$0xff] %v638
                %v640 = vld [vmem:[%s148 + $0xe88] sm:$0xff]
                %641 = vst [vmem:[%s149 + $0x7a8] sm:$0xff] %v640
                %v642 = vld [vmem:[%s148 + $0xe90] sm:$0xff]
                %643 = vst [vmem:[%s149 + $0x7b0] sm:$0xff] %v642
                %v644 = vld [vmem:[%s148 + $0xe98] sm:$0xff]
                %645 = vst [vmem:[%s149 + $0x7b8] sm:$0xff] %v644
                %v646 = vld [vmem:[%s148 + $0xea0] sm:$0xff]
                %647 = vst [vmem:[%s149 + $0x7c0] sm:$0xff] %v646
                %v648 = vld [vmem:[%s148 + $0xea8] sm:$0xff]
                %649 = vst [vmem:[%s149 + $0x7c8] sm:$0xff] %v648
                %v650 = vld [vmem:[%s148 + $0xeb0] sm:$0xff]
                %651 = vst [vmem:[%s149 + $0x7d0] sm:$0xff] %v650
                %v652 = vld [vmem:[%s148 + $0xeb8] sm:$0xff]
                %653 = vst [vmem:[%s149 + $0x7d8] sm:$0xff] %v652
                %v654 = vld [vmem:[%s148 + $0xec0] sm:$0xff]
                %655 = vst [vmem:[%s149 + $0x7e0] sm:$0xff] %v654
                %v656 = vld [vmem:[%s148 + $0xec8] sm:$0xff]
                %657 = vst [vmem:[%s149 + $0x7e8] sm:$0xff] %v656
                %v658 = vld [vmem:[%s148 + $0xed0] sm:$0xff]
                %659 = vst [vmem:[%s149 + $0x7f0] sm:$0xff] %v658
                %v660 = vld [vmem:[%s148 + $0xed8] sm:$0xff]
                %661 = vst [vmem:[%s149 + $0x7f8] sm:$0xff] %v660
                %v662 = vld [vmem:[%s148 + $0xee0] sm:$0xff]
                %663 = vst [vmem:[%s149 + $0x800] sm:$0xff] %v662
                %v664 = vld [vmem:[%s148 + $0xee8] sm:$0xff]
                %665 = vst [vmem:[%s149 + $0x808] sm:$0xff] %v664
                %v666 = vld [vmem:[%s148 + $0xef0] sm:$0xff]
                %667 = vst [vmem:[%s149 + $0x810] sm:$0xff] %v666
                %v668 = vld [vmem:[%s148 + $0xef8] sm:$0xff]
                %669 = vst [vmem:[%s149 + $0x818] sm:$0xff] %v668
                %v670 = vld [vmem:[%s148 + $0xf00] sm:$0xff]
                %671 = vst [vmem:[%s149 + $0x820] sm:$0xff] %v670
                %v672 = vld [vmem:[%s148 + $0xf08] sm:$0xff]
                %673 = vst [vmem:[%s149 + $0x828] sm:$0xff] %v672
                %v674 = vld [vmem:[%s148 + $0xf10] sm:$0xff]
                %675 = vst [vmem:[%s149 + $0x830] sm:$0xff] %v674
                %v676 = vld [vmem:[%s148 + $0xf18] sm:$0xff]
                %677 = vst [vmem:[%s149 + $0x838] sm:$0xff] %v676
                %v678 = vld [vmem:[%s148 + $0x1080] sm:$0xff]
                %679 = vst [vmem:[%s149 + $0x840] sm:$0xff] %v678
                %v680 = vld [vmem:[%s148 + $0x1088] sm:$0xff]
                %681 = vst [vmem:[%s149 + $0x848] sm:$0xff] %v680
                %v682 = vld [vmem:[%s148 + $0x1090] sm:$0xff]
                %683 = vst [vmem:[%s149 + $0x850] sm:$0xff] %v682
                %v684 = vld [vmem:[%s148 + $0x1098] sm:$0xff]
                %685 = vst [vmem:[%s149 + $0x858] sm:$0xff] %v684
                %v686 = vld [vmem:[%s148 + $0x10a0] sm:$0xff]
                %687 = vst [vmem:[%s149 + $0x860] sm:$0xff] %v686
                %v688 = vld [vmem:[%s148 + $0x10a8] sm:$0xff]
                %689 = vst [vmem:[%s149 + $0x868] sm:$0xff] %v688
                %v690 = vld [vmem:[%s148 + $0x10b0] sm:$0xff]
                %691 = vst [vmem:[%s149 + $0x870] sm:$0xff] %v690
                %v692 = vld [vmem:[%s148 + $0x10b8] sm:$0xff]
                %693 = vst [vmem:[%s149 + $0x878] sm:$0xff] %v692
                %v694 = vld [vmem:[%s148 + $0x10c0] sm:$0xff]
                %695 = vst [vmem:[%s149 + $0x880] sm:$0xff] %v694
                %v696 = vld [vmem:[%s148 + $0x10c8] sm:$0xff]
                %697 = vst [vmem:[%s149 + $0x888] sm:$0xff] %v696
                %v698 = vld [vmem:[%s148 + $0x10d0] sm:$0xff]
                %699 = vst [vmem:[%s149 + $0x890] sm:$0xff] %v698
                %v700 = vld [vmem:[%s148 + $0x10d8] sm:$0xff]
                %701 = vst [vmem:[%s149 + $0x898] sm:$0xff] %v700
                %v702 = vld [vmem:[%s148 + $0x10e0] sm:$0xff]
                %703 = vst [vmem:[%s149 + $0x8a0] sm:$0xff] %v702
                %v704 = vld [vmem:[%s148 + $0x10e8] sm:$0xff]
                %705 = vst [vmem:[%s149 + $0x8a8] sm:$0xff] %v704
                %v706 = vld [vmem:[%s148 + $0x10f0] sm:$0xff]
                %707 = vst [vmem:[%s149 + $0x8b0] sm:$0xff] %v706
                %v708 = vld [vmem:[%s148 + $0x10f8] sm:$0xff]
                %709 = vst [vmem:[%s149 + $0x8b8] sm:$0xff] %v708
                %v710 = vld [vmem:[%s148 + $0x1100] sm:$0xff]
                %711 = vst [vmem:[%s149 + $0x8c0] sm:$0xff] %v710
                %v712 = vld [vmem:[%s148 + $0x1108] sm:$0xff]
                %713 = vst [vmem:[%s149 + $0x8c8] sm:$0xff] %v712
                %v714 = vld [vmem:[%s148 + $0x1110] sm:$0xff]
                %715 = vst [vmem:[%s149 + $0x8d0] sm:$0xff] %v714
                %v716 = vld [vmem:[%s148 + $0x1118] sm:$0xff]
                %717 = vst [vmem:[%s149 + $0x8d8] sm:$0xff] %v716
                %v718 = vld [vmem:[%s148 + $0x1120] sm:$0xff]
                %719 = vst [vmem:[%s149 + $0x8e0] sm:$0xff] %v718
                %v720 = vld [vmem:[%s148 + $0x1128] sm:$0xff]
                %721 = vst [vmem:[%s149 + $0x8e8] sm:$0xff] %v720
                %v722 = vld [vmem:[%s148 + $0x1130] sm:$0xff]
                %723 = vst [vmem:[%s149 + $0x8f0] sm:$0xff] %v722
                %v724 = vld [vmem:[%s148 + $0x1138] sm:$0xff]
                %725 = vst [vmem:[%s149 + $0x8f8] sm:$0xff] %v724
                %v726 = vld [vmem:[%s148 + $0x1140] sm:$0xff]
                %727 = vst [vmem:[%s149 + $0x900] sm:$0xff] %v726
                %v728 = vld [vmem:[%s148 + $0x1148] sm:$0xff]
                %729 = vst [vmem:[%s149 + $0x908] sm:$0xff] %v728
                %v730 = vld [vmem:[%s148 + $0x1150] sm:$0xff]
                %731 = vst [vmem:[%s149 + $0x910] sm:$0xff] %v730
                %v732 = vld [vmem:[%s148 + $0x1158] sm:$0xff]
                %733 = vst [vmem:[%s149 + $0x918] sm:$0xff] %v732
                %v734 = vld [vmem:[%s148 + $0x1160] sm:$0xff]
                %735 = vst [vmem:[%s149 + $0x920] sm:$0xff] %v734
                %v736 = vld [vmem:[%s148 + $0x1168] sm:$0xff]
                %737 = vst [vmem:[%s149 + $0x928] sm:$0xff] %v736
                %v738 = vld [vmem:[%s148 + $0x1170] sm:$0xff]
                %739 = vst [vmem:[%s149 + $0x930] sm:$0xff] %v738
                %v740 = vld [vmem:[%s148 + $0x1178] sm:$0xff]
                %741 = vst [vmem:[%s149 + $0x938] sm:$0xff] %v740
                %v742 = vld [vmem:[%s148 + $0x1180] sm:$0xff]
                %743 = vst [vmem:[%s149 + $0x940] sm:$0xff] %v742
                %v744 = vld [vmem:[%s148 + $0x1188] sm:$0xff]
                %745 = vst [vmem:[%s149 + $0x948] sm:$0xff] %v744
                %v746 = vld [vmem:[%s148 + $0x1190] sm:$0xff]
                %747 = vst [vmem:[%s149 + $0x950] sm:$0xff] %v746
                %v748 = vld [vmem:[%s148 + $0x1198] sm:$0xff]
                %749 = vst [vmem:[%s149 + $0x958] sm:$0xff] %v748
                %v750 = vld [vmem:[%s148 + $0x11a0] sm:$0xff]
                %751 = vst [vmem:[%s149 + $0x960] sm:$0xff] %v750
                %v752 = vld [vmem:[%s148 + $0x11a8] sm:$0xff]
                %753 = vst [vmem:[%s149 + $0x968] sm:$0xff] %v752
                %v754 = vld [vmem:[%s148 + $0x11b0] sm:$0xff]
                %755 = vst [vmem:[%s149 + $0x970] sm:$0xff] %v754
                %v756 = vld [vmem:[%s148 + $0x11b8] sm:$0xff]
                %757 = vst [vmem:[%s149 + $0x978] sm:$0xff] %v756
                %v758 = vld [vmem:[%s148 + $0x11c0] sm:$0xff]
                %759 = vst [vmem:[%s149 + $0x980] sm:$0xff] %v758
                %v760 = vld [vmem:[%s148 + $0x11c8] sm:$0xff]
                %761 = vst [vmem:[%s149 + $0x988] sm:$0xff] %v760
                %v762 = vld [vmem:[%s148 + $0x11d0] sm:$0xff]
                %763 = vst [vmem:[%s149 + $0x990] sm:$0xff] %v762
                %v764 = vld [vmem:[%s148 + $0x11d8] sm:$0xff]
                %765 = vst [vmem:[%s149 + $0x998] sm:$0xff] %v764
                %v766 = vld [vmem:[%s148 + $0x1340] sm:$0xff]
                %767 = vst [vmem:[%s149 + $0x9a0] sm:$0xff] %v766
                %v768 = vld [vmem:[%s148 + $0x1348] sm:$0xff]
                %769 = vst [vmem:[%s149 + $0x9a8] sm:$0xff] %v768
                %v770 = vld [vmem:[%s148 + $0x1350] sm:$0xff]
                %771 = vst [vmem:[%s149 + $0x9b0] sm:$0xff] %v770
                %v772 = vld [vmem:[%s148 + $0x1358] sm:$0xff]
                %773 = vst [vmem:[%s149 + $0x9b8] sm:$0xff] %v772
                %v774 = vld [vmem:[%s148 + $0x1360] sm:$0xff]
                %775 = vst [vmem:[%s149 + $0x9c0] sm:$0xff] %v774
                %v776 = vld [vmem:[%s148 + $0x1368] sm:$0xff]
                %777 = vst [vmem:[%s149 + $0x9c8] sm:$0xff] %v776
                %v778 = vld [vmem:[%s148 + $0x1370] sm:$0xff]
                %779 = vst [vmem:[%s149 + $0x9d0] sm:$0xff] %v778
                %v780 = vld [vmem:[%s148 + $0x1378] sm:$0xff]
                %781 = vst [vmem:[%s149 + $0x9d8] sm:$0xff] %v780
                %v782 = vld [vmem:[%s148 + $0x1380] sm:$0xff]
                %783 = vst [vmem:[%s149 + $0x9e0] sm:$0xff] %v782
                %v784 = vld [vmem:[%s148 + $0x1388] sm:$0xff]
                %785 = vst [vmem:[%s149 + $0x9e8] sm:$0xff] %v784
                %v786 = vld [vmem:[%s148 + $0x1390] sm:$0xff]
                %787 = vst [vmem:[%s149 + $0x9f0] sm:$0xff] %v786
                %v788 = vld [vmem:[%s148 + $0x1398] sm:$0xff]
                %789 = vst [vmem:[%s149 + $0x9f8] sm:$0xff] %v788
                %v790 = vld [vmem:[%s148 + $0x13a0] sm:$0xff]
                %791 = vst [vmem:[%s149 + $0xa00] sm:$0xff] %v790
                %v792 = vld [vmem:[%s148 + $0x13a8] sm:$0xff]
                %793 = vst [vmem:[%s149 + $0xa08] sm:$0xff] %v792
                %v794 = vld [vmem:[%s148 + $0x13b0] sm:$0xff]
                %795 = vst [vmem:[%s149 + $0xa10] sm:$0xff] %v794
                %v796 = vld [vmem:[%s148 + $0x13b8] sm:$0xff]
                %797 = vst [vmem:[%s149 + $0xa18] sm:$0xff] %v796
                %v798 = vld [vmem:[%s148 + $0x13c0] sm:$0xff]
                %799 = vst [vmem:[%s149 + $0xa20] sm:$0xff] %v798
                %v800 = vld [vmem:[%s148 + $0x13c8] sm:$0xff]
                %801 = vst [vmem:[%s149 + $0xa28] sm:$0xff] %v800
                %v802 = vld [vmem:[%s148 + $0x13d0] sm:$0xff]
                %803 = vst [vmem:[%s149 + $0xa30] sm:$0xff] %v802
                %v804 = vld [vmem:[%s148 + $0x13d8] sm:$0xff]
                %805 = vst [vmem:[%s149 + $0xa38] sm:$0xff] %v804
                %v806 = vld [vmem:[%s148 + $0x13e0] sm:$0xff]
                %807 = vst [vmem:[%s149 + $0xa40] sm:$0xff] %v806
                %v808 = vld [vmem:[%s148 + $0x13e8] sm:$0xff]
                %809 = vst [vmem:[%s149 + $0xa48] sm:$0xff] %v808
                %v810 = vld [vmem:[%s148 + $0x13f0] sm:$0xff]
                %811 = vst [vmem:[%s149 + $0xa50] sm:$0xff] %v810
                %v812 = vld [vmem:[%s148 + $0x13f8] sm:$0xff]
                %813 = vst [vmem:[%s149 + $0xa58] sm:$0xff] %v812
                %v814 = vld [vmem:[%s148 + $0x1400] sm:$0xff]
                %815 = vst [vmem:[%s149 + $0xa60] sm:$0xff] %v814
                %v816 = vld [vmem:[%s148 + $0x1408] sm:$0xff]
                %817 = vst [vmem:[%s149 + $0xa68] sm:$0xff] %v816
                %v818 = vld [vmem:[%s148 + $0x1410] sm:$0xff]
                %819 = vst [vmem:[%s149 + $0xa70] sm:$0xff] %v818
                %v820 = vld [vmem:[%s148 + $0x1418] sm:$0xff]
                %821 = vst [vmem:[%s149 + $0xa78] sm:$0xff] %v820
                %v822 = vld [vmem:[%s148 + $0x1420] sm:$0xff]
                %823 = vst [vmem:[%s149 + $0xa80] sm:$0xff] %v822
                %v824 = vld [vmem:[%s148 + $0x1428] sm:$0xff]
                %825 = vst [vmem:[%s149 + $0xa88] sm:$0xff] %v824
                %v826 = vld [vmem:[%s148 + $0x1430] sm:$0xff]
                %827 = vst [vmem:[%s149 + $0xa90] sm:$0xff] %v826
                %v828 = vld [vmem:[%s148 + $0x1438] sm:$0xff]
                %829 = vst [vmem:[%s149 + $0xa98] sm:$0xff] %v828
                %v830 = vld [vmem:[%s148 + $0x1440] sm:$0xff]
                %831 = vst [vmem:[%s149 + $0xaa0] sm:$0xff] %v830
                %v832 = vld [vmem:[%s148 + $0x1448] sm:$0xff]
                %833 = vst [vmem:[%s149 + $0xaa8] sm:$0xff] %v832
                %v834 = vld [vmem:[%s148 + $0x1450] sm:$0xff]
                %835 = vst [vmem:[%s149 + $0xab0] sm:$0xff] %v834
                %v836 = vld [vmem:[%s148 + $0x1458] sm:$0xff]
                %837 = vst [vmem:[%s149 + $0xab8] sm:$0xff] %v836
                %v838 = vld [vmem:[%s148 + $0x1460] sm:$0xff]
                %839 = vst [vmem:[%s149 + $0xac0] sm:$0xff] %v838
                %v840 = vld [vmem:[%s148 + $0x1468] sm:$0xff]
                %841 = vst [vmem:[%s149 + $0xac8] sm:$0xff] %v840
                %v842 = vld [vmem:[%s148 + $0x1470] sm:$0xff]
                %843 = vst [vmem:[%s149 + $0xad0] sm:$0xff] %v842
                %v844 = vld [vmem:[%s148 + $0x1478] sm:$0xff]
                %845 = vst [vmem:[%s149 + $0xad8] sm:$0xff] %v844
                %v846 = vld [vmem:[%s148 + $0x1480] sm:$0xff]
                %847 = vst [vmem:[%s149 + $0xae0] sm:$0xff] %v846
                %v848 = vld [vmem:[%s148 + $0x1488] sm:$0xff]
                %849 = vst [vmem:[%s149 + $0xae8] sm:$0xff] %v848
                %v850 = vld [vmem:[%s148 + $0x1490] sm:$0xff]
                %851 = vst [vmem:[%s149 + $0xaf0] sm:$0xff] %v850
                %v852 = vld [vmem:[%s148 + $0x1498] sm:$0xff]
                %853 = vst [vmem:[%s149 + $0xaf8] sm:$0xff] %v852
                %v854 = vld [vmem:[%s148 + $0x1600] sm:$0xff]
                %855 = vst [vmem:[%s149 + $0xb00] sm:$0xff] %v854
                %v856 = vld [vmem:[%s148 + $0x1608] sm:$0xff]
                %857 = vst [vmem:[%s149 + $0xb08] sm:$0xff] %v856
                %v858 = vld [vmem:[%s148 + $0x1610] sm:$0xff]
                %859 = vst [vmem:[%s149 + $0xb10] sm:$0xff] %v858
                %v860 = vld [vmem:[%s148 + $0x1618] sm:$0xff]
                %861 = vst [vmem:[%s149 + $0xb18] sm:$0xff] %v860
                %v862 = vld [vmem:[%s148 + $0x1620] sm:$0xff]
                %863 = vst [vmem:[%s149 + $0xb20] sm:$0xff] %v862
                %v864 = vld [vmem:[%s148 + $0x1628] sm:$0xff]
                %865 = vst [vmem:[%s149 + $0xb28] sm:$0xff] %v864
                %v866 = vld [vmem:[%s148 + $0x1630] sm:$0xff]
                %867 = vst [vmem:[%s149 + $0xb30] sm:$0xff] %v866
                %v868 = vld [vmem:[%s148 + $0x1638] sm:$0xff]
                %869 = vst [vmem:[%s149 + $0xb38] sm:$0xff] %v868
                %v870 = vld [vmem:[%s148 + $0x1640] sm:$0xff]
                %871 = vst [vmem:[%s149 + $0xb40] sm:$0xff] %v870
                %v872 = vld [vmem:[%s148 + $0x1648] sm:$0xff]
                %873 = vst [vmem:[%s149 + $0xb48] sm:$0xff] %v872
                %v874 = vld [vmem:[%s148 + $0x1650] sm:$0xff]
                %875 = vst [vmem:[%s149 + $0xb50] sm:$0xff] %v874
                %v876 = vld [vmem:[%s148 + $0x1658] sm:$0xff]
                %877 = vst [vmem:[%s149 + $0xb58] sm:$0xff] %v876
                %v878 = vld [vmem:[%s148 + $0x1660] sm:$0xff]
                %879 = vst [vmem:[%s149 + $0xb60] sm:$0xff] %v878
                %v880 = vld [vmem:[%s148 + $0x1668] sm:$0xff]
                %881 = vst [vmem:[%s149 + $0xb68] sm:$0xff] %v880
                %v882 = vld [vmem:[%s148 + $0x1670] sm:$0xff]
                %883 = vst [vmem:[%s149 + $0xb70] sm:$0xff] %v882
                %v884 = vld [vmem:[%s148 + $0x1678] sm:$0xff]
                %885 = vst [vmem:[%s149 + $0xb78] sm:$0xff] %v884
                %v886 = vld [vmem:[%s148 + $0x1680] sm:$0xff]
                %887 = vst [vmem:[%s149 + $0xb80] sm:$0xff] %v886
                %v888 = vld [vmem:[%s148 + $0x1688] sm:$0xff]
                %889 = vst [vmem:[%s149 + $0xb88] sm:$0xff] %v888
                %v890 = vld [vmem:[%s148 + $0x1690] sm:$0xff]
                %891 = vst [vmem:[%s149 + $0xb90] sm:$0xff] %v890
                %v892 = vld [vmem:[%s148 + $0x1698] sm:$0xff]
                %893 = vst [vmem:[%s149 + $0xb98] sm:$0xff] %v892
                %v894 = vld [vmem:[%s148 + $0x16a0] sm:$0xff]
                %895 = vst [vmem:[%s149 + $0xba0] sm:$0xff] %v894
                %v896 = vld [vmem:[%s148 + $0x16a8] sm:$0xff]
                %897 = vst [vmem:[%s149 + $0xba8] sm:$0xff] %v896
                %v898 = vld [vmem:[%s148 + $0x16b0] sm:$0xff]
                %899 = vst [vmem:[%s149 + $0xbb0] sm:$0xff] %v898
                %v900 = vld [vmem:[%s148 + $0x16b8] sm:$0xff]
                %901 = vst [vmem:[%s149 + $0xbb8] sm:$0xff] %v900
                %v902 = vld [vmem:[%s148 + $0x16c0] sm:$0xff]
                %903 = vst [vmem:[%s149 + $0xbc0] sm:$0xff] %v902
                %v904 = vld [vmem:[%s148 + $0x16c8] sm:$0xff]
                %905 = vst [vmem:[%s149 + $0xbc8] sm:$0xff] %v904
                %v906 = vld [vmem:[%s148 + $0x16d0] sm:$0xff]
                %907 = vst [vmem:[%s149 + $0xbd0] sm:$0xff] %v906
                %v908 = vld [vmem:[%s148 + $0x16d8] sm:$0xff]
                %909 = vst [vmem:[%s149 + $0xbd8] sm:$0xff] %v908
                %v910 = vld [vmem:[%s148 + $0x16e0] sm:$0xff]
                %911 = vst [vmem:[%s149 + $0xbe0] sm:$0xff] %v910
                %v912 = vld [vmem:[%s148 + $0x16e8] sm:$0xff]
                %913 = vst [vmem:[%s149 + $0xbe8] sm:$0xff] %v912
                %v914 = vld [vmem:[%s148 + $0x16f0] sm:$0xff]
                %915 = vst [vmem:[%s149 + $0xbf0] sm:$0xff] %v914
                %v916 = vld [vmem:[%s148 + $0x16f8] sm:$0xff]
                %917 = vst [vmem:[%s149 + $0xbf8] sm:$0xff] %v916
                %v918 = vld [vmem:[%s148 + $0x1700] sm:$0xff]
                %919 = vst [vmem:[%s149 + $0xc00] sm:$0xff] %v918
                %v920 = vld [vmem:[%s148 + $0x1708] sm:$0xff]
                %921 = vst [vmem:[%s149 + $0xc08] sm:$0xff] %v920
                %v922 = vld [vmem:[%s148 + $0x1710] sm:$0xff]
                %923 = vst [vmem:[%s149 + $0xc10] sm:$0xff] %v922
                %v924 = vld [vmem:[%s148 + $0x1718] sm:$0xff]
                %925 = vst [vmem:[%s149 + $0xc18] sm:$0xff] %v924
                %v926 = vld [vmem:[%s148 + $0x1720] sm:$0xff]
                %927 = vst [vmem:[%s149 + $0xc20] sm:$0xff] %v926
                %v928 = vld [vmem:[%s148 + $0x1728] sm:$0xff]
                %929 = vst [vmem:[%s149 + $0xc28] sm:$0xff] %v928
                %v930 = vld [vmem:[%s148 + $0x1730] sm:$0xff]
                %931 = vst [vmem:[%s149 + $0xc30] sm:$0xff] %v930
                %v932 = vld [vmem:[%s148 + $0x1738] sm:$0xff]
                %933 = vst [vmem:[%s149 + $0xc38] sm:$0xff] %v932
                %v934 = vld [vmem:[%s148 + $0x1740] sm:$0xff]
                %935 = vst [vmem:[%s149 + $0xc40] sm:$0xff] %v934
                %v936 = vld [vmem:[%s148 + $0x1748] sm:$0xff]
                %937 = vst [vmem:[%s149 + $0xc48] sm:$0xff] %v936
                %v938 = vld [vmem:[%s148 + $0x1750] sm:$0xff]
                %939 = vst [vmem:[%s149 + $0xc50] sm:$0xff] %v938
                %v940 = vld [vmem:[%s148 + $0x1758] sm:$0xff]
                %941 = vst [vmem:[%s149 + $0xc58] sm:$0xff] %v940
                %v942 = vld [vmem:[%s148 + $0x18c0] sm:$0xff]
                %943 = vst [vmem:[%s149 + $0xc60] sm:$0xff] %v942
                %v944 = vld [vmem:[%s148 + $0x18c8] sm:$0xff]
                %945 = vst [vmem:[%s149 + $0xc68] sm:$0xff] %v944
                %v946 = vld [vmem:[%s148 + $0x18d0] sm:$0xff]
                %947 = vst [vmem:[%s149 + $0xc70] sm:$0xff] %v946
                %v948 = vld [vmem:[%s148 + $0x18d8] sm:$0xff]
                %949 = vst [vmem:[%s149 + $0xc78] sm:$0xff] %v948
                %v950 = vld [vmem:[%s148 + $0x18e0] sm:$0xff]
                %951 = vst [vmem:[%s149 + $0xc80] sm:$0xff] %v950
                %v952 = vld [vmem:[%s148 + $0x18e8] sm:$0xff]
                %953 = vst [vmem:[%s149 + $0xc88] sm:$0xff] %v952
                %v954 = vld [vmem:[%s148 + $0x18f0] sm:$0xff]
                %955 = vst [vmem:[%s149 + $0xc90] sm:$0xff] %v954
                %v956 = vld [vmem:[%s148 + $0x18f8] sm:$0xff]
                %957 = vst [vmem:[%s149 + $0xc98] sm:$0xff] %v956
                %v958 = vld [vmem:[%s148 + $0x1900] sm:$0xff]
                %959 = vst [vmem:[%s149 + $0xca0] sm:$0xff] %v958
                %v960 = vld [vmem:[%s148 + $0x1908] sm:$0xff]
                %961 = vst [vmem:[%s149 + $0xca8] sm:$0xff] %v960
                %v962 = vld [vmem:[%s148 + $0x1910] sm:$0xff]
                %963 = vst [vmem:[%s149 + $0xcb0] sm:$0xff] %v962
                %v964 = vld [vmem:[%s148 + $0x1918] sm:$0xff]
                %965 = vst [vmem:[%s149 + $0xcb8] sm:$0xff] %v964
                %v966 = vld [vmem:[%s148 + $0x1920] sm:$0xff]
                %967 = vst [vmem:[%s149 + $0xcc0] sm:$0xff] %v966
                %v968 = vld [vmem:[%s148 + $0x1928] sm:$0xff]
                %969 = vst [vmem:[%s149 + $0xcc8] sm:$0xff] %v968
                %v970 = vld [vmem:[%s148 + $0x1930] sm:$0xff]
                %971 = vst [vmem:[%s149 + $0xcd0] sm:$0xff] %v970
                %v972 = vld [vmem:[%s148 + $0x1938] sm:$0xff]
                %973 = vst [vmem:[%s149 + $0xcd8] sm:$0xff] %v972
                %v974 = vld [vmem:[%s148 + $0x1940] sm:$0xff]
                %975 = vst [vmem:[%s149 + $0xce0] sm:$0xff] %v974
                %v976 = vld [vmem:[%s148 + $0x1948] sm:$0xff]
                %977 = vst [vmem:[%s149 + $0xce8] sm:$0xff] %v976
                %v978 = vld [vmem:[%s148 + $0x1950] sm:$0xff]
                %979 = vst [vmem:[%s149 + $0xcf0] sm:$0xff] %v978
                %v980 = vld [vmem:[%s148 + $0x1958] sm:$0xff]
                %981 = vst [vmem:[%s149 + $0xcf8] sm:$0xff] %v980
                %v982 = vld [vmem:[%s148 + $0x1960] sm:$0xff]
                %983 = vst [vmem:[%s149 + $0xd00] sm:$0xff] %v982
                %v984 = vld [vmem:[%s148 + $0x1968] sm:$0xff]
                %985 = vst [vmem:[%s149 + $0xd08] sm:$0xff] %v984
                %v986 = vld [vmem:[%s148 + $0x1970] sm:$0xff]
                %987 = vst [vmem:[%s149 + $0xd10] sm:$0xff] %v986
                %v988 = vld [vmem:[%s148 + $0x1978] sm:$0xff]
                %989 = vst [vmem:[%s149 + $0xd18] sm:$0xff] %v988
                %v990 = vld [vmem:[%s148 + $0x1980] sm:$0xff]
                %991 = vst [vmem:[%s149 + $0xd20] sm:$0xff] %v990
                %v992 = vld [vmem:[%s148 + $0x1988] sm:$0xff]
                %993 = vst [vmem:[%s149 + $0xd28] sm:$0xff] %v992
                %v994 = vld [vmem:[%s148 + $0x1990] sm:$0xff]
                %995 = vst [vmem:[%s149 + $0xd30] sm:$0xff] %v994
                %v996 = vld [vmem:[%s148 + $0x1998] sm:$0xff]
                %997 = vst [vmem:[%s149 + $0xd38] sm:$0xff] %v996
                %v998 = vld [vmem:[%s148 + $0x19a0] sm:$0xff]
                %999 = vst [vmem:[%s149 + $0xd40] sm:$0xff] %v998
                %v1000 = vld [vmem:[%s148 + $0x19a8] sm:$0xff]
                %1001 = vst [vmem:[%s149 + $0xd48] sm:$0xff] %v1000
                %v1002 = vld [vmem:[%s148 + $0x19b0] sm:$0xff]
                %1003 = vst [vmem:[%s149 + $0xd50] sm:$0xff] %v1002
                %v1004 = vld [vmem:[%s148 + $0x19b8] sm:$0xff]
                %1005 = vst [vmem:[%s149 + $0xd58] sm:$0xff] %v1004
                %v1006 = vld [vmem:[%s148 + $0x19c0] sm:$0xff]
                %1007 = vst [vmem:[%s149 + $0xd60] sm:$0xff] %v1006
                %v1008 = vld [vmem:[%s148 + $0x19c8] sm:$0xff]
                %1009 = vst [vmem:[%s149 + $0xd68] sm:$0xff] %v1008
                %v1010 = vld [vmem:[%s148 + $0x19d0] sm:$0xff]
                %1011 = vst [vmem:[%s149 + $0xd70] sm:$0xff] %v1010
                %v1012 = vld [vmem:[%s148 + $0x19d8] sm:$0xff]
                %1013 = vst [vmem:[%s149 + $0xd78] sm:$0xff] %v1012
                %v1014 = vld [vmem:[%s148 + $0x19e0] sm:$0xff]
                %1015 = vst [vmem:[%s149 + $0xd80] sm:$0xff] %v1014
                %v1016 = vld [vmem:[%s148 + $0x19e8] sm:$0xff]
                %1017 = vst [vmem:[%s149 + $0xd88] sm:$0xff] %v1016
                %v1018 = vld [vmem:[%s148 + $0x19f0] sm:$0xff]
                %1019 = vst [vmem:[%s149 + $0xd90] sm:$0xff] %v1018
                %v1020 = vld [vmem:[%s148 + $0x19f8] sm:$0xff]
                %1021 = vst [vmem:[%s149 + $0xd98] sm:$0xff] %v1020
                %v1022 = vld [vmem:[%s148 + $0x1a00] sm:$0xff]
                %1023 = vst [vmem:[%s149 + $0xda0] sm:$0xff] %v1022
                %v1024 = vld [vmem:[%s148 + $0x1a08] sm:$0xff]
                %1025 = vst [vmem:[%s149 + $0xda8] sm:$0xff] %v1024
                %v1026 = vld [vmem:[%s148 + $0x1a10] sm:$0xff]
                %1027 = vst [vmem:[%s149 + $0xdb0] sm:$0xff] %v1026
                %v1028 = vld [vmem:[%s148 + $0x1a18] sm:$0xff]
                %1029 = vst [vmem:[%s149 + $0xdb8] sm:$0xff] %v1028
                %v1030 = vld [vmem:[%s148 + $0x1b80] sm:$0xff]
                %1031 = vst [vmem:[%s149 + $0xdc0] sm:$0xff] %v1030
                %v1032 = vld [vmem:[%s148 + $0x1b88] sm:$0xff]
                %1033 = vst [vmem:[%s149 + $0xdc8] sm:$0xff] %v1032
                %v1034 = vld [vmem:[%s148 + $0x1b90] sm:$0xff]
                %1035 = vst [vmem:[%s149 + $0xdd0] sm:$0xff] %v1034
                %v1036 = vld [vmem:[%s148 + $0x1b98] sm:$0xff]
                %1037 = vst [vmem:[%s149 + $0xdd8] sm:$0xff] %v1036
                %v1038 = vld [vmem:[%s148 + $0x1ba0] sm:$0xff]
                %1039 = vst [vmem:[%s149 + $0xde0] sm:$0xff] %v1038
                %v1040 = vld [vmem:[%s148 + $0x1ba8] sm:$0xff]
                %1041 = vst [vmem:[%s149 + $0xde8] sm:$0xff] %v1040
                %v1042 = vld [vmem:[%s148 + $0x1bb0] sm:$0xff]
                %1043 = vst [vmem:[%s149 + $0xdf0] sm:$0xff] %v1042
                %v1044 = vld [vmem:[%s148 + $0x1bb8] sm:$0xff]
                %1045 = vst [vmem:[%s149 + $0xdf8] sm:$0xff] %v1044
                %v1046 = vld [vmem:[%s148 + $0x1bc0] sm:$0xff]
                %1047 = vst [vmem:[%s149 + $0xe00] sm:$0xff] %v1046
                %v1048 = vld [vmem:[%s148 + $0x1bc8] sm:$0xff]
                %1049 = vst [vmem:[%s149 + $0xe08] sm:$0xff] %v1048
                %v1050 = vld [vmem:[%s148 + $0x1bd0] sm:$0xff]
                %1051 = vst [vmem:[%s149 + $0xe10] sm:$0xff] %v1050
                %v1052 = vld [vmem:[%s148 + $0x1bd8] sm:$0xff]
                %1053 = vst [vmem:[%s149 + $0xe18] sm:$0xff] %v1052
                %v1054 = vld [vmem:[%s148 + $0x1be0] sm:$0xff]
                %1055 = vst [vmem:[%s149 + $0xe20] sm:$0xff] %v1054
                %v1056 = vld [vmem:[%s148 + $0x1be8] sm:$0xff]
                %1057 = vst [vmem:[%s149 + $0xe28] sm:$0xff] %v1056
                %v1058 = vld [vmem:[%s148 + $0x1bf0] sm:$0xff]
                %1059 = vst [vmem:[%s149 + $0xe30] sm:$0xff] %v1058
                %v1060 = vld [vmem:[%s148 + $0x1bf8] sm:$0xff]
                %1061 = vst [vmem:[%s149 + $0xe38] sm:$0xff] %v1060
                %v1062 = vld [vmem:[%s148 + $0x1c00] sm:$0xff]
                %1063 = vst [vmem:[%s149 + $0xe40] sm:$0xff] %v1062
                %v1064 = vld [vmem:[%s148 + $0x1c08] sm:$0xff]
                %1065 = vst [vmem:[%s149 + $0xe48] sm:$0xff] %v1064
                %v1066 = vld [vmem:[%s148 + $0x1c10] sm:$0xff]
                %1067 = vst [vmem:[%s149 + $0xe50] sm:$0xff] %v1066
                %v1068 = vld [vmem:[%s148 + $0x1c18] sm:$0xff]
                %1069 = vst [vmem:[%s149 + $0xe58] sm:$0xff] %v1068
                %v1070 = vld [vmem:[%s148 + $0x1c20] sm:$0xff]
                %1071 = vst [vmem:[%s149 + $0xe60] sm:$0xff] %v1070
                %v1072 = vld [vmem:[%s148 + $0x1c28] sm:$0xff]
                %1073 = vst [vmem:[%s149 + $0xe68] sm:$0xff] %v1072
                %v1074 = vld [vmem:[%s148 + $0x1c30] sm:$0xff]
                %1075 = vst [vmem:[%s149 + $0xe70] sm:$0xff] %v1074
                %v1076 = vld [vmem:[%s148 + $0x1c38] sm:$0xff]
                %1077 = vst [vmem:[%s149 + $0xe78] sm:$0xff] %v1076
                %v1078 = vld [vmem:[%s148 + $0x1c40] sm:$0xff]
                %1079 = vst [vmem:[%s149 + $0xe80] sm:$0xff] %v1078
                %v1080 = vld [vmem:[%s148 + $0x1c48] sm:$0xff]
                %1081 = vst [vmem:[%s149 + $0xe88] sm:$0xff] %v1080
                %v1082 = vld [vmem:[%s148 + $0x1c50] sm:$0xff]
                %1083 = vst [vmem:[%s149 + $0xe90] sm:$0xff] %v1082
                %v1084 = vld [vmem:[%s148 + $0x1c58] sm:$0xff]
                %1085 = vst [vmem:[%s149 + $0xe98] sm:$0xff] %v1084
                %v1086 = vld [vmem:[%s148 + $0x1c60] sm:$0xff]
                %1087 = vst [vmem:[%s149 + $0xea0] sm:$0xff] %v1086
                %v1088 = vld [vmem:[%s148 + $0x1c68] sm:$0xff]
                %1089 = vst [vmem:[%s149 + $0xea8] sm:$0xff] %v1088
                %v1090 = vld [vmem:[%s148 + $0x1c70] sm:$0xff]
                %1091 = vst [vmem:[%s149 + $0xeb0] sm:$0xff] %v1090
                %v1092 = vld [vmem:[%s148 + $0x1c78] sm:$0xff]
                %1093 = vst [vmem:[%s149 + $0xeb8] sm:$0xff] %v1092
                %v1094 = vld [vmem:[%s148 + $0x1c80] sm:$0xff]
                %1095 = vst [vmem:[%s149 + $0xec0] sm:$0xff] %v1094
                %v1096 = vld [vmem:[%s148 + $0x1c88] sm:$0xff]
                %1097 = vst [vmem:[%s149 + $0xec8] sm:$0xff] %v1096
                %v1098 = vld [vmem:[%s148 + $0x1c90] sm:$0xff]
                %1099 = vst [vmem:[%s149 + $0xed0] sm:$0xff] %v1098
                %v1100 = vld [vmem:[%s148 + $0x1c98] sm:$0xff]
                %1101 = vst [vmem:[%s149 + $0xed8] sm:$0xff] %v1100
                %v1102 = vld [vmem:[%s148 + $0x1ca0] sm:$0xff]
                %1103 = vst [vmem:[%s149 + $0xee0] sm:$0xff] %v1102
                %v1104 = vld [vmem:[%s148 + $0x1ca8] sm:$0xff]
                %1105 = vst [vmem:[%s149 + $0xee8] sm:$0xff] %v1104
                %v1106 = vld [vmem:[%s148 + $0x1cb0] sm:$0xff]
                %1107 = vst [vmem:[%s149 + $0xef0] sm:$0xff] %v1106
                %v1108 = vld [vmem:[%s148 + $0x1cb8] sm:$0xff]
                %1109 = vst [vmem:[%s149 + $0xef8] sm:$0xff] %v1108
                %v1110 = vld [vmem:[%s148 + $0x1cc0] sm:$0xff]
                %1111 = vst [vmem:[%s149 + $0xf00] sm:$0xff] %v1110
                %v1112 = vld [vmem:[%s148 + $0x1cc8] sm:$0xff]
                %1113 = vst [vmem:[%s149 + $0xf08] sm:$0xff] %v1112
                %v1114 = vld [vmem:[%s148 + $0x1cd0] sm:$0xff]
                %1115 = vst [vmem:[%s149 + $0xf10] sm:$0xff] %v1114
                %v1116 = vld [vmem:[%s148 + $0x1cd8] sm:$0xff]
                %1117 = vst [vmem:[%s149 + $0xf18] sm:$0xff] %v1116
                %v1118 = vld [vmem:[%s148 + $0x1e40] sm:$0xff]
                %1119 = vst [vmem:[%s149 + $0xf20] sm:$0xff] %v1118
                %v1120 = vld [vmem:[%s148 + $0x1e48] sm:$0xff]
                %1121 = vst [vmem:[%s149 + $0xf28] sm:$0xff] %v1120
                %v1122 = vld [vmem:[%s148 + $0x1e50] sm:$0xff]
                %1123 = vst [vmem:[%s149 + $0xf30] sm:$0xff] %v1122
                %v1124 = vld [vmem:[%s148 + $0x1e58] sm:$0xff]
                %1125 = vst [vmem:[%s149 + $0xf38] sm:$0xff] %v1124
                %v1126 = vld [vmem:[%s148 + $0x1e60] sm:$0xff]
                %1127 = vst [vmem:[%s149 + $0xf40] sm:$0xff] %v1126
                %v1128 = vld [vmem:[%s148 + $0x1e68] sm:$0xff]
                %1129 = vst [vmem:[%s149 + $0xf48] sm:$0xff] %v1128
                %v1130 = vld [vmem:[%s148 + $0x1e70] sm:$0xff]
                %1131 = vst [vmem:[%s149 + $0xf50] sm:$0xff] %v1130
                %v1132 = vld [vmem:[%s148 + $0x1e78] sm:$0xff]
                %1133 = vst [vmem:[%s149 + $0xf58] sm:$0xff] %v1132
                %v1134 = vld [vmem:[%s148 + $0x1e80] sm:$0xff]
                %1135 = vst [vmem:[%s149 + $0xf60] sm:$0xff] %v1134
                %v1136 = vld [vmem:[%s148 + $0x1e88] sm:$0xff]
                %1137 = vst [vmem:[%s149 + $0xf68] sm:$0xff] %v1136
                %v1138 = vld [vmem:[%s148 + $0x1e90] sm:$0xff]
                %1139 = vst [vmem:[%s149 + $0xf70] sm:$0xff] %v1138
                %v1140 = vld [vmem:[%s148 + $0x1e98] sm:$0xff]
                %1141 = vst [vmem:[%s149 + $0xf78] sm:$0xff] %v1140
                %v1142 = vld [vmem:[%s148 + $0x1ea0] sm:$0xff]
                %1143 = vst [vmem:[%s149 + $0xf80] sm:$0xff] %v1142
                %v1144 = vld [vmem:[%s148 + $0x1ea8] sm:$0xff]
                %1145 = vst [vmem:[%s149 + $0xf88] sm:$0xff] %v1144
                %v1146 = vld [vmem:[%s148 + $0x1eb0] sm:$0xff]
                %1147 = vst [vmem:[%s149 + $0xf90] sm:$0xff] %v1146
                %v1148 = vld [vmem:[%s148 + $0x1eb8] sm:$0xff]
                %1149 = vst [vmem:[%s149 + $0xf98] sm:$0xff] %v1148
                %v1150 = vld [vmem:[%s148 + $0x1ec0] sm:$0xff]
                %1151 = vst [vmem:[%s149 + $0xfa0] sm:$0xff] %v1150
                %v1152 = vld [vmem:[%s148 + $0x1ec8] sm:$0xff]
                %1153 = vst [vmem:[%s149 + $0xfa8] sm:$0xff] %v1152
                %v1154 = vld [vmem:[%s148 + $0x1ed0] sm:$0xff]
                %1155 = vst [vmem:[%s149 + $0xfb0] sm:$0xff] %v1154
                %v1156 = vld [vmem:[%s148 + $0x1ed8] sm:$0xff]
                %1157 = vst [vmem:[%s149 + $0xfb8] sm:$0xff] %v1156
                %v1158 = vld [vmem:[%s148 + $0x1ee0] sm:$0xff]
                %1159 = vst [vmem:[%s149 + $0xfc0] sm:$0xff] %v1158
                %v1160 = vld [vmem:[%s148 + $0x1ee8] sm:$0xff]
                %1161 = vst [vmem:[%s149 + $0xfc8] sm:$0xff] %v1160
                %v1162 = vld [vmem:[%s148 + $0x1ef0] sm:$0xff]
                %1163 = vst [vmem:[%s149 + $0xfd0] sm:$0xff] %v1162
                %v1164 = vld [vmem:[%s148 + $0x1ef8] sm:$0xff]
                %1165 = vst [vmem:[%s149 + $0xfd8] sm:$0xff] %v1164
                %v1166 = vld [vmem:[%s148 + $0x1f00] sm:$0xff]
                %1167 = vst [vmem:[%s149 + $0xfe0] sm:$0xff] %v1166
                %v1168 = vld [vmem:[%s148 + $0x1f08] sm:$0xff]
                %1169 = vst [vmem:[%s149 + $0xfe8] sm:$0xff] %v1168
                %v1170 = vld [vmem:[%s148 + $0x1f10] sm:$0xff]
                %1171 = vst [vmem:[%s149 + $0xff0] sm:$0xff] %v1170
                %v1172 = vld [vmem:[%s148 + $0x1f18] sm:$0xff]
                %1173 = vst [vmem:[%s149 + $0xff8] sm:$0xff] %v1172
                %v1174 = vld [vmem:[%s148 + $0x1f20] sm:$0xff]
                %1175 = vst [vmem:[%s149 + $0x1000] sm:$0xff] %v1174
                %v1176 = vld [vmem:[%s148 + $0x1f28] sm:$0xff]
                %1177 = vst [vmem:[%s149 + $0x1008] sm:$0xff] %v1176
                %v1178 = vld [vmem:[%s148 + $0x1f30] sm:$0xff]
                %1179 = vst [vmem:[%s149 + $0x1010] sm:$0xff] %v1178
                %v1180 = vld [vmem:[%s148 + $0x1f38] sm:$0xff]
                %1181 = vst [vmem:[%s149 + $0x1018] sm:$0xff] %v1180
                %v1182 = vld [vmem:[%s148 + $0x1f40] sm:$0xff]
                %1183 = vst [vmem:[%s149 + $0x1020] sm:$0xff] %v1182
                %v1184 = vld [vmem:[%s148 + $0x1f48] sm:$0xff]
                %1185 = vst [vmem:[%s149 + $0x1028] sm:$0xff] %v1184
                %v1186 = vld [vmem:[%s148 + $0x1f50] sm:$0xff]
                %1187 = vst [vmem:[%s149 + $0x1030] sm:$0xff] %v1186
                %v1188 = vld [vmem:[%s148 + $0x1f58] sm:$0xff]
                %1189 = vst [vmem:[%s149 + $0x1038] sm:$0xff] %v1188
                %v1190 = vld [vmem:[%s148 + $0x1f60] sm:$0xff]
                %1191 = vst [vmem:[%s149 + $0x1040] sm:$0xff] %v1190
                %v1192 = vld [vmem:[%s148 + $0x1f68] sm:$0xff]
                %1193 = vst [vmem:[%s149 + $0x1048] sm:$0xff] %v1192
                %v1194 = vld [vmem:[%s148 + $0x1f70] sm:$0xff]
                %1195 = vst [vmem:[%s149 + $0x1050] sm:$0xff] %v1194
                %v1196 = vld [vmem:[%s148 + $0x1f78] sm:$0xff]
                %1197 = vst [vmem:[%s149 + $0x1058] sm:$0xff] %v1196
                %v1198 = vld [vmem:[%s148 + $0x1f80] sm:$0xff]
                %1199 = vst [vmem:[%s149 + $0x1060] sm:$0xff] %v1198
                %v1200 = vld [vmem:[%s148 + $0x1f88] sm:$0xff]
                %1201 = vst [vmem:[%s149 + $0x1068] sm:$0xff] %v1200
                %v1202 = vld [vmem:[%s148 + $0x1f90] sm:$0xff]
                %1203 = vst [vmem:[%s149 + $0x1070] sm:$0xff] %v1202
                %v1204 = vld [vmem:[%s148 + $0x1f98] sm:$0xff]
                %1205 = vst [vmem:[%s149 + $0x1078] sm:$0xff] %v1204
                %v1206 = vld [vmem:[%s148 + $0x2100] sm:$0xff]
                %1207 = vst [vmem:[%s149 + $0x1080] sm:$0xff] %v1206
                %v1208 = vld [vmem:[%s148 + $0x2108] sm:$0xff]
                %1209 = vst [vmem:[%s149 + $0x1088] sm:$0xff] %v1208
                %v1210 = vld [vmem:[%s148 + $0x2110] sm:$0xff]
                %1211 = vst [vmem:[%s149 + $0x1090] sm:$0xff] %v1210
                %v1212 = vld [vmem:[%s148 + $0x2118] sm:$0xff]
                %1213 = vst [vmem:[%s149 + $0x1098] sm:$0xff] %v1212
                %v1214 = vld [vmem:[%s148 + $0x2120] sm:$0xff]
                %1215 = vst [vmem:[%s149 + $0x10a0] sm:$0xff] %v1214
                %v1216 = vld [vmem:[%s148 + $0x2128] sm:$0xff]
                %1217 = vst [vmem:[%s149 + $0x10a8] sm:$0xff] %v1216
                %v1218 = vld [vmem:[%s148 + $0x2130] sm:$0xff]
                %1219 = vst [vmem:[%s149 + $0x10b0] sm:$0xff] %v1218
                %v1220 = vld [vmem:[%s148 + $0x2138] sm:$0xff]
                %1221 = vst [vmem:[%s149 + $0x10b8] sm:$0xff] %v1220
                %v1222 = vld [vmem:[%s148 + $0x2140] sm:$0xff]
                %1223 = vst [vmem:[%s149 + $0x10c0] sm:$0xff] %v1222
                %v1224 = vld [vmem:[%s148 + $0x2148] sm:$0xff]
                %1225 = vst [vmem:[%s149 + $0x10c8] sm:$0xff] %v1224
                %v1226 = vld [vmem:[%s148 + $0x2150] sm:$0xff]
                %1227 = vst [vmem:[%s149 + $0x10d0] sm:$0xff] %v1226
                %v1228 = vld [vmem:[%s148 + $0x2158] sm:$0xff]
                %1229 = vst [vmem:[%s149 + $0x10d8] sm:$0xff] %v1228
                %v1230 = vld [vmem:[%s148 + $0x2160] sm:$0xff]
                %1231 = vst [vmem:[%s149 + $0x10e0] sm:$0xff] %v1230
                %v1232 = vld [vmem:[%s148 + $0x2168] sm:$0xff]
                %1233 = vst [vmem:[%s149 + $0x10e8] sm:$0xff] %v1232
                %v1234 = vld [vmem:[%s148 + $0x2170] sm:$0xff]
                %1235 = vst [vmem:[%s149 + $0x10f0] sm:$0xff] %v1234
                %v1236 = vld [vmem:[%s148 + $0x2178] sm:$0xff]
                %1237 = vst [vmem:[%s149 + $0x10f8] sm:$0xff] %v1236
                %v1238 = vld [vmem:[%s148 + $0x2180] sm:$0xff]
                %1239 = vst [vmem:[%s149 + $0x1100] sm:$0xff] %v1238
                %v1240 = vld [vmem:[%s148 + $0x2188] sm:$0xff]
                %1241 = vst [vmem:[%s149 + $0x1108] sm:$0xff] %v1240
                %v1242 = vld [vmem:[%s148 + $0x2190] sm:$0xff]
                %1243 = vst [vmem:[%s149 + $0x1110] sm:$0xff] %v1242
                %v1244 = vld [vmem:[%s148 + $0x2198] sm:$0xff]
                %1245 = vst [vmem:[%s149 + $0x1118] sm:$0xff] %v1244
                %v1246 = vld [vmem:[%s148 + $0x21a0] sm:$0xff]
                %1247 = vst [vmem:[%s149 + $0x1120] sm:$0xff] %v1246
                %v1248 = vld [vmem:[%s148 + $0x21a8] sm:$0xff]
                %1249 = vst [vmem:[%s149 + $0x1128] sm:$0xff] %v1248
                %v1250 = vld [vmem:[%s148 + $0x21b0] sm:$0xff]
                %1251 = vst [vmem:[%s149 + $0x1130] sm:$0xff] %v1250
                %v1252 = vld [vmem:[%s148 + $0x21b8] sm:$0xff]
                %1253 = vst [vmem:[%s149 + $0x1138] sm:$0xff] %v1252
                %v1254 = vld [vmem:[%s148 + $0x21c0] sm:$0xff]
                %1255 = vst [vmem:[%s149 + $0x1140] sm:$0xff] %v1254
                %v1256 = vld [vmem:[%s148 + $0x21c8] sm:$0xff]
                %1257 = vst [vmem:[%s149 + $0x1148] sm:$0xff] %v1256
                %v1258 = vld [vmem:[%s148 + $0x21d0] sm:$0xff]
                %1259 = vst [vmem:[%s149 + $0x1150] sm:$0xff] %v1258
                %v1260 = vld [vmem:[%s148 + $0x21d8] sm:$0xff]
                %1261 = vst [vmem:[%s149 + $0x1158] sm:$0xff] %v1260
                %v1262 = vld [vmem:[%s148 + $0x21e0] sm:$0xff]
                %1263 = vst [vmem:[%s149 + $0x1160] sm:$0xff] %v1262
                %v1264 = vld [vmem:[%s148 + $0x21e8] sm:$0xff]
                %1265 = vst [vmem:[%s149 + $0x1168] sm:$0xff] %v1264
                %v1266 = vld [vmem:[%s148 + $0x21f0] sm:$0xff]
                %1267 = vst [vmem:[%s149 + $0x1170] sm:$0xff] %v1266
                %v1268 = vld [vmem:[%s148 + $0x21f8] sm:$0xff]
                %1269 = vst [vmem:[%s149 + $0x1178] sm:$0xff] %v1268
                %v1270 = vld [vmem:[%s148 + $0x2200] sm:$0xff]
                %1271 = vst [vmem:[%s149 + $0x1180] sm:$0xff] %v1270
                %v1272 = vld [vmem:[%s148 + $0x2208] sm:$0xff]
                %1273 = vst [vmem:[%s149 + $0x1188] sm:$0xff] %v1272
                %v1274 = vld [vmem:[%s148 + $0x2210] sm:$0xff]
                %1275 = vst [vmem:[%s149 + $0x1190] sm:$0xff] %v1274
                %v1276 = vld [vmem:[%s148 + $0x2218] sm:$0xff]
                %1277 = vst [vmem:[%s149 + $0x1198] sm:$0xff] %v1276
                %v1278 = vld [vmem:[%s148 + $0x2220] sm:$0xff]
                %1279 = vst [vmem:[%s149 + $0x11a0] sm:$0xff] %v1278
                %v1280 = vld [vmem:[%s148 + $0x2228] sm:$0xff]
                %1281 = vst [vmem:[%s149 + $0x11a8] sm:$0xff] %v1280
                %v1282 = vld [vmem:[%s148 + $0x2230] sm:$0xff]
                %1283 = vst [vmem:[%s149 + $0x11b0] sm:$0xff] %v1282
                %v1284 = vld [vmem:[%s148 + $0x2238] sm:$0xff]
                %1285 = vst [vmem:[%s149 + $0x11b8] sm:$0xff] %v1284
                %v1286 = vld [vmem:[%s148 + $0x2240] sm:$0xff]
                %1287 = vst [vmem:[%s149 + $0x11c0] sm:$0xff] %v1286
                %v1288 = vld [vmem:[%s148 + $0x2248] sm:$0xff]
                %1289 = vst [vmem:[%s149 + $0x11c8] sm:$0xff] %v1288
                %v1290 = vld [vmem:[%s148 + $0x2250] sm:$0xff]
                %1291 = vst [vmem:[%s149 + $0x11d0] sm:$0xff] %v1290
                %v1292 = vld [vmem:[%s148 + $0x2258] sm:$0xff]
                %1293 = vst [vmem:[%s149 + $0x11d8] sm:$0xff] %v1292
              $region41: #{cnn_forward.2} parent=35 // loop_footer
                %s147 = sadd.s32 1, %s143
              $region42: #{cnn_forward.2} parent=35 // loop_footer_branch
                %142 = sbr.rel target = $region38
              $region43: #{cnn_forward.2} parent=35 // loop_exit
                _
            $region36: #{cnn_forward.2} parent=31 // pred_fallthru
              _
            // Predicated region
            $region44: #{cnn_forward.2} parent=31 // pred_check
              _
            $region45: #{cnn_forward.2} parent=31 // pred_check_branch
              %1295 = sbr.rel target = $region47
            $region46: #{cnn_forward.2} parent=31 // pred_region
              _
            $region47: #{cnn_forward.2} parent=31 // pred_fallthru
              _
          $region32: #{cnn_forward.2} parent=27 // pred_fallthru
            _
          %1296 = vnop
        $region28: #{cnn_forward.2} parent=23 // pred_fallthru
          _
      $region24: #{cnn_forward.2} parent=5 // pred_fallthru
        _
      %p1297 = scmp.le.s32.totalorder 1, %s9
      %p1298 = scmp.lt.s32.totalorder %s9, 3
      %p1299 = pnand %p1297, %p1298
      %p1300 = pneg %p1299
      // Predicated region
      $region48: #{cnn_forward.2} parent=5 // pred_check
        _
      $region49: #{cnn_forward.2} parent=5 // pred_check_branch
        %1302 = sbr.rel (%p1299) target = $region51
      $region50: #{cnn_forward.2} parent=5 // pred_region
        %s1303 = ssub.s32 %s9, 1
        %s1304 = sand.u32 %s43, 1
        %s1305 = sand.u32 %s43, 1
        %s1306 = smul.addr %s1305, 4576
        %s1307 = scalar_lea.vmem [#allocation2], %s1306
        // Predicated region
        $region52: #{cnn_forward.2} parent=50 // pred_check
          %p1308 = pneg %p56
        $region53: #{cnn_forward.2} parent=50 // pred_check_branch
          %1310 = sbr.rel (%p1308) target = $region55
        $region54: #{cnn_forward.2} parent=50 // pred_region
          _
        $region55: #{cnn_forward.2} parent=50 // pred_fallthru
          _
        %p1311 = pneg %p30
        %p1312 = pneg %p27
        %s1313 = sand.u32 %s43, 1
        %s1314 = sand.u32 %s43, 1
        %s1315 = smul.addr %s1314, 4576
        %s1316 = scalar_lea.vmem [#allocation2], %s1315
        %p1317 = pneg %p56
        %p1318 = pneg %p53
        %p1319 = pneg %p77
        %p1320 = pneg %p74
        %p1321 = pneg %p103
        %p1322 = pneg %p100
        %s1323 = sand.u32 %s90, 1
        %s1324 = sand.u32 %s90, 1
        %s1325 = smul.addr %s1324, 704
        %s1326 = scalar_lea.vmem [#allocation3], %s1325
        %s1327 = smul.u32 44, %s14
        %s1328 = smul.u32 44, %s14
        %v1329 = vld [vmem:[%s0] sm:$0xff]
        %v1330 = vld [vmem:[%s0 + $0x8] sm:$0xff]
        %v1331 = vld [vmem:[%s1307] sm:$0xff]
        %v1332 = vld [vmem:[%s1307 + $0x8] sm:$0xff]
        %v1333 = vld [vmem:[%s1307 + $0x10] sm:$0xff]
        %v1334 = vld [vmem:[%s1307 + $0x18] sm:$0xff]
        %v1335 = vld [vmem:[%s1307 + $0x20] sm:$0xff]
        %v1336 = vld [vmem:[%s1307 + $0x28] sm:$0xff]
        %v1337 = vld [vmem:[%s1307 + $0x30] sm:$0xff]
        %v1338 = vld [vmem:[%s1307 + $0x38] sm:$0xff]
        %v1339 = vld [vmem:[%s1307 + $0x40] sm:$0xff]
        %v1340 = vld [vmem:[%s1307 + $0x48] sm:$0xff]
        %v1341 = vld [vmem:[%s1307 + $0x50] sm:$0xff]
        %v1342 = vld [vmem:[%s1307 + $0x58] sm:$0xff]
        %v1343 = vld [vmem:[%s1307 + $0x60] sm:$0xff]
        %v1344 = vld [vmem:[%s1307 + $0x68] sm:$0xff]
        %v1345 = vld [vmem:[%s1307 + $0x70] sm:$0xff]
        %v1346 = vld [vmem:[%s1307 + $0x78] sm:$0xff]
        %v1347 = vld [vmem:[%s1307 + $0x80] sm:$0xff]
        %v1348 = vld [vmem:[%s1307 + $0x88] sm:$0xff]
        %v1349 = vld [vmem:[%s1307 + $0x90] sm:$0xff]
        %v1350 = vld [vmem:[%s1307 + $0x98] sm:$0xff]
        %v1351 = vld [vmem:[%s1307 + $0xa0] sm:$0xff]
        %v1352 = vld [vmem:[%s1307 + $0xa8] sm:$0xff]
        %v1353 = vld [vmem:[%s1307 + $0xb0] sm:$0xff]
        %v1354 = vld [vmem:[%s1307 + $0xb8] sm:$0xff]
        %v1355 = vld [vmem:[%s1307 + $0xc0] sm:$0xff]
        %v1356 = vld [vmem:[%s1307 + $0xc8] sm:$0xff]
        %v1357 = vld [vmem:[%s1307 + $0xd0] sm:$0xff]
        %v1358 = vld [vmem:[%s1307 + $0xd8] sm:$0xff]
        %v1359 = vld [vmem:[%s1307 + $0xe0] sm:$0xff]
        %v1360 = vld [vmem:[%s1307 + $0xe8] sm:$0xff]
        %v1361 = vld [vmem:[%s1307 + $0xf0] sm:$0xff]
        %v1362 = vld [vmem:[%s1307 + $0xf8] sm:$0xff]
        %v1363 = vld [vmem:[%s1307 + $0x100] sm:$0xff]
        %v1364 = vld [vmem:[%s1307 + $0x108] sm:$0xff]
        %v1365 = vld [vmem:[%s1307 + $0x110] sm:$0xff]
        %v1366 = vld [vmem:[%s1307 + $0x118] sm:$0xff]
        %v1367 = vld [vmem:[%s1307 + $0x120] sm:$0xff]
        %v1368 = vld [vmem:[%s1307 + $0x128] sm:$0xff]
        %v1369 = vld [vmem:[%s1307 + $0x130] sm:$0xff]
        %v1370 = vld [vmem:[%s1307 + $0x138] sm:$0xff]
        %v1371 = vld [vmem:[%s1307 + $0x140] sm:$0xff]
        %v1372 = vld [vmem:[%s1307 + $0x148] sm:$0xff]
        %v1373 = vld [vmem:[%s1307 + $0x150] sm:$0xff]
        %v1374 = vld [vmem:[%s1307 + $0x158] sm:$0xff]
        %v1375 = vld [vmem:[%s1307 + $0x160] sm:$0xff]
        %v1376 = vld [vmem:[%s1307 + $0x168] sm:$0xff]
        %v1377 = vld [vmem:[%s1307 + $0x170] sm:$0xff]
        %v1378 = vld [vmem:[%s1307 + $0x178] sm:$0xff]
        %v1379 = vld [vmem:[%s1307 + $0x180] sm:$0xff]
        %v1380 = vld [vmem:[%s1307 + $0x188] sm:$0xff]
        %v1381 = vld [vmem:[%s1307 + $0x190] sm:$0xff]
        %v1382 = vld [vmem:[%s1307 + $0x198] sm:$0xff]
        %v1383 = vld [vmem:[%s1307 + $0x1a0] sm:$0xff]
        %v1384 = vld [vmem:[%s1307 + $0x1a8] sm:$0xff]
        %v1385 = vld [vmem:[%s1307 + $0x1b0] sm:$0xff]
        %v1386 = vld [vmem:[%s1307 + $0x1b8] sm:$0xff]
        %v1387 = vld [vmem:[%s1307 + $0x1c0] sm:$0xff]
        %v1388 = vld [vmem:[%s1307 + $0x1c8] sm:$0xff]
        %v1389 = vld [vmem:[%s1307 + $0x1d0] sm:$0xff]
        %v1390 = vld [vmem:[%s1307 + $0x1d8] sm:$0xff]
        %v1391 = vld [vmem:[%s1307 + $0x1e0] sm:$0xff]
        %v1392 = vld [vmem:[%s1307 + $0x1e8] sm:$0xff]
        %v1393 = vld [vmem:[%s1307 + $0x1f0] sm:$0xff]
        %v1394 = vld [vmem:[%s1307 + $0x1f8] sm:$0xff]
        %v1395 = vld [vmem:[%s1307 + $0x200] sm:$0xff]
        %v1396 = vld [vmem:[%s1307 + $0x208] sm:$0xff]
        %v1397 = vld [vmem:[%s1307 + $0x210] sm:$0xff]
        %v1398 = vld [vmem:[%s1307 + $0x218] sm:$0xff]
        %v1399 = vld [vmem:[%s1307 + $0x220] sm:$0xff]
        %v1400 = vld [vmem:[%s1307 + $0x228] sm:$0xff]
        %v1401 = vld [vmem:[%s1307 + $0x230] sm:$0xff]
        %v1402 = vld [vmem:[%s1307 + $0x238] sm:$0xff]
        %v1403 = vld [vmem:[%s1307 + $0x240] sm:$0xff]
        %v1404 = vld [vmem:[%s1307 + $0x248] sm:$0xff]
        %v1405 = vld [vmem:[%s1307 + $0x250] sm:$0xff]
        %v1406 = vld [vmem:[%s1307 + $0x258] sm:$0xff]
        %v1407 = vld [vmem:[%s1307 + $0x260] sm:$0xff]
        %v1408 = vld [vmem:[%s1307 + $0x268] sm:$0xff]
        %v1409 = vld [vmem:[%s1307 + $0x270] sm:$0xff]
        %v1410 = vld [vmem:[%s1307 + $0x278] sm:$0xff]
        %v1411 = vld [vmem:[%s1307 + $0x280] sm:$0xff]
        %v1412 = vld [vmem:[%s1307 + $0x288] sm:$0xff]
        %v1413 = vld [vmem:[%s1307 + $0x290] sm:$0xff]
        %v1414 = vld [vmem:[%s1307 + $0x298] sm:$0xff]
        %v1415 = vld [vmem:[%s1307 + $0x2a0] sm:$0xff]
        %v1416 = vld [vmem:[%s1307 + $0x2a8] sm:$0xff]
        %v1417 = vld [vmem:[%s1307 + $0x2b0] sm:$0xff]
        %v1418 = vld [vmem:[%s1307 + $0x2b8] sm:$0xff]
        %v1419 = vld [vmem:[%s1307 + $0x2c0] sm:$0xff]
        %v1420 = vld [vmem:[%s1307 + $0x2c8] sm:$0xff]
        %v1421 = vld [vmem:[%s1307 + $0x2d0] sm:$0xff]
        %v1422 = vld [vmem:[%s1307 + $0x2d8] sm:$0xff]
        %v1423 = vld [vmem:[%s1307 + $0x2e0] sm:$0xff]
        %v1424 = vld [vmem:[%s1307 + $0x2e8] sm:$0xff]
        %v1425 = vld [vmem:[%s1307 + $0x2f0] sm:$0xff]
        %v1426 = vld [vmem:[%s1307 + $0x2f8] sm:$0xff]
        %v1427 = vld [vmem:[%s1307 + $0x300] sm:$0xff]
        %v1428 = vld [vmem:[%s1307 + $0x308] sm:$0xff]
        %v1429 = vld [vmem:[%s1307 + $0x310] sm:$0xff]
        %v1430 = vld [vmem:[%s1307 + $0x318] sm:$0xff]
        %v1431 = vld [vmem:[%s1307 + $0x320] sm:$0xff]
        %v1432 = vld [vmem:[%s1307 + $0x328] sm:$0xff]
        %v1433 = vld [vmem:[%s1307 + $0x330] sm:$0xff]
        %v1434 = vld [vmem:[%s1307 + $0x338] sm:$0xff]
        %v1435 = vld [vmem:[%s1307 + $0x340] sm:$0xff]
        %v1436 = vld [vmem:[%s1307 + $0x348] sm:$0xff]
        %v1437 = vld [vmem:[%s1307 + $0x350] sm:$0xff]
        %v1438 = vld [vmem:[%s1307 + $0x358] sm:$0xff]
        %v1439 = vld [vmem:[%s1307 + $0x360] sm:$0xff]
        %v1440 = vld [vmem:[%s1307 + $0x368] sm:$0xff]
        %v1441 = vld [vmem:[%s1307 + $0x370] sm:$0xff]
        %v1442 = vld [vmem:[%s1307 + $0x378] sm:$0xff]
        %v1443 = vld [vmem:[%s1307 + $0x380] sm:$0xff]
        %v1444 = vld [vmem:[%s1307 + $0x388] sm:$0xff]
        %v1445 = vld [vmem:[%s1307 + $0x390] sm:$0xff]
        %v1446 = vld [vmem:[%s1307 + $0x398] sm:$0xff]
        %v1447 = vld [vmem:[%s1307 + $0x3a0] sm:$0xff]
        %v1448 = vld [vmem:[%s1307 + $0x3a8] sm:$0xff]
        %v1449 = vld [vmem:[%s1307 + $0x3b0] sm:$0xff]
        %v1450 = vld [vmem:[%s1307 + $0x3b8] sm:$0xff]
        %v1451 = vld [vmem:[%s1307 + $0x3c0] sm:$0xff]
        %v1452 = vld [vmem:[%s1307 + $0x3c8] sm:$0xff]
        %v1453 = vld [vmem:[%s1307 + $0x3d0] sm:$0xff]
        %v1454 = vld [vmem:[%s1307 + $0x3d8] sm:$0xff]
        %v1455 = vld [vmem:[%s1307 + $0x3e0] sm:$0xff]
        %v1456 = vld [vmem:[%s1307 + $0x3e8] sm:$0xff]
        %v1457 = vld [vmem:[%s1307 + $0x3f0] sm:$0xff]
        %v1458 = vld [vmem:[%s1307 + $0x3f8] sm:$0xff]
        %v1459 = vld [vmem:[%s1307 + $0x400] sm:$0xff]
        %v1460 = vld [vmem:[%s1307 + $0x408] sm:$0xff]
        %v1461 = vld [vmem:[%s1307 + $0x410] sm:$0xff]
        %v1462 = vld [vmem:[%s1307 + $0x418] sm:$0xff]
        %v1463 = vld [vmem:[%s1307 + $0x420] sm:$0xff]
        %v1464 = vld [vmem:[%s1307 + $0x428] sm:$0xff]
        %v1465 = vld [vmem:[%s1307 + $0x430] sm:$0xff]
        %v1466 = vld [vmem:[%s1307 + $0x438] sm:$0xff]
        %v1467 = vld [vmem:[%s1307 + $0x440] sm:$0xff]
        %v1468 = vld [vmem:[%s1307 + $0x448] sm:$0xff]
        %v1469 = vld [vmem:[%s1307 + $0x450] sm:$0xff]
        %v1470 = vld [vmem:[%s1307 + $0x458] sm:$0xff]
        %v1471 = vld [vmem:[%s1307 + $0x460] sm:$0xff]
        %v1472 = vld [vmem:[%s1307 + $0x468] sm:$0xff]
        %v1473 = vld [vmem:[%s1307 + $0x470] sm:$0xff]
        %v1474 = vld [vmem:[%s1307 + $0x478] sm:$0xff]
        %v1475 = vld [vmem:[%s1307 + $0x480] sm:$0xff]
        %v1476 = vld [vmem:[%s1307 + $0x488] sm:$0xff]
        %v1477 = vld [vmem:[%s1307 + $0x490] sm:$0xff]
        %v1478 = vld [vmem:[%s1307 + $0x498] sm:$0xff]
        %v1479 = vld [vmem:[%s1307 + $0x4a0] sm:$0xff]
        %v1480 = vld [vmem:[%s1307 + $0x4a8] sm:$0xff]
        %v1481 = vld [vmem:[%s1307 + $0x4b0] sm:$0xff]
        %v1482 = vld [vmem:[%s1307 + $0x4b8] sm:$0xff]
        %v1483 = vld [vmem:[%s1307 + $0x4c0] sm:$0xff]
        %v1484 = vld [vmem:[%s1307 + $0x4c8] sm:$0xff]
        %v1485 = vld [vmem:[%s1307 + $0x4d0] sm:$0xff]
        %v1486 = vld [vmem:[%s1307 + $0x4d8] sm:$0xff]
        %v1487 = vld [vmem:[%s1307 + $0x4e0] sm:$0xff]
        %v1488 = vld [vmem:[%s1307 + $0x4e8] sm:$0xff]
        %v1489 = vld [vmem:[%s1307 + $0x4f0] sm:$0xff]
        %v1490 = vld [vmem:[%s1307 + $0x4f8] sm:$0xff]
        %v1491 = vld [vmem:[%s1307 + $0x500] sm:$0xff]
        %v1492 = vld [vmem:[%s1307 + $0x508] sm:$0xff]
        %v1493 = vld [vmem:[%s1307 + $0x510] sm:$0xff]
        %v1494 = vld [vmem:[%s1307 + $0x518] sm:$0xff]
        %v1495 = vld [vmem:[%s1307 + $0x520] sm:$0xff]
        %v1496 = vld [vmem:[%s1307 + $0x528] sm:$0xff]
        %v1497 = vld [vmem:[%s1307 + $0x530] sm:$0xff]
        %v1498 = vld [vmem:[%s1307 + $0x538] sm:$0xff]
        %v1499 = vld [vmem:[%s1307 + $0x540] sm:$0xff]
        %v1500 = vld [vmem:[%s1307 + $0x548] sm:$0xff]
        %v1501 = vld [vmem:[%s1307 + $0x550] sm:$0xff]
        %v1502 = vld [vmem:[%s1307 + $0x558] sm:$0xff]
        %v1503 = vld [vmem:[%s1307 + $0x560] sm:$0xff]
        %v1504 = vld [vmem:[%s1307 + $0x568] sm:$0xff]
        %v1505 = vld [vmem:[%s1307 + $0x570] sm:$0xff]
        %v1506 = vld [vmem:[%s1307 + $0x578] sm:$0xff]
        %v1507 = vld [vmem:[%s1307 + $0x580] sm:$0xff]
        %v1508 = vld [vmem:[%s1307 + $0x588] sm:$0xff]
        %v1509 = vld [vmem:[%s1307 + $0x590] sm:$0xff]
        %v1510 = vld [vmem:[%s1307 + $0x598] sm:$0xff]
        %v1511 = vld [vmem:[%s1307 + $0x5a0] sm:$0xff]
        %v1512 = vld [vmem:[%s1307 + $0x5a8] sm:$0xff]
        %v1513 = vld [vmem:[%s1307 + $0x5b0] sm:$0xff]
        %v1514 = vld [vmem:[%s1307 + $0x5b8] sm:$0xff]
        %v1515 = vld [vmem:[%s1307 + $0x5c0] sm:$0xff]
        %v1516 = vld [vmem:[%s1307 + $0x5c8] sm:$0xff]
        %v1517 = vld [vmem:[%s1307 + $0x5d0] sm:$0xff]
        %v1518 = vld [vmem:[%s1307 + $0x5d8] sm:$0xff]
        %v1519 = vld [vmem:[%s1307 + $0x5e0] sm:$0xff]
        %v1520 = vld [vmem:[%s1307 + $0x5e8] sm:$0xff]
        %v1521 = vld [vmem:[%s1307 + $0x5f0] sm:$0xff]
        %v1522 = vld [vmem:[%s1307 + $0x5f8] sm:$0xff]
        %v1523 = vld [vmem:[%s1307 + $0x600] sm:$0xff]
        %v1524 = vld [vmem:[%s1307 + $0x608] sm:$0xff]
        %v1525 = vld [vmem:[%s1307 + $0x610] sm:$0xff]
        %v1526 = vld [vmem:[%s1307 + $0x618] sm:$0xff]
        %v1527 = vld [vmem:[%s1307 + $0x620] sm:$0xff]
        %v1528 = vld [vmem:[%s1307 + $0x628] sm:$0xff]
        %v1529 = vld [vmem:[%s1307 + $0x630] sm:$0xff]
        %v1530 = vld [vmem:[%s1307 + $0x638] sm:$0xff]
        %v1531 = vld [vmem:[%s1307 + $0x640] sm:$0xff]
        %v1532 = vld [vmem:[%s1307 + $0x648] sm:$0xff]
        %v1533 = vld [vmem:[%s1307 + $0x650] sm:$0xff]
        %v1534 = vld [vmem:[%s1307 + $0x658] sm:$0xff]
        %v1535 = vld [vmem:[%s1307 + $0x660] sm:$0xff]
        %v1536 = vld [vmem:[%s1307 + $0x668] sm:$0xff]
        %v1537 = vld [vmem:[%s1307 + $0x670] sm:$0xff]
        %v1538 = vld [vmem:[%s1307 + $0x678] sm:$0xff]
        %v1539 = vld [vmem:[%s1307 + $0x680] sm:$0xff]
        %v1540 = vld [vmem:[%s1307 + $0x688] sm:$0xff]
        %v1541 = vld [vmem:[%s1307 + $0x690] sm:$0xff]
        %v1542 = vld [vmem:[%s1307 + $0x698] sm:$0xff]
        %v1543 = vld [vmem:[%s1307 + $0x6a0] sm:$0xff]
        %v1544 = vld [vmem:[%s1307 + $0x6a8] sm:$0xff]
        %v1545 = vld [vmem:[%s1307 + $0x6b0] sm:$0xff]
        %v1546 = vld [vmem:[%s1307 + $0x6b8] sm:$0xff]
        %v1547 = vld [vmem:[%s1307 + $0x6c0] sm:$0xff]
        %v1548 = vld [vmem:[%s1307 + $0x6c8] sm:$0xff]
        %v1549 = vld [vmem:[%s1307 + $0x6d0] sm:$0xff]
        %v1550 = vld [vmem:[%s1307 + $0x6d8] sm:$0xff]
        %v1551 = vld [vmem:[%s1307 + $0x6e0] sm:$0xff]
        %v1552 = vld [vmem:[%s1307 + $0x6e8] sm:$0xff]
        %v1553 = vld [vmem:[%s1307 + $0x6f0] sm:$0xff]
        %v1554 = vld [vmem:[%s1307 + $0x6f8] sm:$0xff]
        %v1555 = vld [vmem:[%s1307 + $0x700] sm:$0xff]
        %v1556 = vld [vmem:[%s1307 + $0x708] sm:$0xff]
        %v1557 = vld [vmem:[%s1307 + $0x710] sm:$0xff]
        %v1558 = vld [vmem:[%s1307 + $0x718] sm:$0xff]
        %v1559 = vld [vmem:[%s1307 + $0x720] sm:$0xff]
        %v1560 = vld [vmem:[%s1307 + $0x728] sm:$0xff]
        %v1561 = vld [vmem:[%s1307 + $0x730] sm:$0xff]
        %v1562 = vld [vmem:[%s1307 + $0x738] sm:$0xff]
        %v1563 = vld [vmem:[%s1307 + $0x740] sm:$0xff]
        %v1564 = vld [vmem:[%s1307 + $0x748] sm:$0xff]
        %v1565 = vld [vmem:[%s1307 + $0x750] sm:$0xff]
        %v1566 = vld [vmem:[%s1307 + $0x758] sm:$0xff]
        %v1567 = vld [vmem:[%s1307 + $0x760] sm:$0xff]
        %v1568 = vld [vmem:[%s1307 + $0x768] sm:$0xff]
        %v1569 = vld [vmem:[%s1307 + $0x770] sm:$0xff]
        %v1570 = vld [vmem:[%s1307 + $0x778] sm:$0xff]
        %v1571 = vld [vmem:[%s1307 + $0x780] sm:$0xff]
        %v1572 = vld [vmem:[%s1307 + $0x788] sm:$0xff]
        %v1573 = vld [vmem:[%s1307 + $0x790] sm:$0xff]
        %v1574 = vld [vmem:[%s1307 + $0x798] sm:$0xff]
        %v1575 = vld [vmem:[%s1307 + $0x7a0] sm:$0xff]
        %v1576 = vld [vmem:[%s1307 + $0x7a8] sm:$0xff]
        %v1577 = vld [vmem:[%s1307 + $0x7b0] sm:$0xff]
        %v1578 = vld [vmem:[%s1307 + $0x7b8] sm:$0xff]
        %v1579 = vld [vmem:[%s1307 + $0x7c0] sm:$0xff]
        %v1580 = vld [vmem:[%s1307 + $0x7c8] sm:$0xff]
        %v1581 = vld [vmem:[%s1307 + $0x7d0] sm:$0xff]
        %v1582 = vld [vmem:[%s1307 + $0x7d8] sm:$0xff]
        %v1583 = vld [vmem:[%s1307 + $0x7e0] sm:$0xff]
        %v1584 = vld [vmem:[%s1307 + $0x7e8] sm:$0xff]
        %v1585 = vld [vmem:[%s1307 + $0x7f0] sm:$0xff]
        %v1586 = vld [vmem:[%s1307 + $0x7f8] sm:$0xff]
        %v1587 = vld [vmem:[%s1307 + $0x800] sm:$0xff]
        %v1588 = vld [vmem:[%s1307 + $0x808] sm:$0xff]
        %v1589 = vld [vmem:[%s1307 + $0x810] sm:$0xff]
        %v1590 = vld [vmem:[%s1307 + $0x818] sm:$0xff]
        %v1591 = vld [vmem:[%s1307 + $0x820] sm:$0xff]
        %v1592 = vld [vmem:[%s1307 + $0x828] sm:$0xff]
        %v1593 = vld [vmem:[%s1307 + $0x830] sm:$0xff]
        %v1594 = vld [vmem:[%s1307 + $0x838] sm:$0xff]
        %v1595 = vld [vmem:[%s1307 + $0x840] sm:$0xff]
        %v1596 = vld [vmem:[%s1307 + $0x848] sm:$0xff]
        %v1597 = vld [vmem:[%s1307 + $0x850] sm:$0xff]
        %v1598 = vld [vmem:[%s1307 + $0x858] sm:$0xff]
        %v1599 = vld [vmem:[%s1307 + $0x860] sm:$0xff]
        %v1600 = vld [vmem:[%s1307 + $0x868] sm:$0xff]
        %v1601 = vld [vmem:[%s1307 + $0x870] sm:$0xff]
        %v1602 = vld [vmem:[%s1307 + $0x878] sm:$0xff]
        %v1603 = vld [vmem:[%s1307 + $0x880] sm:$0xff]
        %v1604 = vld [vmem:[%s1307 + $0x888] sm:$0xff]
        %v1605 = vld [vmem:[%s1307 + $0x890] sm:$0xff]
        %v1606 = vld [vmem:[%s1307 + $0x898] sm:$0xff]
        %v1607 = vld [vmem:[%s1307 + $0x8a0] sm:$0xff]
        %v1608 = vld [vmem:[%s1307 + $0x8a8] sm:$0xff]
        %v1609 = vld [vmem:[%s1307 + $0x8b0] sm:$0xff]
        %v1610 = vld [vmem:[%s1307 + $0x8b8] sm:$0xff]
        %v1611 = vld [vmem:[%s1307 + $0x8c0] sm:$0xff]
        %v1612 = vld [vmem:[%s1307 + $0x8c8] sm:$0xff]
        %v1613 = vld [vmem:[%s1307 + $0x8d0] sm:$0xff]
        %v1614 = vld [vmem:[%s1307 + $0x8d8] sm:$0xff]
        %v1615 = vld [vmem:[%s1307 + $0x8e0] sm:$0xff]
        %v1616 = vld [vmem:[%s1307 + $0x8e8] sm:$0xff]
        %v1617 = vld [vmem:[%s1307 + $0x8f0] sm:$0xff]
        %v1618 = vld [vmem:[%s1307 + $0x8f8] sm:$0xff]
        %v1619 = vld [vmem:[%s1307 + $0x900] sm:$0xff]
        %v1620 = vld [vmem:[%s1307 + $0x908] sm:$0xff]
        %v1621 = vld [vmem:[%s1307 + $0x910] sm:$0xff]
        %v1622 = vld [vmem:[%s1307 + $0x918] sm:$0xff]
        %v1623 = vld [vmem:[%s1307 + $0x920] sm:$0xff]
        %v1624 = vld [vmem:[%s1307 + $0x928] sm:$0xff]
        %v1625 = vld [vmem:[%s1307 + $0x930] sm:$0xff]
        %v1626 = vld [vmem:[%s1307 + $0x938] sm:$0xff]
        %v1627 = vld [vmem:[%s1307 + $0x940] sm:$0xff]
        %v1628 = vld [vmem:[%s1307 + $0x948] sm:$0xff]
        %v1629 = vld [vmem:[%s1307 + $0x950] sm:$0xff]
        %v1630 = vld [vmem:[%s1307 + $0x958] sm:$0xff]
        %v1631 = vld [vmem:[%s1307 + $0x960] sm:$0xff]
        %v1632 = vld [vmem:[%s1307 + $0x968] sm:$0xff]
        %v1633 = vld [vmem:[%s1307 + $0x970] sm:$0xff]
        %v1634 = vld [vmem:[%s1307 + $0x978] sm:$0xff]
        %v1635 = vld [vmem:[%s1307 + $0x980] sm:$0xff]
        %v1636 = vld [vmem:[%s1307 + $0x988] sm:$0xff]
        %v1637 = vld [vmem:[%s1307 + $0x990] sm:$0xff]
        %v1638 = vld [vmem:[%s1307 + $0x998] sm:$0xff]
        %v1639 = vld [vmem:[%s1307 + $0x9a0] sm:$0xff]
        %v1640 = vld [vmem:[%s1307 + $0x9a8] sm:$0xff]
        %v1641 = vld [vmem:[%s1307 + $0x9b0] sm:$0xff]
        %v1642 = vld [vmem:[%s1307 + $0x9b8] sm:$0xff]
        %v1643 = vld [vmem:[%s1307 + $0x9c0] sm:$0xff]
        %v1644 = vld [vmem:[%s1307 + $0x9c8] sm:$0xff]
        %v1645 = vld [vmem:[%s1307 + $0x9d0] sm:$0xff]
        %v1646 = vld [vmem:[%s1307 + $0x9d8] sm:$0xff]
        %v1647 = vld [vmem:[%s1307 + $0x9e0] sm:$0xff]
        %v1648 = vld [vmem:[%s1307 + $0x9e8] sm:$0xff]
        %v1649 = vld [vmem:[%s1307 + $0x9f0] sm:$0xff]
        %v1650 = vld [vmem:[%s1307 + $0x9f8] sm:$0xff]
        %v1651 = vld [vmem:[%s1307 + $0xa00] sm:$0xff]
        %v1652 = vld [vmem:[%s1307 + $0xa08] sm:$0xff]
        %v1653 = vld [vmem:[%s1307 + $0xa10] sm:$0xff]
        %v1654 = vld [vmem:[%s1307 + $0xa18] sm:$0xff]
        %v1655 = vld [vmem:[%s1307 + $0xa20] sm:$0xff]
        %v1656 = vld [vmem:[%s1307 + $0xa28] sm:$0xff]
        %v1657 = vld [vmem:[%s1307 + $0xa30] sm:$0xff]
        %v1658 = vld [vmem:[%s1307 + $0xa38] sm:$0xff]
        %v1659 = vld [vmem:[%s1307 + $0xa40] sm:$0xff]
        %v1660 = vld [vmem:[%s1307 + $0xa48] sm:$0xff]
        %v1661 = vld [vmem:[%s1307 + $0xa50] sm:$0xff]
        %v1662 = vld [vmem:[%s1307 + $0xa58] sm:$0xff]
        %v1663 = vld [vmem:[%s1307 + $0xa60] sm:$0xff]
        %v1664 = vld [vmem:[%s1307 + $0xa68] sm:$0xff]
        %v1665 = vld [vmem:[%s1307 + $0xa70] sm:$0xff]
        %v1666 = vld [vmem:[%s1307 + $0xa78] sm:$0xff]
        %v1667 = vld [vmem:[%s1307 + $0xa80] sm:$0xff]
        %v1668 = vld [vmem:[%s1307 + $0xa88] sm:$0xff]
        %v1669 = vld [vmem:[%s1307 + $0xa90] sm:$0xff]
        %v1670 = vld [vmem:[%s1307 + $0xa98] sm:$0xff]
        %v1671 = vld [vmem:[%s1307 + $0xaa0] sm:$0xff]
        %v1672 = vld [vmem:[%s1307 + $0xaa8] sm:$0xff]
        %v1673 = vld [vmem:[%s1307 + $0xab0] sm:$0xff]
        %v1674 = vld [vmem:[%s1307 + $0xab8] sm:$0xff]
        %v1675 = vld [vmem:[%s1307 + $0xac0] sm:$0xff]
        %v1676 = vld [vmem:[%s1307 + $0xac8] sm:$0xff]
        %v1677 = vld [vmem:[%s1307 + $0xad0] sm:$0xff]
        %v1678 = vld [vmem:[%s1307 + $0xad8] sm:$0xff]
        %v1679 = vld [vmem:[%s1307 + $0xae0] sm:$0xff]
        %v1680 = vld [vmem:[%s1307 + $0xae8] sm:$0xff]
        %v1681 = vld [vmem:[%s1307 + $0xaf0] sm:$0xff]
        %v1682 = vld [vmem:[%s1307 + $0xaf8] sm:$0xff]
        %v1683 = vld [vmem:[%s1307 + $0xb00] sm:$0xff]
        %v1684 = vld [vmem:[%s1307 + $0xb08] sm:$0xff]
        %v1685 = vld [vmem:[%s1307 + $0xb10] sm:$0xff]
        %v1686 = vld [vmem:[%s1307 + $0xb18] sm:$0xff]
        %v1687 = vld [vmem:[%s1307 + $0xb20] sm:$0xff]
        %v1688 = vld [vmem:[%s1307 + $0xb28] sm:$0xff]
        %v1689 = vld [vmem:[%s1307 + $0xb30] sm:$0xff]
        %v1690 = vld [vmem:[%s1307 + $0xb38] sm:$0xff]
        %v1691 = vld [vmem:[%s1307 + $0xb40] sm:$0xff]
        %v1692 = vld [vmem:[%s1307 + $0xb48] sm:$0xff]
        %v1693 = vld [vmem:[%s1307 + $0xb50] sm:$0xff]
        %v1694 = vld [vmem:[%s1307 + $0xb58] sm:$0xff]
        %v1695 = vld [vmem:[%s1307 + $0xb60] sm:$0xff]
        %v1696 = vld [vmem:[%s1307 + $0xb68] sm:$0xff]
        %v1697 = vld [vmem:[%s1307 + $0xb70] sm:$0xff]
        %v1698 = vld [vmem:[%s1307 + $0xb78] sm:$0xff]
        %v1699 = vld [vmem:[%s1307 + $0xb80] sm:$0xff]
        %v1700 = vld [vmem:[%s1307 + $0xb88] sm:$0xff]
        %v1701 = vld [vmem:[%s1307 + $0xb90] sm:$0xff]
        %v1702 = vld [vmem:[%s1307 + $0xb98] sm:$0xff]
        %v1703 = vld [vmem:[%s1307 + $0xba0] sm:$0xff]
        %v1704 = vld [vmem:[%s1307 + $0xba8] sm:$0xff]
        %v1705 = vld [vmem:[%s1307 + $0xbb0] sm:$0xff]
        %v1706 = vld [vmem:[%s1307 + $0xbb8] sm:$0xff]
        %v1707 = vld [vmem:[%s1307 + $0xbc0] sm:$0xff]
        %v1708 = vld [vmem:[%s1307 + $0xbc8] sm:$0xff]
        %v1709 = vld [vmem:[%s1307 + $0xbd0] sm:$0xff]
        %v1710 = vld [vmem:[%s1307 + $0xbd8] sm:$0xff]
        %v1711 = vld [vmem:[%s1307 + $0xbe0] sm:$0xff]
        %v1712 = vld [vmem:[%s1307 + $0xbe8] sm:$0xff]
        %v1713 = vld [vmem:[%s1307 + $0xbf0] sm:$0xff]
        %v1714 = vld [vmem:[%s1307 + $0xbf8] sm:$0xff]
        %v1715 = vld [vmem:[%s1307 + $0xc00] sm:$0xff]
        %v1716 = vld [vmem:[%s1307 + $0xc08] sm:$0xff]
        %v1717 = vld [vmem:[%s1307 + $0xc10] sm:$0xff]
        %v1718 = vld [vmem:[%s1307 + $0xc18] sm:$0xff]
        %v1719 = vld [vmem:[%s1307 + $0xc20] sm:$0xff]
        %v1720 = vld [vmem:[%s1307 + $0xc28] sm:$0xff]
        %v1721 = vld [vmem:[%s1307 + $0xc30] sm:$0xff]
        %v1722 = vld [vmem:[%s1307 + $0xc38] sm:$0xff]
        %v1723 = vld [vmem:[%s1307 + $0xc40] sm:$0xff]
        %v1724 = vld [vmem:[%s1307 + $0xc48] sm:$0xff]
        %v1725 = vld [vmem:[%s1307 + $0xc50] sm:$0xff]
        %v1726 = vld [vmem:[%s1307 + $0xc58] sm:$0xff]
        %v1727 = vld [vmem:[%s1307 + $0xc60] sm:$0xff]
        %v1728 = vld [vmem:[%s1307 + $0xc68] sm:$0xff]
        %v1729 = vld [vmem:[%s1307 + $0xc70] sm:$0xff]
        %v1730 = vld [vmem:[%s1307 + $0xc78] sm:$0xff]
        %v1731 = vld [vmem:[%s1307 + $0xc80] sm:$0xff]
        %v1732 = vld [vmem:[%s1307 + $0xc88] sm:$0xff]
        %v1733 = vld [vmem:[%s1307 + $0xc90] sm:$0xff]
        %v1734 = vld [vmem:[%s1307 + $0xc98] sm:$0xff]
        %v1735 = vld [vmem:[%s1307 + $0xca0] sm:$0xff]
        %v1736 = vld [vmem:[%s1307 + $0xca8] sm:$0xff]
        %v1737 = vld [vmem:[%s1307 + $0xcb0] sm:$0xff]
        %v1738 = vld [vmem:[%s1307 + $0xcb8] sm:$0xff]
        %v1739 = vld [vmem:[%s1307 + $0xcc0] sm:$0xff]
        %v1740 = vld [vmem:[%s1307 + $0xcc8] sm:$0xff]
        %v1741 = vld [vmem:[%s1307 + $0xcd0] sm:$0xff]
        %v1742 = vld [vmem:[%s1307 + $0xcd8] sm:$0xff]
        %v1743 = vld [vmem:[%s1307 + $0xce0] sm:$0xff]
        %v1744 = vld [vmem:[%s1307 + $0xce8] sm:$0xff]
        %v1745 = vld [vmem:[%s1307 + $0xcf0] sm:$0xff]
        %v1746 = vld [vmem:[%s1307 + $0xcf8] sm:$0xff]
        %v1747 = vld [vmem:[%s1307 + $0xd00] sm:$0xff]
        %v1748 = vld [vmem:[%s1307 + $0xd08] sm:$0xff]
        %v1749 = vld [vmem:[%s1307 + $0xd10] sm:$0xff]
        %v1750 = vld [vmem:[%s1307 + $0xd18] sm:$0xff]
        %v1751 = vld [vmem:[%s1307 + $0xd20] sm:$0xff]
        %v1752 = vld [vmem:[%s1307 + $0xd28] sm:$0xff]
        %v1753 = vld [vmem:[%s1307 + $0xd30] sm:$0xff]
        %v1754 = vld [vmem:[%s1307 + $0xd38] sm:$0xff]
        %v1755 = vld [vmem:[%s1307 + $0xd40] sm:$0xff]
        %v1756 = vld [vmem:[%s1307 + $0xd48] sm:$0xff]
        %v1757 = vld [vmem:[%s1307 + $0xd50] sm:$0xff]
        %v1758 = vld [vmem:[%s1307 + $0xd58] sm:$0xff]
        %v1759 = vld [vmem:[%s1307 + $0xd60] sm:$0xff]
        %v1760 = vld [vmem:[%s1307 + $0xd68] sm:$0xff]
        %v1761 = vld [vmem:[%s1307 + $0xd70] sm:$0xff]
        %v1762 = vld [vmem:[%s1307 + $0xd78] sm:$0xff]
        %v1763 = vld [vmem:[%s1307 + $0xd80] sm:$0xff]
        %v1764 = vld [vmem:[%s1307 + $0xd88] sm:$0xff]
        %v1765 = vld [vmem:[%s1307 + $0xd90] sm:$0xff]
        %v1766 = vld [vmem:[%s1307 + $0xd98] sm:$0xff]
        %v1767 = vld [vmem:[%s1307 + $0xda0] sm:$0xff]
        %v1768 = vld [vmem:[%s1307 + $0xda8] sm:$0xff]
        %v1769 = vld [vmem:[%s1307 + $0xdb0] sm:$0xff]
        %v1770 = vld [vmem:[%s1307 + $0xdb8] sm:$0xff]
        %v1771 = vld [vmem:[%s1307 + $0xdc0] sm:$0xff]
        %v1772 = vld [vmem:[%s1307 + $0xdc8] sm:$0xff]
        %v1773 = vld [vmem:[%s1307 + $0xdd0] sm:$0xff]
        %v1774 = vld [vmem:[%s1307 + $0xdd8] sm:$0xff]
        %v1775 = vld [vmem:[%s1307 + $0xde0] sm:$0xff]
        %v1776 = vld [vmem:[%s1307 + $0xde8] sm:$0xff]
        %v1777 = vld [vmem:[%s1307 + $0xdf0] sm:$0xff]
        %v1778 = vld [vmem:[%s1307 + $0xdf8] sm:$0xff]
        %v1779 = vld [vmem:[%s1307 + $0xe00] sm:$0xff]
        %v1780 = vld [vmem:[%s1307 + $0xe08] sm:$0xff]
        %v1781 = vld [vmem:[%s1307 + $0xe10] sm:$0xff]
        %v1782 = vld [vmem:[%s1307 + $0xe18] sm:$0xff]
        %v1783 = vld [vmem:[%s1307 + $0xe20] sm:$0xff]
        %v1784 = vld [vmem:[%s1307 + $0xe28] sm:$0xff]
        %v1785 = vld [vmem:[%s1307 + $0xe30] sm:$0xff]
        %v1786 = vld [vmem:[%s1307 + $0xe38] sm:$0xff]
        %v1787 = vld [vmem:[%s1307 + $0xe40] sm:$0xff]
        %v1788 = vld [vmem:[%s1307 + $0xe48] sm:$0xff]
        %v1789 = vld [vmem:[%s1307 + $0xe50] sm:$0xff]
        %v1790 = vld [vmem:[%s1307 + $0xe58] sm:$0xff]
        %v1791 = vld [vmem:[%s1307 + $0xe60] sm:$0xff]
        %v1792 = vld [vmem:[%s1307 + $0xe68] sm:$0xff]
        %v1793 = vld [vmem:[%s1307 + $0xe70] sm:$0xff]
        %v1794 = vld [vmem:[%s1307 + $0xe78] sm:$0xff]
        %v1795 = vld [vmem:[%s1307 + $0xe80] sm:$0xff]
        %v1796 = vld [vmem:[%s1307 + $0xe88] sm:$0xff]
        %v1797 = vld [vmem:[%s1307 + $0xe90] sm:$0xff]
        %v1798 = vld [vmem:[%s1307 + $0xe98] sm:$0xff]
        %v1799 = vld [vmem:[%s1307 + $0xea0] sm:$0xff]
        %v1800 = vld [vmem:[%s1307 + $0xea8] sm:$0xff]
        %v1801 = vld [vmem:[%s1307 + $0xeb0] sm:$0xff]
        %v1802 = vld [vmem:[%s1307 + $0xeb8] sm:$0xff]
        %v1803 = vld [vmem:[%s1307 + $0xec0] sm:$0xff]
        %v1804 = vld [vmem:[%s1307 + $0xec8] sm:$0xff]
        %v1805 = vld [vmem:[%s1307 + $0xed0] sm:$0xff]
        %v1806 = vld [vmem:[%s1307 + $0xed8] sm:$0xff]
        %v1807 = vld [vmem:[%s1307 + $0xee0] sm:$0xff]
        %v1808 = vld [vmem:[%s1307 + $0xee8] sm:$0xff]
        %v1809 = vld [vmem:[%s1307 + $0xef0] sm:$0xff]
        %v1810 = vld [vmem:[%s1307 + $0xef8] sm:$0xff]
        %v1811 = vld [vmem:[%s1307 + $0xf00] sm:$0xff]
        %v1812 = vld [vmem:[%s1307 + $0xf08] sm:$0xff]
        %v1813 = vld [vmem:[%s1307 + $0xf10] sm:$0xff]
        %v1814 = vld [vmem:[%s1307 + $0xf18] sm:$0xff]
        %v1815 = vld [vmem:[%s1307 + $0xf20] sm:$0xff]
        %v1816 = vld [vmem:[%s1307 + $0xf28] sm:$0xff]
        %v1817 = vld [vmem:[%s1307 + $0xf30] sm:$0xff]
        %v1818 = vld [vmem:[%s1307 + $0xf38] sm:$0xff]
        %v1819 = vld [vmem:[%s1307 + $0xf40] sm:$0xff]
        %v1820 = vld [vmem:[%s1307 + $0xf48] sm:$0xff]
        %v1821 = vld [vmem:[%s1307 + $0xf50] sm:$0xff]
        %v1822 = vld [vmem:[%s1307 + $0xf58] sm:$0xff]
        %v1823 = vld [vmem:[%s1307 + $0xf60] sm:$0xff]
        %v1824 = vld [vmem:[%s1307 + $0xf68] sm:$0xff]
        %v1825 = vld [vmem:[%s1307 + $0xf70] sm:$0xff]
        %v1826 = vld [vmem:[%s1307 + $0xf78] sm:$0xff]
        %v1827 = vld [vmem:[%s1307 + $0xf80] sm:$0xff]
        %v1828 = vld [vmem:[%s1307 + $0xf88] sm:$0xff]
        %v1829 = vld [vmem:[%s1307 + $0xf90] sm:$0xff]
        %v1830 = vld [vmem:[%s1307 + $0xf98] sm:$0xff]
        %v1831 = vld [vmem:[%s1307 + $0xfa0] sm:$0xff]
        %v1832 = vld [vmem:[%s1307 + $0xfa8] sm:$0xff]
        %v1833 = vld [vmem:[%s1307 + $0xfb0] sm:$0xff]
        %v1834 = vld [vmem:[%s1307 + $0xfb8] sm:$0xff]
        %v1835 = vld [vmem:[%s1307 + $0xfc0] sm:$0xff]
        %v1836 = vld [vmem:[%s1307 + $0xfc8] sm:$0xff]
        %v1837 = vld [vmem:[%s1307 + $0xfd0] sm:$0xff]
        %v1838 = vld [vmem:[%s1307 + $0xfd8] sm:$0xff]
        %v1839 = vld [vmem:[%s1307 + $0xfe0] sm:$0xff]
        %v1840 = vld [vmem:[%s1307 + $0xfe8] sm:$0xff]
        %v1841 = vld [vmem:[%s1307 + $0xff0] sm:$0xff]
        %v1842 = vld [vmem:[%s1307 + $0xff8] sm:$0xff]
        %v1843 = vld [vmem:[%s1307 + $0x1000] sm:$0xff]
        %v1844 = vld [vmem:[%s1307 + $0x1008] sm:$0xff]
        %v1845 = vld [vmem:[%s1307 + $0x1010] sm:$0xff]
        %v1846 = vld [vmem:[%s1307 + $0x1018] sm:$0xff]
        %v1847 = vld [vmem:[%s1307 + $0x1020] sm:$0xff]
        %v1848 = vld [vmem:[%s1307 + $0x1028] sm:$0xff]
        %v1849 = vld [vmem:[%s1307 + $0x1030] sm:$0xff]
        %v1850 = vld [vmem:[%s1307 + $0x1038] sm:$0xff]
        %v1851 = vld [vmem:[%s1307 + $0x1040] sm:$0xff]
        %v1852 = vld [vmem:[%s1307 + $0x1048] sm:$0xff]
        %v1853 = vld [vmem:[%s1307 + $0x1050] sm:$0xff]
        %v1854 = vld [vmem:[%s1307 + $0x1058] sm:$0xff]
        %v1855 = vld [vmem:[%s1307 + $0x1060] sm:$0xff]
        %v1856 = vld [vmem:[%s1307 + $0x1068] sm:$0xff]
        %v1857 = vld [vmem:[%s1307 + $0x1070] sm:$0xff]
        %v1858 = vld [vmem:[%s1307 + $0x1078] sm:$0xff]
        %v1859 = vld [vmem:[%s1307 + $0x1080] sm:$0xf]
        %v1860 = vld [vmem:[%s1307 + $0x1088] sm:$0xf]
        %v1861 = vld [vmem:[%s1307 + $0x1090] sm:$0xf]
        %v1862 = vld [vmem:[%s1307 + $0x1098] sm:$0xf]
        %v1863 = vld [vmem:[%s1307 + $0x10a0] sm:$0xf]
        %v1864 = vld [vmem:[%s1307 + $0x10a8] sm:$0xf]
        %v1865 = vld [vmem:[%s1307 + $0x10b0] sm:$0xf]
        %v1866 = vld [vmem:[%s1307 + $0x10b8] sm:$0xf]
        %v1867 = vld [vmem:[%s1307 + $0x10c0] sm:$0xf]
        %v1868 = vld [vmem:[%s1307 + $0x10c8] sm:$0xf]
        %v1869 = vld [vmem:[%s1307 + $0x10d0] sm:$0xf]
        %v1870 = vld [vmem:[%s1307 + $0x10d8] sm:$0xf]
        %v1871 = vld [vmem:[%s1307 + $0x10e0] sm:$0xf]
        %v1872 = vld [vmem:[%s1307 + $0x10e8] sm:$0xf]
        %v1873 = vld [vmem:[%s1307 + $0x10f0] sm:$0xf]
        %v1874 = vld [vmem:[%s1307 + $0x10f8] sm:$0xf]
        %v1875 = vld [vmem:[%s1307 + $0x1100] sm:$0xf]
        %v1876 = vld [vmem:[%s1307 + $0x1108] sm:$0xf]
        %v1877 = vld [vmem:[%s1307 + $0x1110] sm:$0xf]
        %v1878 = vld [vmem:[%s1307 + $0x1118] sm:$0xf]
        %v1879 = vld [vmem:[%s1307 + $0x1120] sm:$0xf]
        %v1880 = vld [vmem:[%s1307 + $0x1128] sm:$0xf]
        %v1881 = vld [vmem:[%s1307 + $0x1130] sm:$0xf]
        %v1882 = vld [vmem:[%s1307 + $0x1138] sm:$0xf]
        %v1883 = vld [vmem:[%s1307 + $0x1140] sm:$0xf]
        %v1884 = vld [vmem:[%s1307 + $0x1148] sm:$0xf]
        %v1885 = vld [vmem:[%s1307 + $0x1150] sm:$0xf]
        %v1886 = vld [vmem:[%s1307 + $0x1158] sm:$0xf]
        %v1887 = vld [vmem:[%s1307 + $0x1160] sm:$0xf]
        %v1888 = vld [vmem:[%s1307 + $0x1168] sm:$0xf]
        %v1889 = vld [vmem:[%s1307 + $0x1170] sm:$0xf]
        %v1890 = vld [vmem:[%s1307 + $0x1178] sm:$0xf]
        %v1891 = vld [vmem:[%s1307 + $0x1180] sm:$0xf]
        %v1892 = vld [vmem:[%s1307 + $0x1188] sm:$0xf]
        %v1893 = vld [vmem:[%s1307 + $0x1190] sm:$0xf]
        %v1894 = vld [vmem:[%s1307 + $0x1198] sm:$0xf]
        %v1895 = vld [vmem:[%s1307 + $0x11a0] sm:$0xf]
        %v1896 = vld [vmem:[%s1307 + $0x11a8] sm:$0xf]
        %v1897 = vld [vmem:[%s1307 + $0x11b0] sm:$0xf]
        %v1898 = vld [vmem:[%s1307 + $0x11b8] sm:$0xf]
        %v1899 = vld [vmem:[%s1307 + $0x11c0] sm:$0xf]
        %v1900 = vld [vmem:[%s1307 + $0x11c8] sm:$0xf]
        %v1901 = vld [vmem:[%s1307 + $0x11d0] sm:$0xf]
        %v1902 = vld [vmem:[%s1307 + $0x11d8] sm:$0xf]
        %v1903 = vld [vmem:[%s2] sm:$0xff]
        %v1904 = vld [vmem:[%s2 + $0x8] sm:$0xff]
        %1906 = vset.pattern.permute.xlu0 0
        %1907 = vperm.xlu0 %1906, %v1903
        %v1908 = vpop.permute.xlu0 %1907
        %1911 = vset.pattern.permute.xlu0 0
        %1912 = vperm.xlu0 %1911, %v1904
        %v1913 = vpop.permute.xlu0 %1912
        %vm1915 = vcmask 818176
        %v1917 = vsel %vm1915, %v1329, 0
        %v1920 = vsel %vm1915, %v1330, 0
        %vm1922 = vcmask 1043456
        %v1924 = vsel %vm1922, %v1859, 0
        %v1927 = vsel %vm1922, %v1860, 0
        %v1930 = vsel %vm1922, %v1861, 0
        %v1933 = vsel %vm1922, %v1862, 0
        %v1936 = vsel %vm1922, %v1863, 0
        %v1939 = vsel %vm1922, %v1864, 0
        %v1942 = vsel %vm1922, %v1865, 0
        %v1945 = vsel %vm1922, %v1866, 0
        %v1948 = vsel %vm1922, %v1867, 0
        %v1951 = vsel %vm1922, %v1868, 0
        %v1954 = vsel %vm1922, %v1869, 0
        %v1957 = vsel %vm1922, %v1870, 0
        %v1960 = vsel %vm1922, %v1871, 0
        %v1963 = vsel %vm1922, %v1872, 0
        %v1966 = vsel %vm1922, %v1873, 0
        %v1969 = vsel %vm1922, %v1874, 0
        %v1972 = vsel %vm1922, %v1875, 0
        %v1975 = vsel %vm1922, %v1876, 0
        %v1978 = vsel %vm1922, %v1877, 0
        %v1981 = vsel %vm1922, %v1878, 0
        %v1984 = vsel %vm1922, %v1879, 0
        %v1987 = vsel %vm1922, %v1880, 0
        %v1990 = vsel %vm1922, %v1881, 0
        %v1993 = vsel %vm1922, %v1882, 0
        %v1996 = vsel %vm1922, %v1883, 0
        %v1999 = vsel %vm1922, %v1884, 0
        %v2002 = vsel %vm1922, %v1885, 0
        %v2005 = vsel %vm1922, %v1886, 0
        %v2008 = vsel %vm1922, %v1887, 0
        %v2011 = vsel %vm1922, %v1888, 0
        %v2014 = vsel %vm1922, %v1889, 0
        %v2017 = vsel %vm1922, %v1890, 0
        %v2020 = vsel %vm1922, %v1891, 0
        %v2023 = vsel %vm1922, %v1892, 0
        %v2026 = vsel %vm1922, %v1893, 0
        %v2029 = vsel %vm1922, %v1894, 0
        %v2032 = vsel %vm1922, %v1895, 0
        %v2035 = vsel %vm1922, %v1896, 0
        %v2038 = vsel %vm1922, %v1897, 0
        %v2041 = vsel %vm1922, %v1898, 0
        %v2044 = vsel %vm1922, %v1899, 0
        %v2047 = vsel %vm1922, %v1900, 0
        %v2050 = vsel %vm1922, %v1901, 0
        %v2053 = vsel %vm1922, %v1902, 0
        %2055 = vmatprep.subr.mxu0 %v1332
        %2056 = vmatpush1.msra.mxu0 %v1331
        %2057 = vmatprep.subr.mxu0 %v1376
        %2058 = vmatpush1.msra.mxu0 %v1375
        %2059 = vmatprep.subr.mxu0 %v1420
        %2060 = vmatpush1.msra.mxu0 %v1419
        %2061 = vmatprep.subr.mxu0 %v1464
        %2062 = vmatpush1.msra.mxu0 %v1463
        %2063 = vmatprep.subr.mxu0 %v1508
        %2064 = vmatpush1.msra.mxu0 %v1507
        %2065 = vmatprep.subr.mxu0 %v1552
        %2066 = vmatpush1.msra.mxu0 %v1551
        %2067 = vmatprep.subr.mxu0 %v1596
        %2068 = vmatpush1.msra.mxu0 %v1595
        %2069 = vmatprep.subr.mxu0 %v1640
        %2070 = vmatpush1.msra.mxu0 %v1639
        %2071 = vmatprep.subr.mxu0 %v1684
        %2072 = vmatpush1.msra.mxu0 %v1683
        %2073 = vmatprep.subr.mxu0 %v1728
        %2074 = vmatpush1.msra.mxu0 %v1727
        %2075 = vmatprep.subr.mxu0 %v1772
        %2076 = vmatpush1.msra.mxu0 %v1771
        %2077 = vmatprep.subr.mxu0 %v1816
        %2078 = vmatpush1.msra.mxu0 %v1815
        %2079 = vmatprep.subr.mxu0 %v1927
        %2080 = vmatpush1.msra.mxu0 %v1924
        %2081 = vmatprep.subr.mxu0 0.0
        %2082 = vmatpush1.msra.mxu0 0.0
        %2083 = vmatprep.subr.mxu0 0.0
        %2084 = vmatpush1.msra.mxu0 0.0
        %2085 = vmatprep.subr.mxu0 0.0
        %2086 = vmatpush1.msra.mxu0 0.0
        %2087 = vmatprep.subr.mxu0 0.0
        %2088 = vmatpush1.msra.mxu0 0.0
        %2089 = vmatprep.subr.mxu0 0.0
        %2090 = vmatpush1.msra.mxu0 0.0
        %2091 = vmatprep.subr.mxu0 0.0
        %2092 = vmatpush1.msra.mxu0 0.0
        %2093 = vmatprep.subr.mxu0 0.0
        %2094 = vmatpush1.msra.mxu0 0.0
        %2095 = vmatprep.subr.mxu0 0.0
        %2096 = vmatpush1.msra.mxu0 0.0
        %2097 = vmatprep.subr.mxu0 0.0
        %2098 = vmatpush1.msra.mxu0 0.0
        %2099 = vmatprep.subr.mxu0 0.0
        %2100 = vmatpush1.msra.mxu0 0.0
        %2101 = vmatprep.subr.mxu0 0.0
        %2102 = vmatpush1.msra.mxu0 0.0
        %2103 = vmatprep.subr.mxu0 0.0
        %2104 = vmatpush1.msra.mxu0 0.0
        %2105 = vmatprep.subr.mxu0 0.0
        %2106 = vmatpush1.msra.mxu0 0.0
        %2107 = vmatprep.subr.mxu0 0.0
        %2108 = vmatpush1.msra.mxu0 0.0
        %2109 = vmatprep.subr.mxu0 0.0
        %2110 = vmatpush1.msra.mxu0 0.0
        %2111 = vmatprep.subr.mxu0 0.0
        %2112 = vmatpush1.msra.mxu0 0.0
        %2113 = vmatprep.subr.mxu0 0.0
        %2114 = vmatpush1.msra.mxu0 0.0
        %2115 = vmatprep.subr.mxu0 0.0
        %2116 = vmatpush1.msra.mxu0 0.0
        %2117 = vmatprep.subr.mxu0 0.0
        %2118 = vmatpush1.msra.mxu0 0.0
        %2119 = vmatprep.mubr.f32.mxu0 0.0
        %2120 = vmatmul.mubr.f32.gmra.mrb[0].mxu0 %v1917
        %v2121 = vpop.f32.mrb[0].mxu0
        %v2122 = vadd.f32 %v1908, %v2121
        %v2123 = vpop.f32.mrb[0].mxu0
        %v2124 = vadd.f32 %v1908, %v2123
        %2125 = vmatprep.mubr.f32.mxu0 0.0
        %2126 = vmatmul.mubr.f32.gmra.mrb[0].mxu0 %v1920
        %v2127 = vpop.f32.mrb[0].mxu0
        %v2128 = vadd.f32 %v1913, %v2127
        %v2129 = vpop.f32.mrb[0].mxu0
        %v2130 = vadd.f32 %v1913, %v2129
        %2131 = vdwg.mxu0
        %2132 = vmatprep.subr.mxu0 %v1334
        %2133 = vmatpush1.msra.mxu0 %v1333
        %2134 = vmatprep.subr.mxu0 %v1378
        %2135 = vmatpush1.msra.mxu0 %v1377
        %2136 = vmatprep.subr.mxu0 %v1422
        %2137 = vmatpush1.msra.mxu0 %v1421
        %2138 = vmatprep.subr.mxu0 %v1466
        %2139 = vmatpush1.msra.mxu0 %v1465
        %2140 = vmatprep.subr.mxu0 %v1510
        %2141 = vmatpush1.msra.mxu0 %v1509
        %2142 = vmatprep.subr.mxu0 %v1554
        %2143 = vmatpush1.msra.mxu0 %v1553
        %2144 = vmatprep.subr.mxu0 %v1598
        %2145 = vmatpush1.msra.mxu0 %v1597
        %2146 = vmatprep.subr.mxu0 %v1642
        %2147 = vmatpush1.msra.mxu0 %v1641
        %2148 = vmatprep.subr.mxu0 %v1686
        %2149 = vmatpush1.msra.mxu0 %v1685
        %2150 = vmatprep.subr.mxu0 %v1730
        %2151 = vmatpush1.msra.mxu0 %v1729
        %2152 = vmatprep.subr.mxu0 %v1774
        %2153 = vmatpush1.msra.mxu0 %v1773
        %2154 = vmatprep.subr.mxu0 %v1818
        %2155 = vmatpush1.msra.mxu0 %v1817
        %2156 = vmatprep.subr.mxu0 %v1933
        %2157 = vmatpush1.msra.mxu0 %v1930
        %2158 = vmatprep.subr.mxu0 0.0
        %2159 = vmatpush1.msra.mxu0 0.0
        %2160 = vmatprep.subr.mxu0 0.0
        %2161 = vmatpush1.msra.mxu0 0.0
        %2162 = vmatprep.subr.mxu0 0.0
        %2163 = vmatpush1.msra.mxu0 0.0
        %2164 = vmatprep.subr.mxu0 0.0
        %2165 = vmatpush1.msra.mxu0 0.0
        %2166 = vmatprep.subr.mxu0 0.0
        %2167 = vmatpush1.msra.mxu0 0.0
        %2168 = vmatprep.subr.mxu0 0.0
        %2169 = vmatpush1.msra.mxu0 0.0
        %2170 = vmatprep.subr.mxu0 0.0
        %2171 = vmatpush1.msra.mxu0 0.0
        %2172 = vmatprep.subr.mxu0 0.0
        %2173 = vmatpush1.msra.mxu0 0.0
        %2174 = vmatprep.subr.mxu0 0.0
        %2175 = vmatpush1.msra.mxu0 0.0
        %2176 = vmatprep.subr.mxu0 0.0
        %2177 = vmatpush1.msra.mxu0 0.0
        %2178 = vmatprep.subr.mxu0 0.0
        %2179 = vmatpush1.msra.mxu0 0.0
        %2180 = vmatprep.subr.mxu0 0.0
        %2181 = vmatpush1.msra.mxu0 0.0
        %2182 = vmatprep.subr.mxu0 0.0
        %2183 = vmatpush1.msra.mxu0 0.0
        %2184 = vmatprep.subr.mxu0 0.0
        %2185 = vmatpush1.msra.mxu0 0.0
        %2186 = vmatprep.subr.mxu0 0.0
        %2187 = vmatpush1.msra.mxu0 0.0
        %2188 = vmatprep.subr.mxu0 0.0
        %2189 = vmatpush1.msra.mxu0 0.0
        %2190 = vmatprep.subr.mxu0 0.0
        %2191 = vmatpush1.msra.mxu0 0.0
        %2192 = vmatprep.subr.mxu0 0.0
        %2193 = vmatpush1.msra.mxu0 0.0
        %2194 = vmatprep.subr.mxu0 0.0
        %2195 = vmatpush1.msra.mxu0 0.0
        %2196 = vmatprep.mubr.f32.mxu0 0.0
        %2197 = vmatmul.mubr.f32.gmra.mrb[0].mxu0 %v1917
        %v2198 = vpop.f32.mrb[0].mxu0
        %v2199 = vadd.f32 %v1908, %v2198
        %v2200 = vpop.f32.mrb[0].mxu0
        %v2201 = vadd.f32 %v1908, %v2200
        %2202 = vmatprep.mubr.f32.mxu0 0.0
        %2203 = vmatmul.mubr.f32.gmra.mrb[0].mxu0 %v1920
        %v2204 = vpop.f32.mrb[0].mxu0
        %v2205 = vadd.f32 %v1913, %v2204
        %v2206 = vpop.f32.mrb[0].mxu0
        %v2207 = vadd.f32 %v1913, %v2206
        %2208 = vdwg.mxu0
        %2209 = vmatprep.subr.mxu0 %v1336
        %2210 = vmatpush1.msra.mxu0 %v1335
        %2211 = vmatprep.subr.mxu0 %v1380
        %2212 = vmatpush1.msra.mxu0 %v1379
        %2213 = vmatprep.subr.mxu0 %v1424
        %2214 = vmatpush1.msra.mxu0 %v1423
        %2215 = vmatprep.subr.mxu0 %v1468
        %2216 = vmatpush1.msra.mxu0 %v1467
        %2217 = vmatprep.subr.mxu0 %v1512
        %2218 = vmatpush1.msra.mxu0 %v1511
        %2219 = vmatprep.subr.mxu0 %v1556
        %2220 = vmatpush1.msra.mxu0 %v1555
        %2221 = vmatprep.subr.mxu0 %v1600
        %2222 = vmatpush1.msra.mxu0 %v1599
        %2223 = vmatprep.subr.mxu0 %v1644
        %2224 = vmatpush1.msra.mxu0 %v1643
        %2225 = vmatprep.subr.mxu0 %v1688
        %2226 = vmatpush1.msra.mxu0 %v1687
        %2227 = vmatprep.subr.mxu0 %v1732
        %2228 = vmatpush1.msra.mxu0 %v1731
        %2229 = vmatprep.subr.mxu0 %v1776
        %2230 = vmatpush1.msra.mxu0 %v1775
        %2231 = vmatprep.subr.mxu0 %v1820
        %2232 = vmatpush1.msra.mxu0 %v1819
        %2233 = vmatprep.subr.mxu0 %v1939
        %2234 = vmatpush1.msra.mxu0 %v1936
        %2235 = vmatprep.subr.mxu0 0.0
        %2236 = vmatpush1.msra.mxu0 0.0
        %2237 = vmatprep.subr.mxu0 0.0
        %2238 = vmatpush1.msra.mxu0 0.0
        %2239 = vmatprep.subr.mxu0 0.0
        %2240 = vmatpush1.msra.mxu0 0.0
        %2241 = vmatprep.subr.mxu0 0.0
        %2242 = vmatpush1.msra.mxu0 0.0
        %2243 = vmatprep.subr.mxu0 0.0
        %2244 = vmatpush1.msra.mxu0 0.0
        %2245 = vmatprep.subr.mxu0 0.0
        %2246 = vmatpush1.msra.mxu0 0.0
        %2247 = vmatprep.subr.mxu0 0.0
        %2248 = vmatpush1.msra.mxu0 0.0
        %2249 = vmatprep.subr.mxu0 0.0
        %2250 = vmatpush1.msra.mxu0 0.0
        %2251 = vmatprep.subr.mxu0 0.0
        %2252 = vmatpush1.msra.mxu0 0.0
        %2253 = vmatprep.subr.mxu0 0.0
        %2254 = vmatpush1.msra.mxu0 0.0
        %2255 = vmatprep.subr.mxu0 0.0
        %2256 = vmatpush1.msra.mxu0 0.0
        %2257 = vmatprep.subr.mxu0 0.0
        %2258 = vmatpush1.msra.mxu0 0.0
        %2259 = vmatprep.subr.mxu0 0.0
        %2260 = vmatpush1.msra.mxu0 0.0
        %2261 = vmatprep.subr.mxu0 0.0
        %2262 = vmatpush1.msra.mxu0 0.0
        %2263 = vmatprep.subr.mxu0 0.0
        %2264 = vmatpush1.msra.mxu0 0.0
        %2265 = vmatprep.subr.mxu0 0.0
        %2266 = vmatpush1.msra.mxu0 0.0
        %2267 = vmatprep.subr.mxu0 0.0
        %2268 = vmatpush1.msra.mxu0 0.0
        %2269 = vmatprep.subr.mxu0 0.0
        %2270 = vmatpush1.msra.mxu0 0.0
        %2271 = vmatprep.subr.mxu0 0.0
        %2272 = vmatpush1.msra.mxu0 0.0
        %2273 = vmatprep.mubr.f32.mxu0 0.0
        %2274 = vmatmul.mubr.f32.gmra.mrb[0].mxu0 %v1917
        %v2275 = vpop.f32.mrb[0].mxu0
        %v2276 = vadd.f32 %v1908, %v2275
        %v2277 = vpop.f32.mrb[0].mxu0
        %v2278 = vadd.f32 %v1908, %v2277
        %2279 = vmatprep.mubr.f32.mxu0 0.0
        %2280 = vmatmul.mubr.f32.gmra.mrb[0].mxu0 %v1920
        %v2281 = vpop.f32.mrb[0].mxu0
        %v2282 = vadd.f32 %v1913, %v2281
        %v2283 = vpop.f32.mrb[0].mxu0
        %v2284 = vadd.f32 %v1913, %v2283
        %2285 = vdwg.mxu0
        %2286 = vmatprep.subr.mxu0 %v1338
        %2287 = vmatpush1.msra.mxu0 %v1337
        %2288 = vmatprep.subr.mxu0 %v1382
        %2289 = vmatpush1.msra.mxu0 %v1381
        %2290 = vmatprep.subr.mxu0 %v1426
        %2291 = vmatpush1.msra.mxu0 %v1425
        %2292 = vmatprep.subr.mxu0 %v1470
        %2293 = vmatpush1.msra.mxu0 %v1469
        %2294 = vmatprep.subr.mxu0 %v1514
        %2295 = vmatpush1.msra.mxu0 %v1513
        %2296 = vmatprep.subr.mxu0 %v1558
        %2297 = vmatpush1.msra.mxu0 %v1557
        %2298 = vmatprep.subr.mxu0 %v1602
        %2299 = vmatpush1.msra.mxu0 %v1601
        %2300 = vmatprep.subr.mxu0 %v1646
        %2301 = vmatpush1.msra.mxu0 %v1645
        %2302 = vmatprep.subr.mxu0 %v1690
        %2303 = vmatpush1.msra.mxu0 %v1689
        %2304 = vmatprep.subr.mxu0 %v1734
        %2305 = vmatpush1.msra.mxu0 %v1733
        %2306 = vmatprep.subr.mxu0 %v1778
        %2307 = vmatpush1.msra.mxu0 %v1777
        %2308 = vmatprep.subr.mxu0 %v1822
        %2309 = vmatpush1.msra.mxu0 %v1821
        %2310 = vmatprep.subr.mxu0 %v1945
        %2311 = vmatpush1.msra.mxu0 %v1942
        %2312 = vmatprep.subr.mxu0 0.0
        %2313 = vmatpush1.msra.mxu0 0.0
        %2314 = vmatprep.subr.mxu0 0.0
        %2315 = vmatpush1.msra.mxu0 0.0
        %2316 = vmatprep.subr.mxu0 0.0
        %2317 = vmatpush1.msra.mxu0 0.0
        %2318 = vmatprep.subr.mxu0 0.0
        %2319 = vmatpush1.msra.mxu0 0.0
        %2320 = vmatprep.subr.mxu0 0.0
        %2321 = vmatpush1.msra.mxu0 0.0
        %2322 = vmatprep.subr.mxu0 0.0
        %2323 = vmatpush1.msra.mxu0 0.0
        %2324 = vmatprep.subr.mxu0 0.0
        %2325 = vmatpush1.msra.mxu0 0.0
        %2326 = vmatprep.subr.mxu0 0.0
        %2327 = vmatpush1.msra.mxu0 0.0
        %2328 = vmatprep.subr.mxu0 0.0
        %2329 = vmatpush1.msra.mxu0 0.0
        %2330 = vmatprep.subr.mxu0 0.0
        %2331 = vmatpush1.msra.mxu0 0.0
        %2332 = vmatprep.subr.mxu0 0.0
        %2333 = vmatpush1.msra.mxu0 0.0
        %2334 = vmatprep.subr.mxu0 0.0
        %2335 = vmatpush1.msra.mxu0 0.0
        %2336 = vmatprep.subr.mxu0 0.0
        %2337 = vmatpush1.msra.mxu0 0.0
        %2338 = vmatprep.subr.mxu0 0.0
        %2339 = vmatpush1.msra.mxu0 0.0
        %2340 = vmatprep.subr.mxu0 0.0
        %2341 = vmatpush1.msra.mxu0 0.0
        %2342 = vmatprep.subr.mxu0 0.0
        %2343 = vmatpush1.msra.mxu0 0.0
        %2344 = vmatprep.subr.mxu0 0.0
        %2345 = vmatpush1.msra.mxu0 0.0
        %2346 = vmatprep.subr.mxu0 0.0
        %2347 = vmatpush1.msra.mxu0 0.0
        %2348 = vmatprep.subr.mxu0 0.0
        %2349 = vmatpush1.msra.mxu0 0.0
        %2350 = vmatprep.mubr.f32.mxu0 0.0
        %2351 = vmatmul.mubr.f32.gmra.mrb[0].mxu0 %v1917
        %v2352 = vpop.f32.mrb[0].mxu0
        %v2353 = vadd.f32 %v1908, %v2352
        %v2354 = vpop.f32.mrb[0].mxu0
        %v2355 = vadd.f32 %v1908, %v2354
        %2356 = vmatprep.mubr.f32.mxu0 0.0
        %2357 = vmatmul.mubr.f32.gmra.mrb[0].mxu0 %v1920
        %v2358 = vpop.f32.mrb[0].mxu0
        %v2359 = vadd.f32 %v1913, %v2358
        %v2360 = vpop.f32.mrb[0].mxu0
        %v2361 = vadd.f32 %v1913, %v2360
        %2362 = vdwg.mxu0
        %2363 = vmatprep.subr.mxu0 %v1340
        %2364 = vmatpush1.msra.mxu0 %v1339
        %2365 = vmatprep.subr.mxu0 %v1384
        %2366 = vmatpush1.msra.mxu0 %v1383
        %2367 = vmatprep.subr.mxu0 %v1428
        %2368 = vmatpush1.msra.mxu0 %v1427
        %2369 = vmatprep.subr.mxu0 %v1472
        %2370 = vmatpush1.msra.mxu0 %v1471
        %2371 = vmatprep.subr.mxu0 %v1516
        %2372 = vmatpush1.msra.mxu0 %v1515
        %2373 = vmatprep.subr.mxu0 %v1560
        %2374 = vmatpush1.msra.mxu0 %v1559
        %2375 = vmatprep.subr.mxu0 %v1604
        %2376 = vmatpush1.msra.mxu0 %v1603
        %2377 = vmatprep.subr.mxu0 %v1648
        %2378 = vmatpush1.msra.mxu0 %v1647
        %2379 = vmatprep.subr.mxu0 %v1692
        %2380 = vmatpush1.msra.mxu0 %v1691
        %2381 = vmatprep.subr.mxu0 %v1736
        %2382 = vmatpush1.msra.mxu0 %v1735
        %2383 = vmatprep.subr.mxu0 %v1780
        %2384 = vmatpush1.msra.mxu0 %v1779
        %2385 = vmatprep.subr.mxu0 %v1824
        %2386 = vmatpush1.msra.mxu0 %v1823
        %2387 = vmatprep.subr.mxu0 %v1951
        %2388 = vmatpush1.msra.mxu0 %v1948
        %2389 = vmatprep.subr.mxu0 0.0
        %2390 = vmatpush1.msra.mxu0 0.0
        %2391 = vmatprep.subr.mxu0 0.0
        %2392 = vmatpush1.msra.mxu0 0.0
        %2393 = vmatprep.subr.mxu0 0.0
        %2394 = vmatpush1.msra.mxu0 0.0
        %2395 = vmatprep.subr.mxu0 0.0
        %2396 = vmatpush1.msra.mxu0 0.0
        %2397 = vmatprep.subr.mxu0 0.0
        %2398 = vmatpush1.msra.mxu0 0.0
        %2399 = vmatprep.subr.mxu0 0.0
        %2400 = vmatpush1.msra.mxu0 0.0
        %2401 = vmatprep.subr.mxu0 0.0
        %2402 = vmatpush1.msra.mxu0 0.0
        %2403 = vmatprep.subr.mxu0 0.0
        %2404 = vmatpush1.msra.mxu0 0.0
        %2405 = vmatprep.subr.mxu0 0.0
        %2406 = vmatpush1.msra.mxu0 0.0
        %2407 = vmatprep.subr.mxu0 0.0
        %2408 = vmatpush1.msra.mxu0 0.0
        %2409 = vmatprep.subr.mxu0 0.0
        %2410 = vmatpush1.msra.mxu0 0.0
        %2411 = vmatprep.subr.mxu0 0.0
        %2412 = vmatpush1.msra.mxu0 0.0
        %2413 = vmatprep.subr.mxu0 0.0
        %2414 = vmatpush1.msra.mxu0 0.0
        %2415 = vmatprep.subr.mxu0 0.0
        %2416 = vmatpush1.msra.mxu0 0.0
        %2417 = vmatprep.subr.mxu0 0.0
        %2418 = vmatpush1.msra.mxu0 0.0
        %2419 = vmatprep.subr.mxu0 0.0
        %2420 = vmatpush1.msra.mxu0 0.0
        %2421 = vmatprep.subr.mxu0 0.0
        %2422 = vmatpush1.msra.mxu0 0.0
        %2423 = vmatprep.subr.mxu0 0.0
        %2424 = vmatpush1.msra.mxu0 0.0
        %2425 = vmatprep.subr.mxu0 0.0
        %2426 = vmatpush1.msra.mxu0 0.0
        %2427 = vmatprep.mubr.f32.mxu0 0.0
        %2428 = vmatmul.mubr.f32.gmra.mrb[0].mxu0 %v1917
        %v2429 = vpop.f32.mrb[0].mxu0
        %v2430 = vadd.f32 %v1908, %v2429
        %v2431 = vpop.f32.mrb[0].mxu0
        %v2432 = vadd.f32 %v1908, %v2431
        %2433 = vmatprep.mubr.f32.mxu0 0.0
        %2434 = vmatmul.mubr.f32.gmra.mrb[0].mxu0 %v1920
        %v2435 = vpop.f32.mrb[0].mxu0
        %v2436 = vadd.f32 %v1913, %v2435
        %v2437 = vpop.f32.mrb[0].mxu0
        %v2438 = vadd.f32 %v1913, %v2437
        %2439 = vdwg.mxu0
        %2440 = vmatprep.subr.mxu0 %v1342
        %2441 = vmatpush1.msra.mxu0 %v1341
        %2442 = vmatprep.subr.mxu0 %v1386
        %2443 = vmatpush1.msra.mxu0 %v1385
        %2444 = vmatprep.subr.mxu0 %v1430
        %2445 = vmatpush1.msra.mxu0 %v1429
        %2446 = vmatprep.subr.mxu0 %v1474
        %2447 = vmatpush1.msra.mxu0 %v1473
        %2448 = vmatprep.subr.mxu0 %v1518
        %2449 = vmatpush1.msra.mxu0 %v1517
        %2450 = vmatprep.subr.mxu0 %v1562
        %2451 = vmatpush1.msra.mxu0 %v1561
        %2452 = vmatprep.subr.mxu0 %v1606
        %2453 = vmatpush1.msra.mxu0 %v1605
        %2454 = vmatprep.subr.mxu0 %v1650
        %2455 = vmatpush1.msra.mxu0 %v1649
        %2456 = vmatprep.subr.mxu0 %v1694
        %2457 = vmatpush1.msra.mxu0 %v1693
        %2458 = vmatprep.subr.mxu0 %v1738
        %2459 = vmatpush1.msra.mxu0 %v1737
        %2460 = vmatprep.subr.mxu0 %v1782
        %2461 = vmatpush1.msra.mxu0 %v1781
        %2462 = vmatprep.subr.mxu0 %v1826
        %2463 = vmatpush1.msra.mxu0 %v1825
        %2464 = vmatprep.subr.mxu0 %v1957
        %2465 = vmatpush1.msra.mxu0 %v1954
        %2466 = vmatprep.subr.mxu0 0.0
        %2467 = vmatpush1.msra.mxu0 0.0
        %2468 = vmatprep.subr.mxu0 0.0
        %2469 = vmatpush1.msra.mxu0 0.0
        %2470 = vmatprep.subr.mxu0 0.0
        %2471 = vmatpush1.msra.mxu0 0.0
        %2472 = vmatprep.subr.mxu0 0.0
        %2473 = vmatpush1.msra.mxu0 0.0
        %2474 = vmatprep.subr.mxu0 0.0
        %2475 = vmatpush1.msra.mxu0 0.0
        %2476 = vmatprep.subr.mxu0 0.0
        %2477 = vmatpush1.msra.mxu0 0.0
        %2478 = vmatprep.subr.mxu0 0.0
        %2479 = vmatpush1.msra.mxu0 0.0
        %2480 = vmatprep.subr.mxu0 0.0
        %2481 = vmatpush1.msra.mxu0 0.0
        %2482 = vmatprep.subr.mxu0 0.0
        %2483 = vmatpush1.msra.mxu0 0.0
        %2484 = vmatprep.subr.mxu0 0.0
        %2485 = vmatpush1.msra.mxu0 0.0
        %2486 = vmatprep.subr.mxu0 0.0
        %2487 = vmatpush1.msra.mxu0 0.0
        %2488 = vmatprep.subr.mxu0 0.0
        %2489 = vmatpush1.msra.mxu0 0.0
        %2490 = vmatprep.subr.mxu0 0.0
        %2491 = vmatpush1.msra.mxu0 0.0
        %2492 = vmatprep.subr.mxu0 0.0
        %2493 = vmatpush1.msra.mxu0 0.0
        %2494 = vmatprep.subr.mxu0 0.0
        %2495 = vmatpush1.msra.mxu0 0.0
        %2496 = vmatprep.subr.mxu0 0.0
        %2497 = vmatpush1.msra.mxu0 0.0
        %2498 = vmatprep.subr.mxu0 0.0
        %2499 = vmatpush1.msra.mxu0 0.0
        %2500 = vmatprep.subr.mxu0 0.0
        %2501 = vmatpush1.msra.mxu0 0.0
        %2502 = vmatprep.subr.mxu0 0.0
        %2503 = vmatpush1.msra.mxu0 0.0
        %2504 = vmatprep.mubr.f32.mxu0 0.0
        %2505 = vmatmul.mubr.f32.gmra.mrb[0].mxu0 %v1917
        %v2506 = vpop.f32.mrb[0].mxu0
        %v2507 = vadd.f32 %v1908, %v2506
        %v2508 = vpop.f32.mrb[0].mxu0
        %v2509 = vadd.f32 %v1908, %v2508
        %2510 = vmatprep.mubr.f32.mxu0 0.0
        %2511 = vmatmul.mubr.f32.gmra.mrb[0].mxu0 %v1920
        %v2512 = vpop.f32.mrb[0].mxu0
        %v2513 = vadd.f32 %v1913, %v2512
        %v2514 = vpop.f32.mrb[0].mxu0
        %v2515 = vadd.f32 %v1913, %v2514
        %2516 = vdwg.mxu0
        %2517 = vmatprep.subr.mxu0 %v1344
        %2518 = vmatpush1.msra.mxu0 %v1343
        %2519 = vmatprep.subr.mxu0 %v1388
        %2520 = vmatpush1.msra.mxu0 %v1387
        %2521 = vmatprep.subr.mxu0 %v1432
        %2522 = vmatpush1.msra.mxu0 %v1431
        %2523 = vmatprep.subr.mxu0 %v1476
        %2524 = vmatpush1.msra.mxu0 %v1475
        %2525 = vmatprep.subr.mxu0 %v1520
        %2526 = vmatpush1.msra.mxu0 %v1519
        %2527 = vmatprep.subr.mxu0 %v1564
        %2528 = vmatpush1.msra.mxu0 %v1563
        %2529 = vmatprep.subr.mxu0 %v1608
        %2530 = vmatpush1.msra.mxu0 %v1607
        %2531 = vmatprep.subr.mxu0 %v1652
        %2532 = vmatpush1.msra.mxu0 %v1651
        %2533 = vmatprep.subr.mxu0 %v1696
        %2534 = vmatpush1.msra.mxu0 %v1695
        %2535 = vmatprep.subr.mxu0 %v1740
        %2536 = vmatpush1.msra.mxu0 %v1739
        %2537 = vmatprep.subr.mxu0 %v1784
        %2538 = vmatpush1.msra.mxu0 %v1783
        %2539 = vmatprep.subr.mxu0 %v1828
        %2540 = vmatpush1.msra.mxu0 %v1827
        %2541 = vmatprep.subr.mxu0 %v1963
        %2542 = vmatpush1.msra.mxu0 %v1960
        %2543 = vmatprep.subr.mxu0 0.0
        %2544 = vmatpush1.msra.mxu0 0.0
        %2545 = vmatprep.subr.mxu0 0.0
        %2546 = vmatpush1.msra.mxu0 0.0
        %2547 = vmatprep.subr.mxu0 0.0
        %2548 = vmatpush1.msra.mxu0 0.0
        %2549 = vmatprep.subr.mxu0 0.0
        %2550 = vmatpush1.msra.mxu0 0.0
        %2551 = vmatprep.subr.mxu0 0.0
        %2552 = vmatpush1.msra.mxu0 0.0
        %2553 = vmatprep.subr.mxu0 0.0
        %2554 = vmatpush1.msra.mxu0 0.0
        %2555 = vmatprep.subr.mxu0 0.0
        %2556 = vmatpush1.msra.mxu0 0.0
        %2557 = vmatprep.subr.mxu0 0.0
        %2558 = vmatpush1.msra.mxu0 0.0
        %2559 = vmatprep.subr.mxu0 0.0
        %2560 = vmatpush1.msra.mxu0 0.0
        %2561 = vmatprep.subr.mxu0 0.0
        %2562 = vmatpush1.msra.mxu0 0.0
        %2563 = vmatprep.subr.mxu0 0.0
        %2564 = vmatpush1.msra.mxu0 0.0
        %2565 = vmatprep.subr.mxu0 0.0
        %2566 = vmatpush1.msra.mxu0 0.0
        %2567 = vmatprep.subr.mxu0 0.0
        %2568 = vmatpush1.msra.mxu0 0.0
        %2569 = vmatprep.subr.mxu0 0.0
        %2570 = vmatpush1.msra.mxu0 0.0
        %2571 = vmatprep.subr.mxu0 0.0
        %2572 = vmatpush1.msra.mxu0 0.0
        %2573 = vmatprep.subr.mxu0 0.0
        %2574 = vmatpush1.msra.mxu0 0.0
        %2575 = vmatprep.subr.mxu0 0.0
        %2576 = vmatpush1.msra.mxu0 0.0
        %2577 = vmatprep.subr.mxu0 0.0
        %2578 = vmatpush1.msra.mxu0 0.0
        %2579 = vmatprep.subr.mxu0 0.0
        %2580 = vmatpush1.msra.mxu0 0.0
        %2581 = vmatprep.mubr.f32.mxu0 0.0
        %2582 = vmatmul.mubr.f32.gmra.mrb[0].mxu0 %v1917
        %v2583 = vpop.f32.mrb[0].mxu0
        %v2584 = vadd.f32 %v1908, %v2583
        %v2585 = vpop.f32.mrb[0].mxu0
        %v2586 = vadd.f32 %v1908, %v2585
        %2587 = vmatprep.mubr.f32.mxu0 0.0
        %2588 = vmatmul.mubr.f32.gmra.mrb[0].mxu0 %v1920
        %v2589 = vpop.f32.mrb[0].mxu0
        %v2590 = vadd.f32 %v1913, %v2589
        %v2591 = vpop.f32.mrb[0].mxu0
        %v2592 = vadd.f32 %v1913, %v2591
        %2593 = vdwg.mxu0
        %2594 = vmatprep.subr.mxu0 %v1346
        %2595 = vmatpush1.msra.mxu0 %v1345
        %2596 = vmatprep.subr.mxu0 %v1390
        %2597 = vmatpush1.msra.mxu0 %v1389
        %2598 = vmatprep.subr.mxu0 %v1434
        %2599 = vmatpush1.msra.mxu0 %v1433
        %2600 = vmatprep.subr.mxu0 %v1478
        %2601 = vmatpush1.msra.mxu0 %v1477
        %2602 = vmatprep.subr.mxu0 %v1522
        %2603 = vmatpush1.msra.mxu0 %v1521
        %2604 = vmatprep.subr.mxu0 %v1566
        %2605 = vmatpush1.msra.mxu0 %v1565
        %2606 = vmatprep.subr.mxu0 %v1610
        %2607 = vmatpush1.msra.mxu0 %v1609
        %2608 = vmatprep.subr.mxu0 %v1654
        %2609 = vmatpush1.msra.mxu0 %v1653
        %2610 = vmatprep.subr.mxu0 %v1698
        %2611 = vmatpush1.msra.mxu0 %v1697
        %2612 = vmatprep.subr.mxu0 %v1742
        %2613 = vmatpush1.msra.mxu0 %v1741
        %2614 = vmatprep.subr.mxu0 %v1786
        %2615 = vmatpush1.msra.mxu0 %v1785
        %2616 = vmatprep.subr.mxu0 %v1830
        %2617 = vmatpush1.msra.mxu0 %v1829
        %2618 = vmatprep.subr.mxu0 %v1969
        %2619 = vmatpush1.msra.mxu0 %v1966
        %2620 = vmatprep.subr.mxu0 0.0
        %2621 = vmatpush1.msra.mxu0 0.0
        %2622 = vmatprep.subr.mxu0 0.0
        %2623 = vmatpush1.msra.mxu0 0.0
        %2624 = vmatprep.subr.mxu0 0.0
        %2625 = vmatpush1.msra.mxu0 0.0
        %2626 = vmatprep.subr.mxu0 0.0
        %2627 = vmatpush1.msra.mxu0 0.0
        %2628 = vmatprep.subr.mxu0 0.0
        %2629 = vmatpush1.msra.mxu0 0.0
        %2630 = vmatprep.subr.mxu0 0.0
        %2631 = vmatpush1.msra.mxu0 0.0
        %2632 = vmatprep.subr.mxu0 0.0
        %2633 = vmatpush1.msra.mxu0 0.0
        %2634 = vmatprep.subr.mxu0 0.0
        %2635 = vmatpush1.msra.mxu0 0.0
        %2636 = vmatprep.subr.mxu0 0.0
        %2637 = vmatpush1.msra.mxu0 0.0
        %2638 = vmatprep.subr.mxu0 0.0
        %2639 = vmatpush1.msra.mxu0 0.0
        %2640 = vmatprep.subr.mxu0 0.0
        %2641 = vmatpush1.msra.mxu0 0.0
        %2642 = vmatprep.subr.mxu0 0.0
        %2643 = vmatpush1.msra.mxu0 0.0
        %2644 = vmatprep.subr.mxu0 0.0
        %2645 = vmatpush1.msra.mxu0 0.0
        %2646 = vmatprep.subr.mxu0 0.0
        %2647 = vmatpush1.msra.mxu0 0.0
        %2648 = vmatprep.subr.mxu0 0.0
        %2649 = vmatpush1.msra.mxu0 0.0
        %2650 = vmatprep.subr.mxu0 0.0
        %2651 = vmatpush1.msra.mxu0 0.0
        %2652 = vmatprep.subr.mxu0 0.0
        %2653 = vmatpush1.msra.mxu0 0.0
        %2654 = vmatprep.subr.mxu0 0.0
        %2655 = vmatpush1.msra.mxu0 0.0
        %2656 = vmatprep.subr.mxu0 0.0
        %2657 = vmatpush1.msra.mxu0 0.0
        %2658 = vmatprep.mubr.f32.mxu0 0.0
        %2659 = vmatmul.mubr.f32.gmra.mrb[0].mxu0 %v1917
        %v2660 = vpop.f32.mrb[0].mxu0
        %v2661 = vadd.f32 %v1908, %v2660
        %v2662 = vpop.f32.mrb[0].mxu0
        %v2663 = vadd.f32 %v1908, %v2662
        %2664 = vmatprep.mubr.f32.mxu0 0.0
        %2665 = vmatmul.mubr.f32.gmra.mrb[0].mxu0 %v1920
        %v2666 = vpop.f32.mrb[0].mxu0
        %v2667 = vadd.f32 %v1913, %v2666
        %v2668 = vpop.f32.mrb[0].mxu0
        %v2669 = vadd.f32 %v1913, %v2668
        %2670 = vdwg.mxu0
        %2671 = vmatprep.subr.mxu0 %v1348
        %2672 = vmatpush1.msra.mxu0 %v1347
        %2673 = vmatprep.subr.mxu0 %v1392
        %2674 = vmatpush1.msra.mxu0 %v1391
        %2675 = vmatprep.subr.mxu0 %v1436
        %2676 = vmatpush1.msra.mxu0 %v1435
        %2677 = vmatprep.subr.mxu0 %v1480
        %2678 = vmatpush1.msra.mxu0 %v1479
        %2679 = vmatprep.subr.mxu0 %v1524
        %2680 = vmatpush1.msra.mxu0 %v1523
        %2681 = vmatprep.subr.mxu0 %v1568
        %2682 = vmatpush1.msra.mxu0 %v1567
        %2683 = vmatprep.subr.mxu0 %v1612
        %2684 = vmatpush1.msra.mxu0 %v1611
        %2685 = vmatprep.subr.mxu0 %v1656
        %2686 = vmatpush1.msra.mxu0 %v1655
        %2687 = vmatprep.subr.mxu0 %v1700
        %2688 = vmatpush1.msra.mxu0 %v1699
        %2689 = vmatprep.subr.mxu0 %v1744
        %2690 = vmatpush1.msra.mxu0 %v1743
        %2691 = vmatprep.subr.mxu0 %v1788
        %2692 = vmatpush1.msra.mxu0 %v1787
        %2693 = vmatprep.subr.mxu0 %v1832
        %2694 = vmatpush1.msra.mxu0 %v1831
        %2695 = vmatprep.subr.mxu0 %v1975
        %2696 = vmatpush1.msra.mxu0 %v1972
        %2697 = vmatprep.subr.mxu0 0.0
        %2698 = vmatpush1.msra.mxu0 0.0
        %2699 = vmatprep.subr.mxu0 0.0
        %2700 = vmatpush1.msra.mxu0 0.0
        %2701 = vmatprep.subr.mxu0 0.0
        %2702 = vmatpush1.msra.mxu0 0.0
        %2703 = vmatprep.subr.mxu0 0.0
        %2704 = vmatpush1.msra.mxu0 0.0
        %2705 = vmatprep.subr.mxu0 0.0
        %2706 = vmatpush1.msra.mxu0 0.0
        %2707 = vmatprep.subr.mxu0 0.0
        %2708 = vmatpush1.msra.mxu0 0.0
        %2709 = vmatprep.subr.mxu0 0.0
        %2710 = vmatpush1.msra.mxu0 0.0
        %2711 = vmatprep.subr.mxu0 0.0
        %2712 = vmatpush1.msra.mxu0 0.0
        %2713 = vmatprep.subr.mxu0 0.0
        %2714 = vmatpush1.msra.mxu0 0.0
        %2715 = vmatprep.subr.mxu0 0.0
        %2716 = vmatpush1.msra.mxu0 0.0
        %2717 = vmatprep.subr.mxu0 0.0
        %2718 = vmatpush1.msra.mxu0 0.0
        %2719 = vmatprep.subr.mxu0 0.0
        %2720 = vmatpush1.msra.mxu0 0.0
        %2721 = vmatprep.subr.mxu0 0.0
        %2722 = vmatpush1.msra.mxu0 0.0
        %2723 = vmatprep.subr.mxu0 0.0
        %2724 = vmatpush1.msra.mxu0 0.0
        %2725 = vmatprep.subr.mxu0 0.0
        %2726 = vmatpush1.msra.mxu0 0.0
        %2727 = vmatprep.subr.mxu0 0.0
        %2728 = vmatpush1.msra.mxu0 0.0
        %2729 = vmatprep.subr.mxu0 0.0
        %2730 = vmatpush1.msra.mxu0 0.0
        %2731 = vmatprep.subr.mxu0 0.0
        %2732 = vmatpush1.msra.mxu0 0.0
        %2733 = vmatprep.subr.mxu0 0.0
        %2734 = vmatpush1.msra.mxu0 0.0
        %2735 = vmatprep.mubr.f32.mxu0 0.0
        %2736 = vmatmul.mubr.f32.gmra.mrb[0].mxu0 %v1917
        %v2737 = vpop.f32.mrb[0].mxu0
        %v2738 = vadd.f32 %v1908, %v2737
        %v2739 = vpop.f32.mrb[0].mxu0
        %v2740 = vadd.f32 %v1908, %v2739
        %2741 = vmatprep.mubr.f32.mxu0 0.0
        %2742 = vmatmul.mubr.f32.gmra.mrb[0].mxu0 %v1920
        %v2743 = vpop.f32.mrb[0].mxu0
        %v2744 = vadd.f32 %v1913, %v2743
        %v2745 = vpop.f32.mrb[0].mxu0
        %v2746 = vadd.f32 %v1913, %v2745
        %2747 = vdwg.mxu0
        %2748 = vmatprep.subr.mxu0 %v1350
        %2749 = vmatpush1.msra.mxu0 %v1349
        %2750 = vmatprep.subr.mxu0 %v1394
        %2751 = vmatpush1.msra.mxu0 %v1393
        %2752 = vmatprep.subr.mxu0 %v1438
        %2753 = vmatpush1.msra.mxu0 %v1437
        %2754 = vmatprep.subr.mxu0 %v1482
        %2755 = vmatpush1.msra.mxu0 %v1481
        %2756 = vmatprep.subr.mxu0 %v1526
        %2757 = vmatpush1.msra.mxu0 %v1525
        %2758 = vmatprep.subr.mxu0 %v1570
        %2759 = vmatpush1.msra.mxu0 %v1569
        %2760 = vmatprep.subr.mxu0 %v1614
        %2761 = vmatpush1.msra.mxu0 %v1613
        %2762 = vmatprep.subr.mxu0 %v1658
        %2763 = vmatpush1.msra.mxu0 %v1657
        %2764 = vmatprep.subr.mxu0 %v1702
        %2765 = vmatpush1.msra.mxu0 %v1701
        %2766 = vmatprep.subr.mxu0 %v1746
        %2767 = vmatpush1.msra.mxu0 %v1745
        %2768 = vmatprep.subr.mxu0 %v1790
        %2769 = vmatpush1.msra.mxu0 %v1789
        %2770 = vmatprep.subr.mxu0 %v1834
        %2771 = vmatpush1.msra.mxu0 %v1833
        %2772 = vmatprep.subr.mxu0 %v1981
        %2773 = vmatpush1.msra.mxu0 %v1978
        %2774 = vmatprep.subr.mxu0 0.0
        %2775 = vmatpush1.msra.mxu0 0.0
        %2776 = vmatprep.subr.mxu0 0.0
        %2777 = vmatpush1.msra.mxu0 0.0
        %2778 = vmatprep.subr.mxu0 0.0
        %2779 = vmatpush1.msra.mxu0 0.0
        %2780 = vmatprep.subr.mxu0 0.0
        %2781 = vmatpush1.msra.mxu0 0.0
        %2782 = vmatprep.subr.mxu0 0.0
        %2783 = vmatpush1.msra.mxu0 0.0
        %2784 = vmatprep.subr.mxu0 0.0
        %2785 = vmatpush1.msra.mxu0 0.0
        %2786 = vmatprep.subr.mxu0 0.0
        %2787 = vmatpush1.msra.mxu0 0.0
        %2788 = vmatprep.subr.mxu0 0.0
        %2789 = vmatpush1.msra.mxu0 0.0
        %2790 = vmatprep.subr.mxu0 0.0
        %2791 = vmatpush1.msra.mxu0 0.0
        %2792 = vmatprep.subr.mxu0 0.0
        %2793 = vmatpush1.msra.mxu0 0.0
        %2794 = vmatprep.subr.mxu0 0.0
        %2795 = vmatpush1.msra.mxu0 0.0
        %2796 = vmatprep.subr.mxu0 0.0
        %2797 = vmatpush1.msra.mxu0 0.0
        %2798 = vmatprep.subr.mxu0 0.0
        %2799 = vmatpush1.msra.mxu0 0.0
        %2800 = vmatprep.subr.mxu0 0.0
        %2801 = vmatpush1.msra.mxu0 0.0
        %2802 = vmatprep.subr.mxu0 0.0
        %2803 = vmatpush1.msra.mxu0 0.0
        %2804 = vmatprep.subr.mxu0 0.0
        %2805 = vmatpush1.msra.mxu0 0.0
        %2806 = vmatprep.subr.mxu0 0.0
        %2807 = vmatpush1.msra.mxu0 0.0
        %2808 = vmatprep.subr.mxu0 0.0
        %2809 = vmatpush1.msra.mxu0 0.0
        %2810 = vmatprep.subr.mxu0 0.0
        %2811 = vmatpush1.msra.mxu0 0.0
        %2812 = vmatprep.mubr.f32.mxu0 0.0
        %2813 = vmatmul.mubr.f32.gmra.mrb[0].mxu0 %v1917
        %v2814 = vpop.f32.mrb[0].mxu0
        %v2815 = vadd.f32 %v1908, %v2814
        %v2816 = vpop.f32.mrb[0].mxu0
        %v2817 = vadd.f32 %v1908, %v2816
        %2818 = vmatprep.mubr.f32.mxu0 0.0
        %2819 = vmatmul.mubr.f32.gmra.mrb[0].mxu0 %v1920
        %v2820 = vpop.f32.mrb[0].mxu0
        %v2821 = vadd.f32 %v1913, %v2820
        %v2822 = vpop.f32.mrb[0].mxu0
        %v2823 = vadd.f32 %v1913, %v2822
        %2824 = vdwg.mxu0
        %2825 = vmatprep.subr.mxu0 %v1352
        %2826 = vmatpush1.msra.mxu0 %v1351
        %2827 = vmatprep.subr.mxu0 %v1396
        %2828 = vmatpush1.msra.mxu0 %v1395
        %2829 = vmatprep.subr.mxu0 %v1440
        %2830 = vmatpush1.msra.mxu0 %v1439
        %2831 = vmatprep.subr.mxu0 %v1484
        %2832 = vmatpush1.msra.mxu0 %v1483
        %2833 = vmatprep.subr.mxu0 %v1528
        %2834 = vmatpush1.msra.mxu0 %v1527
        %2835 = vmatprep.subr.mxu0 %v1572
        %2836 = vmatpush1.msra.mxu0 %v1571
        %2837 = vmatprep.subr.mxu0 %v1616
        %2838 = vmatpush1.msra.mxu0 %v1615
        %2839 = vmatprep.subr.mxu0 %v1660
        %2840 = vmatpush1.msra.mxu0 %v1659
        %2841 = vmatprep.subr.mxu0 %v1704
        %2842 = vmatpush1.msra.mxu0 %v1703
        %2843 = vmatprep.subr.mxu0 %v1748
        %2844 = vmatpush1.msra.mxu0 %v1747
        %2845 = vmatprep.subr.mxu0 %v1792
        %2846 = vmatpush1.msra.mxu0 %v1791
        %2847 = vmatprep.subr.mxu0 %v1836
        %2848 = vmatpush1.msra.mxu0 %v1835
        %2849 = vmatprep.subr.mxu0 %v1987
        %2850 = vmatpush1.msra.mxu0 %v1984
        %2851 = vmatprep.subr.mxu0 0.0
        %2852 = vmatpush1.msra.mxu0 0.0
        %2853 = vmatprep.subr.mxu0 0.0
        %2854 = vmatpush1.msra.mxu0 0.0
        %2855 = vmatprep.subr.mxu0 0.0
        %2856 = vmatpush1.msra.mxu0 0.0
        %2857 = vmatprep.subr.mxu0 0.0
        %2858 = vmatpush1.msra.mxu0 0.0
        %2859 = vmatprep.subr.mxu0 0.0
        %2860 = vmatpush1.msra.mxu0 0.0
        %2861 = vmatprep.subr.mxu0 0.0
        %2862 = vmatpush1.msra.mxu0 0.0
        %2863 = vmatprep.subr.mxu0 0.0
        %2864 = vmatpush1.msra.mxu0 0.0
        %2865 = vmatprep.subr.mxu0 0.0
        %2866 = vmatpush1.msra.mxu0 0.0
        %2867 = vmatprep.subr.mxu0 0.0
        %2868 = vmatpush1.msra.mxu0 0.0
        %2869 = vmatprep.subr.mxu0 0.0
        %2870 = vmatpush1.msra.mxu0 0.0
        %2871 = vmatprep.subr.mxu0 0.0
        %2872 = vmatpush1.msra.mxu0 0.0
        %2873 = vmatprep.subr.mxu0 0.0
        %2874 = vmatpush1.msra.mxu0 0.0
        %2875 = vmatprep.subr.mxu0 0.0
        %2876 = vmatpush1.msra.mxu0 0.0
        %2877 = vmatprep.subr.mxu0 0.0
        %2878 = vmatpush1.msra.mxu0 0.0
        %2879 = vmatprep.subr.mxu0 0.0
        %2880 = vmatpush1.msra.mxu0 0.0
        %2881 = vmatprep.subr.mxu0 0.0
        %2882 = vmatpush1.msra.mxu0 0.0
        %2883 = vmatprep.subr.mxu0 0.0
        %2884 = vmatpush1.msra.mxu0 0.0
        %2885 = vmatprep.subr.mxu0 0.0
        %2886 = vmatpush1.msra.mxu0 0.0
        %2887 = vmatprep.subr.mxu0 0.0
        %2888 = vmatpush1.msra.mxu0 0.0
        %2889 = vmatprep.mubr.f32.mxu0 0.0
        %2890 = vmatmul.mubr.f32.gmra.mrb[0].mxu0 %v1917
        %v2891 = vpop.f32.mrb[0].mxu0
        %v2892 = vadd.f32 %v1908, %v2891
        %v2893 = vpop.f32.mrb[0].mxu0
        %v2894 = vadd.f32 %v1908, %v2893
        %2895 = vmatprep.mubr.f32.mxu0 0.0
        %2896 = vmatmul.mubr.f32.gmra.mrb[0].mxu0 %v1920
        %v2897 = vpop.f32.mrb[0].mxu0
        %v2898 = vadd.f32 %v1913, %v2897
        %v2899 = vpop.f32.mrb[0].mxu0
        %v2900 = vadd.f32 %v1913, %v2899
        %2901 = vdwg.mxu0
        %2902 = vmatprep.subr.mxu0 %v1354
        %2903 = vmatpush1.msra.mxu0 %v1353
        %2904 = vmatprep.subr.mxu0 %v1398
        %2905 = vmatpush1.msra.mxu0 %v1397
        %2906 = vmatprep.subr.mxu0 %v1442
        %2907 = vmatpush1.msra.mxu0 %v1441
        %2908 = vmatprep.subr.mxu0 %v1486
        %2909 = vmatpush1.msra.mxu0 %v1485
        %2910 = vmatprep.subr.mxu0 %v1530
        %2911 = vmatpush1.msra.mxu0 %v1529
        %2912 = vmatprep.subr.mxu0 %v1574
        %2913 = vmatpush1.msra.mxu0 %v1573
        %2914 = vmatprep.subr.mxu0 %v1618
        %2915 = vmatpush1.msra.mxu0 %v1617
        %2916 = vmatprep.subr.mxu0 %v1662
        %2917 = vmatpush1.msra.mxu0 %v1661
        %2918 = vmatprep.subr.mxu0 %v1706
        %2919 = vmatpush1.msra.mxu0 %v1705
        %2920 = vmatprep.subr.mxu0 %v1750
        %2921 = vmatpush1.msra.mxu0 %v1749
        %2922 = vmatprep.subr.mxu0 %v1794
        %2923 = vmatpush1.msra.mxu0 %v1793
        %2924 = vmatprep.subr.mxu0 %v1838
        %2925 = vmatpush1.msra.mxu0 %v1837
        %2926 = vmatprep.subr.mxu0 %v1993
        %2927 = vmatpush1.msra.mxu0 %v1990
        %2928 = vmatprep.subr.mxu0 0.0
        %2929 = vmatpush1.msra.mxu0 0.0
        %2930 = vmatprep.subr.mxu0 0.0
        %2931 = vmatpush1.msra.mxu0 0.0
        %2932 = vmatprep.subr.mxu0 0.0
        %2933 = vmatpush1.msra.mxu0 0.0
        %2934 = vmatprep.subr.mxu0 0.0
        %2935 = vmatpush1.msra.mxu0 0.0
        %2936 = vmatprep.subr.mxu0 0.0
        %2937 = vmatpush1.msra.mxu0 0.0
        %2938 = vmatprep.subr.mxu0 0.0
        %2939 = vmatpush1.msra.mxu0 0.0
        %2940 = vmatprep.subr.mxu0 0.0
        %2941 = vmatpush1.msra.mxu0 0.0
        %2942 = vmatprep.subr.mxu0 0.0
        %2943 = vmatpush1.msra.mxu0 0.0
        %2944 = vmatprep.subr.mxu0 0.0
        %2945 = vmatpush1.msra.mxu0 0.0
        %2946 = vmatprep.subr.mxu0 0.0
        %2947 = vmatpush1.msra.mxu0 0.0
        %2948 = vmatprep.subr.mxu0 0.0
        %2949 = vmatpush1.msra.mxu0 0.0
        %2950 = vmatprep.subr.mxu0 0.0
        %2951 = vmatpush1.msra.mxu0 0.0
        %2952 = vmatprep.subr.mxu0 0.0
        %2953 = vmatpush1.msra.mxu0 0.0
        %2954 = vmatprep.subr.mxu0 0.0
        %2955 = vmatpush1.msra.mxu0 0.0
        %2956 = vmatprep.subr.mxu0 0.0
        %2957 = vmatpush1.msra.mxu0 0.0
        %2958 = vmatprep.subr.mxu0 0.0
        %2959 = vmatpush1.msra.mxu0 0.0
        %2960 = vmatprep.subr.mxu0 0.0
        %2961 = vmatpush1.msra.mxu0 0.0
        %2962 = vmatprep.subr.mxu0 0.0
        %2963 = vmatpush1.msra.mxu0 0.0
        %2964 = vmatprep.subr.mxu0 0.0
        %2965 = vmatpush1.msra.mxu0 0.0
        %2966 = vmatprep.mubr.f32.mxu0 0.0
        %2967 = vmatmul.mubr.f32.gmra.mrb[0].mxu0 %v1917
        %v2968 = vpop.f32.mrb[0].mxu0
        %v2969 = vadd.f32 %v1908, %v2968
        %v2970 = vpop.f32.mrb[0].mxu0
        %v2971 = vadd.f32 %v1908, %v2970
        %2972 = vmatprep.mubr.f32.mxu0 0.0
        %2973 = vmatmul.mubr.f32.gmra.mrb[0].mxu0 %v1920
        %v2974 = vpop.f32.mrb[0].mxu0
        %v2975 = vadd.f32 %v1913, %v2974
        %v2976 = vpop.f32.mrb[0].mxu0
        %v2977 = vadd.f32 %v1913, %v2976
        %2978 = vdwg.mxu0
        %2979 = vmatprep.subr.mxu0 %v1356
        %2980 = vmatpush1.msra.mxu0 %v1355
        %2981 = vmatprep.subr.mxu0 %v1400
        %2982 = vmatpush1.msra.mxu0 %v1399
        %2983 = vmatprep.subr.mxu0 %v1444
        %2984 = vmatpush1.msra.mxu0 %v1443
        %2985 = vmatprep.subr.mxu0 %v1488
        %2986 = vmatpush1.msra.mxu0 %v1487
        %2987 = vmatprep.subr.mxu0 %v1532
        %2988 = vmatpush1.msra.mxu0 %v1531
        %2989 = vmatprep.subr.mxu0 %v1576
        %2990 = vmatpush1.msra.mxu0 %v1575
        %2991 = vmatprep.subr.mxu0 %v1620
        %2992 = vmatpush1.msra.mxu0 %v1619
        %2993 = vmatprep.subr.mxu0 %v1664
        %2994 = vmatpush1.msra.mxu0 %v1663
        %2995 = vmatprep.subr.mxu0 %v1708
        %2996 = vmatpush1.msra.mxu0 %v1707
        %2997 = vmatprep.subr.mxu0 %v1752
        %2998 = vmatpush1.msra.mxu0 %v1751
        %2999 = vmatprep.subr.mxu0 %v1796
        %3000 = vmatpush1.msra.mxu0 %v1795
        %3001 = vmatprep.subr.mxu0 %v1840
        %3002 = vmatpush1.msra.mxu0 %v1839
        %3003 = vmatprep.subr.mxu0 %v1999
        %3004 = vmatpush1.msra.mxu0 %v1996
        %3005 = vmatprep.subr.mxu0 0.0
        %3006 = vmatpush1.msra.mxu0 0.0
        %3007 = vmatprep.subr.mxu0 0.0
        %3008 = vmatpush1.msra.mxu0 0.0
        %3009 = vmatprep.subr.mxu0 0.0
        %3010 = vmatpush1.msra.mxu0 0.0
        %3011 = vmatprep.subr.mxu0 0.0
        %3012 = vmatpush1.msra.mxu0 0.0
        %3013 = vmatprep.subr.mxu0 0.0
        %3014 = vmatpush1.msra.mxu0 0.0
        %3015 = vmatprep.subr.mxu0 0.0
        %3016 = vmatpush1.msra.mxu0 0.0
        %3017 = vmatprep.subr.mxu0 0.0
        %3018 = vmatpush1.msra.mxu0 0.0
        %3019 = vmatprep.subr.mxu0 0.0
        %3020 = vmatpush1.msra.mxu0 0.0
        %3021 = vmatprep.subr.mxu0 0.0
        %3022 = vmatpush1.msra.mxu0 0.0
        %3023 = vmatprep.subr.mxu0 0.0
        %3024 = vmatpush1.msra.mxu0 0.0
        %3025 = vmatprep.subr.mxu0 0.0
        %3026 = vmatpush1.msra.mxu0 0.0
        %3027 = vmatprep.subr.mxu0 0.0
        %3028 = vmatpush1.msra.mxu0 0.0
        %3029 = vmatprep.subr.mxu0 0.0
        %3030 = vmatpush1.msra.mxu0 0.0
        %3031 = vmatprep.subr.mxu0 0.0
        %3032 = vmatpush1.msra.mxu0 0.0
        %3033 = vmatprep.subr.mxu0 0.0
        %3034 = vmatpush1.msra.mxu0 0.0
        %3035 = vmatprep.subr.mxu0 0.0
        %3036 = vmatpush1.msra.mxu0 0.0
        %3037 = vmatprep.subr.mxu0 0.0
        %3038 = vmatpush1.msra.mxu0 0.0
        %3039 = vmatprep.subr.mxu0 0.0
        %3040 = vmatpush1.msra.mxu0 0.0
        %3041 = vmatprep.subr.mxu0 0.0
        %3042 = vmatpush1.msra.mxu0 0.0
        %3043 = vmatprep.mubr.f32.mxu0 0.0
        %3044 = vmatmul.mubr.f32.gmra.mrb[0].mxu0 %v1917
        %v3045 = vpop.f32.mrb[0].mxu0
        %v3046 = vadd.f32 %v1908, %v3045
        %v3047 = vpop.f32.mrb[0].mxu0
        %v3048 = vadd.f32 %v1908, %v3047
        %3049 = vmatprep.mubr.f32.mxu0 0.0
        %3050 = vmatmul.mubr.f32.gmra.mrb[0].mxu0 %v1920
        %v3051 = vpop.f32.mrb[0].mxu0
        %v3052 = vadd.f32 %v1913, %v3051
        %v3053 = vpop.f32.mrb[0].mxu0
        %v3054 = vadd.f32 %v1913, %v3053
        %3055 = vdwg.mxu0
        %3056 = vmatprep.subr.mxu0 %v1358
        %3057 = vmatpush1.msra.mxu0 %v1357
        %3058 = vmatprep.subr.mxu0 %v1402
        %3059 = vmatpush1.msra.mxu0 %v1401
        %3060 = vmatprep.subr.mxu0 %v1446
        %3061 = vmatpush1.msra.mxu0 %v1445
        %3062 = vmatprep.subr.mxu0 %v1490
        %3063 = vmatpush1.msra.mxu0 %v1489
        %3064 = vmatprep.subr.mxu0 %v1534
        %3065 = vmatpush1.msra.mxu0 %v1533
        %3066 = vmatprep.subr.mxu0 %v1578
        %3067 = vmatpush1.msra.mxu0 %v1577
        %3068 = vmatprep.subr.mxu0 %v1622
        %3069 = vmatpush1.msra.mxu0 %v1621
        %3070 = vmatprep.subr.mxu0 %v1666
        %3071 = vmatpush1.msra.mxu0 %v1665
        %3072 = vmatprep.subr.mxu0 %v1710
        %3073 = vmatpush1.msra.mxu0 %v1709
        %3074 = vmatprep.subr.mxu0 %v1754
        %3075 = vmatpush1.msra.mxu0 %v1753
        %3076 = vmatprep.subr.mxu0 %v1798
        %3077 = vmatpush1.msra.mxu0 %v1797
        %3078 = vmatprep.subr.mxu0 %v1842
        %3079 = vmatpush1.msra.mxu0 %v1841
        %3080 = vmatprep.subr.mxu0 %v2005
        %3081 = vmatpush1.msra.mxu0 %v2002
        %3082 = vmatprep.subr.mxu0 0.0
        %3083 = vmatpush1.msra.mxu0 0.0
        %3084 = vmatprep.subr.mxu0 0.0
        %3085 = vmatpush1.msra.mxu0 0.0
        %3086 = vmatprep.subr.mxu0 0.0
        %3087 = vmatpush1.msra.mxu0 0.0
        %3088 = vmatprep.subr.mxu0 0.0
        %3089 = vmatpush1.msra.mxu0 0.0
        %3090 = vmatprep.subr.mxu0 0.0
        %3091 = vmatpush1.msra.mxu0 0.0
        %3092 = vmatprep.subr.mxu0 0.0
        %3093 = vmatpush1.msra.mxu0 0.0
        %3094 = vmatprep.subr.mxu0 0.0
        %3095 = vmatpush1.msra.mxu0 0.0
        %3096 = vmatprep.subr.mxu0 0.0
        %3097 = vmatpush1.msra.mxu0 0.0
        %3098 = vmatprep.subr.mxu0 0.0
        %3099 = vmatpush1.msra.mxu0 0.0
        %3100 = vmatprep.subr.mxu0 0.0
        %3101 = vmatpush1.msra.mxu0 0.0
        %3102 = vmatprep.subr.mxu0 0.0
        %3103 = vmatpush1.msra.mxu0 0.0
        %3104 = vmatprep.subr.mxu0 0.0
        %3105 = vmatpush1.msra.mxu0 0.0
        %3106 = vmatprep.subr.mxu0 0.0
        %3107 = vmatpush1.msra.mxu0 0.0
        %3108 = vmatprep.subr.mxu0 0.0
        %3109 = vmatpush1.msra.mxu0 0.0
        %3110 = vmatprep.subr.mxu0 0.0
        %3111 = vmatpush1.msra.mxu0 0.0
        %3112 = vmatprep.subr.mxu0 0.0
        %3113 = vmatpush1.msra.mxu0 0.0
        %3114 = vmatprep.subr.mxu0 0.0
        %3115 = vmatpush1.msra.mxu0 0.0
        %3116 = vmatprep.subr.mxu0 0.0
        %3117 = vmatpush1.msra.mxu0 0.0
        %3118 = vmatprep.subr.mxu0 0.0
        %3119 = vmatpush1.msra.mxu0 0.0
        %3120 = vmatprep.mubr.f32.mxu0 0.0
        %3121 = vmatmul.mubr.f32.gmra.mrb[0].mxu0 %v1917
        %v3122 = vpop.f32.mrb[0].mxu0
        %v3123 = vadd.f32 %v1908, %v3122
        %v3124 = vpop.f32.mrb[0].mxu0
        %v3125 = vadd.f32 %v1908, %v3124
        %3126 = vmatprep.mubr.f32.mxu0 0.0
        %3127 = vmatmul.mubr.f32.gmra.mrb[0].mxu0 %v1920
        %v3128 = vpop.f32.mrb[0].mxu0
        %v3129 = vadd.f32 %v1913, %v3128
        %v3130 = vpop.f32.mrb[0].mxu0
        %v3131 = vadd.f32 %v1913, %v3130
        %3132 = vdwg.mxu0
        %3133 = vmatprep.subr.mxu0 %v1360
        %3134 = vmatpush1.msra.mxu0 %v1359
        %3135 = vmatprep.subr.mxu0 %v1404
        %3136 = vmatpush1.msra.mxu0 %v1403
        %3137 = vmatprep.subr.mxu0 %v1448
        %3138 = vmatpush1.msra.mxu0 %v1447
        %3139 = vmatprep.subr.mxu0 %v1492
        %3140 = vmatpush1.msra.mxu0 %v1491
        %3141 = vmatprep.subr.mxu0 %v1536
        %3142 = vmatpush1.msra.mxu0 %v1535
        %3143 = vmatprep.subr.mxu0 %v1580
        %3144 = vmatpush1.msra.mxu0 %v1579
        %3145 = vmatprep.subr.mxu0 %v1624
        %3146 = vmatpush1.msra.mxu0 %v1623
        %3147 = vmatprep.subr.mxu0 %v1668
        %3148 = vmatpush1.msra.mxu0 %v1667
        %3149 = vmatprep.subr.mxu0 %v1712
        %3150 = vmatpush1.msra.mxu0 %v1711
        %3151 = vmatprep.subr.mxu0 %v1756
        %3152 = vmatpush1.msra.mxu0 %v1755
        %3153 = vmatprep.subr.mxu0 %v1800
        %3154 = vmatpush1.msra.mxu0 %v1799
        %3155 = vmatprep.subr.mxu0 %v1844
        %3156 = vmatpush1.msra.mxu0 %v1843
        %3157 = vmatprep.subr.mxu0 %v2011
        %3158 = vmatpush1.msra.mxu0 %v2008
        %3159 = vmatprep.subr.mxu0 0.0
        %3160 = vmatpush1.msra.mxu0 0.0
        %3161 = vmatprep.subr.mxu0 0.0
        %3162 = vmatpush1.msra.mxu0 0.0
        %3163 = vmatprep.subr.mxu0 0.0
        %3164 = vmatpush1.msra.mxu0 0.0
        %3165 = vmatprep.subr.mxu0 0.0
        %3166 = vmatpush1.msra.mxu0 0.0
        %3167 = vmatprep.subr.mxu0 0.0
        %3168 = vmatpush1.msra.mxu0 0.0
        %3169 = vmatprep.subr.mxu0 0.0
        %3170 = vmatpush1.msra.mxu0 0.0
        %3171 = vmatprep.subr.mxu0 0.0
        %3172 = vmatpush1.msra.mxu0 0.0
        %3173 = vmatprep.subr.mxu0 0.0
        %3174 = vmatpush1.msra.mxu0 0.0
        %3175 = vmatprep.subr.mxu0 0.0
        %3176 = vmatpush1.msra.mxu0 0.0
        %3177 = vmatprep.subr.mxu0 0.0
        %3178 = vmatpush1.msra.mxu0 0.0
        %3179 = vmatprep.subr.mxu0 0.0
        %3180 = vmatpush1.msra.mxu0 0.0
        %3181 = vmatprep.subr.mxu0 0.0
        %3182 = vmatpush1.msra.mxu0 0.0
        %3183 = vmatprep.subr.mxu0 0.0
        %3184 = vmatpush1.msra.mxu0 0.0
        %3185 = vmatprep.subr.mxu0 0.0
        %3186 = vmatpush1.msra.mxu0 0.0
        %3187 = vmatprep.subr.mxu0 0.0
        %3188 = vmatpush1.msra.mxu0 0.0
        %3189 = vmatprep.subr.mxu0 0.0
        %3190 = vmatpush1.msra.mxu0 0.0
        %3191 = vmatprep.subr.mxu0 0.0
        %3192 = vmatpush1.msra.mxu0 0.0
        %3193 = vmatprep.subr.mxu0 0.0
        %3194 = vmatpush1.msra.mxu0 0.0
        %3195 = vmatprep.subr.mxu0 0.0
        %3196 = vmatpush1.msra.mxu0 0.0
        %3197 = vmatprep.mubr.f32.mxu0 0.0
        %3198 = vmatmul.mubr.f32.gmra.mrb[0].mxu0 %v1917
        %v3199 = vpop.f32.mrb[0].mxu0
        %v3200 = vadd.f32 %v1908, %v3199
        %v3201 = vpop.f32.mrb[0].mxu0
        %v3202 = vadd.f32 %v1908, %v3201
        %3203 = vmatprep.mubr.f32.mxu0 0.0
        %3204 = vmatmul.mubr.f32.gmra.mrb[0].mxu0 %v1920
        %v3205 = vpop.f32.mrb[0].mxu0
        %v3206 = vadd.f32 %v1913, %v3205
        %v3207 = vpop.f32.mrb[0].mxu0
        %v3208 = vadd.f32 %v1913, %v3207
        %3209 = vdwg.mxu0
        %3210 = vmatprep.subr.mxu0 %v1362
        %3211 = vmatpush1.msra.mxu0 %v1361
        %3212 = vmatprep.subr.mxu0 %v1406
        %3213 = vmatpush1.msra.mxu0 %v1405
        %3214 = vmatprep.subr.mxu0 %v1450
        %3215 = vmatpush1.msra.mxu0 %v1449
        %3216 = vmatprep.subr.mxu0 %v1494
        %3217 = vmatpush1.msra.mxu0 %v1493
        %3218 = vmatprep.subr.mxu0 %v1538
        %3219 = vmatpush1.msra.mxu0 %v1537
        %3220 = vmatprep.subr.mxu0 %v1582
        %3221 = vmatpush1.msra.mxu0 %v1581
        %3222 = vmatprep.subr.mxu0 %v1626
        %3223 = vmatpush1.msra.mxu0 %v1625
        %3224 = vmatprep.subr.mxu0 %v1670
        %3225 = vmatpush1.msra.mxu0 %v1669
        %3226 = vmatprep.subr.mxu0 %v1714
        %3227 = vmatpush1.msra.mxu0 %v1713
        %3228 = vmatprep.subr.mxu0 %v1758
        %3229 = vmatpush1.msra.mxu0 %v1757
        %3230 = vmatprep.subr.mxu0 %v1802
        %3231 = vmatpush1.msra.mxu0 %v1801
        %3232 = vmatprep.subr.mxu0 %v1846
        %3233 = vmatpush1.msra.mxu0 %v1845
        %3234 = vmatprep.subr.mxu0 %v2017
        %3235 = vmatpush1.msra.mxu0 %v2014
        %3236 = vmatprep.subr.mxu0 0.0
        %3237 = vmatpush1.msra.mxu0 0.0
        %3238 = vmatprep.subr.mxu0 0.0
        %3239 = vmatpush1.msra.mxu0 0.0
        %3240 = vmatprep.subr.mxu0 0.0
        %3241 = vmatpush1.msra.mxu0 0.0
        %3242 = vmatprep.subr.mxu0 0.0
        %3243 = vmatpush1.msra.mxu0 0.0
        %3244 = vmatprep.subr.mxu0 0.0
        %3245 = vmatpush1.msra.mxu0 0.0
        %3246 = vmatprep.subr.mxu0 0.0
        %3247 = vmatpush1.msra.mxu0 0.0
        %3248 = vmatprep.subr.mxu0 0.0
        %3249 = vmatpush1.msra.mxu0 0.0
        %3250 = vmatprep.subr.mxu0 0.0
        %3251 = vmatpush1.msra.mxu0 0.0
        %3252 = vmatprep.subr.mxu0 0.0
        %3253 = vmatpush1.msra.mxu0 0.0
        %3254 = vmatprep.subr.mxu0 0.0
        %3255 = vmatpush1.msra.mxu0 0.0
        %3256 = vmatprep.subr.mxu0 0.0
        %3257 = vmatpush1.msra.mxu0 0.0
        %3258 = vmatprep.subr.mxu0 0.0
        %3259 = vmatpush1.msra.mxu0 0.0
        %3260 = vmatprep.subr.mxu0 0.0
        %3261 = vmatpush1.msra.mxu0 0.0
        %3262 = vmatprep.subr.mxu0 0.0
        %3263 = vmatpush1.msra.mxu0 0.0
        %3264 = vmatprep.subr.mxu0 0.0
        %3265 = vmatpush1.msra.mxu0 0.0
        %3266 = vmatprep.subr.mxu0 0.0
        %3267 = vmatpush1.msra.mxu0 0.0
        %3268 = vmatprep.subr.mxu0 0.0
        %3269 = vmatpush1.msra.mxu0 0.0
        %3270 = vmatprep.subr.mxu0 0.0
        %3271 = vmatpush1.msra.mxu0 0.0
        %3272 = vmatprep.subr.mxu0 0.0
        %3273 = vmatpush1.msra.mxu0 0.0
        %3274 = vmatprep.mubr.f32.mxu0 0.0
        %3275 = vmatmul.mubr.f32.gmra.mrb[0].mxu0 %v1917
        %v3276 = vpop.f32.mrb[0].mxu0
        %v3277 = vadd.f32 %v1908, %v3276
        %v3278 = vpop.f32.mrb[0].mxu0
        %v3279 = vadd.f32 %v1908, %v3278
        %3280 = vmatprep.mubr.f32.mxu0 0.0
        %3281 = vmatmul.mubr.f32.gmra.mrb[0].mxu0 %v1920
        %v3282 = vpop.f32.mrb[0].mxu0
        %v3283 = vadd.f32 %v1913, %v3282
        %v3284 = vpop.f32.mrb[0].mxu0
        %v3285 = vadd.f32 %v1913, %v3284
        %3286 = vdwg.mxu0
        %3287 = vmatprep.subr.mxu0 %v1364
        %3288 = vmatpush1.msra.mxu0 %v1363
        %3289 = vmatprep.subr.mxu0 %v1408
        %3290 = vmatpush1.msra.mxu0 %v1407
        %3291 = vmatprep.subr.mxu0 %v1452
        %3292 = vmatpush1.msra.mxu0 %v1451
        %3293 = vmatprep.subr.mxu0 %v1496
        %3294 = vmatpush1.msra.mxu0 %v1495
        %3295 = vmatprep.subr.mxu0 %v1540
        %3296 = vmatpush1.msra.mxu0 %v1539
        %3297 = vmatprep.subr.mxu0 %v1584
        %3298 = vmatpush1.msra.mxu0 %v1583
        %3299 = vmatprep.subr.mxu0 %v1628
        %3300 = vmatpush1.msra.mxu0 %v1627
        %3301 = vmatprep.subr.mxu0 %v1672
        %3302 = vmatpush1.msra.mxu0 %v1671
        %3303 = vmatprep.subr.mxu0 %v1716
        %3304 = vmatpush1.msra.mxu0 %v1715
        %3305 = vmatprep.subr.mxu0 %v1760
        %3306 = vmatpush1.msra.mxu0 %v1759
        %3307 = vmatprep.subr.mxu0 %v1804
        %3308 = vmatpush1.msra.mxu0 %v1803
        %3309 = vmatprep.subr.mxu0 %v1848
        %3310 = vmatpush1.msra.mxu0 %v1847
        %3311 = vmatprep.subr.mxu0 %v2023
        %3312 = vmatpush1.msra.mxu0 %v2020
        %3313 = vmatprep.subr.mxu0 0.0
        %3314 = vmatpush1.msra.mxu0 0.0
        %3315 = vmatprep.subr.mxu0 0.0
        %3316 = vmatpush1.msra.mxu0 0.0
        %3317 = vmatprep.subr.mxu0 0.0
        %3318 = vmatpush1.msra.mxu0 0.0
        %3319 = vmatprep.subr.mxu0 0.0
        %3320 = vmatpush1.msra.mxu0 0.0
        %3321 = vmatprep.subr.mxu0 0.0
        %3322 = vmatpush1.msra.mxu0 0.0
        %3323 = vmatprep.subr.mxu0 0.0
        %3324 = vmatpush1.msra.mxu0 0.0
        %3325 = vmatprep.subr.mxu0 0.0
        %3326 = vmatpush1.msra.mxu0 0.0
        %3327 = vmatprep.subr.mxu0 0.0
        %3328 = vmatpush1.msra.mxu0 0.0
        %3329 = vmatprep.subr.mxu0 0.0
        %3330 = vmatpush1.msra.mxu0 0.0
        %3331 = vmatprep.subr.mxu0 0.0
        %3332 = vmatpush1.msra.mxu0 0.0
        %3333 = vmatprep.subr.mxu0 0.0
        %3334 = vmatpush1.msra.mxu0 0.0
        %3335 = vmatprep.subr.mxu0 0.0
        %3336 = vmatpush1.msra.mxu0 0.0
        %3337 = vmatprep.subr.mxu0 0.0
        %3338 = vmatpush1.msra.mxu0 0.0
        %3339 = vmatprep.subr.mxu0 0.0
        %3340 = vmatpush1.msra.mxu0 0.0
        %3341 = vmatprep.subr.mxu0 0.0
        %3342 = vmatpush1.msra.mxu0 0.0
        %3343 = vmatprep.subr.mxu0 0.0
        %3344 = vmatpush1.msra.mxu0 0.0
        %3345 = vmatprep.subr.mxu0 0.0
        %3346 = vmatpush1.msra.mxu0 0.0
        %3347 = vmatprep.subr.mxu0 0.0
        %3348 = vmatpush1.msra.mxu0 0.0
        %3349 = vmatprep.subr.mxu0 0.0
        %3350 = vmatpush1.msra.mxu0 0.0
        %3351 = vmatprep.mubr.f32.mxu0 0.0
        %3352 = vmatmul.mubr.f32.gmra.mrb[0].mxu0 %v1917
        %v3353 = vpop.f32.mrb[0].mxu0
        %v3354 = vadd.f32 %v1908, %v3353
        %v3355 = vpop.f32.mrb[0].mxu0
        %v3356 = vadd.f32 %v1908, %v3355
        %3357 = vmatprep.mubr.f32.mxu0 0.0
        %3358 = vmatmul.mubr.f32.gmra.mrb[0].mxu0 %v1920
        %v3359 = vpop.f32.mrb[0].mxu0
        %v3360 = vadd.f32 %v1913, %v3359
        %v3361 = vpop.f32.mrb[0].mxu0
        %v3362 = vadd.f32 %v1913, %v3361
        %3363 = vdwg.mxu0
        %3364 = vmatprep.subr.mxu0 %v1366
        %3365 = vmatpush1.msra.mxu0 %v1365
        %3366 = vmatprep.subr.mxu0 %v1410
        %3367 = vmatpush1.msra.mxu0 %v1409
        %3368 = vmatprep.subr.mxu0 %v1454
        %3369 = vmatpush1.msra.mxu0 %v1453
        %3370 = vmatprep.subr.mxu0 %v1498
        %3371 = vmatpush1.msra.mxu0 %v1497
        %3372 = vmatprep.subr.mxu0 %v1542
        %3373 = vmatpush1.msra.mxu0 %v1541
        %3374 = vmatprep.subr.mxu0 %v1586
        %3375 = vmatpush1.msra.mxu0 %v1585
        %3376 = vmatprep.subr.mxu0 %v1630
        %3377 = vmatpush1.msra.mxu0 %v1629
        %3378 = vmatprep.subr.mxu0 %v1674
        %3379 = vmatpush1.msra.mxu0 %v1673
        %3380 = vmatprep.subr.mxu0 %v1718
        %3381 = vmatpush1.msra.mxu0 %v1717
        %3382 = vmatprep.subr.mxu0 %v1762
        %3383 = vmatpush1.msra.mxu0 %v1761
        %3384 = vmatprep.subr.mxu0 %v1806
        %3385 = vmatpush1.msra.mxu0 %v1805
        %3386 = vmatprep.subr.mxu0 %v1850
        %3387 = vmatpush1.msra.mxu0 %v1849
        %3388 = vmatprep.subr.mxu0 %v2029
        %3389 = vmatpush1.msra.mxu0 %v2026
        %3390 = vmatprep.subr.mxu0 0.0
        %3391 = vmatpush1.msra.mxu0 0.0
        %3392 = vmatprep.subr.mxu0 0.0
        %3393 = vmatpush1.msra.mxu0 0.0
        %3394 = vmatprep.subr.mxu0 0.0
        %3395 = vmatpush1.msra.mxu0 0.0
        %3396 = vmatprep.subr.mxu0 0.0
        %3397 = vmatpush1.msra.mxu0 0.0
        %3398 = vmatprep.subr.mxu0 0.0
        %3399 = vmatpush1.msra.mxu0 0.0
        %3400 = vmatprep.subr.mxu0 0.0
        %3401 = vmatpush1.msra.mxu0 0.0
        %3402 = vmatprep.subr.mxu0 0.0
        %3403 = vmatpush1.msra.mxu0 0.0
        %3404 = vmatprep.subr.mxu0 0.0
        %3405 = vmatpush1.msra.mxu0 0.0
        %3406 = vmatprep.subr.mxu0 0.0
        %3407 = vmatpush1.msra.mxu0 0.0
        %3408 = vmatprep.subr.mxu0 0.0
        %3409 = vmatpush1.msra.mxu0 0.0
        %3410 = vmatprep.subr.mxu0 0.0
        %3411 = vmatpush1.msra.mxu0 0.0
        %3412 = vmatprep.subr.mxu0 0.0
        %3413 = vmatpush1.msra.mxu0 0.0
        %3414 = vmatprep.subr.mxu0 0.0
        %3415 = vmatpush1.msra.mxu0 0.0
        %3416 = vmatprep.subr.mxu0 0.0
        %3417 = vmatpush1.msra.mxu0 0.0
        %3418 = vmatprep.subr.mxu0 0.0
        %3419 = vmatpush1.msra.mxu0 0.0
        %3420 = vmatprep.subr.mxu0 0.0
        %3421 = vmatpush1.msra.mxu0 0.0
        %3422 = vmatprep.subr.mxu0 0.0
        %3423 = vmatpush1.msra.mxu0 0.0
        %3424 = vmatprep.subr.mxu0 0.0
        %3425 = vmatpush1.msra.mxu0 0.0
        %3426 = vmatprep.subr.mxu0 0.0
        %3427 = vmatpush1.msra.mxu0 0.0
        %3428 = vmatprep.mubr.f32.mxu0 0.0
        %3429 = vmatmul.mubr.f32.gmra.mrb[0].mxu0 %v1917
        %v3430 = vpop.f32.mrb[0].mxu0
        %v3431 = vadd.f32 %v1908, %v3430
        %v3432 = vpop.f32.mrb[0].mxu0
        %v3433 = vadd.f32 %v1908, %v3432
        %3434 = vmatprep.mubr.f32.mxu0 0.0
        %3435 = vmatmul.mubr.f32.gmra.mrb[0].mxu0 %v1920
        %v3436 = vpop.f32.mrb[0].mxu0
        %v3437 = vadd.f32 %v1913, %v3436
        %v3438 = vpop.f32.mrb[0].mxu0
        %v3439 = vadd.f32 %v1913, %v3438
        %3440 = vdwg.mxu0
        %3441 = vmatprep.subr.mxu0 %v1368
        %3442 = vmatpush1.msra.mxu0 %v1367
        %3443 = vmatprep.subr.mxu0 %v1412
        %3444 = vmatpush1.msra.mxu0 %v1411
        %3445 = vmatprep.subr.mxu0 %v1456
        %3446 = vmatpush1.msra.mxu0 %v1455
        %3447 = vmatprep.subr.mxu0 %v1500
        %3448 = vmatpush1.msra.mxu0 %v1499
        %3449 = vmatprep.subr.mxu0 %v1544
        %3450 = vmatpush1.msra.mxu0 %v1543
        %3451 = vmatprep.subr.mxu0 %v1588
        %3452 = vmatpush1.msra.mxu0 %v1587
        %3453 = vmatprep.subr.mxu0 %v1632
        %3454 = vmatpush1.msra.mxu0 %v1631
        %3455 = vmatprep.subr.mxu0 %v1676
        %3456 = vmatpush1.msra.mxu0 %v1675
        %3457 = vmatprep.subr.mxu0 %v1720
        %3458 = vmatpush1.msra.mxu0 %v1719
        %3459 = vmatprep.subr.mxu0 %v1764
        %3460 = vmatpush1.msra.mxu0 %v1763
        %3461 = vmatprep.subr.mxu0 %v1808
        %3462 = vmatpush1.msra.mxu0 %v1807
        %3463 = vmatprep.subr.mxu0 %v1852
        %3464 = vmatpush1.msra.mxu0 %v1851
        %3465 = vmatprep.subr.mxu0 %v2035
        %3466 = vmatpush1.msra.mxu0 %v2032
        %3467 = vmatprep.subr.mxu0 0.0
        %3468 = vmatpush1.msra.mxu0 0.0
        %3469 = vmatprep.subr.mxu0 0.0
        %3470 = vmatpush1.msra.mxu0 0.0
        %3471 = vmatprep.subr.mxu0 0.0
        %3472 = vmatpush1.msra.mxu0 0.0
        %3473 = vmatprep.subr.mxu0 0.0
        %3474 = vmatpush1.msra.mxu0 0.0
        %3475 = vmatprep.subr.mxu0 0.0
        %3476 = vmatpush1.msra.mxu0 0.0
        %3477 = vmatprep.subr.mxu0 0.0
        %3478 = vmatpush1.msra.mxu0 0.0
        %3479 = vmatprep.subr.mxu0 0.0
        %3480 = vmatpush1.msra.mxu0 0.0
        %3481 = vmatprep.subr.mxu0 0.0
        %3482 = vmatpush1.msra.mxu0 0.0
        %3483 = vmatprep.subr.mxu0 0.0
        %3484 = vmatpush1.msra.mxu0 0.0
        %3485 = vmatprep.subr.mxu0 0.0
        %3486 = vmatpush1.msra.mxu0 0.0
        %3487 = vmatprep.subr.mxu0 0.0
        %3488 = vmatpush1.msra.mxu0 0.0
        %3489 = vmatprep.subr.mxu0 0.0
        %3490 = vmatpush1.msra.mxu0 0.0
        %3491 = vmatprep.subr.mxu0 0.0
        %3492 = vmatpush1.msra.mxu0 0.0
        %3493 = vmatprep.subr.mxu0 0.0
        %3494 = vmatpush1.msra.mxu0 0.0
        %3495 = vmatprep.subr.mxu0 0.0
        %3496 = vmatpush1.msra.mxu0 0.0
        %3497 = vmatprep.subr.mxu0 0.0
        %3498 = vmatpush1.msra.mxu0 0.0
        %3499 = vmatprep.subr.mxu0 0.0
        %3500 = vmatpush1.msra.mxu0 0.0
        %3501 = vmatprep.subr.mxu0 0.0
        %3502 = vmatpush1.msra.mxu0 0.0
        %3503 = vmatprep.subr.mxu0 0.0
        %3504 = vmatpush1.msra.mxu0 0.0
        %3505 = vmatprep.mubr.f32.mxu0 0.0
        %3506 = vmatmul.mubr.f32.gmra.mrb[0].mxu0 %v1917
        %v3507 = vpop.f32.mrb[0].mxu0
        %v3508 = vadd.f32 %v1908, %v3507
        %v3509 = vpop.f32.mrb[0].mxu0
        %v3510 = vadd.f32 %v1908, %v3509
        %3511 = vmatprep.mubr.f32.mxu0 0.0
        %3512 = vmatmul.mubr.f32.gmra.mrb[0].mxu0 %v1920
        %v3513 = vpop.f32.mrb[0].mxu0
        %v3514 = vadd.f32 %v1913, %v3513
        %v3515 = vpop.f32.mrb[0].mxu0
        %v3516 = vadd.f32 %v1913, %v3515
        %3517 = vdwg.mxu0
        %3518 = vmatprep.subr.mxu0 %v1370
        %3519 = vmatpush1.msra.mxu0 %v1369
        %3520 = vmatprep.subr.mxu0 %v1414
        %3521 = vmatpush1.msra.mxu0 %v1413
        %3522 = vmatprep.subr.mxu0 %v1458
        %3523 = vmatpush1.msra.mxu0 %v1457
        %3524 = vmatprep.subr.mxu0 %v1502
        %3525 = vmatpush1.msra.mxu0 %v1501
        %3526 = vmatprep.subr.mxu0 %v1546
        %3527 = vmatpush1.msra.mxu0 %v1545
        %3528 = vmatprep.subr.mxu0 %v1590
        %3529 = vmatpush1.msra.mxu0 %v1589
        %3530 = vmatprep.subr.mxu0 %v1634
        %3531 = vmatpush1.msra.mxu0 %v1633
        %3532 = vmatprep.subr.mxu0 %v1678
        %3533 = vmatpush1.msra.mxu0 %v1677
        %3534 = vmatprep.subr.mxu0 %v1722
        %3535 = vmatpush1.msra.mxu0 %v1721
        %3536 = vmatprep.subr.mxu0 %v1766
        %3537 = vmatpush1.msra.mxu0 %v1765
        %3538 = vmatprep.subr.mxu0 %v1810
        %3539 = vmatpush1.msra.mxu0 %v1809
        %3540 = vmatprep.subr.mxu0 %v1854
        %3541 = vmatpush1.msra.mxu0 %v1853
        %3542 = vmatprep.subr.mxu0 %v2041
        %3543 = vmatpush1.msra.mxu0 %v2038
        %3544 = vmatprep.subr.mxu0 0.0
        %3545 = vmatpush1.msra.mxu0 0.0
        %3546 = vmatprep.subr.mxu0 0.0
        %3547 = vmatpush1.msra.mxu0 0.0
        %3548 = vmatprep.subr.mxu0 0.0
        %3549 = vmatpush1.msra.mxu0 0.0
        %3550 = vmatprep.subr.mxu0 0.0
        %3551 = vmatpush1.msra.mxu0 0.0
        %3552 = vmatprep.subr.mxu0 0.0
        %3553 = vmatpush1.msra.mxu0 0.0
        %3554 = vmatprep.subr.mxu0 0.0
        %3555 = vmatpush1.msra.mxu0 0.0
        %3556 = vmatprep.subr.mxu0 0.0
        %3557 = vmatpush1.msra.mxu0 0.0
        %3558 = vmatprep.subr.mxu0 0.0
        %3559 = vmatpush1.msra.mxu0 0.0
        %3560 = vmatprep.subr.mxu0 0.0
        %3561 = vmatpush1.msra.mxu0 0.0
        %3562 = vmatprep.subr.mxu0 0.0
        %3563 = vmatpush1.msra.mxu0 0.0
        %3564 = vmatprep.subr.mxu0 0.0
        %3565 = vmatpush1.msra.mxu0 0.0
        %3566 = vmatprep.subr.mxu0 0.0
        %3567 = vmatpush1.msra.mxu0 0.0
        %3568 = vmatprep.subr.mxu0 0.0
        %3569 = vmatpush1.msra.mxu0 0.0
        %3570 = vmatprep.subr.mxu0 0.0
        %3571 = vmatpush1.msra.mxu0 0.0
        %3572 = vmatprep.subr.mxu0 0.0
        %3573 = vmatpush1.msra.mxu0 0.0
        %3574 = vmatprep.subr.mxu0 0.0
        %3575 = vmatpush1.msra.mxu0 0.0
        %3576 = vmatprep.subr.mxu0 0.0
        %3577 = vmatpush1.msra.mxu0 0.0
        %3578 = vmatprep.subr.mxu0 0.0
        %3579 = vmatpush1.msra.mxu0 0.0
        %3580 = vmatprep.subr.mxu0 0.0
        %3581 = vmatpush1.msra.mxu0 0.0
        %3582 = vmatprep.mubr.f32.mxu0 0.0
        %3583 = vmatmul.mubr.f32.gmra.mrb[0].mxu0 %v1917
        %v3584 = vpop.f32.mrb[0].mxu0
        %v3585 = vadd.f32 %v1908, %v3584
        %v3586 = vpop.f32.mrb[0].mxu0
        %v3587 = vadd.f32 %v1908, %v3586
        %3588 = vmatprep.mubr.f32.mxu0 0.0
        %3589 = vmatmul.mubr.f32.gmra.mrb[0].mxu0 %v1920
        %v3590 = vpop.f32.mrb[0].mxu0
        %v3591 = vadd.f32 %v1913, %v3590
        %v3592 = vpop.f32.mrb[0].mxu0
        %v3593 = vadd.f32 %v1913, %v3592
        %3594 = vdwg.mxu0
        %3595 = vmatprep.subr.mxu0 %v1372
        %3596 = vmatpush1.msra.mxu0 %v1371
        %3597 = vmatprep.subr.mxu0 %v1416
        %3598 = vmatpush1.msra.mxu0 %v1415
        %3599 = vmatprep.subr.mxu0 %v1460
        %3600 = vmatpush1.msra.mxu0 %v1459
        %3601 = vmatprep.subr.mxu0 %v1504
        %3602 = vmatpush1.msra.mxu0 %v1503
        %3603 = vmatprep.subr.mxu0 %v1548
        %3604 = vmatpush1.msra.mxu0 %v1547
        %3605 = vmatprep.subr.mxu0 %v1592
        %3606 = vmatpush1.msra.mxu0 %v1591
        %3607 = vmatprep.subr.mxu0 %v1636
        %3608 = vmatpush1.msra.mxu0 %v1635
        %3609 = vmatprep.subr.mxu0 %v1680
        %3610 = vmatpush1.msra.mxu0 %v1679
        %3611 = vmatprep.subr.mxu0 %v1724
        %3612 = vmatpush1.msra.mxu0 %v1723
        %3613 = vmatprep.subr.mxu0 %v1768
        %3614 = vmatpush1.msra.mxu0 %v1767
        %3615 = vmatprep.subr.mxu0 %v1812
        %3616 = vmatpush1.msra.mxu0 %v1811
        %3617 = vmatprep.subr.mxu0 %v1856
        %3618 = vmatpush1.msra.mxu0 %v1855
        %3619 = vmatprep.subr.mxu0 %v2047
        %3620 = vmatpush1.msra.mxu0 %v2044
        %3621 = vmatprep.subr.mxu0 0.0
        %3622 = vmatpush1.msra.mxu0 0.0
        %3623 = vmatprep.subr.mxu0 0.0
        %3624 = vmatpush1.msra.mxu0 0.0
        %3625 = vmatprep.subr.mxu0 0.0
        %3626 = vmatpush1.msra.mxu0 0.0
        %3627 = vmatprep.subr.mxu0 0.0
        %3628 = vmatpush1.msra.mxu0 0.0
        %3629 = vmatprep.subr.mxu0 0.0
        %3630 = vmatpush1.msra.mxu0 0.0
        %3631 = vmatprep.subr.mxu0 0.0
        %3632 = vmatpush1.msra.mxu0 0.0
        %3633 = vmatprep.subr.mxu0 0.0
        %3634 = vmatpush1.msra.mxu0 0.0
        %3635 = vmatprep.subr.mxu0 0.0
        %3636 = vmatpush1.msra.mxu0 0.0
        %3637 = vmatprep.subr.mxu0 0.0
        %3638 = vmatpush1.msra.mxu0 0.0
        %3639 = vmatprep.subr.mxu0 0.0
        %3640 = vmatpush1.msra.mxu0 0.0
        %3641 = vmatprep.subr.mxu0 0.0
        %3642 = vmatpush1.msra.mxu0 0.0
        %3643 = vmatprep.subr.mxu0 0.0
        %3644 = vmatpush1.msra.mxu0 0.0
        %3645 = vmatprep.subr.mxu0 0.0
        %3646 = vmatpush1.msra.mxu0 0.0
        %3647 = vmatprep.subr.mxu0 0.0
        %3648 = vmatpush1.msra.mxu0 0.0
        %3649 = vmatprep.subr.mxu0 0.0
        %3650 = vmatpush1.msra.mxu0 0.0
        %3651 = vmatprep.subr.mxu0 0.0
        %3652 = vmatpush1.msra.mxu0 0.0
        %3653 = vmatprep.subr.mxu0 0.0
        %3654 = vmatpush1.msra.mxu0 0.0
        %3655 = vmatprep.subr.mxu0 0.0
        %3656 = vmatpush1.msra.mxu0 0.0
        %3657 = vmatprep.subr.mxu0 0.0
        %3658 = vmatpush1.msra.mxu0 0.0
        %3659 = vmatprep.mubr.f32.mxu0 0.0
        %3660 = vmatmul.mubr.f32.gmra.mrb[0].mxu0 %v1917
        %v3661 = vpop.f32.mrb[0].mxu0
        %v3662 = vadd.f32 %v1908, %v3661
        %v3663 = vpop.f32.mrb[0].mxu0
        %v3664 = vadd.f32 %v1908, %v3663
        %3665 = vmatprep.mubr.f32.mxu0 0.0
        %3666 = vmatmul.mubr.f32.gmra.mrb[0].mxu0 %v1920
        %v3667 = vpop.f32.mrb[0].mxu0
        %v3668 = vadd.f32 %v1913, %v3667
        %v3669 = vpop.f32.mrb[0].mxu0
        %v3670 = vadd.f32 %v1913, %v3669
        %3671 = vdwg.mxu0
        %3672 = vmatprep.subr.mxu0 %v1374
        %3673 = vmatpush1.msra.mxu0 %v1373
        %3674 = vmatprep.subr.mxu0 %v1418
        %3675 = vmatpush1.msra.mxu0 %v1417
        %3676 = vmatprep.subr.mxu0 %v1462
        %3677 = vmatpush1.msra.mxu0 %v1461
        %3678 = vmatprep.subr.mxu0 %v1506
        %3679 = vmatpush1.msra.mxu0 %v1505
        %3680 = vmatprep.subr.mxu0 %v1550
        %3681 = vmatpush1.msra.mxu0 %v1549
        %3682 = vmatprep.subr.mxu0 %v1594
        %3683 = vmatpush1.msra.mxu0 %v1593
        %3684 = vmatprep.subr.mxu0 %v1638
        %3685 = vmatpush1.msra.mxu0 %v1637
        %3686 = vmatprep.subr.mxu0 %v1682
        %3687 = vmatpush1.msra.mxu0 %v1681
        %3688 = vmatprep.subr.mxu0 %v1726
        %3689 = vmatpush1.msra.mxu0 %v1725
        %3690 = vmatprep.subr.mxu0 %v1770
        %3691 = vmatpush1.msra.mxu0 %v1769
        %3692 = vmatprep.subr.mxu0 %v1814
        %3693 = vmatpush1.msra.mxu0 %v1813
        %3694 = vmatprep.subr.mxu0 %v1858
        %3695 = vmatpush1.msra.mxu0 %v1857
        %3696 = vmatprep.subr.mxu0 %v2053
        %3697 = vmatpush1.msra.mxu0 %v2050
        %3698 = vmatprep.subr.mxu0 0.0
        %3699 = vmatpush1.msra.mxu0 0.0
        %3700 = vmatprep.subr.mxu0 0.0
        %3701 = vmatpush1.msra.mxu0 0.0
        %3702 = vmatprep.subr.mxu0 0.0
        %3703 = vmatpush1.msra.mxu0 0.0
        %3704 = vmatprep.subr.mxu0 0.0
        %3705 = vmatpush1.msra.mxu0 0.0
        %3706 = vmatprep.subr.mxu0 0.0
        %3707 = vmatpush1.msra.mxu0 0.0
        %3708 = vmatprep.subr.mxu0 0.0
        %3709 = vmatpush1.msra.mxu0 0.0
        %3710 = vmatprep.subr.mxu0 0.0
        %3711 = vmatpush1.msra.mxu0 0.0
        %3712 = vmatprep.subr.mxu0 0.0
        %3713 = vmatpush1.msra.mxu0 0.0
        %3714 = vmatprep.subr.mxu0 0.0
        %3715 = vmatpush1.msra.mxu0 0.0
        %3716 = vmatprep.subr.mxu0 0.0
        %3717 = vmatpush1.msra.mxu0 0.0
        %3718 = vmatprep.subr.mxu0 0.0
        %3719 = vmatpush1.msra.mxu0 0.0
        %3720 = vmatprep.subr.mxu0 0.0
        %3721 = vmatpush1.msra.mxu0 0.0
        %3722 = vmatprep.subr.mxu0 0.0
        %3723 = vmatpush1.msra.mxu0 0.0
        %3724 = vmatprep.subr.mxu0 0.0
        %3725 = vmatpush1.msra.mxu0 0.0
        %3726 = vmatprep.subr.mxu0 0.0
        %3727 = vmatpush1.msra.mxu0 0.0
        %3728 = vmatprep.subr.mxu0 0.0
        %3729 = vmatpush1.msra.mxu0 0.0
        %3730 = vmatprep.subr.mxu0 0.0
        %3731 = vmatpush1.msra.mxu0 0.0
        %3732 = vmatprep.subr.mxu0 0.0
        %3733 = vmatpush1.msra.mxu0 0.0
        %3734 = vmatprep.subr.mxu0 0.0
        %3735 = vmatpush1.msra.mxu0 0.0
        %3736 = vmatprep.mubr.f32.mxu0 0.0
        %3737 = vmatmul.mubr.f32.gmra.mrb[0].mxu0 %v1917
        %v3738 = vpop.f32.mrb[0].mxu0
        %v3739 = vadd.f32 %v1908, %v3738
        %v3740 = vpop.f32.mrb[0].mxu0
        %v3741 = vadd.f32 %v1908, %v3740
        %3742 = vmatprep.mubr.f32.mxu0 0.0
        %3743 = vmatmul.mubr.f32.gmra.mrb[0].mxu0 %v1920
        %v3744 = vpop.f32.mrb[0].mxu0
        %v3745 = vadd.f32 %v1913, %v3744
        %v3746 = vpop.f32.mrb[0].mxu0
        %v3747 = vadd.f32 %v1913, %v3746
        %3748 = vdwg.mxu0
        %v3749 = vmax.f32 %v2122, 0.0
        %v3750 = vmax.f32 %v2124, 0.0
        %v3751 = vmax.f32 %v2199, 0.0
        %v3752 = vmax.f32 %v2201, 0.0
        %v3753 = vmax.f32 %v2276, 0.0
        %v3754 = vmax.f32 %v2278, 0.0
        %v3755 = vmax.f32 %v2353, 0.0
        %v3756 = vmax.f32 %v2355, 0.0
        %v3757 = vmax.f32 %v2430, 0.0
        %v3758 = vmax.f32 %v2432, 0.0
        %v3759 = vmax.f32 %v2507, 0.0
        %v3760 = vmax.f32 %v2509, 0.0
        %v3761 = vmax.f32 %v2584, 0.0
        %v3762 = vmax.f32 %v2586, 0.0
        %v3763 = vmax.f32 %v2661, 0.0
        %v3764 = vmax.f32 %v2663, 0.0
        %v3765 = vmax.f32 %v2738, 0.0
        %v3766 = vmax.f32 %v2740, 0.0
        %v3767 = vmax.f32 %v2815, 0.0
        %v3768 = vmax.f32 %v2817, 0.0
        %v3769 = vmax.f32 %v2892, 0.0
        %v3770 = vmax.f32 %v2894, 0.0
        %v3771 = vmax.f32 %v2969, 0.0
        %v3772 = vmax.f32 %v2971, 0.0
        %v3773 = vmax.f32 %v3046, 0.0
        %v3774 = vmax.f32 %v3048, 0.0
        %v3775 = vmax.f32 %v3123, 0.0
        %v3776 = vmax.f32 %v3125, 0.0
        %v3777 = vmax.f32 %v3200, 0.0
        %v3778 = vmax.f32 %v3202, 0.0
        %v3779 = vmax.f32 %v3277, 0.0
        %v3780 = vmax.f32 %v3279, 0.0
        %v3781 = vmax.f32 %v3354, 0.0
        %v3782 = vmax.f32 %v3356, 0.0
        %v3783 = vmax.f32 %v3431, 0.0
        %v3784 = vmax.f32 %v3433, 0.0
        %v3785 = vmax.f32 %v3508, 0.0
        %v3786 = vmax.f32 %v3510, 0.0
        %v3787 = vmax.f32 %v3585, 0.0
        %v3788 = vmax.f32 %v3587, 0.0
        %v3789 = vmax.f32 %v3662, 0.0
        %v3790 = vmax.f32 %v3664, 0.0
        %v3791 = vmax.f32 %v3739, 0.0
        %v3792 = vmax.f32 %v3741, 0.0
        %v3793 = vmax.f32 %v2128, 0.0
        %v3794 = vmax.f32 %v2130, 0.0
        %v3795 = vmax.f32 %v2205, 0.0
        %v3796 = vmax.f32 %v2207, 0.0
        %v3797 = vmax.f32 %v2282, 0.0
        %v3798 = vmax.f32 %v2284, 0.0
        %v3799 = vmax.f32 %v2359, 0.0
        %v3800 = vmax.f32 %v2361, 0.0
        %v3801 = vmax.f32 %v2436, 0.0
        %v3802 = vmax.f32 %v2438, 0.0
        %v3803 = vmax.f32 %v2513, 0.0
        %v3804 = vmax.f32 %v2515, 0.0
        %v3805 = vmax.f32 %v2590, 0.0
        %v3806 = vmax.f32 %v2592, 0.0
        %v3807 = vmax.f32 %v2667, 0.0
        %v3808 = vmax.f32 %v2669, 0.0
        %v3809 = vmax.f32 %v2744, 0.0
        %v3810 = vmax.f32 %v2746, 0.0
        %v3811 = vmax.f32 %v2821, 0.0
        %v3812 = vmax.f32 %v2823, 0.0
        %v3813 = vmax.f32 %v2898, 0.0
        %v3814 = vmax.f32 %v2900, 0.0
        %v3815 = vmax.f32 %v2975, 0.0
        %v3816 = vmax.f32 %v2977, 0.0
        %v3817 = vmax.f32 %v3052, 0.0
        %v3818 = vmax.f32 %v3054, 0.0
        %v3819 = vmax.f32 %v3129, 0.0
        %v3820 = vmax.f32 %v3131, 0.0
        %v3821 = vmax.f32 %v3206, 0.0
        %v3822 = vmax.f32 %v3208, 0.0
        %v3823 = vmax.f32 %v3283, 0.0
        %v3824 = vmax.f32 %v3285, 0.0
        %v3825 = vmax.f32 %v3360, 0.0
        %v3826 = vmax.f32 %v3362, 0.0
        %v3827 = vmax.f32 %v3437, 0.0
        %v3828 = vmax.f32 %v3439, 0.0
        %v3829 = vmax.f32 %v3514, 0.0
        %v3830 = vmax.f32 %v3516, 0.0
        %v3831 = vmax.f32 %v3591, 0.0
        %v3832 = vmax.f32 %v3593, 0.0
        %v3833 = vmax.f32 %v3668, 0.0
        %v3834 = vmax.f32 %v3670, 0.0
        %v3835 = vmax.f32 %v3745, 0.0
        %v3836 = vmax.f32 %v3747, 0.0
        %3837 = vst [vmem:[%s1326] sm:$0xff] %v3749
        %3838 = vst [vmem:[%s1326 + $0x8] sm:$0xff] %v3750
        %3839 = vst [vmem:[%s1326 + $0x10] sm:$0xff] %v3751
        %3840 = vst [vmem:[%s1326 + $0x18] sm:$0xff] %v3752
        %3841 = vst [vmem:[%s1326 + $0x20] sm:$0xff] %v3753
        %3842 = vst [vmem:[%s1326 + $0x28] sm:$0xff] %v3754
        %3843 = vst [vmem:[%s1326 + $0x30] sm:$0xff] %v3755
        %3844 = vst [vmem:[%s1326 + $0x38] sm:$0xff] %v3756
        %3845 = vst [vmem:[%s1326 + $0x40] sm:$0xff] %v3757
        %3846 = vst [vmem:[%s1326 + $0x48] sm:$0xff] %v3758
        %3847 = vst [vmem:[%s1326 + $0x50] sm:$0xff] %v3759
        %3848 = vst [vmem:[%s1326 + $0x58] sm:$0xff] %v3760
        %3849 = vst [vmem:[%s1326 + $0x60] sm:$0xff] %v3761
        %3850 = vst [vmem:[%s1326 + $0x68] sm:$0xff] %v3762
        %3851 = vst [vmem:[%s1326 + $0x70] sm:$0xff] %v3763
        %3852 = vst [vmem:[%s1326 + $0x78] sm:$0xff] %v3764
        %3853 = vst [vmem:[%s1326 + $0x80] sm:$0xff] %v3765
        %3854 = vst [vmem:[%s1326 + $0x88] sm:$0xff] %v3766
        %3855 = vst [vmem:[%s1326 + $0x90] sm:$0xff] %v3767
        %3856 = vst [vmem:[%s1326 + $0x98] sm:$0xff] %v3768
        %3857 = vst [vmem:[%s1326 + $0xa0] sm:$0xff] %v3769
        %3858 = vst [vmem:[%s1326 + $0xa8] sm:$0xff] %v3770
        %3859 = vst [vmem:[%s1326 + $0xb0] sm:$0xff] %v3771
        %3860 = vst [vmem:[%s1326 + $0xb8] sm:$0xff] %v3772
        %3861 = vst [vmem:[%s1326 + $0xc0] sm:$0xff] %v3773
        %3862 = vst [vmem:[%s1326 + $0xc8] sm:$0xff] %v3774
        %3863 = vst [vmem:[%s1326 + $0xd0] sm:$0xff] %v3775
        %3864 = vst [vmem:[%s1326 + $0xd8] sm:$0xff] %v3776
        %3865 = vst [vmem:[%s1326 + $0xe0] sm:$0xff] %v3777
        %3866 = vst [vmem:[%s1326 + $0xe8] sm:$0xff] %v3778
        %3867 = vst [vmem:[%s1326 + $0xf0] sm:$0xff] %v3779
        %3868 = vst [vmem:[%s1326 + $0xf8] sm:$0xff] %v3780
        %3869 = vst [vmem:[%s1326 + $0x100] sm:$0xff] %v3781
        %3870 = vst [vmem:[%s1326 + $0x108] sm:$0xff] %v3782
        %3871 = vst [vmem:[%s1326 + $0x110] sm:$0xff] %v3783
        %3872 = vst [vmem:[%s1326 + $0x118] sm:$0xff] %v3784
        %3873 = vst [vmem:[%s1326 + $0x120] sm:$0xff] %v3785
        %3874 = vst [vmem:[%s1326 + $0x128] sm:$0xff] %v3786
        %3875 = vst [vmem:[%s1326 + $0x130] sm:$0xff] %v3787
        %3876 = vst [vmem:[%s1326 + $0x138] sm:$0xff] %v3788
        %3877 = vst [vmem:[%s1326 + $0x140] sm:$0xff] %v3789
        %3878 = vst [vmem:[%s1326 + $0x148] sm:$0xff] %v3790
        %3879 = vst [vmem:[%s1326 + $0x150] sm:$0xff] %v3791
        %3880 = vst [vmem:[%s1326 + $0x158] sm:$0xff] %v3792
        %3881 = vst [vmem:[%s1326 + $0x160] sm:$0xff] %v3793
        %3882 = vst [vmem:[%s1326 + $0x168] sm:$0xff] %v3794
        %3883 = vst [vmem:[%s1326 + $0x170] sm:$0xff] %v3795
        %3884 = vst [vmem:[%s1326 + $0x178] sm:$0xff] %v3796
        %3885 = vst [vmem:[%s1326 + $0x180] sm:$0xff] %v3797
        %3886 = vst [vmem:[%s1326 + $0x188] sm:$0xff] %v3798
        %3887 = vst [vmem:[%s1326 + $0x190] sm:$0xff] %v3799
        %3888 = vst [vmem:[%s1326 + $0x198] sm:$0xff] %v3800
        %3889 = vst [vmem:[%s1326 + $0x1a0] sm:$0xff] %v3801
        %3890 = vst [vmem:[%s1326 + $0x1a8] sm:$0xff] %v3802
        %3891 = vst [vmem:[%s1326 + $0x1b0] sm:$0xff] %v3803
        %3892 = vst [vmem:[%s1326 + $0x1b8] sm:$0xff] %v3804
        %3893 = vst [vmem:[%s1326 + $0x1c0] sm:$0xff] %v3805
        %3894 = vst [vmem:[%s1326 + $0x1c8] sm:$0xff] %v3806
        %3895 = vst [vmem:[%s1326 + $0x1d0] sm:$0xff] %v3807
        %3896 = vst [vmem:[%s1326 + $0x1d8] sm:$0xff] %v3808
        %3897 = vst [vmem:[%s1326 + $0x1e0] sm:$0xff] %v3809
        %3898 = vst [vmem:[%s1326 + $0x1e8] sm:$0xff] %v3810
        %3899 = vst [vmem:[%s1326 + $0x1f0] sm:$0xff] %v3811
        %3900 = vst [vmem:[%s1326 + $0x1f8] sm:$0xff] %v3812
        %3901 = vst [vmem:[%s1326 + $0x200] sm:$0xff] %v3813
        %3902 = vst [vmem:[%s1326 + $0x208] sm:$0xff] %v3814
        %3903 = vst [vmem:[%s1326 + $0x210] sm:$0xff] %v3815
        %3904 = vst [vmem:[%s1326 + $0x218] sm:$0xff] %v3816
        %3905 = vst [vmem:[%s1326 + $0x220] sm:$0xff] %v3817
        %3906 = vst [vmem:[%s1326 + $0x228] sm:$0xff] %v3818
        %3907 = vst [vmem:[%s1326 + $0x230] sm:$0xff] %v3819
        %3908 = vst [vmem:[%s1326 + $0x238] sm:$0xff] %v3820
        %3909 = vst [vmem:[%s1326 + $0x240] sm:$0xff] %v3821
        %3910 = vst [vmem:[%s1326 + $0x248] sm:$0xff] %v3822
        %3911 = vst [vmem:[%s1326 + $0x250] sm:$0xff] %v3823
        %3912 = vst [vmem:[%s1326 + $0x258] sm:$0xff] %v3824
        %3913 = vst [vmem:[%s1326 + $0x260] sm:$0xff] %v3825
        %3914 = vst [vmem:[%s1326 + $0x268] sm:$0xff] %v3826
        %3915 = vst [vmem:[%s1326 + $0x270] sm:$0xff] %v3827
        %3916 = vst [vmem:[%s1326 + $0x278] sm:$0xff] %v3828
        %3917 = vst [vmem:[%s1326 + $0x280] sm:$0xff] %v3829
        %3918 = vst [vmem:[%s1326 + $0x288] sm:$0xff] %v3830
        %3919 = vst [vmem:[%s1326 + $0x290] sm:$0xff] %v3831
        %3920 = vst [vmem:[%s1326 + $0x298] sm:$0xff] %v3832
        %3921 = vst [vmem:[%s1326 + $0x2a0] sm:$0xff] %v3833
        %3922 = vst [vmem:[%s1326 + $0x2a8] sm:$0xff] %v3834
        %3923 = vst [vmem:[%s1326 + $0x2b0] sm:$0xff] %v3835
        %3924 = vst [vmem:[%s1326 + $0x2b8] sm:$0xff] %v3836
        %s3925 = sand.u32 %s90, 1
        %s3926 = sand.u32 %s90, 1
        %s3927 = smul.addr %s3926, 704
        %s3928 = scalar_lea.vmem [#allocation3], %s3927
        // Predicated region
        $region56: #{cnn_forward.2} parent=50 // pred_check
          %p3929 = pneg %p100
        $region57: #{cnn_forward.2} parent=50 // pred_check_branch
          %3931 = sbr.rel (%p3929) target = $region59
        $region58: #{cnn_forward.2} parent=50 // pred_region
          %s3932 = smul.u32 44, %s14
          %s3933 = smul.addr %s3932, 8
          %s3934 = scalar_lea.vmem %s3, %s3933
          // Predicated region
          $region60: #{cnn_forward.2} parent=58 // pred_check
            _
          $region61: #{cnn_forward.2} parent=58 // pred_check_branch
            %3936 = sbr.rel (0) target = $region63
          $region62: #{cnn_forward.2} parent=58 // pred_region
            // Predicated region
            $region64: #{cnn_forward.2} parent=62 // pred_check
              _
            $region65: #{cnn_forward.2} parent=62 // pred_check_branch
              %3938 = sbr.rel (0) target = $region67
            $region66: #{cnn_forward.2} parent=62 // pred_region
              loop: start=0, step=1, limit=1
              $region68: #{cnn_forward.2} parent=66 // loop_pre_header
                _
              $region69: #{cnn_forward.2} parent=66 // loop_header
                %s3940 = sphi 0, %s3944
                %p3941 = scmp.ge.s32.totalorder %s3940, 1
                %s3945 = sphi %s3928, %s3928
                %s3946 = sphi %s3934, %s3934
              $region70: #{cnn_forward.2} parent=66 // loop_header_branch
                %3943 = sbr.rel (%p3941) target = $region74
              $region71: #{cnn_forward.2} parent=66 // loop_body
                %v3947 = vld [vmem:[%s3945] sm:$0xff]
                %3948 = vst [vmem:[%s3946] sm:$0xff] %v3947
                %v3949 = vld [vmem:[%s3945 + $0x8] sm:$0xff]
                %3950 = vst [vmem:[%s3946 + $0x8] sm:$0xff] %v3949
                %v3951 = vld [vmem:[%s3945 + $0x10] sm:$0xff]
                %3952 = vst [vmem:[%s3946 + $0x10] sm:$0xff] %v3951
                %v3953 = vld [vmem:[%s3945 + $0x18] sm:$0xff]
                %3954 = vst [vmem:[%s3946 + $0x18] sm:$0xff] %v3953
                %v3955 = vld [vmem:[%s3945 + $0x20] sm:$0xff]
                %3956 = vst [vmem:[%s3946 + $0x20] sm:$0xff] %v3955
                %v3957 = vld [vmem:[%s3945 + $0x28] sm:$0xff]
                %3958 = vst [vmem:[%s3946 + $0x28] sm:$0xff] %v3957
                %v3959 = vld [vmem:[%s3945 + $0x30] sm:$0xff]
                %3960 = vst [vmem:[%s3946 + $0x30] sm:$0xff] %v3959
                %v3961 = vld [vmem:[%s3945 + $0x38] sm:$0xff]
                %3962 = vst [vmem:[%s3946 + $0x38] sm:$0xff] %v3961
                %v3963 = vld [vmem:[%s3945 + $0x40] sm:$0xff]
                %3964 = vst [vmem:[%s3946 + $0x40] sm:$0xff] %v3963
                %v3965 = vld [vmem:[%s3945 + $0x48] sm:$0xff]
                %3966 = vst [vmem:[%s3946 + $0x48] sm:$0xff] %v3965
                %v3967 = vld [vmem:[%s3945 + $0x50] sm:$0xff]
                %3968 = vst [vmem:[%s3946 + $0x50] sm:$0xff] %v3967
                %v3969 = vld [vmem:[%s3945 + $0x58] sm:$0xff]
                %3970 = vst [vmem:[%s3946 + $0x58] sm:$0xff] %v3969
                %v3971 = vld [vmem:[%s3945 + $0x60] sm:$0xff]
                %3972 = vst [vmem:[%s3946 + $0x60] sm:$0xff] %v3971
                %v3973 = vld [vmem:[%s3945 + $0x68] sm:$0xff]
                %3974 = vst [vmem:[%s3946 + $0x68] sm:$0xff] %v3973
                %v3975 = vld [vmem:[%s3945 + $0x70] sm:$0xff]
                %3976 = vst [vmem:[%s3946 + $0x70] sm:$0xff] %v3975
                %v3977 = vld [vmem:[%s3945 + $0x78] sm:$0xff]
                %3978 = vst [vmem:[%s3946 + $0x78] sm:$0xff] %v3977
                %v3979 = vld [vmem:[%s3945 + $0x80] sm:$0xff]
                %3980 = vst [vmem:[%s3946 + $0x80] sm:$0xff] %v3979
                %v3981 = vld [vmem:[%s3945 + $0x88] sm:$0xff]
                %3982 = vst [vmem:[%s3946 + $0x88] sm:$0xff] %v3981
                %v3983 = vld [vmem:[%s3945 + $0x90] sm:$0xff]
                %3984 = vst [vmem:[%s3946 + $0x90] sm:$0xff] %v3983
                %v3985 = vld [vmem:[%s3945 + $0x98] sm:$0xff]
                %3986 = vst [vmem:[%s3946 + $0x98] sm:$0xff] %v3985
                %v3987 = vld [vmem:[%s3945 + $0xa0] sm:$0xff]
                %3988 = vst [vmem:[%s3946 + $0xa0] sm:$0xff] %v3987
                %v3989 = vld [vmem:[%s3945 + $0xa8] sm:$0xff]
                %3990 = vst [vmem:[%s3946 + $0xa8] sm:$0xff] %v3989
                %v3991 = vld [vmem:[%s3945 + $0xb0] sm:$0xff]
                %3992 = vst [vmem:[%s3946 + $0xb0] sm:$0xff] %v3991
                %v3993 = vld [vmem:[%s3945 + $0xb8] sm:$0xff]
                %3994 = vst [vmem:[%s3946 + $0xb8] sm:$0xff] %v3993
                %v3995 = vld [vmem:[%s3945 + $0xc0] sm:$0xff]
                %3996 = vst [vmem:[%s3946 + $0xc0] sm:$0xff] %v3995
                %v3997 = vld [vmem:[%s3945 + $0xc8] sm:$0xff]
                %3998 = vst [vmem:[%s3946 + $0xc8] sm:$0xff] %v3997
                %v3999 = vld [vmem:[%s3945 + $0xd0] sm:$0xff]
                %4000 = vst [vmem:[%s3946 + $0xd0] sm:$0xff] %v3999
                %v4001 = vld [vmem:[%s3945 + $0xd8] sm:$0xff]
                %4002 = vst [vmem:[%s3946 + $0xd8] sm:$0xff] %v4001
                %v4003 = vld [vmem:[%s3945 + $0xe0] sm:$0xff]
                %4004 = vst [vmem:[%s3946 + $0xe0] sm:$0xff] %v4003
                %v4005 = vld [vmem:[%s3945 + $0xe8] sm:$0xff]
                %4006 = vst [vmem:[%s3946 + $0xe8] sm:$0xff] %v4005
                %v4007 = vld [vmem:[%s3945 + $0xf0] sm:$0xff]
                %4008 = vst [vmem:[%s3946 + $0xf0] sm:$0xff] %v4007
                %v4009 = vld [vmem:[%s3945 + $0xf8] sm:$0xff]
                %4010 = vst [vmem:[%s3946 + $0xf8] sm:$0xff] %v4009
                %v4011 = vld [vmem:[%s3945 + $0x100] sm:$0xff]
                %4012 = vst [vmem:[%s3946 + $0x100] sm:$0xff] %v4011
                %v4013 = vld [vmem:[%s3945 + $0x108] sm:$0xff]
                %4014 = vst [vmem:[%s3946 + $0x108] sm:$0xff] %v4013
                %v4015 = vld [vmem:[%s3945 + $0x110] sm:$0xff]
                %4016 = vst [vmem:[%s3946 + $0x110] sm:$0xff] %v4015
                %v4017 = vld [vmem:[%s3945 + $0x118] sm:$0xff]
                %4018 = vst [vmem:[%s3946 + $0x118] sm:$0xff] %v4017
                %v4019 = vld [vmem:[%s3945 + $0x120] sm:$0xff]
                %4020 = vst [vmem:[%s3946 + $0x120] sm:$0xff] %v4019
                %v4021 = vld [vmem:[%s3945 + $0x128] sm:$0xff]
                %4022 = vst [vmem:[%s3946 + $0x128] sm:$0xff] %v4021
                %v4023 = vld [vmem:[%s3945 + $0x130] sm:$0xff]
                %4024 = vst [vmem:[%s3946 + $0x130] sm:$0xff] %v4023
                %v4025 = vld [vmem:[%s3945 + $0x138] sm:$0xff]
                %4026 = vst [vmem:[%s3946 + $0x138] sm:$0xff] %v4025
                %v4027 = vld [vmem:[%s3945 + $0x140] sm:$0xff]
                %4028 = vst [vmem:[%s3946 + $0x140] sm:$0xff] %v4027
                %v4029 = vld [vmem:[%s3945 + $0x148] sm:$0xff]
                %4030 = vst [vmem:[%s3946 + $0x148] sm:$0xff] %v4029
                %v4031 = vld [vmem:[%s3945 + $0x150] sm:$0xff]
                %4032 = vst [vmem:[%s3946 + $0x150] sm:$0xff] %v4031
                %v4033 = vld [vmem:[%s3945 + $0x158] sm:$0xff]
                %4034 = vst [vmem:[%s3946 + $0x158] sm:$0xff] %v4033
                %v4035 = vld [vmem:[%s3945 + $0x160] sm:$0xff]
                %4036 = vst [vmem:[%s3946 + $0x2c0] sm:$0xff] %v4035
                %v4037 = vld [vmem:[%s3945 + $0x168] sm:$0xff]
                %4038 = vst [vmem:[%s3946 + $0x2c8] sm:$0xff] %v4037
                %v4039 = vld [vmem:[%s3945 + $0x170] sm:$0xff]
                %4040 = vst [vmem:[%s3946 + $0x2d0] sm:$0xff] %v4039
                %v4041 = vld [vmem:[%s3945 + $0x178] sm:$0xff]
                %4042 = vst [vmem:[%s3946 + $0x2d8] sm:$0xff] %v4041
                %v4043 = vld [vmem:[%s3945 + $0x180] sm:$0xff]
                %4044 = vst [vmem:[%s3946 + $0x2e0] sm:$0xff] %v4043
                %v4045 = vld [vmem:[%s3945 + $0x188] sm:$0xff]
                %4046 = vst [vmem:[%s3946 + $0x2e8] sm:$0xff] %v4045
                %v4047 = vld [vmem:[%s3945 + $0x190] sm:$0xff]
                %4048 = vst [vmem:[%s3946 + $0x2f0] sm:$0xff] %v4047
                %v4049 = vld [vmem:[%s3945 + $0x198] sm:$0xff]
                %4050 = vst [vmem:[%s3946 + $0x2f8] sm:$0xff] %v4049
                %v4051 = vld [vmem:[%s3945 + $0x1a0] sm:$0xff]
                %4052 = vst [vmem:[%s3946 + $0x300] sm:$0xff] %v4051
                %v4053 = vld [vmem:[%s3945 + $0x1a8] sm:$0xff]
                %4054 = vst [vmem:[%s3946 + $0x308] sm:$0xff] %v4053
                %v4055 = vld [vmem:[%s3945 + $0x1b0] sm:$0xff]
                %4056 = vst [vmem:[%s3946 + $0x310] sm:$0xff] %v4055
                %v4057 = vld [vmem:[%s3945 + $0x1b8] sm:$0xff]
                %4058 = vst [vmem:[%s3946 + $0x318] sm:$0xff] %v4057
                %v4059 = vld [vmem:[%s3945 + $0x1c0] sm:$0xff]
                %4060 = vst [vmem:[%s3946 + $0x320] sm:$0xff] %v4059
                %v4061 = vld [vmem:[%s3945 + $0x1c8] sm:$0xff]
                %4062 = vst [vmem:[%s3946 + $0x328] sm:$0xff] %v4061
                %v4063 = vld [vmem:[%s3945 + $0x1d0] sm:$0xff]
                %4064 = vst [vmem:[%s3946 + $0x330] sm:$0xff] %v4063
                %v4065 = vld [vmem:[%s3945 + $0x1d8] sm:$0xff]
                %4066 = vst [vmem:[%s3946 + $0x338] sm:$0xff] %v4065
                %v4067 = vld [vmem:[%s3945 + $0x1e0] sm:$0xff]
                %4068 = vst [vmem:[%s3946 + $0x340] sm:$0xff] %v4067
                %v4069 = vld [vmem:[%s3945 + $0x1e8] sm:$0xff]
                %4070 = vst [vmem:[%s3946 + $0x348] sm:$0xff] %v4069
                %v4071 = vld [vmem:[%s3945 + $0x1f0] sm:$0xff]
                %4072 = vst [vmem:[%s3946 + $0x350] sm:$0xff] %v4071
                %v4073 = vld [vmem:[%s3945 + $0x1f8] sm:$0xff]
                %4074 = vst [vmem:[%s3946 + $0x358] sm:$0xff] %v4073
                %v4075 = vld [vmem:[%s3945 + $0x200] sm:$0xff]
                %4076 = vst [vmem:[%s3946 + $0x360] sm:$0xff] %v4075
                %v4077 = vld [vmem:[%s3945 + $0x208] sm:$0xff]
                %4078 = vst [vmem:[%s3946 + $0x368] sm:$0xff] %v4077
                %v4079 = vld [vmem:[%s3945 + $0x210] sm:$0xff]
                %4080 = vst [vmem:[%s3946 + $0x370] sm:$0xff] %v4079
                %v4081 = vld [vmem:[%s3945 + $0x218] sm:$0xff]
                %4082 = vst [vmem:[%s3946 + $0x378] sm:$0xff] %v4081
                %v4083 = vld [vmem:[%s3945 + $0x220] sm:$0xff]
                %4084 = vst [vmem:[%s3946 + $0x380] sm:$0xff] %v4083
                %v4085 = vld [vmem:[%s3945 + $0x228] sm:$0xff]
                %4086 = vst [vmem:[%s3946 + $0x388] sm:$0xff] %v4085
                %v4087 = vld [vmem:[%s3945 + $0x230] sm:$0xff]
                %4088 = vst [vmem:[%s3946 + $0x390] sm:$0xff] %v4087
                %v4089 = vld [vmem:[%s3945 + $0x238] sm:$0xff]
                %4090 = vst [vmem:[%s3946 + $0x398] sm:$0xff] %v4089
                %v4091 = vld [vmem:[%s3945 + $0x240] sm:$0xff]
                %4092 = vst [vmem:[%s3946 + $0x3a0] sm:$0xff] %v4091
                %v4093 = vld [vmem:[%s3945 + $0x248] sm:$0xff]
                %4094 = vst [vmem:[%s3946 + $0x3a8] sm:$0xff] %v4093
                %v4095 = vld [vmem:[%s3945 + $0x250] sm:$0xff]
                %4096 = vst [vmem:[%s3946 + $0x3b0] sm:$0xff] %v4095
                %v4097 = vld [vmem:[%s3945 + $0x258] sm:$0xff]
                %4098 = vst [vmem:[%s3946 + $0x3b8] sm:$0xff] %v4097
                %v4099 = vld [vmem:[%s3945 + $0x260] sm:$0xff]
                %4100 = vst [vmem:[%s3946 + $0x3c0] sm:$0xff] %v4099
                %v4101 = vld [vmem:[%s3945 + $0x268] sm:$0xff]
                %4102 = vst [vmem:[%s3946 + $0x3c8] sm:$0xff] %v4101
                %v4103 = vld [vmem:[%s3945 + $0x270] sm:$0xff]
                %4104 = vst [vmem:[%s3946 + $0x3d0] sm:$0xff] %v4103
                %v4105 = vld [vmem:[%s3945 + $0x278] sm:$0xff]
                %4106 = vst [vmem:[%s3946 + $0x3d8] sm:$0xff] %v4105
                %v4107 = vld [vmem:[%s3945 + $0x280] sm:$0xff]
                %4108 = vst [vmem:[%s3946 + $0x3e0] sm:$0xff] %v4107
                %v4109 = vld [vmem:[%s3945 + $0x288] sm:$0xff]
                %4110 = vst [vmem:[%s3946 + $0x3e8] sm:$0xff] %v4109
                %v4111 = vld [vmem:[%s3945 + $0x290] sm:$0xff]
                %4112 = vst [vmem:[%s3946 + $0x3f0] sm:$0xff] %v4111
                %v4113 = vld [vmem:[%s3945 + $0x298] sm:$0xff]
                %4114 = vst [vmem:[%s3946 + $0x3f8] sm:$0xff] %v4113
                %v4115 = vld [vmem:[%s3945 + $0x2a0] sm:$0xff]
                %4116 = vst [vmem:[%s3946 + $0x400] sm:$0xff] %v4115
                %v4117 = vld [vmem:[%s3945 + $0x2a8] sm:$0xff]
                %4118 = vst [vmem:[%s3946 + $0x408] sm:$0xff] %v4117
                %v4119 = vld [vmem:[%s3945 + $0x2b0] sm:$0xff]
                %4120 = vst [vmem:[%s3946 + $0x410] sm:$0xff] %v4119
                %v4121 = vld [vmem:[%s3945 + $0x2b8] sm:$0xff]
                %4122 = vst [vmem:[%s3946 + $0x418] sm:$0xff] %v4121
              $region72: #{cnn_forward.2} parent=66 // loop_footer
                %s3944 = sadd.s32 1, %s3940
              $region73: #{cnn_forward.2} parent=66 // loop_footer_branch
                %3939 = sbr.rel target = $region69
              $region74: #{cnn_forward.2} parent=66 // loop_exit
                _
            $region67: #{cnn_forward.2} parent=62 // pred_fallthru
              _
            // Predicated region
            $region75: #{cnn_forward.2} parent=62 // pred_check
              _
            $region76: #{cnn_forward.2} parent=62 // pred_check_branch
              %4124 = sbr.rel target = $region78
            $region77: #{cnn_forward.2} parent=62 // pred_region
              _
            $region78: #{cnn_forward.2} parent=62 // pred_fallthru
              _
          $region63: #{cnn_forward.2} parent=58 // pred_fallthru
            _
          %4125 = vnop
        $region59: #{cnn_forward.2} parent=50 // pred_fallthru
          _
      $region51: #{cnn_forward.2} parent=5 // pred_fallthru
        _
      %p4126 = scmp.le.s32.totalorder 2, %s9
      // Predicated region
      $region79: #{cnn_forward.2} parent=5 // pred_check
        %p4127 = pneg %p4126
      $region80: #{cnn_forward.2} parent=5 // pred_check_branch
        %4129 = sbr.rel (%p4127) target = $region82
      $region81: #{cnn_forward.2} parent=5 // pred_region
        %s4130 = ssub.s32 %s9, 2
        // Predicated region
        $region83: #{cnn_forward.2} parent=81 // pred_check
          %p4131 = pneg %p106
        $region84: #{cnn_forward.2} parent=81 // pred_check_branch
          %4133 = sbr.rel (%p4131) target = $region86
        $region85: #{cnn_forward.2} parent=81 // pred_region
          %s4134 = sand.u32 %s91, 1
          %s4135 = sand.u32 %s91, 1
          %s4136 = smul.addr %s4135, 704
          %s4137 = scalar_lea.vmem [#allocation3], %s4136
        $region86: #{cnn_forward.2} parent=81 // pred_fallthru
          _
      $region82: #{cnn_forward.2} parent=5 // pred_fallthru
        _
    $region6: #{cnn_forward.2} parent=1 // loop_footer
      %s13 = sadd.s32 1, %s9
    $region7: #{cnn_forward.2} parent=1 // loop_footer_branch
      %8 = sbr.rel target = $region3
    $region8: #{cnn_forward.2} parent=1 // loop_exit
      _

// kernel: cnn_forward.3
$region0: #{cnn_forward.3}
  #allocation0 [shape = 'u32[]', space=smem, size = 0x4, offset = 0x4, fixed_abs, tag = 'smem constant byte address 0x4 - core index']
  #allocation1 [shape = 'u32[144,128]{1,0:T(1,128)}', space=vmem, size = 0x12000, scoped, tag = 'internal scratch']
  %s0 = inlined_call_operand.vmem [shape: f32[200,1600], index: 0, kind: input, shape index: {}]
  %s1 = inlined_call_operand.vmem [shape: f32[1600,32], index: 1, kind: input, shape index: {}]
  %s2 = inlined_call_operand.vmem [shape: f32[1,32], index: 2, kind: input, shape index: {}]
  %s3 = inlined_call_operand.vmem [shape: f32[128,500], index: 3, kind: input, shape index: {}]
  %s4 = inlined_call_operand.vmem [shape: f32[1,500], index: 4, kind: input, shape index: {}]
  %s5 = inlined_call_operand.vmem [shape: f32[500,30], index: 5, kind: input, shape index: {}]
  %s6 = inlined_call_operand.vmem [shape: f32[1,30], index: 6, kind: input, shape index: {}]
  %s7 = inlined_call_operand.vmem [shape: f32[30,6], index: 7, kind: input, shape index: {}]
  %s8 = inlined_call_operand.vmem [shape: f32[1,6], index: 8, kind: input, shape index: {}]
  %s9 = inlined_call_operand.hbm [shape: f32[2,6], index: 9, kind: output, shape index: {0}]
  %s10 = inlined_call_operand.hbm [shape: f32[2,30], index: 10, kind: output, shape index: {1}]
  %11 = xla_tuple %s9, %s10
  %s12 = sld [smem:[#allocation0]]
  $region54: #{cnn_forward.3} parent=0
    _
  %s14 = ssub.s32 1, %s12
  %s15 = scalar_select 0, %s14, %s12
  $region1: #{cnn_forward.3} parent=0
    #allocation2 [shape = 'u8[1024]{0}', space=vmem, size = 0x400, scoped, tag = 'output window, operand 0, single buffered']
    #allocation3 [shape = 's32[1]{0}', space=sflag, size = 0x4, scoped, tag = 'scoped memory for cnn_forward.3']
    #allocation4 [shape = 'u8[1024]{0}', space=vmem, size = 0x400, scoped, tag = 'output window, operand 1, single buffered']
    #allocation5 [shape = 's32[1]{0}', space=sflag, size = 0x4, scoped, tag = 'scoped memory for cnn_forward.3']
    %16 = vsyncpa [#allocation3], 0
    %17 = vsyncpa [#allocation5], 0
    // Predicated region
    $region2: #{cnn_forward.3} parent=1 // pred_check
      _
    $region3: #{cnn_forward.3} parent=1 // pred_check_branch
      %19 = sbr.rel (0) target = $region5
    $region4: #{cnn_forward.3} parent=1 // pred_region
      _
    $region5: #{cnn_forward.3} parent=1 // pred_fallthru
      _
    // Predicated region
    $region6: #{cnn_forward.3} parent=1 // pred_check
      _
    $region7: #{cnn_forward.3} parent=1 // pred_check_branch
      %21 = sbr.rel (0) target = $region9
    $region8: #{cnn_forward.3} parent=1 // pred_region
      _
    $region9: #{cnn_forward.3} parent=1 // pred_fallthru
      _
    // Predicated region
    $region10: #{cnn_forward.3} parent=1 // pred_check
      _
    $region11: #{cnn_forward.3} parent=1 // pred_check_branch
      %23 = sbr.rel (0) target = $region13
    $region12: #{cnn_forward.3} parent=1 // pred_region
      _
    $region13: #{cnn_forward.3} parent=1 // pred_fallthru
      _
    // Predicated region
    $region14: #{cnn_forward.3} parent=1 // pred_check
      _
    $region15: #{cnn_forward.3} parent=1 // pred_check_branch
      %25 = sbr.rel (0) target = $region17
    $region16: #{cnn_forward.3} parent=1 // pred_region
      _
    $region17: #{cnn_forward.3} parent=1 // pred_fallthru
      _
    // Predicated region
    $region18: #{cnn_forward.3} parent=1 // pred_check
      _
    $region19: #{cnn_forward.3} parent=1 // pred_check_branch
      %27 = sbr.rel (0) target = $region21
    $region20: #{cnn_forward.3} parent=1 // pred_region
      _
    $region21: #{cnn_forward.3} parent=1 // pred_fallthru
      _
    // Predicated region
    $region22: #{cnn_forward.3} parent=1 // pred_check
      _
    $region23: #{cnn_forward.3} parent=1 // pred_check_branch
      %29 = sbr.rel (0) target = $region25
    $region24: #{cnn_forward.3} parent=1 // pred_region
      _
    $region25: #{cnn_forward.3} parent=1 // pred_fallthru
      _
    // Predicated region
    $region26: #{cnn_forward.3} parent=1 // pred_check
      _
    $region27: #{cnn_forward.3} parent=1 // pred_check_branch
      %31 = sbr.rel (0) target = $region29
    $region28: #{cnn_forward.3} parent=1 // pred_region
      _
    $region29: #{cnn_forward.3} parent=1 // pred_fallthru
      _
    // Predicated region
    $region30: #{cnn_forward.3} parent=1 // pred_check
      _
    $region31: #{cnn_forward.3} parent=1 // pred_check_branch
      %33 = sbr.rel (0) target = $region33
    $region32: #{cnn_forward.3} parent=1 // pred_region
      _
    $region33: #{cnn_forward.3} parent=1 // pred_fallthru
      _
    // Predicated region
    $region34: #{cnn_forward.3} parent=1 // pred_check
      _
    $region35: #{cnn_forward.3} parent=1 // pred_check_branch
      %35 = sbr.rel (0) target = $region37
    $region36: #{cnn_forward.3} parent=1 // pred_region
      _
    $region37: #{cnn_forward.3} parent=1 // pred_fallthru
      _
    %v36 = vld [vmem:[%s0] sm:$0xff]
    %v37 = vld [vmem:[%s0 + $0x8] sm:$0xff]
    %v38 = vld [vmem:[%s0 + $0x10] sm:$0xff]
    %v39 = vld [vmem:[%s0 + $0x18] sm:$0xff]
    %v40 = vld [vmem:[%s0 + $0x20] sm:$0xff]
    %v41 = vld [vmem:[%s0 + $0x28] sm:$0xff]
    %v42 = vld [vmem:[%s0 + $0x30] sm:$0xff]
    %v43 = vld [vmem:[%s0 + $0x38] sm:$0xff]
    %v44 = vld [vmem:[%s0 + $0x40] sm:$0xff]
    %v45 = vld [vmem:[%s0 + $0x48] sm:$0xff]
    %v46 = vld [vmem:[%s0 + $0x50] sm:$0xff]
    %v47 = vld [vmem:[%s0 + $0x58] sm:$0xff]
    %v48 = vld [vmem:[%s0 + $0x60] sm:$0xff]
    %v49 = vld [vmem:[%s0 + $0x68] sm:$0xff]
    %v50 = vld [vmem:[%s0 + $0x70] sm:$0xff]
    %v51 = vld [vmem:[%s0 + $0x78] sm:$0xff]
    %v52 = vld [vmem:[%s0 + $0x80] sm:$0xff]
    %v53 = vld [vmem:[%s0 + $0x88] sm:$0xff]
    %v54 = vld [vmem:[%s0 + $0x90] sm:$0xff]
    %v55 = vld [vmem:[%s0 + $0x98] sm:$0xff]
    %v56 = vld [vmem:[%s0 + $0xa0] sm:$0xff]
    %v57 = vld [vmem:[%s0 + $0xa8] sm:$0xff]
    %v58 = vld [vmem:[%s0 + $0xb0] sm:$0xff]
    %v59 = vld [vmem:[%s0 + $0xb8] sm:$0xff]
    %v60 = vld [vmem:[%s0 + $0xc0] sm:$0xff]
    %v61 = vld [vmem:[%s0 + $0xc8] sm:$0xff]
    %v62 = vld [vmem:[%s0 + $0xd0] sm:$0xff]
    %v63 = vld [vmem:[%s0 + $0xd8] sm:$0xff]
    %v64 = vld [vmem:[%s0 + $0xe0] sm:$0xff]
    %v65 = vld [vmem:[%s0 + $0xe8] sm:$0xff]
    %v66 = vld [vmem:[%s0 + $0xf0] sm:$0xff]
    %v67 = vld [vmem:[%s0 + $0xf8] sm:$0xff]
    %v68 = vld [vmem:[%s0 + $0x100] sm:$0xff]
    %v69 = vld [vmem:[%s0 + $0x108] sm:$0xff]
    %v70 = vld [vmem:[%s0 + $0x110] sm:$0xff]
    %v71 = vld [vmem:[%s0 + $0x118] sm:$0xff]
    %v72 = vld [vmem:[%s0 + $0x120] sm:$0xff]
    %v73 = vld [vmem:[%s0 + $0x128] sm:$0xff]
    %v74 = vld [vmem:[%s0 + $0x130] sm:$0xff]
    %v75 = vld [vmem:[%s0 + $0x138] sm:$0xff]
    %v76 = vld [vmem:[%s0 + $0x140] sm:$0xff]
    %v77 = vld [vmem:[%s0 + $0x148] sm:$0xff]
    %v78 = vld [vmem:[%s0 + $0x150] sm:$0xff]
    %v79 = vld [vmem:[%s0 + $0x158] sm:$0xff]
    %v80 = vld [vmem:[%s0 + $0x160] sm:$0xff]
    %v81 = vld [vmem:[%s0 + $0x168] sm:$0xff]
    %v82 = vld [vmem:[%s0 + $0x170] sm:$0xff]
    %v83 = vld [vmem:[%s0 + $0x178] sm:$0xff]
    %v84 = vld [vmem:[%s0 + $0x180] sm:$0xff]
    %v85 = vld [vmem:[%s0 + $0x188] sm:$0xff]
    %v86 = vld [vmem:[%s0 + $0x190] sm:$0xff]
    %v87 = vld [vmem:[%s0 + $0x198] sm:$0xff]
    %v88 = vld [vmem:[%s0 + $0x1a0] sm:$0xff]
    %v89 = vld [vmem:[%s0 + $0x1a8] sm:$0xff]
    %v90 = vld [vmem:[%s0 + $0x1b0] sm:$0xff]
    %v91 = vld [vmem:[%s0 + $0x1b8] sm:$0xff]
    %v92 = vld [vmem:[%s0 + $0x1c0] sm:$0xff]
    %v93 = vld [vmem:[%s0 + $0x1c8] sm:$0xff]
    %v94 = vld [vmem:[%s0 + $0x1d0] sm:$0xff]
    %v95 = vld [vmem:[%s0 + $0x1d8] sm:$0xff]
    %v96 = vld [vmem:[%s0 + $0x1e0] sm:$0xff]
    %v97 = vld [vmem:[%s0 + $0x1e8] sm:$0xff]
    %v98 = vld [vmem:[%s0 + $0x1f0] sm:$0xff]
    %v99 = vld [vmem:[%s0 + $0x1f8] sm:$0xff]
    %v100 = vld [vmem:[%s0 + $0x200] sm:$0xff]
    %v101 = vld [vmem:[%s0 + $0x208] sm:$0xff]
    %v102 = vld [vmem:[%s0 + $0x210] sm:$0xff]
    %v103 = vld [vmem:[%s0 + $0x218] sm:$0xff]
    %v104 = vld [vmem:[%s0 + $0x220] sm:$0xff]
    %v105 = vld [vmem:[%s0 + $0x228] sm:$0xff]
    %v106 = vld [vmem:[%s0 + $0x230] sm:$0xff]
    %v107 = vld [vmem:[%s0 + $0x238] sm:$0xff]
    %v108 = vld [vmem:[%s0 + $0x240] sm:$0xff]
    %v109 = vld [vmem:[%s0 + $0x248] sm:$0xff]
    %v110 = vld [vmem:[%s0 + $0x250] sm:$0xff]
    %v111 = vld [vmem:[%s0 + $0x258] sm:$0xff]
    %v112 = vld [vmem:[%s0 + $0x260] sm:$0xff]
    %v113 = vld [vmem:[%s0 + $0x268] sm:$0xff]
    %v114 = vld [vmem:[%s0 + $0x270] sm:$0xff]
    %v115 = vld [vmem:[%s0 + $0x278] sm:$0xff]
    %v116 = vld [vmem:[%s0 + $0x280] sm:$0xff]
    %v117 = vld [vmem:[%s0 + $0x288] sm:$0xff]
    %v118 = vld [vmem:[%s0 + $0x290] sm:$0xff]
    %v119 = vld [vmem:[%s0 + $0x298] sm:$0xff]
    %v120 = vld [vmem:[%s0 + $0x2a0] sm:$0xff]
    %v121 = vld [vmem:[%s0 + $0x2a8] sm:$0xff]
    %v122 = vld [vmem:[%s0 + $0x2b0] sm:$0xff]
    %v123 = vld [vmem:[%s0 + $0x2b8] sm:$0xff]
    %v124 = vld [vmem:[%s0 + $0x2c0] sm:$0xff]
    %v125 = vld [vmem:[%s0 + $0x2c8] sm:$0xff]
    %v126 = vld [vmem:[%s0 + $0x2d0] sm:$0xff]
    %v127 = vld [vmem:[%s0 + $0x2d8] sm:$0xff]
    %v128 = vld [vmem:[%s0 + $0x2e0] sm:$0xff]
    %v129 = vld [vmem:[%s0 + $0x2e8] sm:$0xff]
    %v130 = vld [vmem:[%s0 + $0x2f0] sm:$0xff]
    %v131 = vld [vmem:[%s0 + $0x2f8] sm:$0xff]
    %v132 = vld [vmem:[%s0 + $0x300] sm:$0xff]
    %v133 = vld [vmem:[%s0 + $0x308] sm:$0xff]
    %v134 = vld [vmem:[%s0 + $0x310] sm:$0xff]
    %v135 = vld [vmem:[%s0 + $0x318] sm:$0xff]
    %v136 = vld [vmem:[%s0 + $0x320] sm:$0xff]
    %v137 = vld [vmem:[%s0 + $0x328] sm:$0xff]
    %v138 = vld [vmem:[%s0 + $0x330] sm:$0xff]
    %v139 = vld [vmem:[%s0 + $0x338] sm:$0xff]
    %v140 = vld [vmem:[%s0 + $0x340] sm:$0xff]
    %v141 = vld [vmem:[%s0 + $0x348] sm:$0xff]
    %v142 = vld [vmem:[%s0 + $0x350] sm:$0xff]
    %v143 = vld [vmem:[%s0 + $0x358] sm:$0xff]
    %v144 = vld [vmem:[%s0 + $0x360] sm:$0xff]
    %v145 = vld [vmem:[%s0 + $0x368] sm:$0xff]
    %v146 = vld [vmem:[%s0 + $0x370] sm:$0xff]
    %v147 = vld [vmem:[%s0 + $0x378] sm:$0xff]
    %v148 = vld [vmem:[%s0 + $0x380] sm:$0xff]
    %v149 = vld [vmem:[%s0 + $0x388] sm:$0xff]
    %v150 = vld [vmem:[%s0 + $0x390] sm:$0xff]
    %v151 = vld [vmem:[%s0 + $0x398] sm:$0xff]
    %v152 = vld [vmem:[%s0 + $0x3a0] sm:$0xff]
    %v153 = vld [vmem:[%s0 + $0x3a8] sm:$0xff]
    %v154 = vld [vmem:[%s0 + $0x3b0] sm:$0xff]
    %v155 = vld [vmem:[%s0 + $0x3b8] sm:$0xff]
    %v156 = vld [vmem:[%s0 + $0x3c0] sm:$0xff]
    %v157 = vld [vmem:[%s0 + $0x3c8] sm:$0xff]
    %v158 = vld [vmem:[%s0 + $0x3d0] sm:$0xff]
    %v159 = vld [vmem:[%s0 + $0x3d8] sm:$0xff]
    %v160 = vld [vmem:[%s0 + $0x3e0] sm:$0xff]
    %v161 = vld [vmem:[%s0 + $0x3e8] sm:$0xff]
    %v162 = vld [vmem:[%s0 + $0x3f0] sm:$0xff]
    %v163 = vld [vmem:[%s0 + $0x3f8] sm:$0xff]
    %v164 = vld [vmem:[%s0 + $0x400] sm:$0xff]
    %v165 = vld [vmem:[%s0 + $0x408] sm:$0xff]
    %v166 = vld [vmem:[%s0 + $0x410] sm:$0xff]
    %v167 = vld [vmem:[%s0 + $0x418] sm:$0xff]
    %v168 = vld [vmem:[%s0 + $0x420] sm:$0xff]
    %v169 = vld [vmem:[%s0 + $0x428] sm:$0xff]
    %v170 = vld [vmem:[%s0 + $0x430] sm:$0xff]
    %v171 = vld [vmem:[%s0 + $0x438] sm:$0xff]
    %v172 = vld [vmem:[%s0 + $0x440] sm:$0xff]
    %v173 = vld [vmem:[%s0 + $0x448] sm:$0xff]
    %v174 = vld [vmem:[%s0 + $0x450] sm:$0xff]
    %v175 = vld [vmem:[%s0 + $0x458] sm:$0xff]
    %v176 = vld [vmem:[%s0 + $0x460] sm:$0xff]
    %v177 = vld [vmem:[%s0 + $0x468] sm:$0xff]
    %v178 = vld [vmem:[%s0 + $0x470] sm:$0xff]
    %v179 = vld [vmem:[%s0 + $0x478] sm:$0xff]
    %v180 = vld [vmem:[%s0 + $0x480] sm:$0xff]
    %v181 = vld [vmem:[%s0 + $0x488] sm:$0xff]
    %v182 = vld [vmem:[%s0 + $0x490] sm:$0xff]
    %v183 = vld [vmem:[%s0 + $0x498] sm:$0xff]
    %v184 = vld [vmem:[%s0 + $0x4a0] sm:$0xff]
    %v185 = vld [vmem:[%s0 + $0x4a8] sm:$0xff]
    %v186 = vld [vmem:[%s0 + $0x4b0] sm:$0xff]
    %v187 = vld [vmem:[%s0 + $0x4b8] sm:$0xff]
    %v188 = vld [vmem:[%s0 + $0x4c0] sm:$0xff]
    %v189 = vld [vmem:[%s0 + $0x4c8] sm:$0xff]
    %v190 = vld [vmem:[%s0 + $0x4d0] sm:$0xff]
    %v191 = vld [vmem:[%s0 + $0x4d8] sm:$0xff]
    %v192 = vld [vmem:[%s0 + $0x4e0] sm:$0xff]
    %v193 = vld [vmem:[%s0 + $0x4e8] sm:$0xff]
    %v194 = vld [vmem:[%s0 + $0x4f0] sm:$0xff]
    %v195 = vld [vmem:[%s0 + $0x4f8] sm:$0xff]
    %v196 = vld [vmem:[%s0 + $0x500] sm:$0xff]
    %v197 = vld [vmem:[%s0 + $0x508] sm:$0xff]
    %v198 = vld [vmem:[%s0 + $0x510] sm:$0xff]
    %v199 = vld [vmem:[%s0 + $0x518] sm:$0xff]
    %v200 = vld [vmem:[%s0 + $0x520] sm:$0xff]
    %v201 = vld [vmem:[%s0 + $0x528] sm:$0xff]
    %v202 = vld [vmem:[%s0 + $0x530] sm:$0xff]
    %v203 = vld [vmem:[%s0 + $0x538] sm:$0xff]
    %v204 = vld [vmem:[%s0 + $0x540] sm:$0xff]
    %v205 = vld [vmem:[%s0 + $0x548] sm:$0xff]
    %v206 = vld [vmem:[%s0 + $0x550] sm:$0xff]
    %v207 = vld [vmem:[%s0 + $0x558] sm:$0xff]
    %v208 = vld [vmem:[%s0 + $0x560] sm:$0xff]
    %v209 = vld [vmem:[%s0 + $0x568] sm:$0xff]
    %v210 = vld [vmem:[%s0 + $0x570] sm:$0xff]
    %v211 = vld [vmem:[%s0 + $0x578] sm:$0xff]
    %v212 = vld [vmem:[%s0 + $0x580] sm:$0xff]
    %v213 = vld [vmem:[%s0 + $0x588] sm:$0xff]
    %v214 = vld [vmem:[%s0 + $0x590] sm:$0xff]
    %v215 = vld [vmem:[%s0 + $0x598] sm:$0xff]
    %v216 = vld [vmem:[%s0 + $0x5a0] sm:$0xff]
    %v217 = vld [vmem:[%s0 + $0x5a8] sm:$0xff]
    %v218 = vld [vmem:[%s0 + $0x5b0] sm:$0xff]
    %v219 = vld [vmem:[%s0 + $0x5b8] sm:$0xff]
    %v220 = vld [vmem:[%s0 + $0x5c0] sm:$0xff]
    %v221 = vld [vmem:[%s0 + $0x5c8] sm:$0xff]
    %v222 = vld [vmem:[%s0 + $0x5d0] sm:$0xff]
    %v223 = vld [vmem:[%s0 + $0x5d8] sm:$0xff]
    %v224 = vld [vmem:[%s0 + $0x5e0] sm:$0xff]
    %v225 = vld [vmem:[%s0 + $0x5e8] sm:$0xff]
    %v226 = vld [vmem:[%s0 + $0x5f0] sm:$0xff]
    %v227 = vld [vmem:[%s0 + $0x5f8] sm:$0xff]
    %v228 = vld [vmem:[%s0 + $0x600] sm:$0xff]
    %v229 = vld [vmem:[%s0 + $0x608] sm:$0xff]
    %v230 = vld [vmem:[%s0 + $0x610] sm:$0xff]
    %v231 = vld [vmem:[%s0 + $0x618] sm:$0xff]
    %v232 = vld [vmem:[%s0 + $0x620] sm:$0xff]
    %v233 = vld [vmem:[%s0 + $0x628] sm:$0xff]
    %v234 = vld [vmem:[%s0 + $0x630] sm:$0xff]
    %v235 = vld [vmem:[%s0 + $0x638] sm:$0xff]
    %v236 = vld [vmem:[%s0 + $0x640] sm:$0xff]
    %v237 = vld [vmem:[%s0 + $0x648] sm:$0xff]
    %v238 = vld [vmem:[%s0 + $0x650] sm:$0xff]
    %v239 = vld [vmem:[%s0 + $0x658] sm:$0xff]
    %v240 = vld [vmem:[%s0 + $0x660] sm:$0xff]
    %v241 = vld [vmem:[%s0 + $0x668] sm:$0xff]
    %v242 = vld [vmem:[%s0 + $0x670] sm:$0xff]
    %v243 = vld [vmem:[%s0 + $0x678] sm:$0xff]
    %v244 = vld [vmem:[%s0 + $0x680] sm:$0xff]
    %v245 = vld [vmem:[%s0 + $0x688] sm:$0xff]
    %v246 = vld [vmem:[%s0 + $0x690] sm:$0xff]
    %v247 = vld [vmem:[%s0 + $0x698] sm:$0xff]
    %v248 = vld [vmem:[%s0 + $0x6a0] sm:$0xff]
    %v249 = vld [vmem:[%s0 + $0x6a8] sm:$0xff]
    %v250 = vld [vmem:[%s0 + $0x6b0] sm:$0xff]
    %v251 = vld [vmem:[%s0 + $0x6b8] sm:$0xff]
    %v252 = vld [vmem:[%s0 + $0x6c0] sm:$0xff]
    %v253 = vld [vmem:[%s0 + $0x6c8] sm:$0xff]
    %v254 = vld [vmem:[%s0 + $0x6d0] sm:$0xff]
    %v255 = vld [vmem:[%s0 + $0x6d8] sm:$0xff]
    %v256 = vld [vmem:[%s0 + $0x6e0] sm:$0xff]
    %v257 = vld [vmem:[%s0 + $0x6e8] sm:$0xff]
    %v258 = vld [vmem:[%s0 + $0x6f0] sm:$0xff]
    %v259 = vld [vmem:[%s0 + $0x6f8] sm:$0xff]
    %v260 = vld [vmem:[%s0 + $0x700] sm:$0xff]
    %v261 = vld [vmem:[%s0 + $0x708] sm:$0xff]
    %v262 = vld [vmem:[%s0 + $0x710] sm:$0xff]
    %v263 = vld [vmem:[%s0 + $0x718] sm:$0xff]
    %v264 = vld [vmem:[%s0 + $0x720] sm:$0xff]
    %v265 = vld [vmem:[%s0 + $0x728] sm:$0xff]
    %v266 = vld [vmem:[%s0 + $0x730] sm:$0xff]
    %v267 = vld [vmem:[%s0 + $0x738] sm:$0xff]
    %v268 = vld [vmem:[%s0 + $0x740] sm:$0xff]
    %v269 = vld [vmem:[%s0 + $0x748] sm:$0xff]
    %v270 = vld [vmem:[%s0 + $0x750] sm:$0xff]
    %v271 = vld [vmem:[%s0 + $0x758] sm:$0xff]
    %v272 = vld [vmem:[%s0 + $0x760] sm:$0xff]
    %v273 = vld [vmem:[%s0 + $0x768] sm:$0xff]
    %v274 = vld [vmem:[%s0 + $0x770] sm:$0xff]
    %v275 = vld [vmem:[%s0 + $0x778] sm:$0xff]
    %v276 = vld [vmem:[%s0 + $0x780] sm:$0xff]
    %v277 = vld [vmem:[%s0 + $0x788] sm:$0xff]
    %v278 = vld [vmem:[%s0 + $0x790] sm:$0xff]
    %v279 = vld [vmem:[%s0 + $0x798] sm:$0xff]
    %v280 = vld [vmem:[%s0 + $0x7a0] sm:$0xff]
    %v281 = vld [vmem:[%s0 + $0x7a8] sm:$0xff]
    %v282 = vld [vmem:[%s0 + $0x7b0] sm:$0xff]
    %v283 = vld [vmem:[%s0 + $0x7b8] sm:$0xff]
    %v284 = vld [vmem:[%s0 + $0x7c0] sm:$0xff]
    %v285 = vld [vmem:[%s0 + $0x7c8] sm:$0xff]
    %v286 = vld [vmem:[%s0 + $0x7d0] sm:$0xff]
    %v287 = vld [vmem:[%s0 + $0x7d8] sm:$0xff]
    %v288 = vld [vmem:[%s0 + $0x7e0] sm:$0xff]
    %v289 = vld [vmem:[%s0 + $0x7e8] sm:$0xff]
    %v290 = vld [vmem:[%s0 + $0x7f0] sm:$0xff]
    %v291 = vld [vmem:[%s0 + $0x7f8] sm:$0xff]
    %v292 = vld [vmem:[%s0 + $0x800] sm:$0xff]
    %v293 = vld [vmem:[%s0 + $0x808] sm:$0xff]
    %v294 = vld [vmem:[%s0 + $0x810] sm:$0xff]
    %v295 = vld [vmem:[%s0 + $0x818] sm:$0xff]
    %v296 = vld [vmem:[%s0 + $0x820] sm:$0xff]
    %v297 = vld [vmem:[%s0 + $0x828] sm:$0xff]
    %v298 = vld [vmem:[%s0 + $0x830] sm:$0xff]
    %v299 = vld [vmem:[%s0 + $0x838] sm:$0xff]
    %v300 = vld [vmem:[%s0 + $0x840] sm:$0xff]
    %v301 = vld [vmem:[%s0 + $0x848] sm:$0xff]
    %v302 = vld [vmem:[%s0 + $0x850] sm:$0xff]
    %v303 = vld [vmem:[%s0 + $0x858] sm:$0xff]
    %v304 = vld [vmem:[%s0 + $0x860] sm:$0xff]
    %v305 = vld [vmem:[%s0 + $0x868] sm:$0xff]
    %v306 = vld [vmem:[%s0 + $0x870] sm:$0xff]
    %v307 = vld [vmem:[%s0 + $0x878] sm:$0xff]
    %v308 = vld [vmem:[%s0 + $0x880] sm:$0xff]
    %v309 = vld [vmem:[%s0 + $0x888] sm:$0xff]
    %v310 = vld [vmem:[%s0 + $0x890] sm:$0xff]
    %v311 = vld [vmem:[%s0 + $0x898] sm:$0xff]
    %v312 = vld [vmem:[%s0 + $0x8a0] sm:$0xff]
    %v313 = vld [vmem:[%s0 + $0x8a8] sm:$0xff]
    %v314 = vld [vmem:[%s0 + $0x8b0] sm:$0xff]
    %v315 = vld [vmem:[%s0 + $0x8b8] sm:$0xff]
    %v316 = vld [vmem:[%s0 + $0x8c0] sm:$0xff]
    %v317 = vld [vmem:[%s0 + $0x8c8] sm:$0xff]
    %v318 = vld [vmem:[%s0 + $0x8d0] sm:$0xff]
    %v319 = vld [vmem:[%s0 + $0x8d8] sm:$0xff]
    %v320 = vld [vmem:[%s0 + $0x8e0] sm:$0xff]
    %v321 = vld [vmem:[%s0 + $0x8e8] sm:$0xff]
    %v322 = vld [vmem:[%s0 + $0x8f0] sm:$0xff]
    %v323 = vld [vmem:[%s0 + $0x8f8] sm:$0xff]
    %v324 = vld [vmem:[%s0 + $0x900] sm:$0xff]
    %v325 = vld [vmem:[%s0 + $0x908] sm:$0xff]
    %v326 = vld [vmem:[%s0 + $0x910] sm:$0xff]
    %v327 = vld [vmem:[%s0 + $0x918] sm:$0xff]
    %v328 = vld [vmem:[%s0 + $0x920] sm:$0xff]
    %v329 = vld [vmem:[%s0 + $0x928] sm:$0xff]
    %v330 = vld [vmem:[%s0 + $0x930] sm:$0xff]
    %v331 = vld [vmem:[%s0 + $0x938] sm:$0xff]
    %v332 = vld [vmem:[%s0 + $0x940] sm:$0xff]
    %v333 = vld [vmem:[%s0 + $0x948] sm:$0xff]
    %v334 = vld [vmem:[%s0 + $0x950] sm:$0xff]
    %v335 = vld [vmem:[%s0 + $0x958] sm:$0xff]
    %v336 = vld [vmem:[%s0 + $0x960] sm:$0xff]
    %v337 = vld [vmem:[%s0 + $0x968] sm:$0xff]
    %v338 = vld [vmem:[%s0 + $0x970] sm:$0xff]
    %v339 = vld [vmem:[%s0 + $0x978] sm:$0xff]
    %v340 = vld [vmem:[%s0 + $0x980] sm:$0xff]
    %v341 = vld [vmem:[%s0 + $0x988] sm:$0xff]
    %v342 = vld [vmem:[%s0 + $0x990] sm:$0xff]
    %v343 = vld [vmem:[%s0 + $0x998] sm:$0xff]
    %v344 = vld [vmem:[%s0 + $0x9a0] sm:$0xff]
    %v345 = vld [vmem:[%s0 + $0x9a8] sm:$0xff]
    %v346 = vld [vmem:[%s0 + $0x9b0] sm:$0xff]
    %v347 = vld [vmem:[%s0 + $0x9b8] sm:$0xff]
    %v348 = vld [vmem:[%s0 + $0x9c0] sm:$0xff]
    %v349 = vld [vmem:[%s0 + $0x9c8] sm:$0xff]
    %v350 = vld [vmem:[%s0 + $0x9d0] sm:$0xff]
    %v351 = vld [vmem:[%s0 + $0x9d8] sm:$0xff]
    %v352 = vld [vmem:[%s0 + $0x9e0] sm:$0xff]
    %v353 = vld [vmem:[%s0 + $0x9e8] sm:$0xff]
    %v354 = vld [vmem:[%s0 + $0x9f0] sm:$0xff]
    %v355 = vld [vmem:[%s0 + $0x9f8] sm:$0xff]
    %v356 = vld [vmem:[%s0 + $0xa00] sm:$0xff]
    %v357 = vld [vmem:[%s0 + $0xa08] sm:$0xff]
    %v358 = vld [vmem:[%s0 + $0xa10] sm:$0xff]
    %v359 = vld [vmem:[%s0 + $0xa18] sm:$0xff]
    %v360 = vld [vmem:[%s0 + $0xa20] sm:$0xff]
    %v361 = vld [vmem:[%s1] sm:$0xff]
    %v362 = vld [vmem:[%s1 + $0x8] sm:$0xff]
    %v363 = vld [vmem:[%s1 + $0x10] sm:$0xff]
    %v364 = vld [vmem:[%s1 + $0x18] sm:$0xff]
    %v365 = vld [vmem:[%s1 + $0x20] sm:$0xff]
    %v366 = vld [vmem:[%s1 + $0x28] sm:$0xff]
    %v367 = vld [vmem:[%s1 + $0x30] sm:$0xff]
    %v368 = vld [vmem:[%s1 + $0x38] sm:$0xff]
    %v369 = vld [vmem:[%s1 + $0x40] sm:$0xff]
    %v370 = vld [vmem:[%s1 + $0x48] sm:$0xff]
    %v371 = vld [vmem:[%s1 + $0x50] sm:$0xff]
    %v372 = vld [vmem:[%s1 + $0x58] sm:$0xff]
    %v373 = vld [vmem:[%s1 + $0x60] sm:$0xff]
    %v374 = vld [vmem:[%s1 + $0x68] sm:$0xff]
    %v375 = vld [vmem:[%s1 + $0x70] sm:$0xff]
    %v376 = vld [vmem:[%s1 + $0x78] sm:$0xff]
    %v377 = vld [vmem:[%s1 + $0x80] sm:$0xff]
    %v378 = vld [vmem:[%s1 + $0x88] sm:$0xff]
    %v379 = vld [vmem:[%s1 + $0x90] sm:$0xff]
    %v380 = vld [vmem:[%s1 + $0x98] sm:$0xff]
    %v381 = vld [vmem:[%s1 + $0xa0] sm:$0xff]
    %v382 = vld [vmem:[%s1 + $0xa8] sm:$0xff]
    %v383 = vld [vmem:[%s1 + $0xb0] sm:$0xff]
    %v384 = vld [vmem:[%s1 + $0xb8] sm:$0xff]
    %v385 = vld [vmem:[%s1 + $0xc0] sm:$0xff]
    %v386 = vld [vmem:[%s1 + $0xc8] sm:$0xff]
    %v387 = vld [vmem:[%s1 + $0xd0] sm:$0xff]
    %v388 = vld [vmem:[%s1 + $0xd8] sm:$0xff]
    %v389 = vld [vmem:[%s1 + $0xe0] sm:$0xff]
    %v390 = vld [vmem:[%s1 + $0xe8] sm:$0xff]
    %v391 = vld [vmem:[%s1 + $0xf0] sm:$0xff]
    %v392 = vld [vmem:[%s1 + $0xf8] sm:$0xff]
    %v393 = vld [vmem:[%s1 + $0x100] sm:$0xff]
    %v394 = vld [vmem:[%s1 + $0x108] sm:$0xff]
    %v395 = vld [vmem:[%s1 + $0x110] sm:$0xff]
    %v396 = vld [vmem:[%s1 + $0x118] sm:$0xff]
    %v397 = vld [vmem:[%s1 + $0x120] sm:$0xff]
    %v398 = vld [vmem:[%s1 + $0x128] sm:$0xff]
    %v399 = vld [vmem:[%s1 + $0x130] sm:$0xff]
    %v400 = vld [vmem:[%s1 + $0x138] sm:$0xff]
    %v401 = vld [vmem:[%s1 + $0x140] sm:$0xff]
    %v402 = vld [vmem:[%s1 + $0x148] sm:$0xff]
    %v403 = vld [vmem:[%s1 + $0x150] sm:$0xff]
    %v404 = vld [vmem:[%s1 + $0x158] sm:$0xff]
    %v405 = vld [vmem:[%s1 + $0x160] sm:$0xff]
    %v406 = vld [vmem:[%s1 + $0x168] sm:$0xff]
    %v407 = vld [vmem:[%s1 + $0x170] sm:$0xff]
    %v408 = vld [vmem:[%s1 + $0x178] sm:$0xff]
    %v409 = vld [vmem:[%s1 + $0x180] sm:$0xff]
    %v410 = vld [vmem:[%s1 + $0x188] sm:$0xff]
    %v411 = vld [vmem:[%s1 + $0x190] sm:$0xff]
    %v412 = vld [vmem:[%s1 + $0x198] sm:$0xff]
    %v413 = vld [vmem:[%s1 + $0x1a0] sm:$0xff]
    %v414 = vld [vmem:[%s1 + $0x1a8] sm:$0xff]
    %v415 = vld [vmem:[%s1 + $0x1b0] sm:$0xff]
    %v416 = vld [vmem:[%s1 + $0x1b8] sm:$0xff]
    %v417 = vld [vmem:[%s1 + $0x1c0] sm:$0xff]
    %v418 = vld [vmem:[%s1 + $0x1c8] sm:$0xff]
    %v419 = vld [vmem:[%s1 + $0x1d0] sm:$0xff]
    %v420 = vld [vmem:[%s1 + $0x1d8] sm:$0xff]
    %v421 = vld [vmem:[%s1 + $0x1e0] sm:$0xff]
    %v422 = vld [vmem:[%s1 + $0x1e8] sm:$0xff]
    %v423 = vld [vmem:[%s1 + $0x1f0] sm:$0xff]
    %v424 = vld [vmem:[%s1 + $0x1f8] sm:$0xff]
    %v425 = vld [vmem:[%s1 + $0x200] sm:$0xff]
    %v426 = vld [vmem:[%s1 + $0x208] sm:$0xff]
    %v427 = vld [vmem:[%s1 + $0x210] sm:$0xff]
    %v428 = vld [vmem:[%s1 + $0x218] sm:$0xff]
    %v429 = vld [vmem:[%s1 + $0x220] sm:$0xff]
    %v430 = vld [vmem:[%s1 + $0x228] sm:$0xff]
    %v431 = vld [vmem:[%s1 + $0x230] sm:$0xff]
    %v432 = vld [vmem:[%s1 + $0x238] sm:$0xff]
    %v433 = vld [vmem:[%s1 + $0x240] sm:$0xff]
    %v434 = vld [vmem:[%s1 + $0x248] sm:$0xff]
    %v435 = vld [vmem:[%s1 + $0x250] sm:$0xff]
    %v436 = vld [vmem:[%s1 + $0x258] sm:$0xff]
    %v437 = vld [vmem:[%s1 + $0x260] sm:$0xff]
    %v438 = vld [vmem:[%s1 + $0x268] sm:$0xff]
    %v439 = vld [vmem:[%s1 + $0x270] sm:$0xff]
    %v440 = vld [vmem:[%s1 + $0x278] sm:$0xff]
    %v441 = vld [vmem:[%s1 + $0x280] sm:$0xff]
    %v442 = vld [vmem:[%s1 + $0x288] sm:$0xff]
    %v443 = vld [vmem:[%s1 + $0x290] sm:$0xff]
    %v444 = vld [vmem:[%s1 + $0x298] sm:$0xff]
    %v445 = vld [vmem:[%s1 + $0x2a0] sm:$0xff]
    %v446 = vld [vmem:[%s1 + $0x2a8] sm:$0xff]
    %v447 = vld [vmem:[%s1 + $0x2b0] sm:$0xff]
    %v448 = vld [vmem:[%s1 + $0x2b8] sm:$0xff]
    %v449 = vld [vmem:[%s1 + $0x2c0] sm:$0xff]
    %v450 = vld [vmem:[%s1 + $0x2c8] sm:$0xff]
    %v451 = vld [vmem:[%s1 + $0x2d0] sm:$0xff]
    %v452 = vld [vmem:[%s1 + $0x2d8] sm:$0xff]
    %v453 = vld [vmem:[%s1 + $0x2e0] sm:$0xff]
    %v454 = vld [vmem:[%s1 + $0x2e8] sm:$0xff]
    %v455 = vld [vmem:[%s1 + $0x2f0] sm:$0xff]
    %v456 = vld [vmem:[%s1 + $0x2f8] sm:$0xff]
    %v457 = vld [vmem:[%s1 + $0x300] sm:$0xff]
    %v458 = vld [vmem:[%s1 + $0x308] sm:$0xff]
    %v459 = vld [vmem:[%s1 + $0x310] sm:$0xff]
    %v460 = vld [vmem:[%s1 + $0x318] sm:$0xff]
    %v461 = vld [vmem:[%s1 + $0x320] sm:$0xff]
    %v462 = vld [vmem:[%s1 + $0x328] sm:$0xff]
    %v463 = vld [vmem:[%s1 + $0x330] sm:$0xff]
    %v464 = vld [vmem:[%s1 + $0x338] sm:$0xff]
    %v465 = vld [vmem:[%s1 + $0x340] sm:$0xff]
    %v466 = vld [vmem:[%s1 + $0x348] sm:$0xff]
    %v467 = vld [vmem:[%s1 + $0x350] sm:$0xff]
    %v468 = vld [vmem:[%s1 + $0x358] sm:$0xff]
    %v469 = vld [vmem:[%s1 + $0x360] sm:$0xff]
    %v470 = vld [vmem:[%s1 + $0x368] sm:$0xff]
    %v471 = vld [vmem:[%s1 + $0x370] sm:$0xff]
    %v472 = vld [vmem:[%s1 + $0x378] sm:$0xff]
    %v473 = vld [vmem:[%s1 + $0x380] sm:$0xff]
    %v474 = vld [vmem:[%s1 + $0x388] sm:$0xff]
    %v475 = vld [vmem:[%s1 + $0x390] sm:$0xff]
    %v476 = vld [vmem:[%s1 + $0x398] sm:$0xff]
    %v477 = vld [vmem:[%s1 + $0x3a0] sm:$0xff]
    %v478 = vld [vmem:[%s1 + $0x3a8] sm:$0xff]
    %v479 = vld [vmem:[%s1 + $0x3b0] sm:$0xff]
    %v480 = vld [vmem:[%s1 + $0x3b8] sm:$0xff]
    %v481 = vld [vmem:[%s1 + $0x3c0] sm:$0xff]
    %v482 = vld [vmem:[%s1 + $0x3c8] sm:$0xff]
    %v483 = vld [vmem:[%s1 + $0x3d0] sm:$0xff]
    %v484 = vld [vmem:[%s1 + $0x3d8] sm:$0xff]
    %v485 = vld [vmem:[%s1 + $0x3e0] sm:$0xff]
    %v486 = vld [vmem:[%s1 + $0x3e8] sm:$0xff]
    %v487 = vld [vmem:[%s1 + $0x3f0] sm:$0xff]
    %v488 = vld [vmem:[%s1 + $0x3f8] sm:$0xff]
    %v489 = vld [vmem:[%s1 + $0x400] sm:$0xff]
    %v490 = vld [vmem:[%s1 + $0x408] sm:$0xff]
    %v491 = vld [vmem:[%s1 + $0x410] sm:$0xff]
    %v492 = vld [vmem:[%s1 + $0x418] sm:$0xff]
    %v493 = vld [vmem:[%s1 + $0x420] sm:$0xff]
    %v494 = vld [vmem:[%s1 + $0x428] sm:$0xff]
    %v495 = vld [vmem:[%s1 + $0x430] sm:$0xff]
    %v496 = vld [vmem:[%s1 + $0x438] sm:$0xff]
    %v497 = vld [vmem:[%s1 + $0x440] sm:$0xff]
    %v498 = vld [vmem:[%s1 + $0x448] sm:$0xff]
    %v499 = vld [vmem:[%s1 + $0x450] sm:$0xff]
    %v500 = vld [vmem:[%s1 + $0x458] sm:$0xff]
    %v501 = vld [vmem:[%s1 + $0x460] sm:$0xff]
    %v502 = vld [vmem:[%s1 + $0x468] sm:$0xff]
    %v503 = vld [vmem:[%s1 + $0x470] sm:$0xff]
    %v504 = vld [vmem:[%s1 + $0x478] sm:$0xff]
    %v505 = vld [vmem:[%s1 + $0x480] sm:$0xff]
    %v506 = vld [vmem:[%s1 + $0x488] sm:$0xff]
    %v507 = vld [vmem:[%s1 + $0x490] sm:$0xff]
    %v508 = vld [vmem:[%s1 + $0x498] sm:$0xff]
    %v509 = vld [vmem:[%s1 + $0x4a0] sm:$0xff]
    %v510 = vld [vmem:[%s1 + $0x4a8] sm:$0xff]
    %v511 = vld [vmem:[%s1 + $0x4b0] sm:$0xff]
    %v512 = vld [vmem:[%s1 + $0x4b8] sm:$0xff]
    %v513 = vld [vmem:[%s1 + $0x4c0] sm:$0xff]
    %v514 = vld [vmem:[%s1 + $0x4c8] sm:$0xff]
    %v515 = vld [vmem:[%s1 + $0x4d0] sm:$0xff]
    %v516 = vld [vmem:[%s1 + $0x4d8] sm:$0xff]
    %v517 = vld [vmem:[%s1 + $0x4e0] sm:$0xff]
    %v518 = vld [vmem:[%s1 + $0x4e8] sm:$0xff]
    %v519 = vld [vmem:[%s1 + $0x4f0] sm:$0xff]
    %v520 = vld [vmem:[%s1 + $0x4f8] sm:$0xff]
    %v521 = vld [vmem:[%s1 + $0x500] sm:$0xff]
    %v522 = vld [vmem:[%s1 + $0x508] sm:$0xff]
    %v523 = vld [vmem:[%s1 + $0x510] sm:$0xff]
    %v524 = vld [vmem:[%s1 + $0x518] sm:$0xff]
    %v525 = vld [vmem:[%s1 + $0x520] sm:$0xff]
    %v526 = vld [vmem:[%s1 + $0x528] sm:$0xff]
    %v527 = vld [vmem:[%s1 + $0x530] sm:$0xff]
    %v528 = vld [vmem:[%s1 + $0x538] sm:$0xff]
    %v529 = vld [vmem:[%s1 + $0x540] sm:$0xff]
    %v530 = vld [vmem:[%s1 + $0x548] sm:$0xff]
    %v531 = vld [vmem:[%s1 + $0x550] sm:$0xff]
    %v532 = vld [vmem:[%s1 + $0x558] sm:$0xff]
    %v533 = vld [vmem:[%s1 + $0x560] sm:$0xff]
    %v534 = vld [vmem:[%s1 + $0x568] sm:$0xff]
    %v535 = vld [vmem:[%s1 + $0x570] sm:$0xff]
    %v536 = vld [vmem:[%s1 + $0x578] sm:$0xff]
    %v537 = vld [vmem:[%s1 + $0x580] sm:$0xff]
    %v538 = vld [vmem:[%s1 + $0x588] sm:$0xff]
    %v539 = vld [vmem:[%s1 + $0x590] sm:$0xff]
    %v540 = vld [vmem:[%s1 + $0x598] sm:$0xff]
    %v541 = vld [vmem:[%s1 + $0x5a0] sm:$0xff]
    %v542 = vld [vmem:[%s1 + $0x5a8] sm:$0xff]
    %v543 = vld [vmem:[%s1 + $0x5b0] sm:$0xff]
    %v544 = vld [vmem:[%s1 + $0x5b8] sm:$0xff]
    %v545 = vld [vmem:[%s1 + $0x5c0] sm:$0xff]
    %v546 = vld [vmem:[%s1 + $0x5c8] sm:$0xff]
    %v547 = vld [vmem:[%s1 + $0x5d0] sm:$0xff]
    %v548 = vld [vmem:[%s1 + $0x5d8] sm:$0xff]
    %v549 = vld [vmem:[%s1 + $0x5e0] sm:$0xff]
    %v550 = vld [vmem:[%s1 + $0x5e8] sm:$0xff]
    %v551 = vld [vmem:[%s1 + $0x5f0] sm:$0xff]
    %v552 = vld [vmem:[%s1 + $0x5f8] sm:$0xff]
    %v553 = vld [vmem:[%s1 + $0x600] sm:$0xff]
    %v554 = vld [vmem:[%s1 + $0x608] sm:$0xff]
    %v555 = vld [vmem:[%s1 + $0x610] sm:$0xff]
    %v556 = vld [vmem:[%s1 + $0x618] sm:$0xff]
    %v557 = vld [vmem:[%s1 + $0x620] sm:$0xff]
    %v558 = vld [vmem:[%s1 + $0x628] sm:$0xff]
    %v559 = vld [vmem:[%s1 + $0x630] sm:$0xff]
    %v560 = vld [vmem:[%s1 + $0x638] sm:$0xff]
    %v561 = vld [vmem:[%s2] sm:$0x1]
    %v563 = vlaneseq
    %v564 = vshrl.u32 %v563, 7
    %v565 = vsub.s32 0, %v564
    %v566 = vrot.slane %v561, %v565
    %vm568 = vcmask 523264
    %v570 = vsel %vm568, %v48, 0
    %v573 = vsel %vm568, %v61, 0
    %v576 = vsel %vm568, %v74, 0
    %v579 = vsel %vm568, %v87, 0
    %v582 = vsel %vm568, %v100, 0
    %v585 = vsel %vm568, %v113, 0
    %v588 = vsel %vm568, %v126, 0
    %v591 = vsel %vm568, %v139, 0
    %v594 = vsel %vm568, %v152, 0
    %v597 = vsel %vm568, %v165, 0
    %v600 = vsel %vm568, %v178, 0
    %v603 = vsel %vm568, %v191, 0
    %v606 = vsel %vm568, %v204, 0
    %v609 = vsel %vm568, %v217, 0
    %v612 = vsel %vm568, %v230, 0
    %v615 = vsel %vm568, %v243, 0
    %v618 = vsel %vm568, %v256, 0
    %v621 = vsel %vm568, %v269, 0
    %v624 = vsel %vm568, %v282, 0
    %v627 = vsel %vm568, %v295, 0
    %v630 = vsel %vm568, %v308, 0
    %v633 = vsel %vm568, %v321, 0
    %v636 = vsel %vm568, %v334, 0
    %v639 = vsel %vm568, %v347, 0
    %v642 = vsel %vm568, %v360, 0
    %644 = vmatprep.subr.mxu0 0.0
    %645 = vmatpush1.msra.mxu0 %v361
    %646 = vmatprep.subr.mxu0 0.0
    %647 = vmatpush1.msra.mxu0 %v362
    %648 = vmatprep.subr.mxu0 0.0
    %649 = vmatpush1.msra.mxu0 %v363
    %650 = vmatprep.subr.mxu0 0.0
    %651 = vmatpush1.msra.mxu0 %v364
    %652 = vmatprep.subr.mxu0 0.0
    %653 = vmatpush1.msra.mxu0 %v365
    %654 = vmatprep.subr.mxu0 0.0
    %655 = vmatpush1.msra.mxu0 %v366
    %656 = vmatprep.subr.mxu0 0.0
    %657 = vmatpush1.msra.mxu0 %v367
    %658 = vmatprep.subr.mxu0 0.0
    %659 = vmatpush1.msra.mxu0 %v368
    %660 = vmatprep.subr.mxu0 0.0
    %661 = vmatpush1.msra.mxu0 %v369
    %662 = vmatprep.subr.mxu0 0.0
    %663 = vmatpush1.msra.mxu0 %v370
    %664 = vmatprep.subr.mxu0 0.0
    %665 = vmatpush1.msra.mxu0 %v371
    %666 = vmatprep.subr.mxu0 0.0
    %667 = vmatpush1.msra.mxu0 %v372
    %668 = vmatprep.subr.mxu0 0.0
    %669 = vmatpush1.msra.mxu0 %v373
    %670 = vmatprep.subr.mxu0 0.0
    %671 = vmatpush1.msra.mxu0 %v374
    %672 = vmatprep.subr.mxu0 0.0
    %673 = vmatpush1.msra.mxu0 %v375
    %674 = vmatprep.subr.mxu0 0.0
    %675 = vmatpush1.msra.mxu0 %v376
    %676 = vmatprep.subr.mxu0 0.0
    %677 = vmatpush1.msra.mxu0 %v377
    %678 = vmatprep.subr.mxu0 0.0
    %679 = vmatpush1.msra.mxu0 %v378
    %680 = vmatprep.subr.mxu0 0.0
    %681 = vmatpush1.msra.mxu0 %v379
    %682 = vmatprep.subr.mxu0 0.0
    %683 = vmatpush1.msra.mxu0 %v380
    %684 = vmatprep.subr.mxu0 0.0
    %685 = vmatpush1.msra.mxu0 %v381
    %686 = vmatprep.subr.mxu0 0.0
    %687 = vmatpush1.msra.mxu0 %v382
    %688 = vmatprep.subr.mxu0 0.0
    %689 = vmatpush1.msra.mxu0 %v383
    %690 = vmatprep.subr.mxu0 0.0
    %691 = vmatpush1.msra.mxu0 %v384
    %692 = vmatprep.subr.mxu0 0.0
    %693 = vmatpush1.msra.mxu0 %v385
    %694 = vmatprep.subr.mxu0 0.0
    %695 = vmatpush1.msra.mxu0 %v386
    %696 = vmatprep.subr.mxu0 0.0
    %697 = vmatpush1.msra.mxu0 %v387
    %698 = vmatprep.subr.mxu0 0.0
    %699 = vmatpush1.msra.mxu0 %v388
    %700 = vmatprep.subr.mxu0 0.0
    %701 = vmatpush1.msra.mxu0 %v389
    %702 = vmatprep.subr.mxu0 0.0
    %703 = vmatpush1.msra.mxu0 %v390
    %704 = vmatprep.subr.mxu0 0.0
    %705 = vmatpush1.msra.mxu0 %v391
    %706 = vmatprep.subr.mxu0 0.0
    %707 = vmatpush1.msra.mxu0 %v392
    %708 = vmatprep.mubr.f32.mxu0 %v37
    %709 = vmatmul.mubr.f32.gmra.mrb[0].mxu0 %v36
    %v710 = vpop.f32.mrb[0].mxu0
    %v711 = vadd.f32 %v566, %v710
    %v712 = vpop.f32.mrb[0].mxu0
    %713 = vmatprep.mubr.f32.mxu0 %v50
    %714 = vmatmul.mubr.f32.gmra.mrb[0].mxu0 %v49
    %v715 = vpop.f32.mrb[0].mxu0
    %v716 = vadd.f32 %v566, %v715
    %v717 = vpop.f32.mrb[0].mxu0
    %718 = vmatprep.mubr.f32.mxu0 %v63
    %719 = vmatmul.mubr.f32.gmra.mrb[0].mxu0 %v62
    %v720 = vpop.f32.mrb[0].mxu0
    %v721 = vadd.f32 %v566, %v720
    %v722 = vpop.f32.mrb[0].mxu0
    %723 = vmatprep.mubr.f32.mxu0 %v76
    %724 = vmatmul.mubr.f32.gmra.mrb[0].mxu0 %v75
    %v725 = vpop.f32.mrb[0].mxu0
    %v726 = vadd.f32 %v566, %v725
    %v727 = vpop.f32.mrb[0].mxu0
    %728 = vmatprep.mubr.f32.mxu0 %v89
    %729 = vmatmul.mubr.f32.gmra.mrb[0].mxu0 %v88
    %v730 = vpop.f32.mrb[0].mxu0
    %v731 = vadd.f32 %v566, %v730
    %v732 = vpop.f32.mrb[0].mxu0
    %733 = vmatprep.mubr.f32.mxu0 %v102
    %734 = vmatmul.mubr.f32.gmra.mrb[0].mxu0 %v101
    %v735 = vpop.f32.mrb[0].mxu0
    %v736 = vadd.f32 %v566, %v735
    %v737 = vpop.f32.mrb[0].mxu0
    %738 = vmatprep.mubr.f32.mxu0 %v115
    %739 = vmatmul.mubr.f32.gmra.mrb[0].mxu0 %v114
    %v740 = vpop.f32.mrb[0].mxu0
    %v741 = vadd.f32 %v566, %v740
    %v742 = vpop.f32.mrb[0].mxu0
    %743 = vmatprep.mubr.f32.mxu0 %v128
    %744 = vmatmul.mubr.f32.gmra.mrb[0].mxu0 %v127
    %v745 = vpop.f32.mrb[0].mxu0
    %v746 = vadd.f32 %v566, %v745
    %v747 = vpop.f32.mrb[0].mxu0
    %748 = vmatprep.mubr.f32.mxu0 %v141
    %749 = vmatmul.mubr.f32.gmra.mrb[0].mxu0 %v140
    %v750 = vpop.f32.mrb[0].mxu0
    %v751 = vadd.f32 %v566, %v750
    %v752 = vpop.f32.mrb[0].mxu0
    %753 = vmatprep.mubr.f32.mxu0 %v154
    %754 = vmatmul.mubr.f32.gmra.mrb[0].mxu0 %v153
    %v755 = vpop.f32.mrb[0].mxu0
    %v756 = vadd.f32 %v566, %v755
    %v757 = vpop.f32.mrb[0].mxu0
    %758 = vmatprep.mubr.f32.mxu0 %v167
    %759 = vmatmul.mubr.f32.gmra.mrb[0].mxu0 %v166
    %v760 = vpop.f32.mrb[0].mxu0
    %v761 = vadd.f32 %v566, %v760
    %v762 = vpop.f32.mrb[0].mxu0
    %763 = vmatprep.mubr.f32.mxu0 %v180
    %764 = vmatmul.mubr.f32.gmra.mrb[0].mxu0 %v179
    %v765 = vpop.f32.mrb[0].mxu0
    %v766 = vadd.f32 %v566, %v765
    %v767 = vpop.f32.mrb[0].mxu0
    %768 = vmatprep.mubr.f32.mxu0 %v193
    %769 = vmatmul.mubr.f32.gmra.mrb[0].mxu0 %v192
    %v770 = vpop.f32.mrb[0].mxu0
    %v771 = vadd.f32 %v566, %v770
    %v772 = vpop.f32.mrb[0].mxu0
    %773 = vmatprep.mubr.f32.mxu0 %v206
    %774 = vmatmul.mubr.f32.gmra.mrb[0].mxu0 %v205
    %v775 = vpop.f32.mrb[0].mxu0
    %v776 = vadd.f32 %v566, %v775
    %v777 = vpop.f32.mrb[0].mxu0
    %778 = vmatprep.mubr.f32.mxu0 %v219
    %779 = vmatmul.mubr.f32.gmra.mrb[0].mxu0 %v218
    %v780 = vpop.f32.mrb[0].mxu0
    %v781 = vadd.f32 %v566, %v780
    %v782 = vpop.f32.mrb[0].mxu0
    %783 = vmatprep.mubr.f32.mxu0 %v232
    %784 = vmatmul.mubr.f32.gmra.mrb[0].mxu0 %v231
    %v785 = vpop.f32.mrb[0].mxu0
    %v786 = vadd.f32 %v566, %v785
    %v787 = vpop.f32.mrb[0].mxu0
    %788 = vmatprep.mubr.f32.mxu0 %v245
    %789 = vmatmul.mubr.f32.gmra.mrb[0].mxu0 %v244
    %v790 = vpop.f32.mrb[0].mxu0
    %v791 = vadd.f32 %v566, %v790
    %v792 = vpop.f32.mrb[0].mxu0
    %793 = vmatprep.mubr.f32.mxu0 %v258
    %794 = vmatmul.mubr.f32.gmra.mrb[0].mxu0 %v257
    %v795 = vpop.f32.mrb[0].mxu0
    %v796 = vadd.f32 %v566, %v795
    %v797 = vpop.f32.mrb[0].mxu0
    %798 = vmatprep.mubr.f32.mxu0 %v271
    %799 = vmatmul.mubr.f32.gmra.mrb[0].mxu0 %v270
    %v800 = vpop.f32.mrb[0].mxu0
    %v801 = vadd.f32 %v566, %v800
    %v802 = vpop.f32.mrb[0].mxu0
    %803 = vmatprep.mubr.f32.mxu0 %v284
    %804 = vmatmul.mubr.f32.gmra.mrb[0].mxu0 %v283
    %v805 = vpop.f32.mrb[0].mxu0
    %v806 = vadd.f32 %v566, %v805
    %v807 = vpop.f32.mrb[0].mxu0
    %808 = vmatprep.mubr.f32.mxu0 %v297
    %809 = vmatmul.mubr.f32.gmra.mrb[0].mxu0 %v296
    %v810 = vpop.f32.mrb[0].mxu0
    %v811 = vadd.f32 %v566, %v810
    %v812 = vpop.f32.mrb[0].mxu0
    %813 = vmatprep.mubr.f32.mxu0 %v310
    %814 = vmatmul.mubr.f32.gmra.mrb[0].mxu0 %v309
    %v815 = vpop.f32.mrb[0].mxu0
    %v816 = vadd.f32 %v566, %v815
    %v817 = vpop.f32.mrb[0].mxu0
    %818 = vmatprep.mubr.f32.mxu0 %v323
    %819 = vmatmul.mubr.f32.gmra.mrb[0].mxu0 %v322
    %v820 = vpop.f32.mrb[0].mxu0
    %v821 = vadd.f32 %v566, %v820
    %v822 = vpop.f32.mrb[0].mxu0
    %823 = vmatprep.mubr.f32.mxu0 %v336
    %824 = vmatmul.mubr.f32.gmra.mrb[0].mxu0 %v335
    %v825 = vpop.f32.mrb[0].mxu0
    %v826 = vadd.f32 %v566, %v825
    %v827 = vpop.f32.mrb[0].mxu0
    %828 = vmatprep.mubr.f32.mxu0 %v349
    %829 = vmatmul.mubr.f32.gmra.mrb[0].mxu0 %v348
    %v830 = vpop.f32.mrb[0].mxu0
    %v831 = vadd.f32 %v566, %v830
    %v832 = vpop.f32.mrb[0].mxu0
    %833 = vdwg.mxu0
    %834 = vmatprep.subr.mxu0 0.0
    %835 = vmatpush1.msra.mxu0 %v393
    %836 = vmatprep.subr.mxu0 0.0
    %837 = vmatpush1.msra.mxu0 %v394
    %838 = vmatprep.subr.mxu0 0.0
    %839 = vmatpush1.msra.mxu0 %v395
    %840 = vmatprep.subr.mxu0 0.0
    %841 = vmatpush1.msra.mxu0 %v396
    %842 = vmatprep.subr.mxu0 0.0
    %843 = vmatpush1.msra.mxu0 %v397
    %844 = vmatprep.subr.mxu0 0.0
    %845 = vmatpush1.msra.mxu0 %v398
    %846 = vmatprep.subr.mxu0 0.0
    %847 = vmatpush1.msra.mxu0 %v399
    %848 = vmatprep.subr.mxu0 0.0
    %849 = vmatpush1.msra.mxu0 %v400
    %850 = vmatprep.subr.mxu0 0.0
    %851 = vmatpush1.msra.mxu0 %v401
    %852 = vmatprep.subr.mxu0 0.0
    %853 = vmatpush1.msra.mxu0 %v402
    %854 = vmatprep.subr.mxu0 0.0
    %855 = vmatpush1.msra.mxu0 %v403
    %856 = vmatprep.subr.mxu0 0.0
    %857 = vmatpush1.msra.mxu0 %v404
    %858 = vmatprep.subr.mxu0 0.0
    %859 = vmatpush1.msra.mxu0 %v405
    %860 = vmatprep.subr.mxu0 0.0
    %861 = vmatpush1.msra.mxu0 %v406
    %862 = vmatprep.subr.mxu0 0.0
    %863 = vmatpush1.msra.mxu0 %v407
    %864 = vmatprep.subr.mxu0 0.0
    %865 = vmatpush1.msra.mxu0 %v408
    %866 = vmatprep.subr.mxu0 0.0
    %867 = vmatpush1.msra.mxu0 %v409
    %868 = vmatprep.subr.mxu0 0.0
    %869 = vmatpush1.msra.mxu0 %v410
    %870 = vmatprep.subr.mxu0 0.0
    %871 = vmatpush1.msra.mxu0 %v411
    %872 = vmatprep.subr.mxu0 0.0
    %873 = vmatpush1.msra.mxu0 %v412
    %874 = vmatprep.subr.mxu0 0.0
    %875 = vmatpush1.msra.mxu0 %v413
    %876 = vmatprep.subr.mxu0 0.0
    %877 = vmatpush1.msra.mxu0 %v414
    %878 = vmatprep.subr.mxu0 0.0
    %879 = vmatpush1.msra.mxu0 %v415
    %880 = vmatprep.subr.mxu0 0.0
    %881 = vmatpush1.msra.mxu0 %v416
    %882 = vmatprep.subr.mxu0 0.0
    %883 = vmatpush1.msra.mxu0 %v417
    %884 = vmatprep.subr.mxu0 0.0
    %885 = vmatpush1.msra.mxu0 %v418
    %886 = vmatprep.subr.mxu0 0.0
    %887 = vmatpush1.msra.mxu0 %v419
    %888 = vmatprep.subr.mxu0 0.0
    %889 = vmatpush1.msra.mxu0 %v420
    %890 = vmatprep.subr.mxu0 0.0
    %891 = vmatpush1.msra.mxu0 %v421
    %892 = vmatprep.subr.mxu0 0.0
    %893 = vmatpush1.msra.mxu0 %v422
    %894 = vmatprep.subr.mxu0 0.0
    %895 = vmatpush1.msra.mxu0 %v423
    %896 = vmatprep.subr.mxu0 0.0
    %897 = vmatpush1.msra.mxu0 %v424
    %898 = vmatprep.mubr.f32.mxu0 %v39
    %899 = vmatmul.mubr.f32.gmra.mrb[0].mxu0 %v38
    %v900 = vpop.f32.mrb[0].mxu0
    %v901 = vadd.f32 %v711, %v900
    %v902 = vpop.f32.mrb[0].mxu0
    %903 = vmatprep.mubr.f32.mxu0 %v52
    %904 = vmatmul.mubr.f32.gmra.mrb[0].mxu0 %v51
    %v905 = vpop.f32.mrb[0].mxu0
    %v906 = vadd.f32 %v716, %v905
    %v907 = vpop.f32.mrb[0].mxu0
    %908 = vmatprep.mubr.f32.mxu0 %v65
    %909 = vmatmul.mubr.f32.gmra.mrb[0].mxu0 %v64
    %v910 = vpop.f32.mrb[0].mxu0
    %v911 = vadd.f32 %v721, %v910
    %v912 = vpop.f32.mrb[0].mxu0
    %913 = vmatprep.mubr.f32.mxu0 %v78
    %914 = vmatmul.mubr.f32.gmra.mrb[0].mxu0 %v77
    %v915 = vpop.f32.mrb[0].mxu0
    %v916 = vadd.f32 %v726, %v915
    %v917 = vpop.f32.mrb[0].mxu0
    %918 = vmatprep.mubr.f32.mxu0 %v91
    %919 = vmatmul.mubr.f32.gmra.mrb[0].mxu0 %v90
    %v920 = vpop.f32.mrb[0].mxu0
    %v921 = vadd.f32 %v731, %v920
    %v922 = vpop.f32.mrb[0].mxu0
    %923 = vmatprep.mubr.f32.mxu0 %v104
    %924 = vmatmul.mubr.f32.gmra.mrb[0].mxu0 %v103
    %v925 = vpop.f32.mrb[0].mxu0
    %v926 = vadd.f32 %v736, %v925
    %v927 = vpop.f32.mrb[0].mxu0
    %928 = vmatprep.mubr.f32.mxu0 %v117
    %929 = vmatmul.mubr.f32.gmra.mrb[0].mxu0 %v116
    %v930 = vpop.f32.mrb[0].mxu0
    %v931 = vadd.f32 %v741, %v930
    %v932 = vpop.f32.mrb[0].mxu0
    %933 = vmatprep.mubr.f32.mxu0 %v130
    %934 = vmatmul.mubr.f32.gmra.mrb[0].mxu0 %v129
    %v935 = vpop.f32.mrb[0].mxu0
    %v936 = vadd.f32 %v746, %v935
    %v937 = vpop.f32.mrb[0].mxu0
    %938 = vmatprep.mubr.f32.mxu0 %v143
    %939 = vmatmul.mubr.f32.gmra.mrb[0].mxu0 %v142
    %v940 = vpop.f32.mrb[0].mxu0
    %v941 = vadd.f32 %v751, %v940
    %v942 = vpop.f32.mrb[0].mxu0
    %943 = vmatprep.mubr.f32.mxu0 %v156
    %944 = vmatmul.mubr.f32.gmra.mrb[0].mxu0 %v155
    %v945 = vpop.f32.mrb[0].mxu0
    %v946 = vadd.f32 %v756, %v945
    %v947 = vpop.f32.mrb[0].mxu0
    %948 = vmatprep.mubr.f32.mxu0 %v169
    %949 = vmatmul.mubr.f32.gmra.mrb[0].mxu0 %v168
    %v950 = vpop.f32.mrb[0].mxu0
    %v951 = vadd.f32 %v761, %v950
    %v952 = vpop.f32.mrb[0].mxu0
    %953 = vmatprep.mubr.f32.mxu0 %v182
    %954 = vmatmul.mubr.f32.gmra.mrb[0].mxu0 %v181
    %v955 = vpop.f32.mrb[0].mxu0
    %v956 = vadd.f32 %v766, %v955
    %v957 = vpop.f32.mrb[0].mxu0
    %958 = vmatprep.mubr.f32.mxu0 %v195
    %959 = vmatmul.mubr.f32.gmra.mrb[0].mxu0 %v194
    %v960 = vpop.f32.mrb[0].mxu0
    %v961 = vadd.f32 %v771, %v960
    %v962 = vpop.f32.mrb[0].mxu0
    %963 = vmatprep.mubr.f32.mxu0 %v208
    %964 = vmatmul.mubr.f32.gmra.mrb[0].mxu0 %v207
    %v965 = vpop.f32.mrb[0].mxu0
    %v966 = vadd.f32 %v776, %v965
    %v967 = vpop.f32.mrb[0].mxu0
    %968 = vmatprep.mubr.f32.mxu0 %v221
    %969 = vmatmul.mubr.f32.gmra.mrb[0].mxu0 %v220
    %v970 = vpop.f32.mrb[0].mxu0
    %v971 = vadd.f32 %v781, %v970
    %v972 = vpop.f32.mrb[0].mxu0
    %973 = vmatprep.mubr.f32.mxu0 %v234
    %974 = vmatmul.mubr.f32.gmra.mrb[0].mxu0 %v233
    %v975 = vpop.f32.mrb[0].mxu0
    %v976 = vadd.f32 %v786, %v975
    %v977 = vpop.f32.mrb[0].mxu0
    %978 = vmatprep.mubr.f32.mxu0 %v247
    %979 = vmatmul.mubr.f32.gmra.mrb[0].mxu0 %v246
    %v980 = vpop.f32.mrb[0].mxu0
    %v981 = vadd.f32 %v791, %v980
    %v982 = vpop.f32.mrb[0].mxu0
    %983 = vmatprep.mubr.f32.mxu0 %v260
    %984 = vmatmul.mubr.f32.gmra.mrb[0].mxu0 %v259
    %v985 = vpop.f32.mrb[0].mxu0
    %v986 = vadd.f32 %v796, %v985
    %v987 = vpop.f32.mrb[0].mxu0
    %988 = vmatprep.mubr.f32.mxu0 %v273
    %989 = vmatmul.mubr.f32.gmra.mrb[0].mxu0 %v272
    %v990 = vpop.f32.mrb[0].mxu0
    %v991 = vadd.f32 %v801, %v990
    %v992 = vpop.f32.mrb[0].mxu0
    %993 = vmatprep.mubr.f32.mxu0 %v286
    %994 = vmatmul.mubr.f32.gmra.mrb[0].mxu0 %v285
    %v995 = vpop.f32.mrb[0].mxu0
    %v996 = vadd.f32 %v806, %v995
    %v997 = vpop.f32.mrb[0].mxu0
    %998 = vmatprep.mubr.f32.mxu0 %v299
    %999 = vmatmul.mubr.f32.gmra.mrb[0].mxu0 %v298
    %v1000 = vpop.f32.mrb[0].mxu0
    %v1001 = vadd.f32 %v811, %v1000
    %v1002 = vpop.f32.mrb[0].mxu0
    %1003 = vmatprep.mubr.f32.mxu0 %v312
    %1004 = vmatmul.mubr.f32.gmra.mrb[0].mxu0 %v311
    %v1005 = vpop.f32.mrb[0].mxu0
    %v1006 = vadd.f32 %v816, %v1005
    %v1007 = vpop.f32.mrb[0].mxu0
    %1008 = vmatprep.mubr.f32.mxu0 %v325
    %1009 = vmatmul.mubr.f32.gmra.mrb[0].mxu0 %v324
    %v1010 = vpop.f32.mrb[0].mxu0
    %v1011 = vadd.f32 %v821, %v1010
    %v1012 = vpop.f32.mrb[0].mxu0
    %1013 = vmatprep.mubr.f32.mxu0 %v338
    %1014 = vmatmul.mubr.f32.gmra.mrb[0].mxu0 %v337
    %v1015 = vpop.f32.mrb[0].mxu0
    %v1016 = vadd.f32 %v826, %v1015
    %v1017 = vpop.f32.mrb[0].mxu0
    %1018 = vmatprep.mubr.f32.mxu0 %v351
    %1019 = vmatmul.mubr.f32.gmra.mrb[0].mxu0 %v350
    %v1020 = vpop.f32.mrb[0].mxu0
    %v1021 = vadd.f32 %v831, %v1020
    %v1022 = vpop.f32.mrb[0].mxu0
    %1023 = vdwg.mxu0
    %1024 = vmatprep.subr.mxu0 0.0
    %1025 = vmatpush1.msra.mxu0 %v425
    %1026 = vmatprep.subr.mxu0 0.0
    %1027 = vmatpush1.msra.mxu0 %v426
    %1028 = vmatprep.subr.mxu0 0.0
    %1029 = vmatpush1.msra.mxu0 %v427
    %1030 = vmatprep.subr.mxu0 0.0
    %1031 = vmatpush1.msra.mxu0 %v428
    %1032 = vmatprep.subr.mxu0 0.0
    %1033 = vmatpush1.msra.mxu0 %v429
    %1034 = vmatprep.subr.mxu0 0.0
    %1035 = vmatpush1.msra.mxu0 %v430
    %1036 = vmatprep.subr.mxu0 0.0
    %1037 = vmatpush1.msra.mxu0 %v431
    %1038 = vmatprep.subr.mxu0 0.0
    %1039 = vmatpush1.msra.mxu0 %v432
    %1040 = vmatprep.subr.mxu0 0.0
    %1041 = vmatpush1.msra.mxu0 %v433
    %1042 = vmatprep.subr.mxu0 0.0
    %1043 = vmatpush1.msra.mxu0 %v434
    %1044 = vmatprep.subr.mxu0 0.0
    %1045 = vmatpush1.msra.mxu0 %v435
    %1046 = vmatprep.subr.mxu0 0.0
    %1047 = vmatpush1.msra.mxu0 %v436
    %1048 = vmatprep.subr.mxu0 0.0
    %1049 = vmatpush1.msra.mxu0 %v437
    %1050 = vmatprep.subr.mxu0 0.0
    %1051 = vmatpush1.msra.mxu0 %v438
    %1052 = vmatprep.subr.mxu0 0.0
    %1053 = vmatpush1.msra.mxu0 %v439
    %1054 = vmatprep.subr.mxu0 0.0
    %1055 = vmatpush1.msra.mxu0 %v440
    %1056 = vmatprep.subr.mxu0 0.0
    %1057 = vmatpush1.msra.mxu0 %v441
    %1058 = vmatprep.subr.mxu0 0.0
    %1059 = vmatpush1.msra.mxu0 %v442
    %1060 = vmatprep.subr.mxu0 0.0
    %1061 = vmatpush1.msra.mxu0 %v443
    %1062 = vmatprep.subr.mxu0 0.0
    %1063 = vmatpush1.msra.mxu0 %v444
    %1064 = vmatprep.subr.mxu0 0.0
    %1065 = vmatpush1.msra.mxu0 %v445
    %1066 = vmatprep.subr.mxu0 0.0
    %1067 = vmatpush1.msra.mxu0 %v446
    %1068 = vmatprep.subr.mxu0 0.0
    %1069 = vmatpush1.msra.mxu0 %v447
    %1070 = vmatprep.subr.mxu0 0.0
    %1071 = vmatpush1.msra.mxu0 %v448
    %1072 = vmatprep.subr.mxu0 0.0
    %1073 = vmatpush1.msra.mxu0 %v449
    %1074 = vmatprep.subr.mxu0 0.0
    %1075 = vmatpush1.msra.mxu0 %v450
    %1076 = vmatprep.subr.mxu0 0.0
    %1077 = vmatpush1.msra.mxu0 %v451
    %1078 = vmatprep.subr.mxu0 0.0
    %1079 = vmatpush1.msra.mxu0 %v452
    %1080 = vmatprep.subr.mxu0 0.0
    %1081 = vmatpush1.msra.mxu0 %v453
    %1082 = vmatprep.subr.mxu0 0.0
    %1083 = vmatpush1.msra.mxu0 %v454
    %1084 = vmatprep.subr.mxu0 0.0
    %1085 = vmatpush1.msra.mxu0 %v455
    %1086 = vmatprep.subr.mxu0 0.0
    %1087 = vmatpush1.msra.mxu0 %v456
    %1088 = vmatprep.mubr.f32.mxu0 %v41
    %1089 = vmatmul.mubr.f32.gmra.mrb[0].mxu0 %v40
    %v1090 = vpop.f32.mrb[0].mxu0
    %v1091 = vadd.f32 %v901, %v1090
    %v1092 = vpop.f32.mrb[0].mxu0
    %1093 = vmatprep.mubr.f32.mxu0 %v54
    %1094 = vmatmul.mubr.f32.gmra.mrb[0].mxu0 %v53
    %v1095 = vpop.f32.mrb[0].mxu0
    %v1096 = vadd.f32 %v906, %v1095
    %v1097 = vpop.f32.mrb[0].mxu0
    %1098 = vmatprep.mubr.f32.mxu0 %v67
    %1099 = vmatmul.mubr.f32.gmra.mrb[0].mxu0 %v66
    %v1100 = vpop.f32.mrb[0].mxu0
    %v1101 = vadd.f32 %v911, %v1100
    %v1102 = vpop.f32.mrb[0].mxu0
    %1103 = vmatprep.mubr.f32.mxu0 %v80
    %1104 = vmatmul.mubr.f32.gmra.mrb[0].mxu0 %v79
    %v1105 = vpop.f32.mrb[0].mxu0
    %v1106 = vadd.f32 %v916, %v1105
    %v1107 = vpop.f32.mrb[0].mxu0
    %1108 = vmatprep.mubr.f32.mxu0 %v93
    %1109 = vmatmul.mubr.f32.gmra.mrb[0].mxu0 %v92
    %v1110 = vpop.f32.mrb[0].mxu0
    %v1111 = vadd.f32 %v921, %v1110
    %v1112 = vpop.f32.mrb[0].mxu0
    %1113 = vmatprep.mubr.f32.mxu0 %v106
    %1114 = vmatmul.mubr.f32.gmra.mrb[0].mxu0 %v105
    %v1115 = vpop.f32.mrb[0].mxu0
    %v1116 = vadd.f32 %v926, %v1115
    %v1117 = vpop.f32.mrb[0].mxu0
    %1118 = vmatprep.mubr.f32.mxu0 %v119
    %1119 = vmatmul.mubr.f32.gmra.mrb[0].mxu0 %v118
    %v1120 = vpop.f32.mrb[0].mxu0
    %v1121 = vadd.f32 %v931, %v1120
    %v1122 = vpop.f32.mrb[0].mxu0
    %1123 = vmatprep.mubr.f32.mxu0 %v132
    %1124 = vmatmul.mubr.f32.gmra.mrb[0].mxu0 %v131
    %v1125 = vpop.f32.mrb[0].mxu0
    %v1126 = vadd.f32 %v936, %v1125
    %v1127 = vpop.f32.mrb[0].mxu0
    %1128 = vmatprep.mubr.f32.mxu0 %v145
    %1129 = vmatmul.mubr.f32.gmra.mrb[0].mxu0 %v144
    %v1130 = vpop.f32.mrb[0].mxu0
    %v1131 = vadd.f32 %v941, %v1130
    %v1132 = vpop.f32.mrb[0].mxu0
    %1133 = vmatprep.mubr.f32.mxu0 %v158
    %1134 = vmatmul.mubr.f32.gmra.mrb[0].mxu0 %v157
    %v1135 = vpop.f32.mrb[0].mxu0
    %v1136 = vadd.f32 %v946, %v1135
    %v1137 = vpop.f32.mrb[0].mxu0
    %1138 = vmatprep.mubr.f32.mxu0 %v171
    %1139 = vmatmul.mubr.f32.gmra.mrb[0].mxu0 %v170
    %v1140 = vpop.f32.mrb[0].mxu0
    %v1141 = vadd.f32 %v951, %v1140
    %v1142 = vpop.f32.mrb[0].mxu0
    %1143 = vmatprep.mubr.f32.mxu0 %v184
    %1144 = vmatmul.mubr.f32.gmra.mrb[0].mxu0 %v183
    %v1145 = vpop.f32.mrb[0].mxu0
    %v1146 = vadd.f32 %v956, %v1145
    %v1147 = vpop.f32.mrb[0].mxu0
    %1148 = vmatprep.mubr.f32.mxu0 %v197
    %1149 = vmatmul.mubr.f32.gmra.mrb[0].mxu0 %v196
    %v1150 = vpop.f32.mrb[0].mxu0
    %v1151 = vadd.f32 %v961, %v1150
    %v1152 = vpop.f32.mrb[0].mxu0
    %1153 = vmatprep.mubr.f32.mxu0 %v210
    %1154 = vmatmul.mubr.f32.gmra.mrb[0].mxu0 %v209
    %v1155 = vpop.f32.mrb[0].mxu0
    %v1156 = vadd.f32 %v966, %v1155
    %v1157 = vpop.f32.mrb[0].mxu0
    %1158 = vmatprep.mubr.f32.mxu0 %v223
    %1159 = vmatmul.mubr.f32.gmra.mrb[0].mxu0 %v222
    %v1160 = vpop.f32.mrb[0].mxu0
    %v1161 = vadd.f32 %v971, %v1160
    %v1162 = vpop.f32.mrb[0].mxu0
    %1163 = vmatprep.mubr.f32.mxu0 %v236
    %1164 = vmatmul.mubr.f32.gmra.mrb[0].mxu0 %v235
    %v1165 = vpop.f32.mrb[0].mxu0
    %v1166 = vadd.f32 %v976, %v1165
    %v1167 = vpop.f32.mrb[0].mxu0
    %1168 = vmatprep.mubr.f32.mxu0 %v249
    %1169 = vmatmul.mubr.f32.gmra.mrb[0].mxu0 %v248
    %v1170 = vpop.f32.mrb[0].mxu0
    %v1171 = vadd.f32 %v981, %v1170
    %v1172 = vpop.f32.mrb[0].mxu0
    %1173 = vmatprep.mubr.f32.mxu0 %v262
    %1174 = vmatmul.mubr.f32.gmra.mrb[0].mxu0 %v261
    %v1175 = vpop.f32.mrb[0].mxu0
    %v1176 = vadd.f32 %v986, %v1175
    %v1177 = vpop.f32.mrb[0].mxu0
    %1178 = vmatprep.mubr.f32.mxu0 %v275
    %1179 = vmatmul.mubr.f32.gmra.mrb[0].mxu0 %v274
    %v1180 = vpop.f32.mrb[0].mxu0
    %v1181 = vadd.f32 %v991, %v1180
    %v1182 = vpop.f32.mrb[0].mxu0
    %1183 = vmatprep.mubr.f32.mxu0 %v288
    %1184 = vmatmul.mubr.f32.gmra.mrb[0].mxu0 %v287
    %v1185 = vpop.f32.mrb[0].mxu0
    %v1186 = vadd.f32 %v996, %v1185
    %v1187 = vpop.f32.mrb[0].mxu0
    %1188 = vmatprep.mubr.f32.mxu0 %v301
    %1189 = vmatmul.mubr.f32.gmra.mrb[0].mxu0 %v300
    %v1190 = vpop.f32.mrb[0].mxu0
    %v1191 = vadd.f32 %v1001, %v1190
    %v1192 = vpop.f32.mrb[0].mxu0
    %1193 = vmatprep.mubr.f32.mxu0 %v314
    %1194 = vmatmul.mubr.f32.gmra.mrb[0].mxu0 %v313
    %v1195 = vpop.f32.mrb[0].mxu0
    %v1196 = vadd.f32 %v1006, %v1195
    %v1197 = vpop.f32.mrb[0].mxu0
    %1198 = vmatprep.mubr.f32.mxu0 %v327
    %1199 = vmatmul.mubr.f32.gmra.mrb[0].mxu0 %v326
    %v1200 = vpop.f32.mrb[0].mxu0
    %v1201 = vadd.f32 %v1011, %v1200
    %v1202 = vpop.f32.mrb[0].mxu0
    %1203 = vmatprep.mubr.f32.mxu0 %v340
    %1204 = vmatmul.mubr.f32.gmra.mrb[0].mxu0 %v339
    %v1205 = vpop.f32.mrb[0].mxu0
    %v1206 = vadd.f32 %v1016, %v1205
    %v1207 = vpop.f32.mrb[0].mxu0
    %1208 = vmatprep.mubr.f32.mxu0 %v353
    %1209 = vmatmul.mubr.f32.gmra.mrb[0].mxu0 %v352
    %v1210 = vpop.f32.mrb[0].mxu0
    %v1211 = vadd.f32 %v1021, %v1210
    %v1212 = vpop.f32.mrb[0].mxu0
    %1213 = vdwg.mxu0
    %1214 = vmatprep.subr.mxu0 0.0
    %1215 = vmatpush1.msra.mxu0 %v457
    %1216 = vmatprep.subr.mxu0 0.0
    %1217 = vmatpush1.msra.mxu0 %v458
    %1218 = vmatprep.subr.mxu0 0.0
    %1219 = vmatpush1.msra.mxu0 %v459
    %1220 = vmatprep.subr.mxu0 0.0
    %1221 = vmatpush1.msra.mxu0 %v460
    %1222 = vmatprep.subr.mxu0 0.0
    %1223 = vmatpush1.msra.mxu0 %v461
    %1224 = vmatprep.subr.mxu0 0.0
    %1225 = vmatpush1.msra.mxu0 %v462
    %1226 = vmatprep.subr.mxu0 0.0
    %1227 = vmatpush1.msra.mxu0 %v463
    %1228 = vmatprep.subr.mxu0 0.0
    %1229 = vmatpush1.msra.mxu0 %v464
    %1230 = vmatprep.subr.mxu0 0.0
    %1231 = vmatpush1.msra.mxu0 %v465
    %1232 = vmatprep.subr.mxu0 0.0
    %1233 = vmatpush1.msra.mxu0 %v466
    %1234 = vmatprep.subr.mxu0 0.0
    %1235 = vmatpush1.msra.mxu0 %v467
    %1236 = vmatprep.subr.mxu0 0.0
    %1237 = vmatpush1.msra.mxu0 %v468
    %1238 = vmatprep.subr.mxu0 0.0
    %1239 = vmatpush1.msra.mxu0 %v469
    %1240 = vmatprep.subr.mxu0 0.0
    %1241 = vmatpush1.msra.mxu0 %v470
    %1242 = vmatprep.subr.mxu0 0.0
    %1243 = vmatpush1.msra.mxu0 %v471
    %1244 = vmatprep.subr.mxu0 0.0
    %1245 = vmatpush1.msra.mxu0 %v472
    %1246 = vmatprep.subr.mxu0 0.0
    %1247 = vmatpush1.msra.mxu0 %v473
    %1248 = vmatprep.subr.mxu0 0.0
    %1249 = vmatpush1.msra.mxu0 %v474
    %1250 = vmatprep.subr.mxu0 0.0
    %1251 = vmatpush1.msra.mxu0 %v475
    %1252 = vmatprep.subr.mxu0 0.0
    %1253 = vmatpush1.msra.mxu0 %v476
    %1254 = vmatprep.subr.mxu0 0.0
    %1255 = vmatpush1.msra.mxu0 %v477
    %1256 = vmatprep.subr.mxu0 0.0
    %1257 = vmatpush1.msra.mxu0 %v478
    %1258 = vmatprep.subr.mxu0 0.0
    %1259 = vmatpush1.msra.mxu0 %v479
    %1260 = vmatprep.subr.mxu0 0.0
    %1261 = vmatpush1.msra.mxu0 %v480
    %1262 = vmatprep.subr.mxu0 0.0
    %1263 = vmatpush1.msra.mxu0 %v481
    %1264 = vmatprep.subr.mxu0 0.0
    %1265 = vmatpush1.msra.mxu0 %v482
    %1266 = vmatprep.subr.mxu0 0.0
    %1267 = vmatpush1.msra.mxu0 %v483
    %1268 = vmatprep.subr.mxu0 0.0
    %1269 = vmatpush1.msra.mxu0 %v484
    %1270 = vmatprep.subr.mxu0 0.0
    %1271 = vmatpush1.msra.mxu0 %v485
    %1272 = vmatprep.subr.mxu0 0.0
    %1273 = vmatpush1.msra.mxu0 %v486
    %1274 = vmatprep.subr.mxu0 0.0
    %1275 = vmatpush1.msra.mxu0 %v487
    %1276 = vmatprep.subr.mxu0 0.0
    %1277 = vmatpush1.msra.mxu0 %v488
    %1278 = vmatprep.mubr.f32.mxu0 %v43
    %1279 = vmatmul.mubr.f32.gmra.mrb[0].mxu0 %v42
    %v1280 = vpop.f32.mrb[0].mxu0
    %v1281 = vadd.f32 %v1091, %v1280
    %v1282 = vpop.f32.mrb[0].mxu0
    %1283 = vmatprep.mubr.f32.mxu0 %v56
    %1284 = vmatmul.mubr.f32.gmra.mrb[0].mxu0 %v55
    %v1285 = vpop.f32.mrb[0].mxu0
    %v1286 = vadd.f32 %v1096, %v1285
    %v1287 = vpop.f32.mrb[0].mxu0
    %1288 = vmatprep.mubr.f32.mxu0 %v69
    %1289 = vmatmul.mubr.f32.gmra.mrb[0].mxu0 %v68
    %v1290 = vpop.f32.mrb[0].mxu0
    %v1291 = vadd.f32 %v1101, %v1290
    %v1292 = vpop.f32.mrb[0].mxu0
    %1293 = vmatprep.mubr.f32.mxu0 %v82
    %1294 = vmatmul.mubr.f32.gmra.mrb[0].mxu0 %v81
    %v1295 = vpop.f32.mrb[0].mxu0
    %v1296 = vadd.f32 %v1106, %v1295
    %v1297 = vpop.f32.mrb[0].mxu0
    %1298 = vmatprep.mubr.f32.mxu0 %v95
    %1299 = vmatmul.mubr.f32.gmra.mrb[0].mxu0 %v94
    %v1300 = vpop.f32.mrb[0].mxu0
    %v1301 = vadd.f32 %v1111, %v1300
    %v1302 = vpop.f32.mrb[0].mxu0
    %1303 = vmatprep.mubr.f32.mxu0 %v108
    %1304 = vmatmul.mubr.f32.gmra.mrb[0].mxu0 %v107
    %v1305 = vpop.f32.mrb[0].mxu0
    %v1306 = vadd.f32 %v1116, %v1305
    %v1307 = vpop.f32.mrb[0].mxu0
    %1308 = vmatprep.mubr.f32.mxu0 %v121
    %1309 = vmatmul.mubr.f32.gmra.mrb[0].mxu0 %v120
    %v1310 = vpop.f32.mrb[0].mxu0
    %v1311 = vadd.f32 %v1121, %v1310
    %v1312 = vpop.f32.mrb[0].mxu0
    %1313 = vmatprep.mubr.f32.mxu0 %v134
    %1314 = vmatmul.mubr.f32.gmra.mrb[0].mxu0 %v133
    %v1315 = vpop.f32.mrb[0].mxu0
    %v1316 = vadd.f32 %v1126, %v1315
    %v1317 = vpop.f32.mrb[0].mxu0
    %1318 = vmatprep.mubr.f32.mxu0 %v147
    %1319 = vmatmul.mubr.f32.gmra.mrb[0].mxu0 %v146
    %v1320 = vpop.f32.mrb[0].mxu0
    %v1321 = vadd.f32 %v1131, %v1320
    %v1322 = vpop.f32.mrb[0].mxu0
    %1323 = vmatprep.mubr.f32.mxu0 %v160
    %1324 = vmatmul.mubr.f32.gmra.mrb[0].mxu0 %v159
    %v1325 = vpop.f32.mrb[0].mxu0
    %v1326 = vadd.f32 %v1136, %v1325
    %v1327 = vpop.f32.mrb[0].mxu0
    %1328 = vmatprep.mubr.f32.mxu0 %v173
    %1329 = vmatmul.mubr.f32.gmra.mrb[0].mxu0 %v172
    %v1330 = vpop.f32.mrb[0].mxu0
    %v1331 = vadd.f32 %v1141, %v1330
    %v1332 = vpop.f32.mrb[0].mxu0
    %1333 = vmatprep.mubr.f32.mxu0 %v186
    %1334 = vmatmul.mubr.f32.gmra.mrb[0].mxu0 %v185
    %v1335 = vpop.f32.mrb[0].mxu0
    %v1336 = vadd.f32 %v1146, %v1335
    %v1337 = vpop.f32.mrb[0].mxu0
    %1338 = vmatprep.mubr.f32.mxu0 %v199
    %1339 = vmatmul.mubr.f32.gmra.mrb[0].mxu0 %v198
    %v1340 = vpop.f32.mrb[0].mxu0
    %v1341 = vadd.f32 %v1151, %v1340
    %v1342 = vpop.f32.mrb[0].mxu0
    %1343 = vmatprep.mubr.f32.mxu0 %v212
    %1344 = vmatmul.mubr.f32.gmra.mrb[0].mxu0 %v211
    %v1345 = vpop.f32.mrb[0].mxu0
    %v1346 = vadd.f32 %v1156, %v1345
    %v1347 = vpop.f32.mrb[0].mxu0
    %1348 = vmatprep.mubr.f32.mxu0 %v225
    %1349 = vmatmul.mubr.f32.gmra.mrb[0].mxu0 %v224
    %v1350 = vpop.f32.mrb[0].mxu0
    %v1351 = vadd.f32 %v1161, %v1350
    %v1352 = vpop.f32.mrb[0].mxu0
    %1353 = vmatprep.mubr.f32.mxu0 %v238
    %1354 = vmatmul.mubr.f32.gmra.mrb[0].mxu0 %v237
    %v1355 = vpop.f32.mrb[0].mxu0
    %v1356 = vadd.f32 %v1166, %v1355
    %v1357 = vpop.f32.mrb[0].mxu0
    %1358 = vmatprep.mubr.f32.mxu0 %v251
    %1359 = vmatmul.mubr.f32.gmra.mrb[0].mxu0 %v250
    %v1360 = vpop.f32.mrb[0].mxu0
    %v1361 = vadd.f32 %v1171, %v1360
    %v1362 = vpop.f32.mrb[0].mxu0
    %1363 = vmatprep.mubr.f32.mxu0 %v264
    %1364 = vmatmul.mubr.f32.gmra.mrb[0].mxu0 %v263
    %v1365 = vpop.f32.mrb[0].mxu0
    %v1366 = vadd.f32 %v1176, %v1365
    %v1367 = vpop.f32.mrb[0].mxu0
    %1368 = vmatprep.mubr.f32.mxu0 %v277
    %1369 = vmatmul.mubr.f32.gmra.mrb[0].mxu0 %v276
    %v1370 = vpop.f32.mrb[0].mxu0
    %v1371 = vadd.f32 %v1181, %v1370
    %v1372 = vpop.f32.mrb[0].mxu0
    %1373 = vmatprep.mubr.f32.mxu0 %v290
    %1374 = vmatmul.mubr.f32.gmra.mrb[0].mxu0 %v289
    %v1375 = vpop.f32.mrb[0].mxu0
    %v1376 = vadd.f32 %v1186, %v1375
    %v1377 = vpop.f32.mrb[0].mxu0
    %1378 = vmatprep.mubr.f32.mxu0 %v303
    %1379 = vmatmul.mubr.f32.gmra.mrb[0].mxu0 %v302
    %v1380 = vpop.f32.mrb[0].mxu0
    %v1381 = vadd.f32 %v1191, %v1380
    %v1382 = vpop.f32.mrb[0].mxu0
    %1383 = vmatprep.mubr.f32.mxu0 %v316
    %1384 = vmatmul.mubr.f32.gmra.mrb[0].mxu0 %v315
    %v1385 = vpop.f32.mrb[0].mxu0
    %v1386 = vadd.f32 %v1196, %v1385
    %v1387 = vpop.f32.mrb[0].mxu0
    %1388 = vmatprep.mubr.f32.mxu0 %v329
    %1389 = vmatmul.mubr.f32.gmra.mrb[0].mxu0 %v328
    %v1390 = vpop.f32.mrb[0].mxu0
    %v1391 = vadd.f32 %v1201, %v1390
    %v1392 = vpop.f32.mrb[0].mxu0
    %1393 = vmatprep.mubr.f32.mxu0 %v342
    %1394 = vmatmul.mubr.f32.gmra.mrb[0].mxu0 %v341
    %v1395 = vpop.f32.mrb[0].mxu0
    %v1396 = vadd.f32 %v1206, %v1395
    %v1397 = vpop.f32.mrb[0].mxu0
    %1398 = vmatprep.mubr.f32.mxu0 %v355
    %1399 = vmatmul.mubr.f32.gmra.mrb[0].mxu0 %v354
    %v1400 = vpop.f32.mrb[0].mxu0
    %v1401 = vadd.f32 %v1211, %v1400
    %v1402 = vpop.f32.mrb[0].mxu0
    %1403 = vdwg.mxu0
    %1404 = vmatprep.subr.mxu0 0.0
    %1405 = vmatpush1.msra.mxu0 %v489
    %1406 = vmatprep.subr.mxu0 0.0
    %1407 = vmatpush1.msra.mxu0 %v490
    %1408 = vmatprep.subr.mxu0 0.0
    %1409 = vmatpush1.msra.mxu0 %v491
    %1410 = vmatprep.subr.mxu0 0.0
    %1411 = vmatpush1.msra.mxu0 %v492
    %1412 = vmatprep.subr.mxu0 0.0
    %1413 = vmatpush1.msra.mxu0 %v493
    %1414 = vmatprep.subr.mxu0 0.0
    %1415 = vmatpush1.msra.mxu0 %v494
    %1416 = vmatprep.subr.mxu0 0.0
    %1417 = vmatpush1.msra.mxu0 %v495
    %1418 = vmatprep.subr.mxu0 0.0
    %1419 = vmatpush1.msra.mxu0 %v496
    %1420 = vmatprep.subr.mxu0 0.0
    %1421 = vmatpush1.msra.mxu0 %v497
    %1422 = vmatprep.subr.mxu0 0.0
    %1423 = vmatpush1.msra.mxu0 %v498
    %1424 = vmatprep.subr.mxu0 0.0
    %1425 = vmatpush1.msra.mxu0 %v499
    %1426 = vmatprep.subr.mxu0 0.0
    %1427 = vmatpush1.msra.mxu0 %v500
    %1428 = vmatprep.subr.mxu0 0.0
    %1429 = vmatpush1.msra.mxu0 %v501
    %1430 = vmatprep.subr.mxu0 0.0
    %1431 = vmatpush1.msra.mxu0 %v502
    %1432 = vmatprep.subr.mxu0 0.0
    %1433 = vmatpush1.msra.mxu0 %v503
    %1434 = vmatprep.subr.mxu0 0.0
    %1435 = vmatpush1.msra.mxu0 %v504
    %1436 = vmatprep.subr.mxu0 0.0
    %1437 = vmatpush1.msra.mxu0 %v505
    %1438 = vmatprep.subr.mxu0 0.0
    %1439 = vmatpush1.msra.mxu0 %v506
    %1440 = vmatprep.subr.mxu0 0.0
    %1441 = vmatpush1.msra.mxu0 %v507
    %1442 = vmatprep.subr.mxu0 0.0
    %1443 = vmatpush1.msra.mxu0 %v508
    %1444 = vmatprep.subr.mxu0 0.0
    %1445 = vmatpush1.msra.mxu0 %v509
    %1446 = vmatprep.subr.mxu0 0.0
    %1447 = vmatpush1.msra.mxu0 %v510
    %1448 = vmatprep.subr.mxu0 0.0
    %1449 = vmatpush1.msra.mxu0 %v511
    %1450 = vmatprep.subr.mxu0 0.0
    %1451 = vmatpush1.msra.mxu0 %v512
    %1452 = vmatprep.subr.mxu0 0.0
    %1453 = vmatpush1.msra.mxu0 %v513
    %1454 = vmatprep.subr.mxu0 0.0
    %1455 = vmatpush1.msra.mxu0 %v514
    %1456 = vmatprep.subr.mxu0 0.0
    %1457 = vmatpush1.msra.mxu0 %v515
    %1458 = vmatprep.subr.mxu0 0.0
    %1459 = vmatpush1.msra.mxu0 %v516
    %1460 = vmatprep.subr.mxu0 0.0
    %1461 = vmatpush1.msra.mxu0 %v517
    %1462 = vmatprep.subr.mxu0 0.0
    %1463 = vmatpush1.msra.mxu0 %v518
    %1464 = vmatprep.subr.mxu0 0.0
    %1465 = vmatpush1.msra.mxu0 %v519
    %1466 = vmatprep.subr.mxu0 0.0
    %1467 = vmatpush1.msra.mxu0 %v520
    %1468 = vmatprep.mubr.f32.mxu0 %v45
    %1469 = vmatmul.mubr.f32.gmra.mrb[0].mxu0 %v44
    %v1470 = vpop.f32.mrb[0].mxu0
    %v1471 = vadd.f32 %v1281, %v1470
    %v1472 = vpop.f32.mrb[0].mxu0
    %1473 = vmatprep.mubr.f32.mxu0 %v58
    %1474 = vmatmul.mubr.f32.gmra.mrb[0].mxu0 %v57
    %v1475 = vpop.f32.mrb[0].mxu0
    %v1476 = vadd.f32 %v1286, %v1475
    %v1477 = vpop.f32.mrb[0].mxu0
    %1478 = vmatprep.mubr.f32.mxu0 %v71
    %1479 = vmatmul.mubr.f32.gmra.mrb[0].mxu0 %v70
    %v1480 = vpop.f32.mrb[0].mxu0
    %v1481 = vadd.f32 %v1291, %v1480
    %v1482 = vpop.f32.mrb[0].mxu0
    %1483 = vmatprep.mubr.f32.mxu0 %v84
    %1484 = vmatmul.mubr.f32.gmra.mrb[0].mxu0 %v83
    %v1485 = vpop.f32.mrb[0].mxu0
    %v1486 = vadd.f32 %v1296, %v1485
    %v1487 = vpop.f32.mrb[0].mxu0
    %1488 = vmatprep.mubr.f32.mxu0 %v97
    %1489 = vmatmul.mubr.f32.gmra.mrb[0].mxu0 %v96
    %v1490 = vpop.f32.mrb[0].mxu0
    %v1491 = vadd.f32 %v1301, %v1490
    %v1492 = vpop.f32.mrb[0].mxu0
    %1493 = vmatprep.mubr.f32.mxu0 %v110
    %1494 = vmatmul.mubr.f32.gmra.mrb[0].mxu0 %v109
    %v1495 = vpop.f32.mrb[0].mxu0
    %v1496 = vadd.f32 %v1306, %v1495
    %v1497 = vpop.f32.mrb[0].mxu0
    %1498 = vmatprep.mubr.f32.mxu0 %v123
    %1499 = vmatmul.mubr.f32.gmra.mrb[0].mxu0 %v122
    %v1500 = vpop.f32.mrb[0].mxu0
    %v1501 = vadd.f32 %v1311, %v1500
    %v1502 = vpop.f32.mrb[0].mxu0
    %1503 = vmatprep.mubr.f32.mxu0 %v136
    %1504 = vmatmul.mubr.f32.gmra.mrb[0].mxu0 %v135
    %v1505 = vpop.f32.mrb[0].mxu0
    %v1506 = vadd.f32 %v1316, %v1505
    %v1507 = vpop.f32.mrb[0].mxu0
    %1508 = vmatprep.mubr.f32.mxu0 %v149
    %1509 = vmatmul.mubr.f32.gmra.mrb[0].mxu0 %v148
    %v1510 = vpop.f32.mrb[0].mxu0
    %v1511 = vadd.f32 %v1321, %v1510
    %v1512 = vpop.f32.mrb[0].mxu0
    %1513 = vmatprep.mubr.f32.mxu0 %v162
    %1514 = vmatmul.mubr.f32.gmra.mrb[0].mxu0 %v161
    %v1515 = vpop.f32.mrb[0].mxu0
    %v1516 = vadd.f32 %v1326, %v1515
    %v1517 = vpop.f32.mrb[0].mxu0
    %1518 = vmatprep.mubr.f32.mxu0 %v175
    %1519 = vmatmul.mubr.f32.gmra.mrb[0].mxu0 %v174
    %v1520 = vpop.f32.mrb[0].mxu0
    %v1521 = vadd.f32 %v1331, %v1520
    %v1522 = vpop.f32.mrb[0].mxu0
    %1523 = vmatprep.mubr.f32.mxu0 %v188
    %1524 = vmatmul.mubr.f32.gmra.mrb[0].mxu0 %v187
    %v1525 = vpop.f32.mrb[0].mxu0
    %v1526 = vadd.f32 %v1336, %v1525
    %v1527 = vpop.f32.mrb[0].mxu0
    %1528 = vmatprep.mubr.f32.mxu0 %v201
    %1529 = vmatmul.mubr.f32.gmra.mrb[0].mxu0 %v200
    %v1530 = vpop.f32.mrb[0].mxu0
    %v1531 = vadd.f32 %v1341, %v1530
    %v1532 = vpop.f32.mrb[0].mxu0
    %1533 = vmatprep.mubr.f32.mxu0 %v214
    %1534 = vmatmul.mubr.f32.gmra.mrb[0].mxu0 %v213
    %v1535 = vpop.f32.mrb[0].mxu0
    %v1536 = vadd.f32 %v1346, %v1535
    %v1537 = vpop.f32.mrb[0].mxu0
    %1538 = vmatprep.mubr.f32.mxu0 %v227
    %1539 = vmatmul.mubr.f32.gmra.mrb[0].mxu0 %v226
    %v1540 = vpop.f32.mrb[0].mxu0
    %v1541 = vadd.f32 %v1351, %v1540
    %v1542 = vpop.f32.mrb[0].mxu0
    %1543 = vmatprep.mubr.f32.mxu0 %v240
    %1544 = vmatmul.mubr.f32.gmra.mrb[0].mxu0 %v239
    %v1545 = vpop.f32.mrb[0].mxu0
    %v1546 = vadd.f32 %v1356, %v1545
    %v1547 = vpop.f32.mrb[0].mxu0
    %1548 = vmatprep.mubr.f32.mxu0 %v253
    %1549 = vmatmul.mubr.f32.gmra.mrb[0].mxu0 %v252
    %v1550 = vpop.f32.mrb[0].mxu0
    %v1551 = vadd.f32 %v1361, %v1550
    %v1552 = vpop.f32.mrb[0].mxu0
    %1553 = vmatprep.mubr.f32.mxu0 %v266
    %1554 = vmatmul.mubr.f32.gmra.mrb[0].mxu0 %v265
    %v1555 = vpop.f32.mrb[0].mxu0
    %v1556 = vadd.f32 %v1366, %v1555
    %v1557 = vpop.f32.mrb[0].mxu0
    %1558 = vmatprep.mubr.f32.mxu0 %v279
    %1559 = vmatmul.mubr.f32.gmra.mrb[0].mxu0 %v278
    %v1560 = vpop.f32.mrb[0].mxu0
    %v1561 = vadd.f32 %v1371, %v1560
    %v1562 = vpop.f32.mrb[0].mxu0
    %1563 = vmatprep.mubr.f32.mxu0 %v292
    %1564 = vmatmul.mubr.f32.gmra.mrb[0].mxu0 %v291
    %v1565 = vpop.f32.mrb[0].mxu0
    %v1566 = vadd.f32 %v1376, %v1565
    %v1567 = vpop.f32.mrb[0].mxu0
    %1568 = vmatprep.mubr.f32.mxu0 %v305
    %1569 = vmatmul.mubr.f32.gmra.mrb[0].mxu0 %v304
    %v1570 = vpop.f32.mrb[0].mxu0
    %v1571 = vadd.f32 %v1381, %v1570
    %v1572 = vpop.f32.mrb[0].mxu0
    %1573 = vmatprep.mubr.f32.mxu0 %v318
    %1574 = vmatmul.mubr.f32.gmra.mrb[0].mxu0 %v317
    %v1575 = vpop.f32.mrb[0].mxu0
    %v1576 = vadd.f32 %v1386, %v1575
    %v1577 = vpop.f32.mrb[0].mxu0
    %1578 = vmatprep.mubr.f32.mxu0 %v331
    %1579 = vmatmul.mubr.f32.gmra.mrb[0].mxu0 %v330
    %v1580 = vpop.f32.mrb[0].mxu0
    %v1581 = vadd.f32 %v1391, %v1580
    %v1582 = vpop.f32.mrb[0].mxu0
    %1583 = vmatprep.mubr.f32.mxu0 %v344
    %1584 = vmatmul.mubr.f32.gmra.mrb[0].mxu0 %v343
    %v1585 = vpop.f32.mrb[0].mxu0
    %v1586 = vadd.f32 %v1396, %v1585
    %v1587 = vpop.f32.mrb[0].mxu0
    %1588 = vmatprep.mubr.f32.mxu0 %v357
    %1589 = vmatmul.mubr.f32.gmra.mrb[0].mxu0 %v356
    %v1590 = vpop.f32.mrb[0].mxu0
    %v1591 = vadd.f32 %v1401, %v1590
    %v1592 = vpop.f32.mrb[0].mxu0
    %1593 = vdwg.mxu0
    %1594 = vmatprep.subr.mxu0 0.0
    %1595 = vmatpush1.msra.mxu0 %v521
    %1596 = vmatprep.subr.mxu0 0.0
    %1597 = vmatpush1.msra.mxu0 %v522
    %1598 = vmatprep.subr.mxu0 0.0
    %1599 = vmatpush1.msra.mxu0 %v523
    %1600 = vmatprep.subr.mxu0 0.0
    %1601 = vmatpush1.msra.mxu0 %v524
    %1602 = vmatprep.subr.mxu0 0.0
    %1603 = vmatpush1.msra.mxu0 %v525
    %1604 = vmatprep.subr.mxu0 0.0
    %1605 = vmatpush1.msra.mxu0 %v526
    %1606 = vmatprep.subr.mxu0 0.0
    %1607 = vmatpush1.msra.mxu0 %v527
    %1608 = vmatprep.subr.mxu0 0.0
    %1609 = vmatpush1.msra.mxu0 %v528
    %1610 = vmatprep.subr.mxu0 0.0
    %1611 = vmatpush1.msra.mxu0 %v529
    %1612 = vmatprep.subr.mxu0 0.0
    %1613 = vmatpush1.msra.mxu0 %v530
    %1614 = vmatprep.subr.mxu0 0.0
    %1615 = vmatpush1.msra.mxu0 %v531
    %1616 = vmatprep.subr.mxu0 0.0
    %1617 = vmatpush1.msra.mxu0 %v532
    %1618 = vmatprep.subr.mxu0 0.0
    %1619 = vmatpush1.msra.mxu0 %v533
    %1620 = vmatprep.subr.mxu0 0.0
    %1621 = vmatpush1.msra.mxu0 %v534
    %1622 = vmatprep.subr.mxu0 0.0
    %1623 = vmatpush1.msra.mxu0 %v535
    %1624 = vmatprep.subr.mxu0 0.0
    %1625 = vmatpush1.msra.mxu0 %v536
    %1626 = vmatprep.subr.mxu0 0.0
    %1627 = vmatpush1.msra.mxu0 %v537
    %1628 = vmatprep.subr.mxu0 0.0
    %1629 = vmatpush1.msra.mxu0 %v538
    %1630 = vmatprep.subr.mxu0 0.0
    %1631 = vmatpush1.msra.mxu0 %v539
    %1632 = vmatprep.subr.mxu0 0.0
    %1633 = vmatpush1.msra.mxu0 %v540
    %1634 = vmatprep.subr.mxu0 0.0
    %1635 = vmatpush1.msra.mxu0 %v541
    %1636 = vmatprep.subr.mxu0 0.0
    %1637 = vmatpush1.msra.mxu0 %v542
    %1638 = vmatprep.subr.mxu0 0.0
    %1639 = vmatpush1.msra.mxu0 %v543
    %1640 = vmatprep.subr.mxu0 0.0
    %1641 = vmatpush1.msra.mxu0 %v544
    %1642 = vmatprep.subr.mxu0 0.0
    %1643 = vmatpush1.msra.mxu0 %v545
    %1644 = vmatprep.subr.mxu0 0.0
    %1645 = vmatpush1.msra.mxu0 %v546
    %1646 = vmatprep.subr.mxu0 0.0
    %1647 = vmatpush1.msra.mxu0 %v547
    %1648 = vmatprep.subr.mxu0 0.0
    %1649 = vmatpush1.msra.mxu0 %v548
    %1650 = vmatprep.subr.mxu0 0.0
    %1651 = vmatpush1.msra.mxu0 %v549
    %1652 = vmatprep.subr.mxu0 0.0
    %1653 = vmatpush1.msra.mxu0 %v550
    %1654 = vmatprep.subr.mxu0 0.0
    %1655 = vmatpush1.msra.mxu0 %v551
    %1656 = vmatprep.subr.mxu0 0.0
    %1657 = vmatpush1.msra.mxu0 %v552
    %1658 = vmatprep.mubr.f32.mxu0 %v47
    %1659 = vmatmul.mubr.f32.gmra.mrb[0].mxu0 %v46
    %v1660 = vpop.f32.mrb[0].mxu0
    %v1661 = vadd.f32 %v1471, %v1660
    %v1662 = vpop.f32.mrb[0].mxu0
    %1663 = vmatprep.mubr.f32.mxu0 %v60
    %1664 = vmatmul.mubr.f32.gmra.mrb[0].mxu0 %v59
    %v1665 = vpop.f32.mrb[0].mxu0
    %v1666 = vadd.f32 %v1476, %v1665
    %v1667 = vpop.f32.mrb[0].mxu0
    %1668 = vmatprep.mubr.f32.mxu0 %v73
    %1669 = vmatmul.mubr.f32.gmra.mrb[0].mxu0 %v72
    %v1670 = vpop.f32.mrb[0].mxu0
    %v1671 = vadd.f32 %v1481, %v1670
    %v1672 = vpop.f32.mrb[0].mxu0
    %1673 = vmatprep.mubr.f32.mxu0 %v86
    %1674 = vmatmul.mubr.f32.gmra.mrb[0].mxu0 %v85
    %v1675 = vpop.f32.mrb[0].mxu0
    %v1676 = vadd.f32 %v1486, %v1675
    %v1677 = vpop.f32.mrb[0].mxu0
    %1678 = vmatprep.mubr.f32.mxu0 %v99
    %1679 = vmatmul.mubr.f32.gmra.mrb[0].mxu0 %v98
    %v1680 = vpop.f32.mrb[0].mxu0
    %v1681 = vadd.f32 %v1491, %v1680
    %v1682 = vpop.f32.mrb[0].mxu0
    %1683 = vmatprep.mubr.f32.mxu0 %v112
    %1684 = vmatmul.mubr.f32.gmra.mrb[0].mxu0 %v111
    %v1685 = vpop.f32.mrb[0].mxu0
    %v1686 = vadd.f32 %v1496, %v1685
    %v1687 = vpop.f32.mrb[0].mxu0
    %1688 = vmatprep.mubr.f32.mxu0 %v125
    %1689 = vmatmul.mubr.f32.gmra.mrb[0].mxu0 %v124
    %v1690 = vpop.f32.mrb[0].mxu0
    %v1691 = vadd.f32 %v1501, %v1690
    %v1692 = vpop.f32.mrb[0].mxu0
    %1693 = vmatprep.mubr.f32.mxu0 %v138
    %1694 = vmatmul.mubr.f32.gmra.mrb[0].mxu0 %v137
    %v1695 = vpop.f32.mrb[0].mxu0
    %v1696 = vadd.f32 %v1506, %v1695
    %v1697 = vpop.f32.mrb[0].mxu0
    %1698 = vmatprep.mubr.f32.mxu0 %v151
    %1699 = vmatmul.mubr.f32.gmra.mrb[0].mxu0 %v150
    %v1700 = vpop.f32.mrb[0].mxu0
    %v1701 = vadd.f32 %v1511, %v1700
    %v1702 = vpop.f32.mrb[0].mxu0
    %1703 = vmatprep.mubr.f32.mxu0 %v164
    %1704 = vmatmul.mubr.f32.gmra.mrb[0].mxu0 %v163
    %v1705 = vpop.f32.mrb[0].mxu0
    %v1706 = vadd.f32 %v1516, %v1705
    %v1707 = vpop.f32.mrb[0].mxu0
    %1708 = vmatprep.mubr.f32.mxu0 %v177
    %1709 = vmatmul.mubr.f32.gmra.mrb[0].mxu0 %v176
    %v1710 = vpop.f32.mrb[0].mxu0
    %v1711 = vadd.f32 %v1521, %v1710
    %v1712 = vpop.f32.mrb[0].mxu0
    %1713 = vmatprep.mubr.f32.mxu0 %v190
    %1714 = vmatmul.mubr.f32.gmra.mrb[0].mxu0 %v189
    %v1715 = vpop.f32.mrb[0].mxu0
    %v1716 = vadd.f32 %v1526, %v1715
    %v1717 = vpop.f32.mrb[0].mxu0
    %1718 = vmatprep.mubr.f32.mxu0 %v203
    %1719 = vmatmul.mubr.f32.gmra.mrb[0].mxu0 %v202
    %v1720 = vpop.f32.mrb[0].mxu0
    %v1721 = vadd.f32 %v1531, %v1720
    %v1722 = vpop.f32.mrb[0].mxu0
    %1723 = vmatprep.mubr.f32.mxu0 %v216
    %1724 = vmatmul.mubr.f32.gmra.mrb[0].mxu0 %v215
    %v1725 = vpop.f32.mrb[0].mxu0
    %v1726 = vadd.f32 %v1536, %v1725
    %v1727 = vpop.f32.mrb[0].mxu0
    %1728 = vmatprep.mubr.f32.mxu0 %v229
    %1729 = vmatmul.mubr.f32.gmra.mrb[0].mxu0 %v228
    %v1730 = vpop.f32.mrb[0].mxu0
    %v1731 = vadd.f32 %v1541, %v1730
    %v1732 = vpop.f32.mrb[0].mxu0
    %1733 = vmatprep.mubr.f32.mxu0 %v242
    %1734 = vmatmul.mubr.f32.gmra.mrb[0].mxu0 %v241
    %v1735 = vpop.f32.mrb[0].mxu0
    %v1736 = vadd.f32 %v1546, %v1735
    %v1737 = vpop.f32.mrb[0].mxu0
    %1738 = vmatprep.mubr.f32.mxu0 %v255
    %1739 = vmatmul.mubr.f32.gmra.mrb[0].mxu0 %v254
    %v1740 = vpop.f32.mrb[0].mxu0
    %v1741 = vadd.f32 %v1551, %v1740
    %v1742 = vpop.f32.mrb[0].mxu0
    %1743 = vmatprep.mubr.f32.mxu0 %v268
    %1744 = vmatmul.mubr.f32.gmra.mrb[0].mxu0 %v267
    %v1745 = vpop.f32.mrb[0].mxu0
    %v1746 = vadd.f32 %v1556, %v1745
    %v1747 = vpop.f32.mrb[0].mxu0
    %1748 = vmatprep.mubr.f32.mxu0 %v281
    %1749 = vmatmul.mubr.f32.gmra.mrb[0].mxu0 %v280
    %v1750 = vpop.f32.mrb[0].mxu0
    %v1751 = vadd.f32 %v1561, %v1750
    %v1752 = vpop.f32.mrb[0].mxu0
    %1753 = vmatprep.mubr.f32.mxu0 %v294
    %1754 = vmatmul.mubr.f32.gmra.mrb[0].mxu0 %v293
    %v1755 = vpop.f32.mrb[0].mxu0
    %v1756 = vadd.f32 %v1566, %v1755
    %v1757 = vpop.f32.mrb[0].mxu0
    %1758 = vmatprep.mubr.f32.mxu0 %v307
    %1759 = vmatmul.mubr.f32.gmra.mrb[0].mxu0 %v306
    %v1760 = vpop.f32.mrb[0].mxu0
    %v1761 = vadd.f32 %v1571, %v1760
    %v1762 = vpop.f32.mrb[0].mxu0
    %1763 = vmatprep.mubr.f32.mxu0 %v320
    %1764 = vmatmul.mubr.f32.gmra.mrb[0].mxu0 %v319
    %v1765 = vpop.f32.mrb[0].mxu0
    %v1766 = vadd.f32 %v1576, %v1765
    %v1767 = vpop.f32.mrb[0].mxu0
    %1768 = vmatprep.mubr.f32.mxu0 %v333
    %1769 = vmatmul.mubr.f32.gmra.mrb[0].mxu0 %v332
    %v1770 = vpop.f32.mrb[0].mxu0
    %v1771 = vadd.f32 %v1581, %v1770
    %v1772 = vpop.f32.mrb[0].mxu0
    %1773 = vmatprep.mubr.f32.mxu0 %v346
    %1774 = vmatmul.mubr.f32.gmra.mrb[0].mxu0 %v345
    %v1775 = vpop.f32.mrb[0].mxu0
    %v1776 = vadd.f32 %v1586, %v1775
    %v1777 = vpop.f32.mrb[0].mxu0
    %1778 = vmatprep.mubr.f32.mxu0 %v359
    %1779 = vmatmul.mubr.f32.gmra.mrb[0].mxu0 %v358
    %v1780 = vpop.f32.mrb[0].mxu0
    %v1781 = vadd.f32 %v1591, %v1780
    %v1782 = vpop.f32.mrb[0].mxu0
    %1783 = vdwg.mxu0
    %1784 = vmatprep.subr.mxu0 0.0
    %1785 = vmatpush1.msra.mxu0 %v553
    %1786 = vmatprep.subr.mxu0 0.0
    %1787 = vmatpush1.msra.mxu0 %v554
    %1788 = vmatprep.subr.mxu0 0.0
    %1789 = vmatpush1.msra.mxu0 %v555
    %1790 = vmatprep.subr.mxu0 0.0
    %1791 = vmatpush1.msra.mxu0 %v556
    %1792 = vmatprep.subr.mxu0 0.0
    %1793 = vmatpush1.msra.mxu0 %v557
    %1794 = vmatprep.subr.mxu0 0.0
    %1795 = vmatpush1.msra.mxu0 %v558
    %1796 = vmatprep.subr.mxu0 0.0
    %1797 = vmatpush1.msra.mxu0 %v559
    %1798 = vmatprep.subr.mxu0 0.0
    %1799 = vmatpush1.msra.mxu0 %v560
    %1800 = vmatprep.subr.mxu0 0.0
    %1801 = vmatpush1.msra.mxu0 0.0
    %1802 = vmatprep.subr.mxu0 0.0
    %1803 = vmatpush1.msra.mxu0 0.0
    %1804 = vmatprep.subr.mxu0 0.0
    %1805 = vmatpush1.msra.mxu0 0.0
    %1806 = vmatprep.subr.mxu0 0.0
    %1807 = vmatpush1.msra.mxu0 0.0
    %1808 = vmatprep.subr.mxu0 0.0
    %1809 = vmatpush1.msra.mxu0 0.0
    %1810 = vmatprep.subr.mxu0 0.0
    %1811 = vmatpush1.msra.mxu0 0.0
    %1812 = vmatprep.subr.mxu0 0.0
    %1813 = vmatpush1.msra.mxu0 0.0
    %1814 = vmatprep.subr.mxu0 0.0
    %1815 = vmatpush1.msra.mxu0 0.0
    %1816 = vmatprep.subr.mxu0 0.0
    %1817 = vmatpush1.msra.mxu0 0.0
    %1818 = vmatprep.subr.mxu0 0.0
    %1819 = vmatpush1.msra.mxu0 0.0
    %1820 = vmatprep.subr.mxu0 0.0
    %1821 = vmatpush1.msra.mxu0 0.0
    %1822 = vmatprep.subr.mxu0 0.0
    %1823 = vmatpush1.msra.mxu0 0.0
    %1824 = vmatprep.subr.mxu0 0.0
    %1825 = vmatpush1.msra.mxu0 0.0
    %1826 = vmatprep.subr.mxu0 0.0
    %1827 = vmatpush1.msra.mxu0 0.0
    %1828 = vmatprep.subr.mxu0 0.0
    %1829 = vmatpush1.msra.mxu0 0.0
    %1830 = vmatprep.subr.mxu0 0.0
    %1831 = vmatpush1.msra.mxu0 0.0
    %1832 = vmatprep.subr.mxu0 0.0
    %1833 = vmatpush1.msra.mxu0 0.0
    %1834 = vmatprep.subr.mxu0 0.0
    %1835 = vmatpush1.msra.mxu0 0.0
    %1836 = vmatprep.subr.mxu0 0.0
    %1837 = vmatpush1.msra.mxu0 0.0
    %1838 = vmatprep.subr.mxu0 0.0
    %1839 = vmatpush1.msra.mxu0 0.0
    %1840 = vmatprep.subr.mxu0 0.0
    %1841 = vmatpush1.msra.mxu0 0.0
    %1842 = vmatprep.subr.mxu0 0.0
    %1843 = vmatpush1.msra.mxu0 0.0
    %1844 = vmatprep.subr.mxu0 0.0
    %1845 = vmatpush1.msra.mxu0 0.0
    %1846 = vmatprep.subr.mxu0 0.0
    %1847 = vmatpush1.msra.mxu0 0.0
    %1848 = vmatprep.mubr.f32.mxu0 0.0
    %1849 = vmatmul.mubr.f32.gmra.mrb[0].mxu0 %v570
    %v1850 = vpop.f32.mrb[0].mxu0
    %v1851 = vadd.f32 %v1661, %v1850
    %v1852 = vpop.f32.mrb[0].mxu0
    %1853 = vmatprep.mubr.f32.mxu0 0.0
    %1854 = vmatmul.mubr.f32.gmra.mrb[0].mxu0 %v573
    %v1855 = vpop.f32.mrb[0].mxu0
    %v1856 = vadd.f32 %v1666, %v1855
    %v1857 = vpop.f32.mrb[0].mxu0
    %1858 = vmatprep.mubr.f32.mxu0 0.0
    %1859 = vmatmul.mubr.f32.gmra.mrb[0].mxu0 %v576
    %v1860 = vpop.f32.mrb[0].mxu0
    %v1861 = vadd.f32 %v1671, %v1860
    %v1862 = vpop.f32.mrb[0].mxu0
    %1863 = vmatprep.mubr.f32.mxu0 0.0
    %1864 = vmatmul.mubr.f32.gmra.mrb[0].mxu0 %v579
    %v1865 = vpop.f32.mrb[0].mxu0
    %v1866 = vadd.f32 %v1676, %v1865
    %v1867 = vpop.f32.mrb[0].mxu0
    %1868 = vmatprep.mubr.f32.mxu0 0.0
    %1869 = vmatmul.mubr.f32.gmra.mrb[0].mxu0 %v582
    %v1870 = vpop.f32.mrb[0].mxu0
    %v1871 = vadd.f32 %v1681, %v1870
    %v1872 = vpop.f32.mrb[0].mxu0
    %1873 = vmatprep.mubr.f32.mxu0 0.0
    %1874 = vmatmul.mubr.f32.gmra.mrb[0].mxu0 %v585
    %v1875 = vpop.f32.mrb[0].mxu0
    %v1876 = vadd.f32 %v1686, %v1875
    %v1877 = vpop.f32.mrb[0].mxu0
    %1878 = vmatprep.mubr.f32.mxu0 0.0
    %1879 = vmatmul.mubr.f32.gmra.mrb[0].mxu0 %v588
    %v1880 = vpop.f32.mrb[0].mxu0
    %v1881 = vadd.f32 %v1691, %v1880
    %v1882 = vpop.f32.mrb[0].mxu0
    %1883 = vmatprep.mubr.f32.mxu0 0.0
    %1884 = vmatmul.mubr.f32.gmra.mrb[0].mxu0 %v591
    %v1885 = vpop.f32.mrb[0].mxu0
    %v1886 = vadd.f32 %v1696, %v1885
    %v1887 = vpop.f32.mrb[0].mxu0
    %1888 = vmatprep.mubr.f32.mxu0 0.0
    %1889 = vmatmul.mubr.f32.gmra.mrb[0].mxu0 %v594
    %v1890 = vpop.f32.mrb[0].mxu0
    %v1891 = vadd.f32 %v1701, %v1890
    %v1892 = vpop.f32.mrb[0].mxu0
    %1893 = vmatprep.mubr.f32.mxu0 0.0
    %1894 = vmatmul.mubr.f32.gmra.mrb[0].mxu0 %v597
    %v1895 = vpop.f32.mrb[0].mxu0
    %v1896 = vadd.f32 %v1706, %v1895
    %v1897 = vpop.f32.mrb[0].mxu0
    %1898 = vmatprep.mubr.f32.mxu0 0.0
    %1899 = vmatmul.mubr.f32.gmra.mrb[0].mxu0 %v600
    %v1900 = vpop.f32.mrb[0].mxu0
    %v1901 = vadd.f32 %v1711, %v1900
    %v1902 = vpop.f32.mrb[0].mxu0
    %1903 = vmatprep.mubr.f32.mxu0 0.0
    %1904 = vmatmul.mubr.f32.gmra.mrb[0].mxu0 %v603
    %v1905 = vpop.f32.mrb[0].mxu0
    %v1906 = vadd.f32 %v1716, %v1905
    %v1907 = vpop.f32.mrb[0].mxu0
    %1908 = vmatprep.mubr.f32.mxu0 0.0
    %1909 = vmatmul.mubr.f32.gmra.mrb[0].mxu0 %v606
    %v1910 = vpop.f32.mrb[0].mxu0
    %v1911 = vadd.f32 %v1721, %v1910
    %v1912 = vpop.f32.mrb[0].mxu0
    %1913 = vmatprep.mubr.f32.mxu0 0.0
    %1914 = vmatmul.mubr.f32.gmra.mrb[0].mxu0 %v609
    %v1915 = vpop.f32.mrb[0].mxu0
    %v1916 = vadd.f32 %v1726, %v1915
    %v1917 = vpop.f32.mrb[0].mxu0
    %1918 = vmatprep.mubr.f32.mxu0 0.0
    %1919 = vmatmul.mubr.f32.gmra.mrb[0].mxu0 %v612
    %v1920 = vpop.f32.mrb[0].mxu0
    %v1921 = vadd.f32 %v1731, %v1920
    %v1922 = vpop.f32.mrb[0].mxu0
    %1923 = vmatprep.mubr.f32.mxu0 0.0
    %1924 = vmatmul.mubr.f32.gmra.mrb[0].mxu0 %v615
    %v1925 = vpop.f32.mrb[0].mxu0
    %v1926 = vadd.f32 %v1736, %v1925
    %v1927 = vpop.f32.mrb[0].mxu0
    %1928 = vmatprep.mubr.f32.mxu0 0.0
    %1929 = vmatmul.mubr.f32.gmra.mrb[0].mxu0 %v618
    %v1930 = vpop.f32.mrb[0].mxu0
    %v1931 = vadd.f32 %v1741, %v1930
    %v1932 = vpop.f32.mrb[0].mxu0
    %1933 = vmatprep.mubr.f32.mxu0 0.0
    %1934 = vmatmul.mubr.f32.gmra.mrb[0].mxu0 %v621
    %v1935 = vpop.f32.mrb[0].mxu0
    %v1936 = vadd.f32 %v1746, %v1935
    %v1937 = vpop.f32.mrb[0].mxu0
    %1938 = vmatprep.mubr.f32.mxu0 0.0
    %1939 = vmatmul.mubr.f32.gmra.mrb[0].mxu0 %v624
    %v1940 = vpop.f32.mrb[0].mxu0
    %v1941 = vadd.f32 %v1751, %v1940
    %v1942 = vpop.f32.mrb[0].mxu0
    %1943 = vmatprep.mubr.f32.mxu0 0.0
    %1944 = vmatmul.mubr.f32.gmra.mrb[0].mxu0 %v627
    %v1945 = vpop.f32.mrb[0].mxu0
    %v1946 = vadd.f32 %v1756, %v1945
    %v1947 = vpop.f32.mrb[0].mxu0
    %1948 = vmatprep.mubr.f32.mxu0 0.0
    %1949 = vmatmul.mubr.f32.gmra.mrb[0].mxu0 %v630
    %v1950 = vpop.f32.mrb[0].mxu0
    %v1951 = vadd.f32 %v1761, %v1950
    %v1952 = vpop.f32.mrb[0].mxu0
    %1953 = vmatprep.mubr.f32.mxu0 0.0
    %1954 = vmatmul.mubr.f32.gmra.mrb[0].mxu0 %v633
    %v1955 = vpop.f32.mrb[0].mxu0
    %v1956 = vadd.f32 %v1766, %v1955
    %v1957 = vpop.f32.mrb[0].mxu0
    %1958 = vmatprep.mubr.f32.mxu0 0.0
    %1959 = vmatmul.mubr.f32.gmra.mrb[0].mxu0 %v636
    %v1960 = vpop.f32.mrb[0].mxu0
    %v1961 = vadd.f32 %v1771, %v1960
    %v1962 = vpop.f32.mrb[0].mxu0
    %1963 = vmatprep.mubr.f32.mxu0 0.0
    %1964 = vmatmul.mubr.f32.gmra.mrb[0].mxu0 %v639
    %v1965 = vpop.f32.mrb[0].mxu0
    %v1966 = vadd.f32 %v1776, %v1965
    %v1967 = vpop.f32.mrb[0].mxu0
    %1968 = vmatprep.mubr.f32.mxu0 0.0
    %1969 = vmatmul.mubr.f32.gmra.mrb[0].mxu0 %v642
    %v1970 = vpop.f32.mrb[0].mxu0
    %v1971 = vadd.f32 %v1781, %v1970
    %v1972 = vpop.f32.mrb[0].mxu0
    %1973 = vdwg.mxu0
    %v1974 = vmax.f32 %v1851, 0.0
    %v1975 = vmax.f32 %v1856, 0.0
    %v1976 = vmax.f32 %v1861, 0.0
    %v1977 = vmax.f32 %v1866, 0.0
    %v1978 = vmax.f32 %v1871, 0.0
    %v1979 = vmax.f32 %v1876, 0.0
    %v1980 = vmax.f32 %v1881, 0.0
    %v1981 = vmax.f32 %v1886, 0.0
    %v1982 = vmax.f32 %v1891, 0.0
    %v1983 = vmax.f32 %v1896, 0.0
    %v1984 = vmax.f32 %v1901, 0.0
    %v1985 = vmax.f32 %v1906, 0.0
    %v1986 = vmax.f32 %v1911, 0.0
    %v1987 = vmax.f32 %v1916, 0.0
    %v1988 = vmax.f32 %v1921, 0.0
    %v1989 = vmax.f32 %v1926, 0.0
    %v1990 = vmax.f32 %v1931, 0.0
    %v1991 = vmax.f32 %v1936, 0.0
    %v1992 = vmax.f32 %v1941, 0.0
    %v1993 = vmax.f32 %v1946, 0.0
    %v1994 = vmax.f32 %v1951, 0.0
    %v1995 = vmax.f32 %v1956, 0.0
    %v1996 = vmax.f32 %v1961, 0.0
    %v1997 = vmax.f32 %v1966, 0.0
    %v1998 = vmax.f32 %v1971, 0.0
    %vm2005 = vcmask 1045504
    %v2006 = vrot.slane %v1974, 2
    %v2007 = vrot.slane %v1975, 2
    %v2008 = vsel %vm2005, %v2006, %v2007
    %v2009 = vrot.slane %v1976, 2
    %v2010 = vsel %vm2005, %v2007, %v2009
    %v2011 = vrot.slane %v1986, 2
    %v2012 = vrot.slane %v1987, 2
    %v2013 = vsel %vm2005, %v2011, %v2012
    %v2014 = vrot.slane %v1988, 2
    %v2015 = vsel %vm2005, %v2012, %v2014
    %v2020 = vmax.f32 %v1974, %v2008
    %v2021 = vmax.f32 %v1975, %v2010
    %v2022 = vmax.f32 %v1986, %v2013
    %v2023 = vmax.f32 %v1987, %v2015
    %vm2024 = vcmask 1043456
    %v2025 = vrot.slane %v1974, 4
    %v2026 = vrot.slane %v1975, 4
    %v2027 = vsel %vm2024, %v2025, %v2026
    %v2028 = vrot.slane %v1976, 4
    %v2029 = vsel %vm2024, %v2026, %v2028
    %v2030 = vrot.slane %v1986, 4
    %v2031 = vrot.slane %v1987, 4
    %v2032 = vsel %vm2024, %v2030, %v2031
    %v2033 = vrot.slane %v1988, 4
    %v2034 = vsel %vm2024, %v2031, %v2033
    %v2039 = vmax.f32 %v2020, %v2027
    %v2040 = vmax.f32 %v2021, %v2029
    %v2041 = vmax.f32 %v2022, %v2032
    %v2042 = vmax.f32 %v2023, %v2034
    %vm2043 = vcmask 1041408
    %v2044 = vrot.slane %v1974, 6
    %v2045 = vrot.slane %v1975, 6
    %v2046 = vsel %vm2043, %v2044, %v2045
    %v2047 = vrot.slane %v1976, 6
    %v2048 = vsel %vm2043, %v2045, %v2047
    %v2049 = vrot.slane %v1986, 6
    %v2050 = vrot.slane %v1987, 6
    %v2051 = vsel %vm2043, %v2049, %v2050
    %v2052 = vrot.slane %v1988, 6
    %v2053 = vsel %vm2043, %v2050, %v2052
    %v2058 = vmax.f32 %v2039, %v2046
    %v2059 = vmax.f32 %v2040, %v2048
    %v2060 = vmax.f32 %v2041, %v2051
    %v2061 = vmax.f32 %v2042, %v2053
    %v2062 = vmax.f32 %v2058, %v1975
    %v2063 = vmax.f32 %v2059, %v1976
    %v2064 = vmax.f32 %v2060, %v1987
    %v2065 = vmax.f32 %v2061, %v1988
    %v2070 = vrot.slane %v1977, 4
    %v2071 = vsel %vm2024, %v2028, %v2070
    %v2072 = vrot.slane %v1978, 4
    %v2073 = vsel %vm2024, %v2070, %v2072
    %v2074 = vrot.slane %v1989, 4
    %v2075 = vsel %vm2024, %v2033, %v2074
    %v2076 = vrot.slane %v1990, 4
    %v2077 = vsel %vm2024, %v2074, %v2076
    %v2082 = vmax.f32 %v2062, %v2071
    %v2083 = vmax.f32 %v2063, %v2073
    %v2084 = vmax.f32 %v2064, %v2075
    %v2085 = vmax.f32 %v2065, %v2077
    %v2086 = vrot.slane %v1977, 6
    %v2087 = vsel %vm2043, %v2047, %v2086
    %v2088 = vrot.slane %v1978, 6
    %v2089 = vsel %vm2043, %v2086, %v2088
    %v2090 = vrot.slane %v1989, 6
    %v2091 = vsel %vm2043, %v2052, %v2090
    %v2092 = vrot.slane %v1990, 6
    %v2093 = vsel %vm2043, %v2090, %v2092
    %v2098 = vmax.f32 %v2082, %v2087
    %v2099 = vmax.f32 %v2083, %v2089
    %v2100 = vmax.f32 %v2084, %v2091
    %v2101 = vmax.f32 %v2085, %v2093
    %v2102 = vmax.f32 %v2098, %v1977
    %v2103 = vmax.f32 %v2099, %v1978
    %v2104 = vmax.f32 %v2100, %v1989
    %v2105 = vmax.f32 %v2101, %v1990
    %v2108 = vrot.slane %v1977, 2
    %v2109 = vrot.slane %v1978, 2
    %v2110 = vsel %vm2005, %v2108, %v2109
    %v2111 = vrot.slane %v1979, 2
    %v2112 = vsel %vm2005, %v2109, %v2111
    %v2113 = vrot.slane %v1989, 2
    %v2114 = vrot.slane %v1990, 2
    %v2115 = vsel %vm2005, %v2113, %v2114
    %v2116 = vrot.slane %v1991, 2
    %v2117 = vsel %vm2005, %v2114, %v2116
    %v2122 = vmax.f32 %v2102, %v2110
    %v2123 = vmax.f32 %v2103, %v2112
    %v2124 = vmax.f32 %v2104, %v2115
    %v2125 = vmax.f32 %v2105, %v2117
    %v2126 = vrot.slane %v1979, 4
    %v2127 = vsel %vm2024, %v2072, %v2126
    %v2128 = vrot.slane %v1991, 4
    %v2129 = vsel %vm2024, %v2076, %v2128
    %v2132 = vmax.f32 %v2122, %v2073
    %v2133 = vmax.f32 %v2123, %v2127
    %v2134 = vmax.f32 %v2124, %v2077
    %v2135 = vmax.f32 %v2125, %v2129
    %v2136 = vmax.f32 %v2132, %v1979
    %v2137 = vmax.f32 %v2133, %v1980
    %v2138 = vmax.f32 %v2134, %v1991
    %v2139 = vmax.f32 %v2135, %v1992
    %v2144 = vrot.slane %v1980, 2
    %v2145 = vsel %vm2005, %v2111, %v2144
    %v2146 = vrot.slane %v1981, 2
    %v2147 = vsel %vm2005, %v2144, %v2146
    %v2148 = vrot.slane %v1992, 2
    %v2149 = vsel %vm2005, %v2116, %v2148
    %v2150 = vrot.slane %v1993, 2
    %v2151 = vsel %vm2005, %v2148, %v2150
    %v2156 = vmax.f32 %v2136, %v2145
    %v2157 = vmax.f32 %v2137, %v2147
    %v2158 = vmax.f32 %v2138, %v2149
    %v2159 = vmax.f32 %v2139, %v2151
    %v2160 = vrot.slane %v1980, 4
    %v2161 = vsel %vm2024, %v2126, %v2160
    %v2162 = vrot.slane %v1981, 4
    %v2163 = vsel %vm2024, %v2160, %v2162
    %v2164 = vrot.slane %v1992, 4
    %v2165 = vsel %vm2024, %v2128, %v2164
    %v2166 = vrot.slane %v1993, 4
    %v2167 = vsel %vm2024, %v2164, %v2166
    %v2172 = vmax.f32 %v2156, %v2161
    %v2173 = vmax.f32 %v2157, %v2163
    %v2174 = vmax.f32 %v2158, %v2165
    %v2175 = vmax.f32 %v2159, %v2167
    %v2176 = vrot.slane %v1979, 6
    %v2177 = vrot.slane %v1980, 6
    %v2178 = vsel %vm2043, %v2176, %v2177
    %v2179 = vrot.slane %v1981, 6
    %v2180 = vsel %vm2043, %v2177, %v2179
    %v2181 = vrot.slane %v1991, 6
    %v2182 = vrot.slane %v1992, 6
    %v2183 = vsel %vm2043, %v2181, %v2182
    %v2184 = vrot.slane %v1993, 6
    %v2185 = vsel %vm2043, %v2182, %v2184
    %v2190 = vmax.f32 %v2172, %v2178
    %v2191 = vmax.f32 %v2173, %v2180
    %v2192 = vmax.f32 %v2174, %v2183
    %v2193 = vmax.f32 %v2175, %v2185
    %v2194 = vmax.f32 %v2190, %v1980
    %v2195 = vmax.f32 %v2191, %v1981
    %v2196 = vmax.f32 %v2192, %v1992
    %v2197 = vmax.f32 %v2193, %v1993
    %v2202 = vrot.slane %v1982, 4
    %v2203 = vsel %vm2024, %v2162, %v2202
    %v2204 = vrot.slane %v1983, 4
    %v2205 = vsel %vm2024, %v2202, %v2204
    %v2206 = vrot.slane %v1994, 4
    %v2207 = vsel %vm2024, %v2166, %v2206
    %v2208 = vrot.slane %v1995, 4
    %v2209 = vsel %vm2024, %v2206, %v2208
    %v2214 = vmax.f32 %v2194, %v2203
    %v2215 = vmax.f32 %v2195, %v2205
    %v2216 = vmax.f32 %v2196, %v2207
    %v2217 = vmax.f32 %v2197, %v2209
    %v2218 = vrot.slane %v1982, 6
    %v2219 = vsel %vm2043, %v2179, %v2218
    %v2220 = vrot.slane %v1983, 6
    %v2221 = vsel %vm2043, %v2218, %v2220
    %v2222 = vrot.slane %v1994, 6
    %v2223 = vsel %vm2043, %v2184, %v2222
    %v2224 = vrot.slane %v1995, 6
    %v2225 = vsel %vm2043, %v2222, %v2224
    %v2230 = vmax.f32 %v2214, %v2219
    %v2231 = vmax.f32 %v2215, %v2221
    %v2232 = vmax.f32 %v2216, %v2223
    %v2233 = vmax.f32 %v2217, %v2225
    %v2234 = vmax.f32 %v2230, %v1982
    %v2235 = vmax.f32 %v2231, %v1983
    %v2236 = vmax.f32 %v2232, %v1994
    %v2237 = vmax.f32 %v2233, %v1995
    %v2240 = vrot.slane %v1982, 2
    %v2241 = vrot.slane %v1983, 2
    %v2242 = vsel %vm2005, %v2240, %v2241
    %v2243 = vrot.slane %v1984, 2
    %v2244 = vsel %vm2005, %v2241, %v2243
    %v2245 = vrot.slane %v1994, 2
    %v2246 = vrot.slane %v1995, 2
    %v2247 = vsel %vm2005, %v2245, %v2246
    %v2248 = vrot.slane %v1996, 2
    %v2249 = vsel %vm2005, %v2246, %v2248
    %v2254 = vmax.f32 %v2234, %v2242
    %v2255 = vmax.f32 %v2235, %v2244
    %v2256 = vmax.f32 %v2236, %v2247
    %v2257 = vmax.f32 %v2237, %v2249
    %v2258 = vrot.slane %v1984, 4
    %v2259 = vsel %vm2024, %v2204, %v2258
    %v2260 = vrot.slane %v1996, 4
    %v2261 = vsel %vm2024, %v2208, %v2260
    %v2264 = vmax.f32 %v2254, %v2205
    %v2265 = vmax.f32 %v2255, %v2259
    %v2266 = vmax.f32 %v2256, %v2209
    %v2267 = vmax.f32 %v2257, %v2261
    %v2268 = vmax.f32 %v2264, %v1984
    %v2269 = vmax.f32 %v2265, %v1985
    %v2270 = vmax.f32 %v2266, %v1996
    %v2271 = vmax.f32 %v2267, %v1997
    %v2275 = vrot.slane %v1985, 2
    %v2276 = vsel %vm2005, %v2243, %v2275
    %v2277 = vsel %vm2005, %v2275, %v2011
    %v2278 = vrot.slane %v1997, 2
    %v2279 = vsel %vm2005, %v2248, %v2278
    %v2280 = vrot.slane %v1998, 2
    %v2281 = vsel %vm2005, %v2278, %v2280
    %v2286 = vmax.f32 %v2268, %v2276
    %v2287 = vmax.f32 %v2269, %v2277
    %v2288 = vmax.f32 %v2270, %v2279
    %v2289 = vmax.f32 %v2271, %v2281
    %v2290 = vrot.slane %v1985, 4
    %v2291 = vsel %vm2024, %v2258, %v2290
    %v2292 = vsel %vm2024, %v2290, %v2030
    %v2293 = vrot.slane %v1997, 4
    %v2294 = vsel %vm2024, %v2260, %v2293
    %v2295 = vrot.slane %v1998, 4
    %v2296 = vsel %vm2024, %v2293, %v2295
    %v2301 = vmax.f32 %v2286, %v2291
    %v2302 = vmax.f32 %v2287, %v2292
    %v2303 = vmax.f32 %v2288, %v2294
    %v2304 = vmax.f32 %v2289, %v2296
    %v2305 = vrot.slane %v1984, 6
    %v2306 = vrot.slane %v1985, 6
    %v2307 = vsel %vm2043, %v2305, %v2306
    %v2308 = vsel %vm2043, %v2306, %v2049
    %v2309 = vrot.slane %v1996, 6
    %v2310 = vrot.slane %v1997, 6
    %v2311 = vsel %vm2043, %v2309, %v2310
    %v2312 = vrot.slane %v1998, 6
    %v2313 = vsel %vm2043, %v2310, %v2312
    %v2318 = vmax.f32 %v2301, %v2307
    %v2319 = vmax.f32 %v2302, %v2308
    %v2320 = vmax.f32 %v2303, %v2311
    %v2321 = vmax.f32 %v2304, %v2313
    %v2322 = vmax.f32 %v2318, %v1985
    %v2323 = vmax.f32 %v2319, %v1986
    %v2324 = vmax.f32 %v2320, %v1997
    %v2325 = vmax.f32 %v2321, %v1998
    %v2327 = vrot.slane %v2323, 2
    %2328 = vrot.lane.b32.xlu0 %v2327, 32
    %v2329 = vpop.permute.xlu0 %2328
    %v2332 = vrot.slane %v2324, 4
    %2333 = vrot.lane.b32.xlu0 %v2332, 64
    %v2334 = vpop.permute.xlu0 %2333
    %v2337 = vrot.slane %v2325, 6
    %2338 = vrot.lane.b32.xlu0 %v2337, 96
    %v2339 = vpop.permute.xlu0 %2338
    %vm2341 = vcmask 261120
    %v2342 = vsel %vm2341, %v2322, %v2329
    %v2343 = vsel %vm568, %v2342, %v2334
    %vm2344 = vcmask 785408
    %v2345 = vsel %vm2344, %v2343, %v2339
    %v2346 = vmax.f32 %v2345, 0.0
    %v2347 = vld [vmem:[%s3] sm:$0xff]
    %v2348 = vld [vmem:[%s3 + $0x8] sm:$0xff]
    %v2349 = vld [vmem:[%s3 + $0x10] sm:$0xff]
    %v2350 = vld [vmem:[%s3 + $0x18] sm:$0xff]
    %v2351 = vld [vmem:[%s3 + $0x20] sm:$0xff]
    %v2352 = vld [vmem:[%s3 + $0x28] sm:$0xff]
    %v2353 = vld [vmem:[%s3 + $0x30] sm:$0xff]
    %v2354 = vld [vmem:[%s3 + $0x38] sm:$0xff]
    %v2355 = vld [vmem:[%s3 + $0x40] sm:$0xff]
    %v2356 = vld [vmem:[%s3 + $0x48] sm:$0xff]
    %v2357 = vld [vmem:[%s3 + $0x50] sm:$0xff]
    %v2358 = vld [vmem:[%s3 + $0x58] sm:$0xff]
    %v2359 = vld [vmem:[%s3 + $0x60] sm:$0xff]
    %v2360 = vld [vmem:[%s3 + $0x68] sm:$0xff]
    %v2361 = vld [vmem:[%s3 + $0x70] sm:$0xff]
    %v2362 = vld [vmem:[%s3 + $0x78] sm:$0xff]
    %v2363 = vld [vmem:[%s3 + $0x80] sm:$0xff]
    %v2364 = vld [vmem:[%s3 + $0x88] sm:$0xff]
    %v2365 = vld [vmem:[%s3 + $0x90] sm:$0xff]
    %v2366 = vld [vmem:[%s3 + $0x98] sm:$0xff]
    %v2367 = vld [vmem:[%s3 + $0xa0] sm:$0xff]
    %v2368 = vld [vmem:[%s3 + $0xa8] sm:$0xff]
    %v2369 = vld [vmem:[%s3 + $0xb0] sm:$0xff]
    %v2370 = vld [vmem:[%s3 + $0xb8] sm:$0xff]
    %v2371 = vld [vmem:[%s3 + $0xc0] sm:$0xff]
    %v2372 = vld [vmem:[%s3 + $0xc8] sm:$0xff]
    %v2373 = vld [vmem:[%s3 + $0xd0] sm:$0xff]
    %v2374 = vld [vmem:[%s3 + $0xd8] sm:$0xff]
    %v2375 = vld [vmem:[%s3 + $0xe0] sm:$0xff]
    %v2376 = vld [vmem:[%s3 + $0xe8] sm:$0xff]
    %v2377 = vld [vmem:[%s3 + $0xf0] sm:$0xff]
    %v2378 = vld [vmem:[%s3 + $0xf8] sm:$0xff]
    %v2379 = vld [vmem:[%s3 + $0x100] sm:$0xff]
    %v2380 = vld [vmem:[%s3 + $0x108] sm:$0xff]
    %v2381 = vld [vmem:[%s3 + $0x110] sm:$0xff]
    %v2382 = vld [vmem:[%s3 + $0x118] sm:$0xff]
    %v2383 = vld [vmem:[%s3 + $0x120] sm:$0xff]
    %v2384 = vld [vmem:[%s3 + $0x128] sm:$0xff]
    %v2385 = vld [vmem:[%s3 + $0x130] sm:$0xff]
    %v2386 = vld [vmem:[%s3 + $0x138] sm:$0xff]
    %v2387 = vld [vmem:[%s3 + $0x140] sm:$0xff]
    %v2388 = vld [vmem:[%s3 + $0x148] sm:$0xff]
    %v2389 = vld [vmem:[%s3 + $0x150] sm:$0xff]
    %v2390 = vld [vmem:[%s3 + $0x158] sm:$0xff]
    %v2391 = vld [vmem:[%s3 + $0x160] sm:$0xff]
    %v2392 = vld [vmem:[%s3 + $0x168] sm:$0xff]
    %v2393 = vld [vmem:[%s3 + $0x170] sm:$0xff]
    %v2394 = vld [vmem:[%s3 + $0x178] sm:$0xff]
    %v2395 = vld [vmem:[%s3 + $0x180] sm:$0xff]
    %v2396 = vld [vmem:[%s3 + $0x188] sm:$0xff]
    %v2397 = vld [vmem:[%s3 + $0x190] sm:$0xff]
    %v2398 = vld [vmem:[%s3 + $0x198] sm:$0xff]
    %v2399 = vld [vmem:[%s3 + $0x1a0] sm:$0xff]
    %v2400 = vld [vmem:[%s3 + $0x1a8] sm:$0xff]
    %v2401 = vld [vmem:[%s3 + $0x1b0] sm:$0xff]
    %v2402 = vld [vmem:[%s3 + $0x1b8] sm:$0xff]
    %v2403 = vld [vmem:[%s3 + $0x1c0] sm:$0xff]
    %v2404 = vld [vmem:[%s3 + $0x1c8] sm:$0xff]
    %v2405 = vld [vmem:[%s3 + $0x1d0] sm:$0xff]
    %v2406 = vld [vmem:[%s3 + $0x1d8] sm:$0xff]
    %v2407 = vld [vmem:[%s3 + $0x1e0] sm:$0xff]
    %v2408 = vld [vmem:[%s3 + $0x1e8] sm:$0xff]
    %v2409 = vld [vmem:[%s3 + $0x1f0] sm:$0xff]
    %v2410 = vld [vmem:[%s3 + $0x1f8] sm:$0xff]
    %v2411 = vld [vmem:[%s4] sm:$0xf]
    %v2413 = vlaneseq
    %v2414 = vshrl.u32 %v2413, 7
    %v2415 = vsub.s32 0, %v2414
    %v2416 = vrot.slane %v2411, %v2415
    %v2417 = vlaneseq
    %v2418 = vshrl.u32 %v2417, 7
    %v2419 = vsub.s32 1, %v2418
    %v2420 = vrot.slane %v2411, %v2419
    %v2421 = vlaneseq
    %v2422 = vshrl.u32 %v2421, 7
    %v2423 = vsub.s32 2, %v2422
    %v2424 = vrot.slane %v2411, %v2423
    %v2425 = vlaneseq
    %v2426 = vshrl.u32 %v2425, 7
    %v2427 = vsub.s32 3, %v2426
    %v2428 = vrot.slane %v2411, %v2427
    %2433 = vmatprep.subr.mxu0 %v2348
    %2434 = vmatpush1.msra.mxu0 %v2347
    %2435 = vmatprep.subr.mxu0 %v2352
    %2436 = vmatpush1.msra.mxu0 %v2351
    %2437 = vmatprep.subr.mxu0 %v2356
    %2438 = vmatpush1.msra.mxu0 %v2355
    %2439 = vmatprep.subr.mxu0 %v2360
    %2440 = vmatpush1.msra.mxu0 %v2359
    %2441 = vmatprep.subr.mxu0 %v2364
    %2442 = vmatpush1.msra.mxu0 %v2363
    %2443 = vmatprep.subr.mxu0 %v2368
    %2444 = vmatpush1.msra.mxu0 %v2367
    %2445 = vmatprep.subr.mxu0 %v2372
    %2446 = vmatpush1.msra.mxu0 %v2371
    %2447 = vmatprep.subr.mxu0 %v2376
    %2448 = vmatpush1.msra.mxu0 %v2375
    %2449 = vmatprep.subr.mxu0 %v2380
    %2450 = vmatpush1.msra.mxu0 %v2379
    %2451 = vmatprep.subr.mxu0 %v2384
    %2452 = vmatpush1.msra.mxu0 %v2383
    %2453 = vmatprep.subr.mxu0 %v2388
    %2454 = vmatpush1.msra.mxu0 %v2387
    %2455 = vmatprep.subr.mxu0 %v2392
    %2456 = vmatpush1.msra.mxu0 %v2391
    %2457 = vmatprep.subr.mxu0 %v2396
    %2458 = vmatpush1.msra.mxu0 %v2395
    %2459 = vmatprep.subr.mxu0 %v2400
    %2460 = vmatpush1.msra.mxu0 %v2399
    %2461 = vmatprep.subr.mxu0 %v2404
    %2462 = vmatpush1.msra.mxu0 %v2403
    %2463 = vmatprep.subr.mxu0 %v2408
    %2464 = vmatpush1.msra.mxu0 %v2407
    %2465 = vmatprep.subr.mxu0 0.0
    %2466 = vmatpush1.msra.mxu0 0.0
    %2467 = vmatprep.subr.mxu0 0.0
    %2468 = vmatpush1.msra.mxu0 0.0
    %2469 = vmatprep.subr.mxu0 0.0
    %2470 = vmatpush1.msra.mxu0 0.0
    %2471 = vmatprep.subr.mxu0 0.0
    %2472 = vmatpush1.msra.mxu0 0.0
    %2473 = vmatprep.subr.mxu0 0.0
    %2474 = vmatpush1.msra.mxu0 0.0
    %2475 = vmatprep.subr.mxu0 0.0
    %2476 = vmatpush1.msra.mxu0 0.0
    %2477 = vmatprep.subr.mxu0 0.0
    %2478 = vmatpush1.msra.mxu0 0.0
    %2479 = vmatprep.subr.mxu0 0.0
    %2480 = vmatpush1.msra.mxu0 0.0
    %2481 = vmatprep.subr.mxu0 0.0
    %2482 = vmatpush1.msra.mxu0 0.0
    %2483 = vmatprep.subr.mxu0 0.0
    %2484 = vmatpush1.msra.mxu0 0.0
    %2485 = vmatprep.subr.mxu0 0.0
    %2486 = vmatpush1.msra.mxu0 0.0
    %2487 = vmatprep.subr.mxu0 0.0
    %2488 = vmatpush1.msra.mxu0 0.0
    %2489 = vmatprep.subr.mxu0 0.0
    %2490 = vmatpush1.msra.mxu0 0.0
    %2491 = vmatprep.subr.mxu0 0.0
    %2492 = vmatpush1.msra.mxu0 0.0
    %2493 = vmatprep.subr.mxu0 0.0
    %2494 = vmatpush1.msra.mxu0 0.0
    %2495 = vmatprep.subr.mxu0 0.0
    %2496 = vmatpush1.msra.mxu0 0.0
    %2497 = vmatprep.mubr.f32.mxu0 0.0
    %2498 = vmatmul.mubr.f32.gmra.mrb[0].mxu0 %v2346
    %v2499 = vpop.f32.mrb[0].mxu0
    %v2500 = vadd.f32 %v2416, %v2499
    %v2501 = vpop.f32.mrb[0].mxu0
    %v2502 = vadd.f32 %v2420, %v2501
    %2503 = vdwg.mxu0
    %2504 = vmatprep.subr.mxu0 %v2350
    %2505 = vmatpush1.msra.mxu0 %v2349
    %2506 = vmatprep.subr.mxu0 %v2354
    %2507 = vmatpush1.msra.mxu0 %v2353
    %2508 = vmatprep.subr.mxu0 %v2358
    %2509 = vmatpush1.msra.mxu0 %v2357
    %2510 = vmatprep.subr.mxu0 %v2362
    %2511 = vmatpush1.msra.mxu0 %v2361
    %2512 = vmatprep.subr.mxu0 %v2366
    %2513 = vmatpush1.msra.mxu0 %v2365
    %2514 = vmatprep.subr.mxu0 %v2370
    %2515 = vmatpush1.msra.mxu0 %v2369
    %2516 = vmatprep.subr.mxu0 %v2374
    %2517 = vmatpush1.msra.mxu0 %v2373
    %2518 = vmatprep.subr.mxu0 %v2378
    %2519 = vmatpush1.msra.mxu0 %v2377
    %2520 = vmatprep.subr.mxu0 %v2382
    %2521 = vmatpush1.msra.mxu0 %v2381
    %2522 = vmatprep.subr.mxu0 %v2386
    %2523 = vmatpush1.msra.mxu0 %v2385
    %2524 = vmatprep.subr.mxu0 %v2390
    %2525 = vmatpush1.msra.mxu0 %v2389
    %2526 = vmatprep.subr.mxu0 %v2394
    %2527 = vmatpush1.msra.mxu0 %v2393
    %2528 = vmatprep.subr.mxu0 %v2398
    %2529 = vmatpush1.msra.mxu0 %v2397
    %2530 = vmatprep.subr.mxu0 %v2402
    %2531 = vmatpush1.msra.mxu0 %v2401
    %2532 = vmatprep.subr.mxu0 %v2406
    %2533 = vmatpush1.msra.mxu0 %v2405
    %2534 = vmatprep.subr.mxu0 %v2410
    %2535 = vmatpush1.msra.mxu0 %v2409
    %2536 = vmatprep.subr.mxu0 0.0
    %2537 = vmatpush1.msra.mxu0 0.0
    %2538 = vmatprep.subr.mxu0 0.0
    %2539 = vmatpush1.msra.mxu0 0.0
    %2540 = vmatprep.subr.mxu0 0.0
    %2541 = vmatpush1.msra.mxu0 0.0
    %2542 = vmatprep.subr.mxu0 0.0
    %2543 = vmatpush1.msra.mxu0 0.0
    %2544 = vmatprep.subr.mxu0 0.0
    %2545 = vmatpush1.msra.mxu0 0.0
    %2546 = vmatprep.subr.mxu0 0.0
    %2547 = vmatpush1.msra.mxu0 0.0
    %2548 = vmatprep.subr.mxu0 0.0
    %2549 = vmatpush1.msra.mxu0 0.0
    %2550 = vmatprep.subr.mxu0 0.0
    %2551 = vmatpush1.msra.mxu0 0.0
    %2552 = vmatprep.subr.mxu0 0.0
    %2553 = vmatpush1.msra.mxu0 0.0
    %2554 = vmatprep.subr.mxu0 0.0
    %2555 = vmatpush1.msra.mxu0 0.0
    %2556 = vmatprep.subr.mxu0 0.0
    %2557 = vmatpush1.msra.mxu0 0.0
    %2558 = vmatprep.subr.mxu0 0.0
    %2559 = vmatpush1.msra.mxu0 0.0
    %2560 = vmatprep.subr.mxu0 0.0
    %2561 = vmatpush1.msra.mxu0 0.0
    %2562 = vmatprep.subr.mxu0 0.0
    %2563 = vmatpush1.msra.mxu0 0.0
    %2564 = vmatprep.subr.mxu0 0.0
    %2565 = vmatpush1.msra.mxu0 0.0
    %2566 = vmatprep.subr.mxu0 0.0
    %2567 = vmatpush1.msra.mxu0 0.0
    %2568 = vmatprep.mubr.f32.mxu0 0.0
    %2569 = vmatmul.mubr.f32.gmra.mrb[0].mxu0 %v2346
    %v2570 = vpop.f32.mrb[0].mxu0
    %v2571 = vadd.f32 %v2424, %v2570
    %v2572 = vpop.f32.mrb[0].mxu0
    %v2573 = vadd.f32 %v2428, %v2572
    %2574 = vdwg.mxu0
    %v2575 = vmax.f32 %v2500, 0.0
    %v2576 = vmax.f32 %v2502, 0.0
    %v2577 = vmax.f32 %v2571, 0.0
    %v2578 = vmax.f32 %v2573, 0.0
    %v2579 = vld [vmem:[%s5] sm:$0xff]
    %v2580 = vld [vmem:[%s5 + $0x8] sm:$0xff]
    %v2581 = vld [vmem:[%s5 + $0x10] sm:$0xff]
    %v2582 = vld [vmem:[%s5 + $0x18] sm:$0xff]
    %v2583 = vld [vmem:[%s5 + $0x20] sm:$0xff]
    %v2584 = vld [vmem:[%s5 + $0x28] sm:$0xff]
    %v2585 = vld [vmem:[%s5 + $0x30] sm:$0xff]
    %v2586 = vld [vmem:[%s5 + $0x38] sm:$0xff]
    %v2587 = vld [vmem:[%s5 + $0x40] sm:$0xff]
    %v2588 = vld [vmem:[%s5 + $0x48] sm:$0xff]
    %v2589 = vld [vmem:[%s5 + $0x50] sm:$0xff]
    %v2590 = vld [vmem:[%s5 + $0x58] sm:$0xff]
    %v2591 = vld [vmem:[%s5 + $0x60] sm:$0xff]
    %v2592 = vld [vmem:[%s5 + $0x68] sm:$0xff]
    %v2593 = vld [vmem:[%s5 + $0x70] sm:$0xff]
    %v2594 = vld [vmem:[%s5 + $0x78] sm:$0xff]
    %v2595 = vld [vmem:[%s5 + $0x80] sm:$0xff]
    %v2596 = vld [vmem:[%s5 + $0x88] sm:$0xff]
    %v2597 = vld [vmem:[%s5 + $0x90] sm:$0xff]
    %v2598 = vld [vmem:[%s5 + $0x98] sm:$0xff]
    %v2599 = vld [vmem:[%s5 + $0xa0] sm:$0xff]
    %v2600 = vld [vmem:[%s5 + $0xa8] sm:$0xff]
    %v2601 = vld [vmem:[%s5 + $0xb0] sm:$0xff]
    %v2602 = vld [vmem:[%s5 + $0xb8] sm:$0xff]
    %v2603 = vld [vmem:[%s5 + $0xc0] sm:$0xff]
    %v2604 = vld [vmem:[%s5 + $0xc8] sm:$0xff]
    %v2605 = vld [vmem:[%s5 + $0xd0] sm:$0xff]
    %v2606 = vld [vmem:[%s5 + $0xd8] sm:$0xff]
    %v2607 = vld [vmem:[%s5 + $0xe0] sm:$0xff]
    %v2608 = vld [vmem:[%s5 + $0xe8] sm:$0xff]
    %v2609 = vld [vmem:[%s5 + $0xf0] sm:$0xff]
    %v2610 = vld [vmem:[%s5 + $0xf8] sm:$0xff]
    %v2611 = vld [vmem:[%s5 + $0x100] sm:$0xff]
    %v2612 = vld [vmem:[%s5 + $0x108] sm:$0xff]
    %v2613 = vld [vmem:[%s5 + $0x110] sm:$0xff]
    %v2614 = vld [vmem:[%s5 + $0x118] sm:$0xff]
    %v2615 = vld [vmem:[%s5 + $0x120] sm:$0xff]
    %v2616 = vld [vmem:[%s5 + $0x128] sm:$0xff]
    %v2617 = vld [vmem:[%s5 + $0x130] sm:$0xff]
    %v2618 = vld [vmem:[%s5 + $0x138] sm:$0xff]
    %v2619 = vld [vmem:[%s5 + $0x140] sm:$0xff]
    %v2620 = vld [vmem:[%s5 + $0x148] sm:$0xff]
    %v2621 = vld [vmem:[%s5 + $0x150] sm:$0xff]
    %v2622 = vld [vmem:[%s5 + $0x158] sm:$0xff]
    %v2623 = vld [vmem:[%s5 + $0x160] sm:$0xff]
    %v2624 = vld [vmem:[%s5 + $0x168] sm:$0xff]
    %v2625 = vld [vmem:[%s5 + $0x170] sm:$0xff]
    %v2626 = vld [vmem:[%s5 + $0x178] sm:$0xff]
    %v2627 = vld [vmem:[%s5 + $0x180] sm:$0xff]
    %v2628 = vld [vmem:[%s5 + $0x188] sm:$0xff]
    %v2629 = vld [vmem:[%s5 + $0x190] sm:$0xff]
    %v2630 = vld [vmem:[%s5 + $0x198] sm:$0xff]
    %v2631 = vld [vmem:[%s5 + $0x1a0] sm:$0xff]
    %v2632 = vld [vmem:[%s5 + $0x1a8] sm:$0xff]
    %v2633 = vld [vmem:[%s5 + $0x1b0] sm:$0xff]
    %v2634 = vld [vmem:[%s5 + $0x1b8] sm:$0xff]
    %v2635 = vld [vmem:[%s5 + $0x1c0] sm:$0xff]
    %v2636 = vld [vmem:[%s5 + $0x1c8] sm:$0xff]
    %v2637 = vld [vmem:[%s5 + $0x1d0] sm:$0xff]
    %v2638 = vld [vmem:[%s5 + $0x1d8] sm:$0xff]
    %v2639 = vld [vmem:[%s5 + $0x1e0] sm:$0xff]
    %v2640 = vld [vmem:[%s5 + $0x1e8] sm:$0xff]
    %v2641 = vld [vmem:[%s5 + $0x1f0] sm:$0xf]
    %v2642 = vld [vmem:[%s6] sm:$0x1]
    %v2644 = vlaneseq
    %v2645 = vshrl.u32 %v2644, 7
    %v2646 = vsub.s32 0, %v2645
    %v2647 = vrot.slane %v2642, %v2646
    %vm2649 = vcmask 949248
    %v2651 = vsel %vm2649, %v2578, 0
    %v2654 = vsel %vm2024, %v2641, 0
    %2656 = vmatprep.subr.mxu0 0.0
    %2657 = vmatpush1.msra.mxu0 %v2579
    %2658 = vmatprep.subr.mxu0 0.0
    %2659 = vmatpush1.msra.mxu0 %v2580
    %2660 = vmatprep.subr.mxu0 0.0
    %2661 = vmatpush1.msra.mxu0 %v2581
    %2662 = vmatprep.subr.mxu0 0.0
    %2663 = vmatpush1.msra.mxu0 %v2582
    %2664 = vmatprep.subr.mxu0 0.0
    %2665 = vmatpush1.msra.mxu0 %v2583
    %2666 = vmatprep.subr.mxu0 0.0
    %2667 = vmatpush1.msra.mxu0 %v2584
    %2668 = vmatprep.subr.mxu0 0.0
    %2669 = vmatpush1.msra.mxu0 %v2585
    %2670 = vmatprep.subr.mxu0 0.0
    %2671 = vmatpush1.msra.mxu0 %v2586
    %2672 = vmatprep.subr.mxu0 0.0
    %2673 = vmatpush1.msra.mxu0 %v2587
    %2674 = vmatprep.subr.mxu0 0.0
    %2675 = vmatpush1.msra.mxu0 %v2588
    %2676 = vmatprep.subr.mxu0 0.0
    %2677 = vmatpush1.msra.mxu0 %v2589
    %2678 = vmatprep.subr.mxu0 0.0
    %2679 = vmatpush1.msra.mxu0 %v2590
    %2680 = vmatprep.subr.mxu0 0.0
    %2681 = vmatpush1.msra.mxu0 %v2591
    %2682 = vmatprep.subr.mxu0 0.0
    %2683 = vmatpush1.msra.mxu0 %v2592
    %2684 = vmatprep.subr.mxu0 0.0
    %2685 = vmatpush1.msra.mxu0 %v2593
    %2686 = vmatprep.subr.mxu0 0.0
    %2687 = vmatpush1.msra.mxu0 %v2594
    %2688 = vmatprep.subr.mxu0 0.0
    %2689 = vmatpush1.msra.mxu0 %v2595
    %2690 = vmatprep.subr.mxu0 0.0
    %2691 = vmatpush1.msra.mxu0 %v2596
    %2692 = vmatprep.subr.mxu0 0.0
    %2693 = vmatpush1.msra.mxu0 %v2597
    %2694 = vmatprep.subr.mxu0 0.0
    %2695 = vmatpush1.msra.mxu0 %v2598
    %2696 = vmatprep.subr.mxu0 0.0
    %2697 = vmatpush1.msra.mxu0 %v2599
    %2698 = vmatprep.subr.mxu0 0.0
    %2699 = vmatpush1.msra.mxu0 %v2600
    %2700 = vmatprep.subr.mxu0 0.0
    %2701 = vmatpush1.msra.mxu0 %v2601
    %2702 = vmatprep.subr.mxu0 0.0
    %2703 = vmatpush1.msra.mxu0 %v2602
    %2704 = vmatprep.subr.mxu0 0.0
    %2705 = vmatpush1.msra.mxu0 %v2603
    %2706 = vmatprep.subr.mxu0 0.0
    %2707 = vmatpush1.msra.mxu0 %v2604
    %2708 = vmatprep.subr.mxu0 0.0
    %2709 = vmatpush1.msra.mxu0 %v2605
    %2710 = vmatprep.subr.mxu0 0.0
    %2711 = vmatpush1.msra.mxu0 %v2606
    %2712 = vmatprep.subr.mxu0 0.0
    %2713 = vmatpush1.msra.mxu0 %v2607
    %2714 = vmatprep.subr.mxu0 0.0
    %2715 = vmatpush1.msra.mxu0 %v2608
    %2716 = vmatprep.subr.mxu0 0.0
    %2717 = vmatpush1.msra.mxu0 %v2609
    %2718 = vmatprep.subr.mxu0 0.0
    %2719 = vmatpush1.msra.mxu0 %v2610
    %2720 = vmatprep.mubr.f32.mxu0 %v2576
    %2721 = vmatmul.mubr.f32.gmra.mrb[0].mxu0 %v2575
    %v2722 = vpop.f32.mrb[0].mxu0
    %v2723 = vadd.f32 %v2647, %v2722
    %v2724 = vpop.f32.mrb[0].mxu0
    %2725 = vdwg.mxu0
    %2726 = vmatprep.subr.mxu0 0.0
    %2727 = vmatpush1.msra.mxu0 %v2611
    %2728 = vmatprep.subr.mxu0 0.0
    %2729 = vmatpush1.msra.mxu0 %v2612
    %2730 = vmatprep.subr.mxu0 0.0
    %2731 = vmatpush1.msra.mxu0 %v2613
    %2732 = vmatprep.subr.mxu0 0.0
    %2733 = vmatpush1.msra.mxu0 %v2614
    %2734 = vmatprep.subr.mxu0 0.0
    %2735 = vmatpush1.msra.mxu0 %v2615
    %2736 = vmatprep.subr.mxu0 0.0
    %2737 = vmatpush1.msra.mxu0 %v2616
    %2738 = vmatprep.subr.mxu0 0.0
    %2739 = vmatpush1.msra.mxu0 %v2617
    %2740 = vmatprep.subr.mxu0 0.0
    %2741 = vmatpush1.msra.mxu0 %v2618
    %2742 = vmatprep.subr.mxu0 0.0
    %2743 = vmatpush1.msra.mxu0 %v2619
    %2744 = vmatprep.subr.mxu0 0.0
    %2745 = vmatpush1.msra.mxu0 %v2620
    %2746 = vmatprep.subr.mxu0 0.0
    %2747 = vmatpush1.msra.mxu0 %v2621
    %2748 = vmatprep.subr.mxu0 0.0
    %2749 = vmatpush1.msra.mxu0 %v2622
    %2750 = vmatprep.subr.mxu0 0.0
    %2751 = vmatpush1.msra.mxu0 %v2623
    %2752 = vmatprep.subr.mxu0 0.0
    %2753 = vmatpush1.msra.mxu0 %v2624
    %2754 = vmatprep.subr.mxu0 0.0
    %2755 = vmatpush1.msra.mxu0 %v2625
    %2756 = vmatprep.subr.mxu0 0.0
    %2757 = vmatpush1.msra.mxu0 %v2626
    %2758 = vmatprep.subr.mxu0 0.0
    %2759 = vmatpush1.msra.mxu0 %v2627
    %2760 = vmatprep.subr.mxu0 0.0
    %2761 = vmatpush1.msra.mxu0 %v2628
    %2762 = vmatprep.subr.mxu0 0.0
    %2763 = vmatpush1.msra.mxu0 %v2629
    %2764 = vmatprep.subr.mxu0 0.0
    %2765 = vmatpush1.msra.mxu0 %v2630
    %2766 = vmatprep.subr.mxu0 0.0
    %2767 = vmatpush1.msra.mxu0 %v2631
    %2768 = vmatprep.subr.mxu0 0.0
    %2769 = vmatpush1.msra.mxu0 %v2632
    %2770 = vmatprep.subr.mxu0 0.0
    %2771 = vmatpush1.msra.mxu0 %v2633
    %2772 = vmatprep.subr.mxu0 0.0
    %2773 = vmatpush1.msra.mxu0 %v2634
    %2774 = vmatprep.subr.mxu0 0.0
    %2775 = vmatpush1.msra.mxu0 %v2635
    %2776 = vmatprep.subr.mxu0 0.0
    %2777 = vmatpush1.msra.mxu0 %v2636
    %2778 = vmatprep.subr.mxu0 0.0
    %2779 = vmatpush1.msra.mxu0 %v2637
    %2780 = vmatprep.subr.mxu0 0.0
    %2781 = vmatpush1.msra.mxu0 %v2638
    %2782 = vmatprep.subr.mxu0 0.0
    %2783 = vmatpush1.msra.mxu0 %v2639
    %2784 = vmatprep.subr.mxu0 0.0
    %2785 = vmatpush1.msra.mxu0 %v2640
    %2786 = vmatprep.subr.mxu0 0.0
    %2787 = vmatpush1.msra.mxu0 %v2654
    %2788 = vmatprep.subr.mxu0 0.0
    %2789 = vmatpush1.msra.mxu0 0.0
    %2790 = vmatprep.mubr.f32.mxu0 %v2651
    %2791 = vmatmul.mubr.f32.gmra.mrb[0].mxu0 %v2577
    %v2792 = vpop.f32.mrb[0].mxu0
    %v2793 = vadd.f32 %v2723, %v2792
    %v2794 = vpop.f32.mrb[0].mxu0
    %2795 = vdwg.mxu0
    %v2796 = vmax.f32 %v2793, 0.0
    %v2797 = vld [vmem:[%s7] sm:$0xff]
    %v2798 = vld [vmem:[%s7 + $0x8] sm:$0xff]
    %v2799 = vld [vmem:[%s7 + $0x10] sm:$0xff]
    %v2800 = vld [vmem:[%s7 + $0x18] sm:$0x3f]
    %v2801 = vld [vmem:[%s8] sm:$0x1]
    %v2803 = vlaneseq
    %v2804 = vshrl.u32 %v2803, 7
    %v2805 = vsub.s32 0, %v2804
    %v2806 = vrot.slane %v2801, %v2805
    %vm2808 = vcmask 244736
    %v2810 = vsel %vm2808, %v2796, 0
    %v2813 = vsel %vm2005, %v2800, 0
    %2815 = vmatprep.subr.mxu0 0.0
    %2816 = vmatpush1.msra.mxu0 %v2797
    %2817 = vmatprep.subr.mxu0 0.0
    %2818 = vmatpush1.msra.mxu0 %v2798
    %2819 = vmatprep.subr.mxu0 0.0
    %2820 = vmatpush1.msra.mxu0 %v2799
    %2821 = vmatprep.subr.mxu0 0.0
    %2822 = vmatpush1.msra.mxu0 %v2813
    %2823 = vmatprep.subr.mxu0 0.0
    %2824 = vmatpush1.msra.mxu0 0.0
    %2825 = vmatprep.subr.mxu0 0.0
    %2826 = vmatpush1.msra.mxu0 0.0
    %2827 = vmatprep.subr.mxu0 0.0
    %2828 = vmatpush1.msra.mxu0 0.0
    %2829 = vmatprep.subr.mxu0 0.0
    %2830 = vmatpush1.msra.mxu0 0.0
    %2831 = vmatprep.subr.mxu0 0.0
    %2832 = vmatpush1.msra.mxu0 0.0
    %2833 = vmatprep.subr.mxu0 0.0
    %2834 = vmatpush1.msra.mxu0 0.0
    %2835 = vmatprep.subr.mxu0 0.0
    %2836 = vmatpush1.msra.mxu0 0.0
    %2837 = vmatprep.subr.mxu0 0.0
    %2838 = vmatpush1.msra.mxu0 0.0
    %2839 = vmatprep.subr.mxu0 0.0
    %2840 = vmatpush1.msra.mxu0 0.0
    %2841 = vmatprep.subr.mxu0 0.0
    %2842 = vmatpush1.msra.mxu0 0.0
    %2843 = vmatprep.subr.mxu0 0.0
    %2844 = vmatpush1.msra.mxu0 0.0
    %2845 = vmatprep.subr.mxu0 0.0
    %2846 = vmatpush1.msra.mxu0 0.0
    %2847 = vmatprep.subr.mxu0 0.0
    %2848 = vmatpush1.msra.mxu0 0.0
    %2849 = vmatprep.subr.mxu0 0.0
    %2850 = vmatpush1.msra.mxu0 0.0
    %2851 = vmatprep.subr.mxu0 0.0
    %2852 = vmatpush1.msra.mxu0 0.0
    %2853 = vmatprep.subr.mxu0 0.0
    %2854 = vmatpush1.msra.mxu0 0.0
    %2855 = vmatprep.subr.mxu0 0.0
    %2856 = vmatpush1.msra.mxu0 0.0
    %2857 = vmatprep.subr.mxu0 0.0
    %2858 = vmatpush1.msra.mxu0 0.0
    %2859 = vmatprep.subr.mxu0 0.0
    %2860 = vmatpush1.msra.mxu0 0.0
    %2861 = vmatprep.subr.mxu0 0.0
    %2862 = vmatpush1.msra.mxu0 0.0
    %2863 = vmatprep.subr.mxu0 0.0
    %2864 = vmatpush1.msra.mxu0 0.0
    %2865 = vmatprep.subr.mxu0 0.0
    %2866 = vmatpush1.msra.mxu0 0.0
    %2867 = vmatprep.subr.mxu0 0.0
    %2868 = vmatpush1.msra.mxu0 0.0
    %2869 = vmatprep.subr.mxu0 0.0
    %2870 = vmatpush1.msra.mxu0 0.0
    %2871 = vmatprep.subr.mxu0 0.0
    %2872 = vmatpush1.msra.mxu0 0.0
    %2873 = vmatprep.subr.mxu0 0.0
    %2874 = vmatpush1.msra.mxu0 0.0
    %2875 = vmatprep.subr.mxu0 0.0
    %2876 = vmatpush1.msra.mxu0 0.0
    %2877 = vmatprep.subr.mxu0 0.0
    %2878 = vmatpush1.msra.mxu0 0.0
    %2879 = vmatprep.mubr.f32.mxu0 0.0
    %2880 = vmatmul.mubr.f32.gmra.mrb[0].mxu0 %v2810
    %v2881 = vpop.f32.mrb[0].mxu0
    %v2882 = vadd.f32 %v2806, %v2881
    %v2883 = vpop.f32.mrb[0].mxu0
    %2884 = vdwg.mxu0
    %vm2885 = vcmask 41984
    %2886 = vst.msk [vmem:[#allocation2] sm:$0x3] %vm2885, %v2882
    %vm2887 = vcmask 238592
    %2888 = vst.msk [vmem:[#allocation4] sm:$0x3] %vm2887, %v2796
    // Predicated region
    $region38: #{cnn_forward.3} parent=1 // pred_check
      _
    $region39: #{cnn_forward.3} parent=1 // pred_check_branch
      %2890 = sbr.rel (0) target = $region41
    $region40: #{cnn_forward.3} parent=1 // pred_region
      %s2892 = ssub.s32 32, 32
      %2893 = vsyncadd [#allocation3], %s2892
      %s2895 = sshll.u32 [#allocation2], 4
      %s2896 = int_to_ptr.vmem [resolvable:$true] %s2895
      %2898 = dma.vmem_to_hbm [thread:$0]  %s2896, 32, %s9, [#allocation3]
    $region41: #{cnn_forward.3} parent=1 // pred_fallthru
      _
    // Predicated region
    $region42: #{cnn_forward.3} parent=1 // pred_check
      _
    $region43: #{cnn_forward.3} parent=1 // pred_check_branch
      %2900 = sbr.rel (0) target = $region45
    $region44: #{cnn_forward.3} parent=1 // pred_region
      %s2902 = ssub.s32 32, 32
      %2903 = vsyncadd [#allocation5], %s2902
      %s2905 = sshll.u32 [#allocation4], 4
      %s2906 = int_to_ptr.vmem [resolvable:$true] %s2905
      %2908 = dma.vmem_to_hbm [thread:$0]  %s2906, 32, %s10, [#allocation5]
    $region45: #{cnn_forward.3} parent=1 // pred_fallthru
      _
    // Predicated region
    $region46: #{cnn_forward.3} parent=1 // pred_check
      _
    $region47: #{cnn_forward.3} parent=1 // pred_check_branch
      %2910 = sbr.rel (0) target = $region49
    $region48: #{cnn_forward.3} parent=1 // pred_region
      %2911 = dma.done [#allocation3], 32
    $region49: #{cnn_forward.3} parent=1 // pred_fallthru
      _
    // Predicated region
    $region50: #{cnn_forward.3} parent=1 // pred_check
      _
    $region51: #{cnn_forward.3} parent=1 // pred_check_branch
      %2913 = sbr.rel (0) target = $region53
    $region52: #{cnn_forward.3} parent=1 // pred_region
      %2914 = dma.done [#allocation5], 32
    $region53: #{cnn_forward.3} parent=1 // pred_fallthru
      _
    %2915 = vsyncpa [#allocation3], 1
    %2916 = vsyncpa [#allocation5], 1

</llo_original>
